<compile_context>
chip_gen: v7x
topology: tpu7x:2x2x1
jax: 0.10.0
libtpu: 0.0.40
codegen_flags: <defaults>
</compile_context>

<pallas_src>
import math
import jax
import jax.numpy as jnp
from jax import lax
from jax.experimental import pallas as pl
from jax.experimental.pallas import tpu as pltpu

D_MODEL = 32          # in_channels
NHEAD = 8
HEAD_DIM = D_MODEL // NHEAD
DIM_FF = 2048         # PyTorch default dim_feedforward
LN_EPS = 1e-5         # PyTorch default LayerNorm eps

# Matmul-operand dtype.  Set to jnp.bfloat16 on v6e/v7x for ~2x on the MXU-bound part
# (relax the allclose tolerance to ~1e-2 if you do).  Accumulation is always f32.
MM_DTYPE = jnp.float32


def _layer_norm(x, gamma, beta):
    mu = jnp.mean(x, axis=-1, keepdims=True)
    var = jnp.mean(jnp.square(x - mu), axis=-1, keepdims=True)
    return (x - mu) * lax.rsqrt(var + LN_EPS) * gamma + beta


def transformer_layer_kernel(x_ref, wqkv_ref, bqkv_ref, wo_ref, bo_ref,
                             g1_ref, be1_ref, w1_ref, b1_ref,
                             w2_ref, b2_ref, g2_ref, be2_ref, o_ref):
    bt, seq, emb = x_ref.shape                 # (B_TILE, S, E)
    rows = bt * seq
    x = x_ref[...].reshape(rows, emb)          # (rows, E) f32

    # ---- multi-head self-attention ------------------------------------------
    # QKV projection; 1/sqrt(head_dim) is already folded into the Q columns.
    qkv = jnp.dot(x.astype(MM_DTYPE), wqkv_ref[...].astype(MM_DTYPE),
                  preferred_element_type=jnp.float32) + bqkv_ref[...]
    q = qkv[:, :emb].reshape(bt, seq, NHEAD, HEAD_DIM)
    k = qkv[:, emb:2 * emb].reshape(bt, seq, NHEAD, HEAD_DIM)
    v = qkv[:, 2 * emb:].reshape(bt, seq, NHEAD, HEAD_DIM)

    # Merge (batch, head) into one batch axis -> 3-D batched matmuls.
    def to_bh(t):
        return t.transpose(0, 2, 1, 3).reshape(bt * NHEAD, seq, HEAD_DIM)

    qh, kh, vh = to_bh(q), to_bh(k), to_bh(v)

    s = jnp.einsum('nqd,nkd->nqk', qh, kh,
                   preferred_element_type=jnp.float32)          # (bt*H, S, S)
    s = s - jnp.max(s, axis=-1, keepdims=True)
    p = jnp.exp(s)
    p = p * (1.0 / jnp.sum(p, axis=-1, keepdims=True))
    ctx = jnp.einsum('nqk,nkd->nqd', p, vh,
                     preferred_element_type=jnp.float32)        # (bt*H, S, Dh)
    attn = (ctx.reshape(bt, NHEAD, seq, HEAD_DIM)
               .transpose(0, 2, 1, 3)
               .reshape(rows, emb))

    attn = jnp.dot(attn.astype(MM_DTYPE), wo_ref[...].astype(MM_DTYPE),
                   preferred_element_type=jnp.float32) + bo_ref[...]

    # TODO(synk): dropout layers are identity here (eval-mode semantics).
    # residual + LayerNorm1 (post-norm, PyTorch norm_first=False)
    h1 = _layer_norm(x + attn, g1_ref[...], be1_ref[...])

    # ---- feed-forward (relu) -------------------------------------------------
    f = jnp.dot(h1.astype(MM_DTYPE), w1_ref[...].astype(MM_DTYPE),
                preferred_element_type=jnp.float32) + b1_ref[...]
    f = jnp.maximum(f, 0.0)
    f = jnp.dot(f.astype(MM_DTYPE), w2_ref[...].astype(MM_DTYPE),
                preferred_element_type=jnp.float32) + b2_ref[...]

    # residual + LayerNorm2; one lane-dense store for the whole slab.
    h2 = _layer_norm(h1 + f, g2_ref[...], be2_ref[...])
    o_ref[...] = h2.reshape(bt, seq, emb).astype(o_ref.dtype)


def transformer_block_forward(x_sbe, params, *, b_tile=None):
    """x_sbe: (S, B, E) float32 — PyTorch batch_first=False layout."""
    S, B, E = x_sbe.shape
    assert E == D_MODEL

    # Target ~256 rows (= B_TILE * S) per grid step; pad B to a multiple of B_TILE.
    if b_tile is None:
        b_tile = max(1, min(B, pl.cdiv(256, S)))
    grid_b = pl.cdiv(B, b_tile)
    b_pad = grid_b * b_tile

    x_bse = jnp.transpose(x_sbe, (1, 0, 2))                      # (B, S, E)
    if b_pad != B:
        x_bse = jnp.pad(x_bse, ((0, b_pad - B), (0, 0), (0, 0)))

    # ---- host-side parameter prep (glue) -------------------------------------
    scale = 1.0 / math.sqrt(HEAD_DIM)
    w_in = params["in_proj_weight"].T                            # (E, 3E)
    b_in = params["in_proj_bias"]                                # (3E,)
    w_in = jnp.concatenate([w_in[:, :E] * scale, w_in[:, E:]], axis=1)  # fold scale into Q
    b_in = jnp.concatenate([b_in[:E] * scale, b_in[E:]])

    row = lambda v: v.reshape(1, -1)
    weights = [
        w_in,                          row(b_in),                        # (E,3E), (1,3E)
        params["out_proj_weight"].T,   row(params["out_proj_bias"]),     # (E,E),  (1,E)
        row(params["norm1_weight"]),   row(params["norm1_bias"]),        # (1,E)
        params["linear1_weight"].T,    row(params["linear1_bias"]),      # (E,F),  (1,F)
        params["linear2_weight"].T,    row(params["linear2_bias"]),      # (F,E),  (1,E)
        row(params["norm2_weight"]),   row(params["norm2_bias"]),        # (1,E)
    ]

    # Constant index_map -> Pallas keeps these blocks VMEM-resident across grid steps
    # (no per-step re-DMA of the FF weights).
    def full_spec(a):
        return pl.BlockSpec(a.shape, lambda b, _nd=a.ndim: (0,) * _nd)

    out = pl.pallas_call(
        transformer_layer_kernel,
        out_shape=jax.ShapeDtypeStruct((b_pad, S, E), x_sbe.dtype),
        grid_spec=pltpu.PrefetchScalarGridSpec(
            num_scalar_prefetch=0,
            grid=(grid_b,),
            in_specs=[pl.BlockSpec((b_tile, S, E), lambda b: (b, 0, 0))]
                     + [full_spec(w) for w in weights],
            out_specs=pl.BlockSpec((b_tile, S, E), lambda b: (b, 0, 0)),
        ),
        compiler_params=pltpu.CompilerParams(dimension_semantics=("parallel",)),
    )(x_bse, *weights)

    out = out[:B]                                                # drop batch padding
    return jnp.transpose(out, (1, 0, 2))                         # back to (S, B, E)


# ---------------- pure-JAX reference (same math, for verification) ------------
def reference_forward(x_sbe, params):
    def per_batch(xb):                                           # xb: (S, E)
        qkv = xb @ params["in_proj_weight"].T + params["in_proj_bias"]
        q, k, v = jnp.split(qkv, 3, axis=-1)
        scale = 1.0 / math.sqrt(HEAD_DIM)
        outs = []
        for h in range(NHEAD):
            lo, hi = h * HEAD_DIM, (h + 1) * HEAD_DIM
            s = (q[:, lo:hi] * scale) @ k[:, lo:hi].T
            p = jax.nn.softmax(s, axis=-1)
            outs.append(p @ v[:, lo:hi])
        attn = jnp.concatenate(outs, axis=-1)
        attn = attn @ params["out_proj_weight"].T + params["out_proj_bias"]
        h1 = _layer_norm(xb + attn, params["norm1_weight"], params["norm1_bias"])
        f = jnp.maximum(h1 @ params["linear1_weight"].T + params["linear1_bias"], 0.0)
        f = f @ params["linear2_weight"].T + params["linear2_bias"]
        return _layer_norm(h1 + f, params["norm2_weight"], params["norm2_bias"])
    return jax.vmap(per_batch, in_axes=1, out_axes=1)(x_sbe)


def init_params(key):
    ks = jax.random.split(key, 6)
    return {
        "in_proj_weight": jax.random.normal(ks[0], (3 * D_MODEL, D_MODEL), jnp.float32) * 0.08,
        "in_proj_bias":   jax.random.normal(ks[1], (3 * D_MODEL,), jnp.float32) * 0.02,
        "out_proj_weight": jax.random.normal(ks[2], (D_MODEL, D_MODEL), jnp.float32) * 0.08,
        "out_proj_bias":  jnp.zeros((D_MODEL,), jnp.float32),
        "linear1_weight": jax.random.normal(ks[3], (DIM_FF, D_MODEL), jnp.float32) * 0.05,
        "linear1_bias":   jax.random.normal(ks[4], (DIM_FF,), jnp.float32) * 0.02,
        "linear2_weight": jax.random.normal(ks[5], (D_MODEL, DIM_FF), jnp.float32) * 0.02,
        "linear2_bias":   jnp.zeros((D_MODEL,), jnp.float32),
        "norm1_weight":   jnp.ones((D_MODEL,), jnp.float32),
        "norm1_bias":     jnp.zeros((D_MODEL,), jnp.float32),
        "norm2_weight":   jnp.ones((D_MODEL,), jnp.float32),
        "norm2_bias":     jnp.zeros((D_MODEL,), jnp.float32),
    }


if __name__ == "__main__":
    key = jax.random.PRNGKey(0)
    k_x, k_p = jax.random.split(key)
    S, B = 8, 2
    x = jax.random.normal(k_x, (S, B, D_MODEL), jnp.float32)      # (seq, batch, d_model)
    params = init_params(k_p)

    out = transformer_block_forward(x, params)
    out = jax.block_until_ready(out)

    ref = reference_forward(x, params)
    assert out.shape == (S, B, D_MODEL)
    assert jnp.all(jnp.isfinite(out))
    assert jnp.allclose(out, ref, rtol=1e-4, atol=1e-4)
    print("KERNEL_OK")
</pallas_src>

<mosaic_0001>
module attributes {stable_mosaic.version = 11 : i64} {
  func.func @transformer_layer_kernel(%arg0: i32, %arg1: memref<2x8x32xf32, #tpu.memory_space<vmem>>, %arg2: memref<32x96xf32, #tpu.memory_space<vmem>>, %arg3: memref<1x96xf32, #tpu.memory_space<vmem>>, %arg4: memref<32x32xf32, #tpu.memory_space<vmem>>, %arg5: memref<1x32xf32, #tpu.memory_space<vmem>>, %arg6: memref<1x32xf32, #tpu.memory_space<vmem>>, %arg7: memref<1x32xf32, #tpu.memory_space<vmem>>, %arg8: memref<32x2048xf32, #tpu.memory_space<vmem>>, %arg9: memref<1x2048xf32, #tpu.memory_space<vmem>>, %arg10: memref<2048x32xf32, #tpu.memory_space<vmem>>, %arg11: memref<1x32xf32, #tpu.memory_space<vmem>>, %arg12: memref<1x32xf32, #tpu.memory_space<vmem>>, %arg13: memref<1x32xf32, #tpu.memory_space<vmem>>, %arg14: memref<2x8x32xf32, #tpu.memory_space<vmem>>) attributes {dimension_semantics = [#tpu.dimension_semantics<parallel>], iteration_bounds = array<i64: 1>, scalar_prefetch = 0 : i64, scratch_operands = 0 : i64, tpu.core_type = #tpu.core_type<tc>, window_params = [{transform_indices = @transform_0, window_bounds = array<i64: 2, 8, 32>}, {pipeline_mode = #tpu.pipeline_mode<synchronous>, transform_indices = @transform_1, window_bounds = array<i64: 32, 96>}, {pipeline_mode = #tpu.pipeline_mode<synchronous>, transform_indices = @transform_2, window_bounds = array<i64: 1, 96>}, {pipeline_mode = #tpu.pipeline_mode<synchronous>, transform_indices = @transform_3, window_bounds = array<i64: 32, 32>}, {pipeline_mode = #tpu.pipeline_mode<synchronous>, transform_indices = @transform_4, window_bounds = array<i64: 1, 32>}, {pipeline_mode = #tpu.pipeline_mode<synchronous>, transform_indices = @transform_5, window_bounds = array<i64: 1, 32>}, {pipeline_mode = #tpu.pipeline_mode<synchronous>, transform_indices = @transform_6, window_bounds = array<i64: 1, 32>}, {pipeline_mode = #tpu.pipeline_mode<synchronous>, transform_indices = @transform_7, window_bounds = array<i64: 32, 2048>}, {pipeline_mode = #tpu.pipeline_mode<synchronous>, transform_indices = @transform_8, window_bounds = array<i64: 1, 2048>}, {pipeline_mode = #tpu.pipeline_mode<synchronous>, transform_indices = @transform_9, window_bounds = array<i64: 2048, 32>}, {pipeline_mode = #tpu.pipeline_mode<synchronous>, transform_indices = @transform_10, window_bounds = array<i64: 1, 32>}, {pipeline_mode = #tpu.pipeline_mode<synchronous>, transform_indices = @transform_11, window_bounds = array<i64: 1, 32>}, {pipeline_mode = #tpu.pipeline_mode<synchronous>, transform_indices = @transform_12, window_bounds = array<i64: 1, 32>}, {transform_indices = @transform_13, window_bounds = array<i64: 2, 8, 32>}]} {
    %c0 = arith.constant 0 : index
    %c0_0 = arith.constant 0 : index
    %c0_1 = arith.constant 0 : index
    %0 = vector.load %arg1[%c0, %c0_0, %c0_1] : memref<2x8x32xf32, #tpu.memory_space<vmem>>, vector<2x8x32xf32>
    %1 = vector.shape_cast %0 : vector<2x8x32xf32> to vector<16x32xf32>
    %c0_2 = arith.constant 0 : index
    %c0_3 = arith.constant 0 : index
    %2 = vector.load %arg2[%c0_2, %c0_3] : memref<32x96xf32, #tpu.memory_space<vmem>>, vector<32x96xf32>
    %cst = arith.constant dense<0.000000e+00> : vector<16x96xf32>
    %3 = tpu.matmul %1, %2, %cst {dimension_numbers = #tpu.dot_dimension_numbers<[1], [0], [0], [1], [0, 0, 1, 1], [], []>} : vector<16x32xf32>, vector<32x96xf32>, vector<16x96xf32> -> vector<16x96xf32>
    %c0_4 = arith.constant 0 : index
    %c0_5 = arith.constant 0 : index
    %4 = vector.load %arg3[%c0_4, %c0_5] : memref<1x96xf32, #tpu.memory_space<vmem>>, vector<1x96xf32>
    %5 = vector.broadcast %4 : vector<1x96xf32> to vector<16x96xf32>
    %6 = arith.addf %3, %5 : vector<16x96xf32>
    %7 = vector.extract_strided_slice %6 {offsets = [0, 0], sizes = [16, 32], strides = [1, 1]} : vector<16x96xf32> to vector<16x32xf32>
    %8 = vector.shape_cast %7 : vector<16x32xf32> to vector<2x8x8x4xf32>
    %9 = vector.extract_strided_slice %6 {offsets = [0, 32], sizes = [16, 32], strides = [1, 1]} : vector<16x96xf32> to vector<16x32xf32>
    %10 = vector.shape_cast %9 : vector<16x32xf32> to vector<2x8x8x4xf32>
    %11 = vector.extract_strided_slice %6 {offsets = [0, 64], sizes = [16, 32], strides = [1, 1]} : vector<16x96xf32> to vector<16x32xf32>
    %12 = vector.shape_cast %11 : vector<16x32xf32> to vector<2x8x8x4xf32>
    %13 = tpu.transpose %8, [0, 2, 1, 3] : vector<2x8x8x4xf32> -> vector<2x8x8x4xf32>
    %14 = vector.shape_cast %13 : vector<2x8x8x4xf32> to vector<16x8x4xf32>
    %15 = tpu.transpose %10, [0, 2, 1, 3] : vector<2x8x8x4xf32> -> vector<2x8x8x4xf32>
    %16 = vector.shape_cast %15 : vector<2x8x8x4xf32> to vector<16x8x4xf32>
    %17 = tpu.transpose %12, [0, 2, 1, 3] : vector<2x8x8x4xf32> -> vector<2x8x8x4xf32>
    %18 = vector.shape_cast %17 : vector<2x8x8x4xf32> to vector<16x8x4xf32>
    "tpu.trace_start"() <{level = 10 : i32, message = "nqd,nkd->nqk"}> : () -> ()
    %cst_6 = arith.constant dense<0.000000e+00> : vector<16x8x8xf32>
    %19 = tpu.matmul %14, %16, %cst_6 {dimension_numbers = #tpu.dot_dimension_numbers<[2], [2], [1], [1], [0, 0, 0, 1, 1, 1], [0], [0]>} : vector<16x8x4xf32>, vector<16x8x4xf32>, vector<16x8x8xf32> -> vector<16x8x8xf32>
    "tpu.trace_stop"() : () -> ()
    %cst_7 = arith.constant dense<0xFF800000> : vector<16x8xf32>
    %20 = vector.multi_reduction <maximumf>, %19, %cst_7 [2] : vector<16x8x8xf32> to vector<16x8xf32>
    %21 = vector.shape_cast %20 : vector<16x8xf32> to vector<16x8x1xf32>
    %22 = vector.broadcast %21 : vector<16x8x1xf32> to vector<16x8x8xf32>
    %23 = arith.subf %19, %22 : vector<16x8x8xf32>
    %24 = math.exp %23 : vector<16x8x8xf32>
    %cst_8 = arith.constant dense<0.000000e+00> : vector<16x8xf32>
    %25 = vector.multi_reduction <add>, %24, %cst_8 [2] : vector<16x8x8xf32> to vector<16x8xf32>
    %26 = vector.shape_cast %25 : vector<16x8xf32> to vector<16x8x1xf32>
    %cst_9 = arith.constant 1.000000e+00 : f32
    %27 = vector.broadcast %cst_9 : f32 to vector<16x8x1xf32>
    %28 = arith.divf %27, %26 : vector<16x8x1xf32>
    %29 = vector.broadcast %28 : vector<16x8x1xf32> to vector<16x8x8xf32>
    %30 = arith.mulf %24, %29 : vector<16x8x8xf32>
    "tpu.trace_start"() <{level = 10 : i32, message = "nqk,nkd->nqd"}> : () -> ()
    %cst_10 = arith.constant dense<0.000000e+00> : vector<16x8x4xf32>
    %31 = tpu.matmul %30, %18, %cst_10 {dimension_numbers = #tpu.dot_dimension_numbers<[2], [1], [1], [2], [0, 0, 0, 1, 1, 2], [0], [0]>} : vector<16x8x8xf32>, vector<16x8x4xf32>, vector<16x8x4xf32> -> vector<16x8x4xf32>
    "tpu.trace_stop"() : () -> ()
    %32 = vector.shape_cast %31 : vector<16x8x4xf32> to vector<2x8x8x4xf32>
    %33 = tpu.transpose %32, [0, 2, 1, 3] : vector<2x8x8x4xf32> -> vector<2x8x8x4xf32>
    %34 = vector.shape_cast %33 : vector<2x8x8x4xf32> to vector<16x32xf32>
    %c0_11 = arith.constant 0 : index
    %c0_12 = arith.constant 0 : index
    %35 = vector.load %arg4[%c0_11, %c0_12] : memref<32x32xf32, #tpu.memory_space<vmem>>, vector<32x32xf32>
    %cst_13 = arith.constant dense<0.000000e+00> : vector<16x32xf32>
    %36 = tpu.matmul %34, %35, %cst_13 {dimension_numbers = #tpu.dot_dimension_numbers<[1], [0], [0], [1], [0, 0, 1, 1], [], []>} : vector<16x32xf32>, vector<32x32xf32>, vector<16x32xf32> -> vector<16x32xf32>
    %c0_14 = arith.constant 0 : index
    %c0_15 = arith.constant 0 : index
    %37 = vector.load %arg5[%c0_14, %c0_15] : memref<1x32xf32, #tpu.memory_space<vmem>>, vector<1x32xf32>
    %38 = vector.broadcast %37 : vector<1x32xf32> to vector<16x32xf32>
    %39 = arith.addf %36, %38 : vector<16x32xf32>
    %40 = arith.addf %1, %39 : vector<16x32xf32>
    %c0_16 = arith.constant 0 : index
    %c0_17 = arith.constant 0 : index
    %41 = vector.load %arg6[%c0_16, %c0_17] : memref<1x32xf32, #tpu.memory_space<vmem>>, vector<1x32xf32>
    %c0_18 = arith.constant 0 : index
    %c0_19 = arith.constant 0 : index
    %42 = vector.load %arg7[%c0_18, %c0_19] : memref<1x32xf32, #tpu.memory_space<vmem>>, vector<1x32xf32>
    %cst_20 = arith.constant dense<0.000000e+00> : vector<16xf32>
    %43 = vector.multi_reduction <add>, %40, %cst_20 [1] : vector<16x32xf32> to vector<16xf32>
    %44 = vector.shape_cast %43 : vector<16xf32> to vector<16x1xf32>
    %cst_21 = arith.constant 3.200000e+01 : f32
    %45 = vector.broadcast %cst_21 : f32 to vector<16x1xf32>
    %46 = arith.divf %44, %45 : vector<16x1xf32>
    %47 = vector.broadcast %46 : vector<16x1xf32> to vector<16x32xf32>
    %48 = arith.subf %40, %47 : vector<16x32xf32>
    %49 = arith.mulf %48, %48 : vector<16x32xf32>
    %cst_22 = arith.constant dense<0.000000e+00> : vector<16xf32>
    %50 = vector.multi_reduction <add>, %49, %cst_22 [1] : vector<16x32xf32> to vector<16xf32>
    %51 = vector.shape_cast %50 : vector<16xf32> to vector<16x1xf32>
    %cst_23 = arith.constant 3.200000e+01 : f32
    %52 = vector.broadcast %cst_23 : f32 to vector<16x1xf32>
    %53 = arith.divf %51, %52 : vector<16x1xf32>
    %54 = vector.broadcast %46 : vector<16x1xf32> to vector<16x32xf32>
    %55 = arith.subf %40, %54 : vector<16x32xf32>
    %cst_24 = arith.constant 9.99999974E-6 : f32
    %56 = vector.broadcast %cst_24 : f32 to vector<16x1xf32>
    %57 = arith.addf %53, %56 : vector<16x1xf32>
    %58 = math.rsqrt %57 : vector<16x1xf32>
    %59 = vector.broadcast %58 : vector<16x1xf32> to vector<16x32xf32>
    %60 = arith.mulf %55, %59 : vector<16x32xf32>
    %61 = vector.broadcast %41 : vector<1x32xf32> to vector<16x32xf32>
    %62 = arith.mulf %60, %61 : vector<16x32xf32>
    %63 = vector.broadcast %42 : vector<1x32xf32> to vector<16x32xf32>
    %64 = arith.addf %62, %63 : vector<16x32xf32>
    %c0_25 = arith.constant 0 : index
    %c0_26 = arith.constant 0 : index
    %65 = vector.load %arg8[%c0_25, %c0_26] : memref<32x2048xf32, #tpu.memory_space<vmem>>, vector<32x2048xf32>
    %cst_27 = arith.constant dense<0.000000e+00> : vector<16x2048xf32>
    %66 = tpu.matmul %64, %65, %cst_27 {dimension_numbers = #tpu.dot_dimension_numbers<[1], [0], [0], [1], [0, 0, 1, 1], [], []>} : vector<16x32xf32>, vector<32x2048xf32>, vector<16x2048xf32> -> vector<16x2048xf32>
    %c0_28 = arith.constant 0 : index
    %c0_29 = arith.constant 0 : index
    %67 = vector.load %arg9[%c0_28, %c0_29] : memref<1x2048xf32, #tpu.memory_space<vmem>>, vector<1x2048xf32>
    %68 = vector.broadcast %67 : vector<1x2048xf32> to vector<16x2048xf32>
    %69 = arith.addf %66, %68 : vector<16x2048xf32>
    %cst_30 = arith.constant 0.000000e+00 : f32
    %70 = vector.broadcast %cst_30 : f32 to vector<16x2048xf32>
    %71 = arith.maximumf %69, %70 : vector<16x2048xf32>
    %c0_31 = arith.constant 0 : index
    %c0_32 = arith.constant 0 : index
    %72 = vector.load %arg10[%c0_31, %c0_32] : memref<2048x32xf32, #tpu.memory_space<vmem>>, vector<2048x32xf32>
    %cst_33 = arith.constant dense<0.000000e+00> : vector<16x32xf32>
    %73 = tpu.matmul %71, %72, %cst_33 {dimension_numbers = #tpu.dot_dimension_numbers<[1], [0], [0], [1], [0, 0, 1, 1], [], []>} : vector<16x2048xf32>, vector<2048x32xf32>, vector<16x32xf32> -> vector<16x32xf32>
    %c0_34 = arith.constant 0 : index
    %c0_35 = arith.constant 0 : index
    %74 = vector.load %arg11[%c0_34, %c0_35] : memref<1x32xf32, #tpu.memory_space<vmem>>, vector<1x32xf32>
    %75 = vector.broadcast %74 : vector<1x32xf32> to vector<16x32xf32>
    %76 = arith.addf %73, %75 : vector<16x32xf32>
    %77 = arith.addf %64, %76 : vector<16x32xf32>
    %c0_36 = arith.constant 0 : index
    %c0_37 = arith.constant 0 : index
    %78 = vector.load %arg12[%c0_36, %c0_37] : memref<1x32xf32, #tpu.memory_space<vmem>>, vector<1x32xf32>
    %c0_38 = arith.constant 0 : index
    %c0_39 = arith.constant 0 : index
    %79 = vector.load %arg13[%c0_38, %c0_39] : memref<1x32xf32, #tpu.memory_space<vmem>>, vector<1x32xf32>
    %cst_40 = arith.constant dense<0.000000e+00> : vector<16xf32>
    %80 = vector.multi_reduction <add>, %77, %cst_40 [1] : vector<16x32xf32> to vector<16xf32>
    %81 = vector.shape_cast %80 : vector<16xf32> to vector<16x1xf32>
    %cst_41 = arith.constant 3.200000e+01 : f32
    %82 = vector.broadcast %cst_41 : f32 to vector<16x1xf32>
    %83 = arith.divf %81, %82 : vector<16x1xf32>
    %84 = vector.broadcast %83 : vector<16x1xf32> to vector<16x32xf32>
    %85 = arith.subf %77, %84 : vector<16x32xf32>
    %86 = arith.mulf %85, %85 : vector<16x32xf32>
    %cst_42 = arith.constant dense<0.000000e+00> : vector<16xf32>
    %87 = vector.multi_reduction <add>, %86, %cst_42 [1] : vector<16x32xf32> to vector<16xf32>
    %88 = vector.shape_cast %87 : vector<16xf32> to vector<16x1xf32>
    %cst_43 = arith.constant 3.200000e+01 : f32
    %89 = vector.broadcast %cst_43 : f32 to vector<16x1xf32>
    %90 = arith.divf %88, %89 : vector<16x1xf32>
    %91 = vector.broadcast %83 : vector<16x1xf32> to vector<16x32xf32>
    %92 = arith.subf %77, %91 : vector<16x32xf32>
    %cst_44 = arith.constant 9.99999974E-6 : f32
    %93 = vector.broadcast %cst_44 : f32 to vector<16x1xf32>
    %94 = arith.addf %90, %93 : vector<16x1xf32>
    %95 = math.rsqrt %94 : vector<16x1xf32>
    %96 = vector.broadcast %95 : vector<16x1xf32> to vector<16x32xf32>
    %97 = arith.mulf %92, %96 : vector<16x32xf32>
    %98 = vector.broadcast %78 : vector<1x32xf32> to vector<16x32xf32>
    %99 = arith.mulf %97, %98 : vector<16x32xf32>
    %100 = vector.broadcast %79 : vector<1x32xf32> to vector<16x32xf32>
    %101 = arith.addf %99, %100 : vector<16x32xf32>
    %102 = vector.shape_cast %101 : vector<16x32xf32> to vector<2x8x32xf32>
    %c0_45 = arith.constant 0 : index
    %c0_46 = arith.constant 0 : index
    %c0_47 = arith.constant 0 : index
    %103 = vector.load %arg14[%c0_45, %c0_46, %c0_47] : memref<2x8x32xf32, #tpu.memory_space<vmem>>, vector<2x8x32xf32>
    tpu.vector_store %arg14[%c0_45, %c0_46, %c0_47], %102 {strides = array<i32>} : memref<2x8x32xf32, #tpu.memory_space<vmem>>, vector<2x8x32xf32>,
    return
  }
  func.func @transform_0(%arg0: i32) -> (i32, i32, i32) {
    %c0_i32 = arith.constant 0 : i32
    %c0_i32_0 = arith.constant 0 : i32
    %c0_i32_1 = arith.constant 0 : i32
    return %arg0, %c0_i32, %c0_i32_0 : i32, i32, i32
  }
  func.func @transform_1(%arg0: i32) -> (i32, i32) {
    %c0_i32 = arith.constant 0 : i32
    %c0_i32_0 = arith.constant 0 : i32
    %c0_i32_1 = arith.constant 0 : i32
    return %c0_i32, %c0_i32_0 : i32, i32
  }
  func.func @transform_2(%arg0: i32) -> (i32, i32) {
    %c0_i32 = arith.constant 0 : i32
    %c0_i32_0 = arith.constant 0 : i32
    %c0_i32_1 = arith.constant 0 : i32
    return %c0_i32, %c0_i32_0 : i32, i32
  }
  func.func @transform_3(%arg0: i32) -> (i32, i32) {
    %c0_i32 = arith.constant 0 : i32
    %c0_i32_0 = arith.constant 0 : i32
    %c0_i32_1 = arith.constant 0 : i32
    return %c0_i32, %c0_i32_0 : i32, i32
  }
  func.func @transform_4(%arg0: i32) -> (i32, i32) {
    %c0_i32 = arith.constant 0 : i32
    %c0_i32_0 = arith.constant 0 : i32
    %c0_i32_1 = arith.constant 0 : i32
    return %c0_i32, %c0_i32_0 : i32, i32
  }
  func.func @transform_5(%arg0: i32) -> (i32, i32) {
    %c0_i32 = arith.constant 0 : i32
    %c0_i32_0 = arith.constant 0 : i32
    %c0_i32_1 = arith.constant 0 : i32
    return %c0_i32, %c0_i32_0 : i32, i32
  }
  func.func @transform_6(%arg0: i32) -> (i32, i32) {
    %c0_i32 = arith.constant 0 : i32
    %c0_i32_0 = arith.constant 0 : i32
    %c0_i32_1 = arith.constant 0 : i32
    return %c0_i32, %c0_i32_0 : i32, i32
  }
  func.func @transform_7(%arg0: i32) -> (i32, i32) {
    %c0_i32 = arith.constant 0 : i32
    %c0_i32_0 = arith.constant 0 : i32
    %c0_i32_1 = arith.constant 0 : i32
    return %c0_i32, %c0_i32_0 : i32, i32
  }
  func.func @transform_8(%arg0: i32) -> (i32, i32) {
    %c0_i32 = arith.constant 0 : i32
    %c0_i32_0 = arith.constant 0 : i32
    %c0_i32_1 = arith.constant 0 : i32
    return %c0_i32, %c0_i32_0 : i32, i32
  }
  func.func @transform_9(%arg0: i32) -> (i32, i32) {
    %c0_i32 = arith.constant 0 : i32
    %c0_i32_0 = arith.constant 0 : i32
    %c0_i32_1 = arith.constant 0 : i32
    return %c0_i32, %c0_i32_0 : i32, i32
  }
  func.func @transform_10(%arg0: i32) -> (i32, i32) {
    %c0_i32 = arith.constant 0 : i32
    %c0_i32_0 = arith.constant 0 : i32
    %c0_i32_1 = arith.constant 0 : i32
    return %c0_i32, %c0_i32_0 : i32, i32
  }
  func.func @transform_11(%arg0: i32) -> (i32, i32) {
    %c0_i32 = arith.constant 0 : i32
    %c0_i32_0 = arith.constant 0 : i32
    %c0_i32_1 = arith.constant 0 : i32
    return %c0_i32, %c0_i32_0 : i32, i32
  }
  func.func @transform_12(%arg0: i32) -> (i32, i32) {
    %c0_i32 = arith.constant 0 : i32
    %c0_i32_0 = arith.constant 0 : i32
    %c0_i32_1 = arith.constant 0 : i32
    return %c0_i32, %c0_i32_0 : i32, i32
  }
  func.func @transform_13(%arg0: i32) -> (i32, i32, i32) {
    %c0_i32 = arith.constant 0 : i32
    %c0_i32_0 = arith.constant 0 : i32
    %c0_i32_1 = arith.constant 0 : i32
    return %arg0, %c0_i32, %c0_i32_0 : i32, i32, i32
  }
}

</mosaic_0001>

<llo_original>
// kernel: tpu_custom_call.1
$region0: #{tpu_custom_call.1}
  #allocation0 [shape = 'u32[]', space=smem, size = 0x4, offset = 0x4, fixed_abs, tag = 'smem constant byte address 0x4 - core index']
  #allocation1 [shape = 'u32[144,128]{1,0:T(1,128)}', space=vmem, size = 0x12000, scoped, tag = 'internal scratch']
  %s0 = inlined_call_operand.vmem [shape: f32[2,8,32], index: 0, kind: input, shape index: {}]
  %s1 = inlined_call_operand.vmem [shape: f32[32,96], index: 1, kind: input, shape index: {}]
  %s2 = inlined_call_operand.vmem [shape: f32[1,96], index: 2, kind: input, shape index: {}]
  %s3 = inlined_call_operand.vmem [shape: f32[32,32], index: 3, kind: input, shape index: {}]
  %s4 = inlined_call_operand.vmem [shape: f32[1,32], index: 4, kind: input, shape index: {}]
  %s5 = inlined_call_operand.vmem [shape: f32[1,32], index: 5, kind: input, shape index: {}]
  %s6 = inlined_call_operand.vmem [shape: f32[1,32], index: 6, kind: input, shape index: {}]
  %s7 = inlined_call_operand.vmem [shape: f32[32,2048], index: 7, kind: input, shape index: {}]
  %s8 = inlined_call_operand.vmem [shape: f32[1,2048], index: 8, kind: input, shape index: {}]
  %s9 = inlined_call_operand.vmem [shape: f32[2048,32], index: 9, kind: input, shape index: {}]
  %s10 = inlined_call_operand.vmem [shape: f32[1,32], index: 10, kind: input, shape index: {}]
  %s11 = inlined_call_operand.vmem [shape: f32[1,32], index: 11, kind: input, shape index: {}]
  %s12 = inlined_call_operand.vmem [shape: f32[1,32], index: 12, kind: input, shape index: {}]
  %s13 = inlined_call_operand.hbm [shape: f32[2,8,32], index: 13, kind: output, shape index: {}]
  %s14 = sld [smem:[#allocation0]]
  $region62: #{tpu_custom_call.1} parent=0
    _
  %s16 = ssub.s32 1, %s14
  %s17 = scalar_select 0, %s16, %s14
  $region1: #{tpu_custom_call.1} parent=0
    #allocation2 [shape = 'u8[8192]{0}', space=vmem, size = 0x2000, scoped, tag = 'output window, operand 0, single buffered']
    #allocation3 [shape = 's32[1]{0}', space=sflag, size = 0x4, scoped, tag = 'scoped memory for tpu_custom_call.1']
    %18 = vsyncpa [#allocation3], 0
    // Predicated region
    $region2: #{tpu_custom_call.1} parent=1 // pred_check
      _
    $region3: #{tpu_custom_call.1} parent=1 // pred_check_branch
      %20 = sbr.rel (0) target = $region5
    $region4: #{tpu_custom_call.1} parent=1 // pred_region
      _
    $region5: #{tpu_custom_call.1} parent=1 // pred_fallthru
      _
    // Predicated region
    $region6: #{tpu_custom_call.1} parent=1 // pred_check
      _
    $region7: #{tpu_custom_call.1} parent=1 // pred_check_branch
      %22 = sbr.rel (0) target = $region9
    $region8: #{tpu_custom_call.1} parent=1 // pred_region
      _
    $region9: #{tpu_custom_call.1} parent=1 // pred_fallthru
      _
    // Predicated region
    $region10: #{tpu_custom_call.1} parent=1 // pred_check
      _
    $region11: #{tpu_custom_call.1} parent=1 // pred_check_branch
      %24 = sbr.rel (0) target = $region13
    $region12: #{tpu_custom_call.1} parent=1 // pred_region
      _
    $region13: #{tpu_custom_call.1} parent=1 // pred_fallthru
      _
    // Predicated region
    $region14: #{tpu_custom_call.1} parent=1 // pred_check
      _
    $region15: #{tpu_custom_call.1} parent=1 // pred_check_branch
      %26 = sbr.rel (0) target = $region17
    $region16: #{tpu_custom_call.1} parent=1 // pred_region
      _
    $region17: #{tpu_custom_call.1} parent=1 // pred_fallthru
      _
    // Predicated region
    $region18: #{tpu_custom_call.1} parent=1 // pred_check
      _
    $region19: #{tpu_custom_call.1} parent=1 // pred_check_branch
      %28 = sbr.rel (0) target = $region21
    $region20: #{tpu_custom_call.1} parent=1 // pred_region
      _
    $region21: #{tpu_custom_call.1} parent=1 // pred_fallthru
      _
    // Predicated region
    $region22: #{tpu_custom_call.1} parent=1 // pred_check
      _
    $region23: #{tpu_custom_call.1} parent=1 // pred_check_branch
      %30 = sbr.rel (0) target = $region25
    $region24: #{tpu_custom_call.1} parent=1 // pred_region
      _
    $region25: #{tpu_custom_call.1} parent=1 // pred_fallthru
      _
    // Predicated region
    $region26: #{tpu_custom_call.1} parent=1 // pred_check
      _
    $region27: #{tpu_custom_call.1} parent=1 // pred_check_branch
      %32 = sbr.rel (0) target = $region29
    $region28: #{tpu_custom_call.1} parent=1 // pred_region
      _
    $region29: #{tpu_custom_call.1} parent=1 // pred_fallthru
      _
    // Predicated region
    $region30: #{tpu_custom_call.1} parent=1 // pred_check
      _
    $region31: #{tpu_custom_call.1} parent=1 // pred_check_branch
      %34 = sbr.rel (0) target = $region33
    $region32: #{tpu_custom_call.1} parent=1 // pred_region
      _
    $region33: #{tpu_custom_call.1} parent=1 // pred_fallthru
      _
    // Predicated region
    $region34: #{tpu_custom_call.1} parent=1 // pred_check
      _
    $region35: #{tpu_custom_call.1} parent=1 // pred_check_branch
      %36 = sbr.rel (0) target = $region37
    $region36: #{tpu_custom_call.1} parent=1 // pred_region
      _
    $region37: #{tpu_custom_call.1} parent=1 // pred_fallthru
      _
    // Predicated region
    $region38: #{tpu_custom_call.1} parent=1 // pred_check
      _
    $region39: #{tpu_custom_call.1} parent=1 // pred_check_branch
      %38 = sbr.rel (0) target = $region41
    $region40: #{tpu_custom_call.1} parent=1 // pred_region
      _
    $region41: #{tpu_custom_call.1} parent=1 // pred_fallthru
      _
    // Predicated region
    $region42: #{tpu_custom_call.1} parent=1 // pred_check
      _
    $region43: #{tpu_custom_call.1} parent=1 // pred_check_branch
      %40 = sbr.rel (0) target = $region45
    $region44: #{tpu_custom_call.1} parent=1 // pred_region
      _
    $region45: #{tpu_custom_call.1} parent=1 // pred_fallthru
      _
    // Predicated region
    $region46: #{tpu_custom_call.1} parent=1 // pred_check
      _
    $region47: #{tpu_custom_call.1} parent=1 // pred_check_branch
      %42 = sbr.rel (0) target = $region49
    $region48: #{tpu_custom_call.1} parent=1 // pred_region
      _
    $region49: #{tpu_custom_call.1} parent=1 // pred_fallthru
      _
    // Predicated region
    $region50: #{tpu_custom_call.1} parent=1 // pred_check
      _
    $region51: #{tpu_custom_call.1} parent=1 // pred_check_branch
      %44 = sbr.rel (0) target = $region53
    $region52: #{tpu_custom_call.1} parent=1 // pred_region
      _
    $region53: #{tpu_custom_call.1} parent=1 // pred_fallthru
      _
    %v45 = vld [vmem:[%s0] sm:$0xff]
    %v46 = vld [vmem:[%s0 + $0x8] sm:$0xff]
    %v47 = vld [vmem:[%s1] sm:$0xff]
    %v48 = vld [vmem:[%s1 + $0x8] sm:$0xff]
    %v49 = vld [vmem:[%s1 + $0x10] sm:$0xff]
    %v50 = vld [vmem:[%s1 + $0x18] sm:$0xff]
    %v51 = vld [vmem:[%s2] sm:$0x1]
    %v53 = vlaneseq
    %v54 = vshrl.u32 %v53, 7
    %v55 = vsub.s32 0, %v54
    %v56 = vrot.slane %v51, %v55
    %vm58 = vcmask 261120
    %v60 = vsel %vm58, %v45, 0
    %v63 = vsel %vm58, %v46, 0
    %65 = vmatprep.subr.mxu0 0.0
    %66 = vmatpush1.msra.mxu0 %v47
    %67 = vmatprep.subr.mxu0 0.0
    %68 = vmatpush1.msra.mxu0 %v48
    %69 = vmatprep.subr.mxu0 0.0
    %70 = vmatpush1.msra.mxu0 %v49
    %71 = vmatprep.subr.mxu0 0.0
    %72 = vmatpush1.msra.mxu0 %v50
    %73 = vmatprep.subr.mxu0 0.0
    %74 = vmatpush1.msra.mxu0 0.0
    %75 = vmatprep.subr.mxu0 0.0
    %76 = vmatpush1.msra.mxu0 0.0
    %77 = vmatprep.subr.mxu0 0.0
    %78 = vmatpush1.msra.mxu0 0.0
    %79 = vmatprep.subr.mxu0 0.0
    %80 = vmatpush1.msra.mxu0 0.0
    %81 = vmatprep.subr.mxu0 0.0
    %82 = vmatpush1.msra.mxu0 0.0
    %83 = vmatprep.subr.mxu0 0.0
    %84 = vmatpush1.msra.mxu0 0.0
    %85 = vmatprep.subr.mxu0 0.0
    %86 = vmatpush1.msra.mxu0 0.0
    %87 = vmatprep.subr.mxu0 0.0
    %88 = vmatpush1.msra.mxu0 0.0
    %89 = vmatprep.subr.mxu0 0.0
    %90 = vmatpush1.msra.mxu0 0.0
    %91 = vmatprep.subr.mxu0 0.0
    %92 = vmatpush1.msra.mxu0 0.0
    %93 = vmatprep.subr.mxu0 0.0
    %94 = vmatpush1.msra.mxu0 0.0
    %95 = vmatprep.subr.mxu0 0.0
    %96 = vmatpush1.msra.mxu0 0.0
    %97 = vmatprep.subr.mxu0 0.0
    %98 = vmatpush1.msra.mxu0 0.0
    %99 = vmatprep.subr.mxu0 0.0
    %100 = vmatpush1.msra.mxu0 0.0
    %101 = vmatprep.subr.mxu0 0.0
    %102 = vmatpush1.msra.mxu0 0.0
    %103 = vmatprep.subr.mxu0 0.0
    %104 = vmatpush1.msra.mxu0 0.0
    %105 = vmatprep.subr.mxu0 0.0
    %106 = vmatpush1.msra.mxu0 0.0
    %107 = vmatprep.subr.mxu0 0.0
    %108 = vmatpush1.msra.mxu0 0.0
    %109 = vmatprep.subr.mxu0 0.0
    %110 = vmatpush1.msra.mxu0 0.0
    %111 = vmatprep.subr.mxu0 0.0
    %112 = vmatpush1.msra.mxu0 0.0
    %113 = vmatprep.subr.mxu0 0.0
    %114 = vmatpush1.msra.mxu0 0.0
    %115 = vmatprep.subr.mxu0 0.0
    %116 = vmatpush1.msra.mxu0 0.0
    %117 = vmatprep.subr.mxu0 0.0
    %118 = vmatpush1.msra.mxu0 0.0
    %119 = vmatprep.subr.mxu0 0.0
    %120 = vmatpush1.msra.mxu0 0.0
    %121 = vmatprep.subr.mxu0 0.0
    %122 = vmatpush1.msra.mxu0 0.0
    %123 = vmatprep.subr.mxu0 0.0
    %124 = vmatpush1.msra.mxu0 0.0
    %125 = vmatprep.subr.mxu0 0.0
    %126 = vmatpush1.msra.mxu0 0.0
    %127 = vmatprep.subr.mxu0 0.0
    %128 = vmatpush1.msra.mxu0 0.0
    %129 = vmatprep.mubr.f32.mxu0 0.0
    %130 = vmatmul.mubr.f32.gmra.mrb[0].mxu0 %v60
    %v131 = vpop.f32.mrb[0].mxu0
    %v132 = vadd.f32 %v56, %v131
    %v133 = vpop.f32.mrb[0].mxu0
    %134 = vmatprep.mubr.f32.mxu0 0.0
    %135 = vmatmul.mubr.f32.gmra.mrb[0].mxu0 %v63
    %v136 = vpop.f32.mrb[0].mxu0
    %v137 = vadd.f32 %v56, %v136
    %v138 = vpop.f32.mrb[0].mxu0
    %139 = vdwg.mxu0
    %142 = vrot.lane.b32.xlu0 %v132, 124
    %v143 = vpop.permute.xlu0 %142
    %144 = vrot.lane.b32.xlu0 %v137, 124
    %v145 = vpop.permute.xlu0 %144
    %148 = vrot.lane.b32.xlu0 %v132, 120
    %v149 = vpop.permute.xlu0 %148
    %150 = vrot.lane.b32.xlu0 %v137, 120
    %v151 = vpop.permute.xlu0 %150
    %154 = vrot.lane.b32.xlu0 %v132, 116
    %v155 = vpop.permute.xlu0 %154
    %156 = vrot.lane.b32.xlu0 %v137, 116
    %v157 = vpop.permute.xlu0 %156
    %160 = vrot.lane.b32.xlu0 %v132, 112
    %v161 = vpop.permute.xlu0 %160
    %162 = vrot.lane.b32.xlu0 %v137, 112
    %v163 = vpop.permute.xlu0 %162
    %166 = vrot.lane.b32.xlu0 %v132, 108
    %v167 = vpop.permute.xlu0 %166
    %168 = vrot.lane.b32.xlu0 %v137, 108
    %v169 = vpop.permute.xlu0 %168
    %172 = vrot.lane.b32.xlu0 %v132, 104
    %v173 = vpop.permute.xlu0 %172
    %174 = vrot.lane.b32.xlu0 %v137, 104
    %v175 = vpop.permute.xlu0 %174
    %178 = vrot.lane.b32.xlu0 %v132, 100
    %v179 = vpop.permute.xlu0 %178
    %180 = vrot.lane.b32.xlu0 %v137, 100
    %v181 = vpop.permute.xlu0 %180
    %v184 = vcombine.low %v132, %v149
    %v185 = vcombine.high %v132, %v149
    %v187 = vunpack.c.l.s4 1983009808
    %v188 = vunpack.c.0.s8 %v187
    %v189 = vlaneseq
    %v190 = vshrl.u32 %v189, 7
    %v191 = vsub.s32 %v188, %v190
    %v192 = vrot.slane %v184, %v191
    %v194 = vunpack.c.l.s4 1983009808
    %v195 = vunpack.c.0.s8 %v194
    %v196 = vlaneseq
    %v197 = vshrl.u32 %v196, 7
    %v198 = vsub.s32 %v195, %v197
    %v199 = vrot.slane %v185, %v198
    %v200 = vcombine.low %v143, %v155
    %v201 = vcombine.high %v143, %v155
    %v203 = vunpack.c.l.s4 1983009808
    %v204 = vunpack.c.0.s8 %v203
    %v205 = vlaneseq
    %v206 = vshrl.u32 %v205, 7
    %v207 = vsub.s32 %v204, %v206
    %v208 = vrot.slane %v200, %v207
    %v210 = vunpack.c.l.s4 1983009808
    %v211 = vunpack.c.0.s8 %v210
    %v212 = vlaneseq
    %v213 = vshrl.u32 %v212, 7
    %v214 = vsub.s32 %v211, %v213
    %v215 = vrot.slane %v201, %v214
    %v216 = vcombine.low %v161, %v173
    %v217 = vcombine.high %v161, %v173
    %v219 = vunpack.c.l.s4 1983009808
    %v220 = vunpack.c.0.s8 %v219
    %v221 = vlaneseq
    %v222 = vshrl.u32 %v221, 7
    %v223 = vsub.s32 %v220, %v222
    %v224 = vrot.slane %v216, %v223
    %v226 = vunpack.c.l.s4 1983009808
    %v227 = vunpack.c.0.s8 %v226
    %v228 = vlaneseq
    %v229 = vshrl.u32 %v228, 7
    %v230 = vsub.s32 %v227, %v229
    %v231 = vrot.slane %v217, %v230
    %v232 = vcombine.low %v167, %v179
    %v233 = vcombine.high %v167, %v179
    %v235 = vunpack.c.l.s4 1983009808
    %v236 = vunpack.c.0.s8 %v235
    %v237 = vlaneseq
    %v238 = vshrl.u32 %v237, 7
    %v239 = vsub.s32 %v236, %v238
    %v240 = vrot.slane %v232, %v239
    %v242 = vunpack.c.l.s4 1983009808
    %v243 = vunpack.c.0.s8 %v242
    %v244 = vlaneseq
    %v245 = vshrl.u32 %v244, 7
    %v246 = vsub.s32 %v243, %v245
    %v247 = vrot.slane %v233, %v246
    %v248 = vcombine.low %v192, %v208
    %v249 = vcombine.high %v192, %v208
    %v251 = vunpack.c.l.s4 1934713408
    %v252 = vunpack.c.0.s8 %v251
    %v253 = vlaneseq
    %v254 = vshrl.u32 %v253, 7
    %v255 = vsub.s32 %v252, %v254
    %v256 = vrot.slane %v248, %v255
    %v258 = vunpack.c.l.s4 1934713408
    %v259 = vunpack.c.0.s8 %v258
    %v260 = vlaneseq
    %v261 = vshrl.u32 %v260, 7
    %v262 = vsub.s32 %v259, %v261
    %v263 = vrot.slane %v249, %v262
    %v264 = vcombine.low %v199, %v215
    %v265 = vcombine.high %v199, %v215
    %v267 = vunpack.c.l.s4 1934713408
    %v268 = vunpack.c.0.s8 %v267
    %v269 = vlaneseq
    %v270 = vshrl.u32 %v269, 7
    %v271 = vsub.s32 %v268, %v270
    %v272 = vrot.slane %v264, %v271
    %v274 = vunpack.c.l.s4 1934713408
    %v275 = vunpack.c.0.s8 %v274
    %v276 = vlaneseq
    %v277 = vshrl.u32 %v276, 7
    %v278 = vsub.s32 %v275, %v277
    %v279 = vrot.slane %v265, %v278
    %v280 = vcombine.low %v224, %v240
    %v281 = vcombine.high %v224, %v240
    %v283 = vunpack.c.l.s4 1934713408
    %v284 = vunpack.c.0.s8 %v283
    %v285 = vlaneseq
    %v286 = vshrl.u32 %v285, 7
    %v287 = vsub.s32 %v284, %v286
    %v288 = vrot.slane %v280, %v287
    %v290 = vunpack.c.l.s4 1934713408
    %v291 = vunpack.c.0.s8 %v290
    %v292 = vlaneseq
    %v293 = vshrl.u32 %v292, 7
    %v294 = vsub.s32 %v291, %v293
    %v295 = vrot.slane %v281, %v294
    %v296 = vcombine.low %v231, %v247
    %v297 = vcombine.high %v231, %v247
    %v299 = vunpack.c.l.s4 1934713408
    %v300 = vunpack.c.0.s8 %v299
    %v301 = vlaneseq
    %v302 = vshrl.u32 %v301, 7
    %v303 = vsub.s32 %v300, %v302
    %v304 = vrot.slane %v296, %v303
    %v306 = vunpack.c.l.s4 1934713408
    %v307 = vunpack.c.0.s8 %v306
    %v308 = vlaneseq
    %v309 = vshrl.u32 %v308, 7
    %v310 = vsub.s32 %v307, %v309
    %v311 = vrot.slane %v297, %v310
    %v312 = vcombine.low %v256, %v288
    %v313 = vcombine.high %v256, %v288
    %v314 = vcombine.low %v263, %v295
    %v315 = vcombine.high %v263, %v295
    %v316 = vcombine.low %v272, %v304
    %v317 = vcombine.high %v272, %v304
    %v318 = vcombine.low %v279, %v311
    %v319 = vcombine.high %v279, %v311
    %v320 = vcombine.low %v137, %v151
    %v321 = vcombine.high %v137, %v151
    %v323 = vunpack.c.l.s4 1983009808
    %v324 = vunpack.c.0.s8 %v323
    %v325 = vlaneseq
    %v326 = vshrl.u32 %v325, 7
    %v327 = vsub.s32 %v324, %v326
    %v328 = vrot.slane %v320, %v327
    %v330 = vunpack.c.l.s4 1983009808
    %v331 = vunpack.c.0.s8 %v330
    %v332 = vlaneseq
    %v333 = vshrl.u32 %v332, 7
    %v334 = vsub.s32 %v331, %v333
    %v335 = vrot.slane %v321, %v334
    %v336 = vcombine.low %v145, %v157
    %v337 = vcombine.high %v145, %v157
    %v339 = vunpack.c.l.s4 1983009808
    %v340 = vunpack.c.0.s8 %v339
    %v341 = vlaneseq
    %v342 = vshrl.u32 %v341, 7
    %v343 = vsub.s32 %v340, %v342
    %v344 = vrot.slane %v336, %v343
    %v346 = vunpack.c.l.s4 1983009808
    %v347 = vunpack.c.0.s8 %v346
    %v348 = vlaneseq
    %v349 = vshrl.u32 %v348, 7
    %v350 = vsub.s32 %v347, %v349
    %v351 = vrot.slane %v337, %v350
    %v352 = vcombine.low %v163, %v175
    %v353 = vcombine.high %v163, %v175
    %v355 = vunpack.c.l.s4 1983009808
    %v356 = vunpack.c.0.s8 %v355
    %v357 = vlaneseq
    %v358 = vshrl.u32 %v357, 7
    %v359 = vsub.s32 %v356, %v358
    %v360 = vrot.slane %v352, %v359
    %v362 = vunpack.c.l.s4 1983009808
    %v363 = vunpack.c.0.s8 %v362
    %v364 = vlaneseq
    %v365 = vshrl.u32 %v364, 7
    %v366 = vsub.s32 %v363, %v365
    %v367 = vrot.slane %v353, %v366
    %v368 = vcombine.low %v169, %v181
    %v369 = vcombine.high %v169, %v181
    %v371 = vunpack.c.l.s4 1983009808
    %v372 = vunpack.c.0.s8 %v371
    %v373 = vlaneseq
    %v374 = vshrl.u32 %v373, 7
    %v375 = vsub.s32 %v372, %v374
    %v376 = vrot.slane %v368, %v375
    %v378 = vunpack.c.l.s4 1983009808
    %v379 = vunpack.c.0.s8 %v378
    %v380 = vlaneseq
    %v381 = vshrl.u32 %v380, 7
    %v382 = vsub.s32 %v379, %v381
    %v383 = vrot.slane %v369, %v382
    %v384 = vcombine.low %v328, %v344
    %v385 = vcombine.high %v328, %v344
    %v387 = vunpack.c.l.s4 1934713408
    %v388 = vunpack.c.0.s8 %v387
    %v389 = vlaneseq
    %v390 = vshrl.u32 %v389, 7
    %v391 = vsub.s32 %v388, %v390
    %v392 = vrot.slane %v384, %v391
    %v394 = vunpack.c.l.s4 1934713408
    %v395 = vunpack.c.0.s8 %v394
    %v396 = vlaneseq
    %v397 = vshrl.u32 %v396, 7
    %v398 = vsub.s32 %v395, %v397
    %v399 = vrot.slane %v385, %v398
    %v400 = vcombine.low %v335, %v351
    %v401 = vcombine.high %v335, %v351
    %v403 = vunpack.c.l.s4 1934713408
    %v404 = vunpack.c.0.s8 %v403
    %v405 = vlaneseq
    %v406 = vshrl.u32 %v405, 7
    %v407 = vsub.s32 %v404, %v406
    %v408 = vrot.slane %v400, %v407
    %v410 = vunpack.c.l.s4 1934713408
    %v411 = vunpack.c.0.s8 %v410
    %v412 = vlaneseq
    %v413 = vshrl.u32 %v412, 7
    %v414 = vsub.s32 %v411, %v413
    %v415 = vrot.slane %v401, %v414
    %v416 = vcombine.low %v360, %v376
    %v417 = vcombine.high %v360, %v376
    %v419 = vunpack.c.l.s4 1934713408
    %v420 = vunpack.c.0.s8 %v419
    %v421 = vlaneseq
    %v422 = vshrl.u32 %v421, 7
    %v423 = vsub.s32 %v420, %v422
    %v424 = vrot.slane %v416, %v423
    %v426 = vunpack.c.l.s4 1934713408
    %v427 = vunpack.c.0.s8 %v426
    %v428 = vlaneseq
    %v429 = vshrl.u32 %v428, 7
    %v430 = vsub.s32 %v427, %v429
    %v431 = vrot.slane %v417, %v430
    %v432 = vcombine.low %v367, %v383
    %v433 = vcombine.high %v367, %v383
    %v435 = vunpack.c.l.s4 1934713408
    %v436 = vunpack.c.0.s8 %v435
    %v437 = vlaneseq
    %v438 = vshrl.u32 %v437, 7
    %v439 = vsub.s32 %v436, %v438
    %v440 = vrot.slane %v432, %v439
    %v442 = vunpack.c.l.s4 1934713408
    %v443 = vunpack.c.0.s8 %v442
    %v444 = vlaneseq
    %v445 = vshrl.u32 %v444, 7
    %v446 = vsub.s32 %v443, %v445
    %v447 = vrot.slane %v433, %v446
    %v448 = vcombine.low %v392, %v424
    %v449 = vcombine.high %v392, %v424
    %v450 = vcombine.low %v399, %v431
    %v451 = vcombine.high %v399, %v431
    %v452 = vcombine.low %v408, %v440
    %v453 = vcombine.high %v408, %v440
    %v454 = vcombine.low %v415, %v447
    %v455 = vcombine.high %v415, %v447
    %456 = vrot.lane.b32.xlu0 %v132, 96
    %v457 = vpop.permute.xlu0 %456
    %458 = vrot.lane.b32.xlu0 %v137, 96
    %v459 = vpop.permute.xlu0 %458
    %460 = vrot.lane.b32.xlu0 %v143, 96
    %v461 = vpop.permute.xlu0 %460
    %462 = vrot.lane.b32.xlu0 %v145, 96
    %v463 = vpop.permute.xlu0 %462
    %464 = vrot.lane.b32.xlu0 %v149, 96
    %v465 = vpop.permute.xlu0 %464
    %466 = vrot.lane.b32.xlu0 %v151, 96
    %v467 = vpop.permute.xlu0 %466
    %468 = vrot.lane.b32.xlu0 %v155, 96
    %v469 = vpop.permute.xlu0 %468
    %470 = vrot.lane.b32.xlu0 %v157, 96
    %v471 = vpop.permute.xlu0 %470
    %472 = vrot.lane.b32.xlu0 %v161, 96
    %v473 = vpop.permute.xlu0 %472
    %474 = vrot.lane.b32.xlu0 %v163, 96
    %v475 = vpop.permute.xlu0 %474
    %476 = vrot.lane.b32.xlu0 %v167, 96
    %v477 = vpop.permute.xlu0 %476
    %478 = vrot.lane.b32.xlu0 %v169, 96
    %v479 = vpop.permute.xlu0 %478
    %480 = vrot.lane.b32.xlu0 %v173, 96
    %v481 = vpop.permute.xlu0 %480
    %482 = vrot.lane.b32.xlu0 %v175, 96
    %v483 = vpop.permute.xlu0 %482
    %484 = vrot.lane.b32.xlu0 %v179, 96
    %v485 = vpop.permute.xlu0 %484
    %486 = vrot.lane.b32.xlu0 %v181, 96
    %v487 = vpop.permute.xlu0 %486
    %v504 = vcombine.low %v457, %v465
    %v505 = vcombine.high %v457, %v465
    %v507 = vunpack.c.l.s4 1983009808
    %v508 = vunpack.c.0.s8 %v507
    %v509 = vlaneseq
    %v510 = vshrl.u32 %v509, 7
    %v511 = vsub.s32 %v508, %v510
    %v512 = vrot.slane %v504, %v511
    %v514 = vunpack.c.l.s4 1983009808
    %v515 = vunpack.c.0.s8 %v514
    %v516 = vlaneseq
    %v517 = vshrl.u32 %v516, 7
    %v518 = vsub.s32 %v515, %v517
    %v519 = vrot.slane %v505, %v518
    %v520 = vcombine.low %v461, %v469
    %v521 = vcombine.high %v461, %v469
    %v523 = vunpack.c.l.s4 1983009808
    %v524 = vunpack.c.0.s8 %v523
    %v525 = vlaneseq
    %v526 = vshrl.u32 %v525, 7
    %v527 = vsub.s32 %v524, %v526
    %v528 = vrot.slane %v520, %v527
    %v530 = vunpack.c.l.s4 1983009808
    %v531 = vunpack.c.0.s8 %v530
    %v532 = vlaneseq
    %v533 = vshrl.u32 %v532, 7
    %v534 = vsub.s32 %v531, %v533
    %v535 = vrot.slane %v521, %v534
    %v536 = vcombine.low %v473, %v481
    %v537 = vcombine.high %v473, %v481
    %v539 = vunpack.c.l.s4 1983009808
    %v540 = vunpack.c.0.s8 %v539
    %v541 = vlaneseq
    %v542 = vshrl.u32 %v541, 7
    %v543 = vsub.s32 %v540, %v542
    %v544 = vrot.slane %v536, %v543
    %v546 = vunpack.c.l.s4 1983009808
    %v547 = vunpack.c.0.s8 %v546
    %v548 = vlaneseq
    %v549 = vshrl.u32 %v548, 7
    %v550 = vsub.s32 %v547, %v549
    %v551 = vrot.slane %v537, %v550
    %v552 = vcombine.low %v477, %v485
    %v553 = vcombine.high %v477, %v485
    %v555 = vunpack.c.l.s4 1983009808
    %v556 = vunpack.c.0.s8 %v555
    %v557 = vlaneseq
    %v558 = vshrl.u32 %v557, 7
    %v559 = vsub.s32 %v556, %v558
    %v560 = vrot.slane %v552, %v559
    %v562 = vunpack.c.l.s4 1983009808
    %v563 = vunpack.c.0.s8 %v562
    %v564 = vlaneseq
    %v565 = vshrl.u32 %v564, 7
    %v566 = vsub.s32 %v563, %v565
    %v567 = vrot.slane %v553, %v566
    %v568 = vcombine.low %v512, %v528
    %v569 = vcombine.high %v512, %v528
    %v571 = vunpack.c.l.s4 1934713408
    %v572 = vunpack.c.0.s8 %v571
    %v573 = vlaneseq
    %v574 = vshrl.u32 %v573, 7
    %v575 = vsub.s32 %v572, %v574
    %v576 = vrot.slane %v568, %v575
    %v578 = vunpack.c.l.s4 1934713408
    %v579 = vunpack.c.0.s8 %v578
    %v580 = vlaneseq
    %v581 = vshrl.u32 %v580, 7
    %v582 = vsub.s32 %v579, %v581
    %v583 = vrot.slane %v569, %v582
    %v584 = vcombine.low %v519, %v535
    %v585 = vcombine.high %v519, %v535
    %v587 = vunpack.c.l.s4 1934713408
    %v588 = vunpack.c.0.s8 %v587
    %v589 = vlaneseq
    %v590 = vshrl.u32 %v589, 7
    %v591 = vsub.s32 %v588, %v590
    %v592 = vrot.slane %v584, %v591
    %v594 = vunpack.c.l.s4 1934713408
    %v595 = vunpack.c.0.s8 %v594
    %v596 = vlaneseq
    %v597 = vshrl.u32 %v596, 7
    %v598 = vsub.s32 %v595, %v597
    %v599 = vrot.slane %v585, %v598
    %v600 = vcombine.low %v544, %v560
    %v601 = vcombine.high %v544, %v560
    %v603 = vunpack.c.l.s4 1934713408
    %v604 = vunpack.c.0.s8 %v603
    %v605 = vlaneseq
    %v606 = vshrl.u32 %v605, 7
    %v607 = vsub.s32 %v604, %v606
    %v608 = vrot.slane %v600, %v607
    %v610 = vunpack.c.l.s4 1934713408
    %v611 = vunpack.c.0.s8 %v610
    %v612 = vlaneseq
    %v613 = vshrl.u32 %v612, 7
    %v614 = vsub.s32 %v611, %v613
    %v615 = vrot.slane %v601, %v614
    %v616 = vcombine.low %v551, %v567
    %v617 = vcombine.high %v551, %v567
    %v619 = vunpack.c.l.s4 1934713408
    %v620 = vunpack.c.0.s8 %v619
    %v621 = vlaneseq
    %v622 = vshrl.u32 %v621, 7
    %v623 = vsub.s32 %v620, %v622
    %v624 = vrot.slane %v616, %v623
    %v626 = vunpack.c.l.s4 1934713408
    %v627 = vunpack.c.0.s8 %v626
    %v628 = vlaneseq
    %v629 = vshrl.u32 %v628, 7
    %v630 = vsub.s32 %v627, %v629
    %v631 = vrot.slane %v617, %v630
    %v632 = vcombine.low %v576, %v608
    %v633 = vcombine.high %v576, %v608
    %v634 = vcombine.low %v583, %v615
    %v635 = vcombine.high %v583, %v615
    %v636 = vcombine.low %v592, %v624
    %v637 = vcombine.high %v592, %v624
    %v638 = vcombine.low %v599, %v631
    %v639 = vcombine.high %v599, %v631
    %v640 = vcombine.low %v459, %v467
    %v641 = vcombine.high %v459, %v467
    %v643 = vunpack.c.l.s4 1983009808
    %v644 = vunpack.c.0.s8 %v643
    %v645 = vlaneseq
    %v646 = vshrl.u32 %v645, 7
    %v647 = vsub.s32 %v644, %v646
    %v648 = vrot.slane %v640, %v647
    %v650 = vunpack.c.l.s4 1983009808
    %v651 = vunpack.c.0.s8 %v650
    %v652 = vlaneseq
    %v653 = vshrl.u32 %v652, 7
    %v654 = vsub.s32 %v651, %v653
    %v655 = vrot.slane %v641, %v654
    %v656 = vcombine.low %v463, %v471
    %v657 = vcombine.high %v463, %v471
    %v659 = vunpack.c.l.s4 1983009808
    %v660 = vunpack.c.0.s8 %v659
    %v661 = vlaneseq
    %v662 = vshrl.u32 %v661, 7
    %v663 = vsub.s32 %v660, %v662
    %v664 = vrot.slane %v656, %v663
    %v666 = vunpack.c.l.s4 1983009808
    %v667 = vunpack.c.0.s8 %v666
    %v668 = vlaneseq
    %v669 = vshrl.u32 %v668, 7
    %v670 = vsub.s32 %v667, %v669
    %v671 = vrot.slane %v657, %v670
    %v672 = vcombine.low %v475, %v483
    %v673 = vcombine.high %v475, %v483
    %v675 = vunpack.c.l.s4 1983009808
    %v676 = vunpack.c.0.s8 %v675
    %v677 = vlaneseq
    %v678 = vshrl.u32 %v677, 7
    %v679 = vsub.s32 %v676, %v678
    %v680 = vrot.slane %v672, %v679
    %v682 = vunpack.c.l.s4 1983009808
    %v683 = vunpack.c.0.s8 %v682
    %v684 = vlaneseq
    %v685 = vshrl.u32 %v684, 7
    %v686 = vsub.s32 %v683, %v685
    %v687 = vrot.slane %v673, %v686
    %v688 = vcombine.low %v479, %v487
    %v689 = vcombine.high %v479, %v487
    %v691 = vunpack.c.l.s4 1983009808
    %v692 = vunpack.c.0.s8 %v691
    %v693 = vlaneseq
    %v694 = vshrl.u32 %v693, 7
    %v695 = vsub.s32 %v692, %v694
    %v696 = vrot.slane %v688, %v695
    %v698 = vunpack.c.l.s4 1983009808
    %v699 = vunpack.c.0.s8 %v698
    %v700 = vlaneseq
    %v701 = vshrl.u32 %v700, 7
    %v702 = vsub.s32 %v699, %v701
    %v703 = vrot.slane %v689, %v702
    %v704 = vcombine.low %v648, %v664
    %v705 = vcombine.high %v648, %v664
    %v707 = vunpack.c.l.s4 1934713408
    %v708 = vunpack.c.0.s8 %v707
    %v709 = vlaneseq
    %v710 = vshrl.u32 %v709, 7
    %v711 = vsub.s32 %v708, %v710
    %v712 = vrot.slane %v704, %v711
    %v714 = vunpack.c.l.s4 1934713408
    %v715 = vunpack.c.0.s8 %v714
    %v716 = vlaneseq
    %v717 = vshrl.u32 %v716, 7
    %v718 = vsub.s32 %v715, %v717
    %v719 = vrot.slane %v705, %v718
    %v720 = vcombine.low %v655, %v671
    %v721 = vcombine.high %v655, %v671
    %v723 = vunpack.c.l.s4 1934713408
    %v724 = vunpack.c.0.s8 %v723
    %v725 = vlaneseq
    %v726 = vshrl.u32 %v725, 7
    %v727 = vsub.s32 %v724, %v726
    %v728 = vrot.slane %v720, %v727
    %v730 = vunpack.c.l.s4 1934713408
    %v731 = vunpack.c.0.s8 %v730
    %v732 = vlaneseq
    %v733 = vshrl.u32 %v732, 7
    %v734 = vsub.s32 %v731, %v733
    %v735 = vrot.slane %v721, %v734
    %v736 = vcombine.low %v680, %v696
    %v737 = vcombine.high %v680, %v696
    %v739 = vunpack.c.l.s4 1934713408
    %v740 = vunpack.c.0.s8 %v739
    %v741 = vlaneseq
    %v742 = vshrl.u32 %v741, 7
    %v743 = vsub.s32 %v740, %v742
    %v744 = vrot.slane %v736, %v743
    %v746 = vunpack.c.l.s4 1934713408
    %v747 = vunpack.c.0.s8 %v746
    %v748 = vlaneseq
    %v749 = vshrl.u32 %v748, 7
    %v750 = vsub.s32 %v747, %v749
    %v751 = vrot.slane %v737, %v750
    %v752 = vcombine.low %v687, %v703
    %v753 = vcombine.high %v687, %v703
    %v755 = vunpack.c.l.s4 1934713408
    %v756 = vunpack.c.0.s8 %v755
    %v757 = vlaneseq
    %v758 = vshrl.u32 %v757, 7
    %v759 = vsub.s32 %v756, %v758
    %v760 = vrot.slane %v752, %v759
    %v762 = vunpack.c.l.s4 1934713408
    %v763 = vunpack.c.0.s8 %v762
    %v764 = vlaneseq
    %v765 = vshrl.u32 %v764, 7
    %v766 = vsub.s32 %v763, %v765
    %v767 = vrot.slane %v753, %v766
    %v768 = vcombine.low %v712, %v744
    %v769 = vcombine.high %v712, %v744
    %v770 = vcombine.low %v719, %v751
    %v771 = vcombine.high %v719, %v751
    %v772 = vcombine.low %v728, %v760
    %v773 = vcombine.high %v728, %v760
    %v774 = vcombine.low %v735, %v767
    %v775 = vcombine.high %v735, %v767
    %776 = vrot.lane.b32.xlu0 %v132, 64
    %v777 = vpop.permute.xlu0 %776
    %778 = vrot.lane.b32.xlu0 %v137, 64
    %v779 = vpop.permute.xlu0 %778
    %780 = vrot.lane.b32.xlu0 %v143, 64
    %v781 = vpop.permute.xlu0 %780
    %782 = vrot.lane.b32.xlu0 %v145, 64
    %v783 = vpop.permute.xlu0 %782
    %784 = vrot.lane.b32.xlu0 %v149, 64
    %v785 = vpop.permute.xlu0 %784
    %786 = vrot.lane.b32.xlu0 %v151, 64
    %v787 = vpop.permute.xlu0 %786
    %788 = vrot.lane.b32.xlu0 %v155, 64
    %v789 = vpop.permute.xlu0 %788
    %790 = vrot.lane.b32.xlu0 %v157, 64
    %v791 = vpop.permute.xlu0 %790
    %792 = vrot.lane.b32.xlu0 %v161, 64
    %v793 = vpop.permute.xlu0 %792
    %794 = vrot.lane.b32.xlu0 %v163, 64
    %v795 = vpop.permute.xlu0 %794
    %796 = vrot.lane.b32.xlu0 %v167, 64
    %v797 = vpop.permute.xlu0 %796
    %798 = vrot.lane.b32.xlu0 %v169, 64
    %v799 = vpop.permute.xlu0 %798
    %800 = vrot.lane.b32.xlu0 %v173, 64
    %v801 = vpop.permute.xlu0 %800
    %802 = vrot.lane.b32.xlu0 %v175, 64
    %v803 = vpop.permute.xlu0 %802
    %804 = vrot.lane.b32.xlu0 %v179, 64
    %v805 = vpop.permute.xlu0 %804
    %806 = vrot.lane.b32.xlu0 %v181, 64
    %v807 = vpop.permute.xlu0 %806
    %v824 = vcombine.low %v777, %v785
    %v825 = vcombine.high %v777, %v785
    %v827 = vunpack.c.l.s4 1983009808
    %v828 = vunpack.c.0.s8 %v827
    %v829 = vlaneseq
    %v830 = vshrl.u32 %v829, 7
    %v831 = vsub.s32 %v828, %v830
    %v832 = vrot.slane %v824, %v831
    %v834 = vunpack.c.l.s4 1983009808
    %v835 = vunpack.c.0.s8 %v834
    %v836 = vlaneseq
    %v837 = vshrl.u32 %v836, 7
    %v838 = vsub.s32 %v835, %v837
    %v839 = vrot.slane %v825, %v838
    %v840 = vcombine.low %v781, %v789
    %v841 = vcombine.high %v781, %v789
    %v843 = vunpack.c.l.s4 1983009808
    %v844 = vunpack.c.0.s8 %v843
    %v845 = vlaneseq
    %v846 = vshrl.u32 %v845, 7
    %v847 = vsub.s32 %v844, %v846
    %v848 = vrot.slane %v840, %v847
    %v850 = vunpack.c.l.s4 1983009808
    %v851 = vunpack.c.0.s8 %v850
    %v852 = vlaneseq
    %v853 = vshrl.u32 %v852, 7
    %v854 = vsub.s32 %v851, %v853
    %v855 = vrot.slane %v841, %v854
    %v856 = vcombine.low %v793, %v801
    %v857 = vcombine.high %v793, %v801
    %v859 = vunpack.c.l.s4 1983009808
    %v860 = vunpack.c.0.s8 %v859
    %v861 = vlaneseq
    %v862 = vshrl.u32 %v861, 7
    %v863 = vsub.s32 %v860, %v862
    %v864 = vrot.slane %v856, %v863
    %v866 = vunpack.c.l.s4 1983009808
    %v867 = vunpack.c.0.s8 %v866
    %v868 = vlaneseq
    %v869 = vshrl.u32 %v868, 7
    %v870 = vsub.s32 %v867, %v869
    %v871 = vrot.slane %v857, %v870
    %v872 = vcombine.low %v797, %v805
    %v873 = vcombine.high %v797, %v805
    %v875 = vunpack.c.l.s4 1983009808
    %v876 = vunpack.c.0.s8 %v875
    %v877 = vlaneseq
    %v878 = vshrl.u32 %v877, 7
    %v879 = vsub.s32 %v876, %v878
    %v880 = vrot.slane %v872, %v879
    %v882 = vunpack.c.l.s4 1983009808
    %v883 = vunpack.c.0.s8 %v882
    %v884 = vlaneseq
    %v885 = vshrl.u32 %v884, 7
    %v886 = vsub.s32 %v883, %v885
    %v887 = vrot.slane %v873, %v886
    %v888 = vcombine.low %v832, %v848
    %v889 = vcombine.high %v832, %v848
    %v891 = vunpack.c.l.s4 1934713408
    %v892 = vunpack.c.0.s8 %v891
    %v893 = vlaneseq
    %v894 = vshrl.u32 %v893, 7
    %v895 = vsub.s32 %v892, %v894
    %v896 = vrot.slane %v888, %v895
    %v898 = vunpack.c.l.s4 1934713408
    %v899 = vunpack.c.0.s8 %v898
    %v900 = vlaneseq
    %v901 = vshrl.u32 %v900, 7
    %v902 = vsub.s32 %v899, %v901
    %v903 = vrot.slane %v889, %v902
    %v904 = vcombine.low %v839, %v855
    %v905 = vcombine.high %v839, %v855
    %v907 = vunpack.c.l.s4 1934713408
    %v908 = vunpack.c.0.s8 %v907
    %v909 = vlaneseq
    %v910 = vshrl.u32 %v909, 7
    %v911 = vsub.s32 %v908, %v910
    %v912 = vrot.slane %v904, %v911
    %v914 = vunpack.c.l.s4 1934713408
    %v915 = vunpack.c.0.s8 %v914
    %v916 = vlaneseq
    %v917 = vshrl.u32 %v916, 7
    %v918 = vsub.s32 %v915, %v917
    %v919 = vrot.slane %v905, %v918
    %v920 = vcombine.low %v864, %v880
    %v921 = vcombine.high %v864, %v880
    %v923 = vunpack.c.l.s4 1934713408
    %v924 = vunpack.c.0.s8 %v923
    %v925 = vlaneseq
    %v926 = vshrl.u32 %v925, 7
    %v927 = vsub.s32 %v924, %v926
    %v928 = vrot.slane %v920, %v927
    %v930 = vunpack.c.l.s4 1934713408
    %v931 = vunpack.c.0.s8 %v930
    %v932 = vlaneseq
    %v933 = vshrl.u32 %v932, 7
    %v934 = vsub.s32 %v931, %v933
    %v935 = vrot.slane %v921, %v934
    %v936 = vcombine.low %v871, %v887
    %v937 = vcombine.high %v871, %v887
    %v939 = vunpack.c.l.s4 1934713408
    %v940 = vunpack.c.0.s8 %v939
    %v941 = vlaneseq
    %v942 = vshrl.u32 %v941, 7
    %v943 = vsub.s32 %v940, %v942
    %v944 = vrot.slane %v936, %v943
    %v946 = vunpack.c.l.s4 1934713408
    %v947 = vunpack.c.0.s8 %v946
    %v948 = vlaneseq
    %v949 = vshrl.u32 %v948, 7
    %v950 = vsub.s32 %v947, %v949
    %v951 = vrot.slane %v937, %v950
    %v952 = vcombine.low %v896, %v928
    %v953 = vcombine.high %v896, %v928
    %v954 = vcombine.low %v903, %v935
    %v955 = vcombine.high %v903, %v935
    %v956 = vcombine.low %v912, %v944
    %v957 = vcombine.high %v912, %v944
    %v958 = vcombine.low %v919, %v951
    %v959 = vcombine.high %v919, %v951
    %v960 = vcombine.low %v779, %v787
    %v961 = vcombine.high %v779, %v787
    %v963 = vunpack.c.l.s4 1983009808
    %v964 = vunpack.c.0.s8 %v963
    %v965 = vlaneseq
    %v966 = vshrl.u32 %v965, 7
    %v967 = vsub.s32 %v964, %v966
    %v968 = vrot.slane %v960, %v967
    %v970 = vunpack.c.l.s4 1983009808
    %v971 = vunpack.c.0.s8 %v970
    %v972 = vlaneseq
    %v973 = vshrl.u32 %v972, 7
    %v974 = vsub.s32 %v971, %v973
    %v975 = vrot.slane %v961, %v974
    %v976 = vcombine.low %v783, %v791
    %v977 = vcombine.high %v783, %v791
    %v979 = vunpack.c.l.s4 1983009808
    %v980 = vunpack.c.0.s8 %v979
    %v981 = vlaneseq
    %v982 = vshrl.u32 %v981, 7
    %v983 = vsub.s32 %v980, %v982
    %v984 = vrot.slane %v976, %v983
    %v986 = vunpack.c.l.s4 1983009808
    %v987 = vunpack.c.0.s8 %v986
    %v988 = vlaneseq
    %v989 = vshrl.u32 %v988, 7
    %v990 = vsub.s32 %v987, %v989
    %v991 = vrot.slane %v977, %v990
    %v992 = vcombine.low %v795, %v803
    %v993 = vcombine.high %v795, %v803
    %v995 = vunpack.c.l.s4 1983009808
    %v996 = vunpack.c.0.s8 %v995
    %v997 = vlaneseq
    %v998 = vshrl.u32 %v997, 7
    %v999 = vsub.s32 %v996, %v998
    %v1000 = vrot.slane %v992, %v999
    %v1002 = vunpack.c.l.s4 1983009808
    %v1003 = vunpack.c.0.s8 %v1002
    %v1004 = vlaneseq
    %v1005 = vshrl.u32 %v1004, 7
    %v1006 = vsub.s32 %v1003, %v1005
    %v1007 = vrot.slane %v993, %v1006
    %v1008 = vcombine.low %v799, %v807
    %v1009 = vcombine.high %v799, %v807
    %v1011 = vunpack.c.l.s4 1983009808
    %v1012 = vunpack.c.0.s8 %v1011
    %v1013 = vlaneseq
    %v1014 = vshrl.u32 %v1013, 7
    %v1015 = vsub.s32 %v1012, %v1014
    %v1016 = vrot.slane %v1008, %v1015
    %v1018 = vunpack.c.l.s4 1983009808
    %v1019 = vunpack.c.0.s8 %v1018
    %v1020 = vlaneseq
    %v1021 = vshrl.u32 %v1020, 7
    %v1022 = vsub.s32 %v1019, %v1021
    %v1023 = vrot.slane %v1009, %v1022
    %v1024 = vcombine.low %v968, %v984
    %v1025 = vcombine.high %v968, %v984
    %v1027 = vunpack.c.l.s4 1934713408
    %v1028 = vunpack.c.0.s8 %v1027
    %v1029 = vlaneseq
    %v1030 = vshrl.u32 %v1029, 7
    %v1031 = vsub.s32 %v1028, %v1030
    %v1032 = vrot.slane %v1024, %v1031
    %v1034 = vunpack.c.l.s4 1934713408
    %v1035 = vunpack.c.0.s8 %v1034
    %v1036 = vlaneseq
    %v1037 = vshrl.u32 %v1036, 7
    %v1038 = vsub.s32 %v1035, %v1037
    %v1039 = vrot.slane %v1025, %v1038
    %v1040 = vcombine.low %v975, %v991
    %v1041 = vcombine.high %v975, %v991
    %v1043 = vunpack.c.l.s4 1934713408
    %v1044 = vunpack.c.0.s8 %v1043
    %v1045 = vlaneseq
    %v1046 = vshrl.u32 %v1045, 7
    %v1047 = vsub.s32 %v1044, %v1046
    %v1048 = vrot.slane %v1040, %v1047
    %v1050 = vunpack.c.l.s4 1934713408
    %v1051 = vunpack.c.0.s8 %v1050
    %v1052 = vlaneseq
    %v1053 = vshrl.u32 %v1052, 7
    %v1054 = vsub.s32 %v1051, %v1053
    %v1055 = vrot.slane %v1041, %v1054
    %v1056 = vcombine.low %v1000, %v1016
    %v1057 = vcombine.high %v1000, %v1016
    %v1059 = vunpack.c.l.s4 1934713408
    %v1060 = vunpack.c.0.s8 %v1059
    %v1061 = vlaneseq
    %v1062 = vshrl.u32 %v1061, 7
    %v1063 = vsub.s32 %v1060, %v1062
    %v1064 = vrot.slane %v1056, %v1063
    %v1066 = vunpack.c.l.s4 1934713408
    %v1067 = vunpack.c.0.s8 %v1066
    %v1068 = vlaneseq
    %v1069 = vshrl.u32 %v1068, 7
    %v1070 = vsub.s32 %v1067, %v1069
    %v1071 = vrot.slane %v1057, %v1070
    %v1072 = vcombine.low %v1007, %v1023
    %v1073 = vcombine.high %v1007, %v1023
    %v1075 = vunpack.c.l.s4 1934713408
    %v1076 = vunpack.c.0.s8 %v1075
    %v1077 = vlaneseq
    %v1078 = vshrl.u32 %v1077, 7
    %v1079 = vsub.s32 %v1076, %v1078
    %v1080 = vrot.slane %v1072, %v1079
    %v1082 = vunpack.c.l.s4 1934713408
    %v1083 = vunpack.c.0.s8 %v1082
    %v1084 = vlaneseq
    %v1085 = vshrl.u32 %v1084, 7
    %v1086 = vsub.s32 %v1083, %v1085
    %v1087 = vrot.slane %v1073, %v1086
    %v1088 = vcombine.low %v1032, %v1064
    %v1089 = vcombine.high %v1032, %v1064
    %v1090 = vcombine.low %v1039, %v1071
    %v1091 = vcombine.high %v1039, %v1071
    %v1092 = vcombine.low %v1048, %v1080
    %v1093 = vcombine.high %v1048, %v1080
    %v1094 = vcombine.low %v1055, %v1087
    %v1095 = vcombine.high %v1055, %v1087
    %v1096 = vcombine.low %v312, %v314
    %v1097 = vcombine.high %v312, %v314
    %v1099 = vunpack.c.l.s4 1983009808
    %v1100 = vunpack.c.0.s8 %v1099
    %v1101 = vlaneseq
    %v1102 = vshrl.u32 %v1101, 7
    %v1103 = vsub.s32 %v1100, %v1102
    %v1104 = vrot.slane %v1096, %v1103
    %v1106 = vunpack.c.l.s4 1983009808
    %v1107 = vunpack.c.0.s8 %v1106
    %v1108 = vlaneseq
    %v1109 = vshrl.u32 %v1108, 7
    %v1110 = vsub.s32 %v1107, %v1109
    %v1111 = vrot.slane %v1097, %v1110
    %v1112 = vcombine.low %v313, %v315
    %v1113 = vcombine.high %v313, %v315
    %v1115 = vunpack.c.l.s4 1983009808
    %v1116 = vunpack.c.0.s8 %v1115
    %v1117 = vlaneseq
    %v1118 = vshrl.u32 %v1117, 7
    %v1119 = vsub.s32 %v1116, %v1118
    %v1120 = vrot.slane %v1112, %v1119
    %v1122 = vunpack.c.l.s4 1983009808
    %v1123 = vunpack.c.0.s8 %v1122
    %v1124 = vlaneseq
    %v1125 = vshrl.u32 %v1124, 7
    %v1126 = vsub.s32 %v1123, %v1125
    %v1127 = vrot.slane %v1113, %v1126
    %v1128 = vcombine.low %v316, %v318
    %v1129 = vcombine.high %v316, %v318
    %v1131 = vunpack.c.l.s4 1983009808
    %v1132 = vunpack.c.0.s8 %v1131
    %v1133 = vlaneseq
    %v1134 = vshrl.u32 %v1133, 7
    %v1135 = vsub.s32 %v1132, %v1134
    %v1136 = vrot.slane %v1128, %v1135
    %v1138 = vunpack.c.l.s4 1983009808
    %v1139 = vunpack.c.0.s8 %v1138
    %v1140 = vlaneseq
    %v1141 = vshrl.u32 %v1140, 7
    %v1142 = vsub.s32 %v1139, %v1141
    %v1143 = vrot.slane %v1129, %v1142
    %v1144 = vcombine.low %v317, %v319
    %v1145 = vcombine.high %v317, %v319
    %v1147 = vunpack.c.l.s4 1983009808
    %v1148 = vunpack.c.0.s8 %v1147
    %v1149 = vlaneseq
    %v1150 = vshrl.u32 %v1149, 7
    %v1151 = vsub.s32 %v1148, %v1150
    %v1152 = vrot.slane %v1144, %v1151
    %v1154 = vunpack.c.l.s4 1983009808
    %v1155 = vunpack.c.0.s8 %v1154
    %v1156 = vlaneseq
    %v1157 = vshrl.u32 %v1156, 7
    %v1158 = vsub.s32 %v1155, %v1157
    %v1159 = vrot.slane %v1145, %v1158
    %v1160 = vcombine.low %v1104, %v1120
    %v1161 = vcombine.high %v1104, %v1120
    %v1163 = vunpack.c.l.s4 1934713408
    %v1164 = vunpack.c.0.s8 %v1163
    %v1165 = vlaneseq
    %v1166 = vshrl.u32 %v1165, 7
    %v1167 = vsub.s32 %v1164, %v1166
    %v1168 = vrot.slane %v1160, %v1167
    %v1170 = vunpack.c.l.s4 1934713408
    %v1171 = vunpack.c.0.s8 %v1170
    %v1172 = vlaneseq
    %v1173 = vshrl.u32 %v1172, 7
    %v1174 = vsub.s32 %v1171, %v1173
    %v1175 = vrot.slane %v1161, %v1174
    %v1176 = vcombine.low %v1111, %v1127
    %v1177 = vcombine.high %v1111, %v1127
    %v1179 = vunpack.c.l.s4 1934713408
    %v1180 = vunpack.c.0.s8 %v1179
    %v1181 = vlaneseq
    %v1182 = vshrl.u32 %v1181, 7
    %v1183 = vsub.s32 %v1180, %v1182
    %v1184 = vrot.slane %v1176, %v1183
    %v1186 = vunpack.c.l.s4 1934713408
    %v1187 = vunpack.c.0.s8 %v1186
    %v1188 = vlaneseq
    %v1189 = vshrl.u32 %v1188, 7
    %v1190 = vsub.s32 %v1187, %v1189
    %v1191 = vrot.slane %v1177, %v1190
    %v1192 = vcombine.low %v1136, %v1152
    %v1193 = vcombine.high %v1136, %v1152
    %v1195 = vunpack.c.l.s4 1934713408
    %v1196 = vunpack.c.0.s8 %v1195
    %v1197 = vlaneseq
    %v1198 = vshrl.u32 %v1197, 7
    %v1199 = vsub.s32 %v1196, %v1198
    %v1200 = vrot.slane %v1192, %v1199
    %v1202 = vunpack.c.l.s4 1934713408
    %v1203 = vunpack.c.0.s8 %v1202
    %v1204 = vlaneseq
    %v1205 = vshrl.u32 %v1204, 7
    %v1206 = vsub.s32 %v1203, %v1205
    %v1207 = vrot.slane %v1193, %v1206
    %v1208 = vcombine.low %v1143, %v1159
    %v1209 = vcombine.high %v1143, %v1159
    %v1211 = vunpack.c.l.s4 1934713408
    %v1212 = vunpack.c.0.s8 %v1211
    %v1213 = vlaneseq
    %v1214 = vshrl.u32 %v1213, 7
    %v1215 = vsub.s32 %v1212, %v1214
    %v1216 = vrot.slane %v1208, %v1215
    %v1218 = vunpack.c.l.s4 1934713408
    %v1219 = vunpack.c.0.s8 %v1218
    %v1220 = vlaneseq
    %v1221 = vshrl.u32 %v1220, 7
    %v1222 = vsub.s32 %v1219, %v1221
    %v1223 = vrot.slane %v1209, %v1222
    %v1224 = vcombine.low %v1168, %v1200
    %v1225 = vcombine.high %v1168, %v1200
    %v1226 = vcombine.low %v1175, %v1207
    %v1227 = vcombine.high %v1175, %v1207
    %v1228 = vcombine.low %v1184, %v1216
    %v1229 = vcombine.high %v1184, %v1216
    %v1230 = vcombine.low %v1191, %v1223
    %v1231 = vcombine.high %v1191, %v1223
    %v1232 = vcombine.low %v448, %v450
    %v1233 = vcombine.high %v448, %v450
    %v1235 = vunpack.c.l.s4 1983009808
    %v1236 = vunpack.c.0.s8 %v1235
    %v1237 = vlaneseq
    %v1238 = vshrl.u32 %v1237, 7
    %v1239 = vsub.s32 %v1236, %v1238
    %v1240 = vrot.slane %v1232, %v1239
    %v1242 = vunpack.c.l.s4 1983009808
    %v1243 = vunpack.c.0.s8 %v1242
    %v1244 = vlaneseq
    %v1245 = vshrl.u32 %v1244, 7
    %v1246 = vsub.s32 %v1243, %v1245
    %v1247 = vrot.slane %v1233, %v1246
    %v1248 = vcombine.low %v449, %v451
    %v1249 = vcombine.high %v449, %v451
    %v1251 = vunpack.c.l.s4 1983009808
    %v1252 = vunpack.c.0.s8 %v1251
    %v1253 = vlaneseq
    %v1254 = vshrl.u32 %v1253, 7
    %v1255 = vsub.s32 %v1252, %v1254
    %v1256 = vrot.slane %v1248, %v1255
    %v1258 = vunpack.c.l.s4 1983009808
    %v1259 = vunpack.c.0.s8 %v1258
    %v1260 = vlaneseq
    %v1261 = vshrl.u32 %v1260, 7
    %v1262 = vsub.s32 %v1259, %v1261
    %v1263 = vrot.slane %v1249, %v1262
    %v1264 = vcombine.low %v452, %v454
    %v1265 = vcombine.high %v452, %v454
    %v1267 = vunpack.c.l.s4 1983009808
    %v1268 = vunpack.c.0.s8 %v1267
    %v1269 = vlaneseq
    %v1270 = vshrl.u32 %v1269, 7
    %v1271 = vsub.s32 %v1268, %v1270
    %v1272 = vrot.slane %v1264, %v1271
    %v1274 = vunpack.c.l.s4 1983009808
    %v1275 = vunpack.c.0.s8 %v1274
    %v1276 = vlaneseq
    %v1277 = vshrl.u32 %v1276, 7
    %v1278 = vsub.s32 %v1275, %v1277
    %v1279 = vrot.slane %v1265, %v1278
    %v1280 = vcombine.low %v453, %v455
    %v1281 = vcombine.high %v453, %v455
    %v1283 = vunpack.c.l.s4 1983009808
    %v1284 = vunpack.c.0.s8 %v1283
    %v1285 = vlaneseq
    %v1286 = vshrl.u32 %v1285, 7
    %v1287 = vsub.s32 %v1284, %v1286
    %v1288 = vrot.slane %v1280, %v1287
    %v1290 = vunpack.c.l.s4 1983009808
    %v1291 = vunpack.c.0.s8 %v1290
    %v1292 = vlaneseq
    %v1293 = vshrl.u32 %v1292, 7
    %v1294 = vsub.s32 %v1291, %v1293
    %v1295 = vrot.slane %v1281, %v1294
    %v1296 = vcombine.low %v1240, %v1256
    %v1297 = vcombine.high %v1240, %v1256
    %v1299 = vunpack.c.l.s4 1934713408
    %v1300 = vunpack.c.0.s8 %v1299
    %v1301 = vlaneseq
    %v1302 = vshrl.u32 %v1301, 7
    %v1303 = vsub.s32 %v1300, %v1302
    %v1304 = vrot.slane %v1296, %v1303
    %v1306 = vunpack.c.l.s4 1934713408
    %v1307 = vunpack.c.0.s8 %v1306
    %v1308 = vlaneseq
    %v1309 = vshrl.u32 %v1308, 7
    %v1310 = vsub.s32 %v1307, %v1309
    %v1311 = vrot.slane %v1297, %v1310
    %v1312 = vcombine.low %v1247, %v1263
    %v1313 = vcombine.high %v1247, %v1263
    %v1315 = vunpack.c.l.s4 1934713408
    %v1316 = vunpack.c.0.s8 %v1315
    %v1317 = vlaneseq
    %v1318 = vshrl.u32 %v1317, 7
    %v1319 = vsub.s32 %v1316, %v1318
    %v1320 = vrot.slane %v1312, %v1319
    %v1322 = vunpack.c.l.s4 1934713408
    %v1323 = vunpack.c.0.s8 %v1322
    %v1324 = vlaneseq
    %v1325 = vshrl.u32 %v1324, 7
    %v1326 = vsub.s32 %v1323, %v1325
    %v1327 = vrot.slane %v1313, %v1326
    %v1328 = vcombine.low %v1272, %v1288
    %v1329 = vcombine.high %v1272, %v1288
    %v1331 = vunpack.c.l.s4 1934713408
    %v1332 = vunpack.c.0.s8 %v1331
    %v1333 = vlaneseq
    %v1334 = vshrl.u32 %v1333, 7
    %v1335 = vsub.s32 %v1332, %v1334
    %v1336 = vrot.slane %v1328, %v1335
    %v1338 = vunpack.c.l.s4 1934713408
    %v1339 = vunpack.c.0.s8 %v1338
    %v1340 = vlaneseq
    %v1341 = vshrl.u32 %v1340, 7
    %v1342 = vsub.s32 %v1339, %v1341
    %v1343 = vrot.slane %v1329, %v1342
    %v1344 = vcombine.low %v1279, %v1295
    %v1345 = vcombine.high %v1279, %v1295
    %v1347 = vunpack.c.l.s4 1934713408
    %v1348 = vunpack.c.0.s8 %v1347
    %v1349 = vlaneseq
    %v1350 = vshrl.u32 %v1349, 7
    %v1351 = vsub.s32 %v1348, %v1350
    %v1352 = vrot.slane %v1344, %v1351
    %v1354 = vunpack.c.l.s4 1934713408
    %v1355 = vunpack.c.0.s8 %v1354
    %v1356 = vlaneseq
    %v1357 = vshrl.u32 %v1356, 7
    %v1358 = vsub.s32 %v1355, %v1357
    %v1359 = vrot.slane %v1345, %v1358
    %v1360 = vcombine.low %v1304, %v1336
    %v1361 = vcombine.high %v1304, %v1336
    %v1362 = vcombine.low %v1311, %v1343
    %v1363 = vcombine.high %v1311, %v1343
    %v1364 = vcombine.low %v1320, %v1352
    %v1365 = vcombine.high %v1320, %v1352
    %v1366 = vcombine.low %v1327, %v1359
    %v1367 = vcombine.high %v1327, %v1359
    %v1368 = vcombine.low %v632, %v634
    %v1369 = vcombine.high %v632, %v634
    %v1371 = vunpack.c.l.s4 1983009808
    %v1372 = vunpack.c.0.s8 %v1371
    %v1373 = vlaneseq
    %v1374 = vshrl.u32 %v1373, 7
    %v1375 = vsub.s32 %v1372, %v1374
    %v1376 = vrot.slane %v1368, %v1375
    %v1378 = vunpack.c.l.s4 1983009808
    %v1379 = vunpack.c.0.s8 %v1378
    %v1380 = vlaneseq
    %v1381 = vshrl.u32 %v1380, 7
    %v1382 = vsub.s32 %v1379, %v1381
    %v1383 = vrot.slane %v1369, %v1382
    %v1384 = vcombine.low %v633, %v635
    %v1385 = vcombine.high %v633, %v635
    %v1387 = vunpack.c.l.s4 1983009808
    %v1388 = vunpack.c.0.s8 %v1387
    %v1389 = vlaneseq
    %v1390 = vshrl.u32 %v1389, 7
    %v1391 = vsub.s32 %v1388, %v1390
    %v1392 = vrot.slane %v1384, %v1391
    %v1394 = vunpack.c.l.s4 1983009808
    %v1395 = vunpack.c.0.s8 %v1394
    %v1396 = vlaneseq
    %v1397 = vshrl.u32 %v1396, 7
    %v1398 = vsub.s32 %v1395, %v1397
    %v1399 = vrot.slane %v1385, %v1398
    %v1400 = vcombine.low %v636, %v638
    %v1401 = vcombine.high %v636, %v638
    %v1403 = vunpack.c.l.s4 1983009808
    %v1404 = vunpack.c.0.s8 %v1403
    %v1405 = vlaneseq
    %v1406 = vshrl.u32 %v1405, 7
    %v1407 = vsub.s32 %v1404, %v1406
    %v1408 = vrot.slane %v1400, %v1407
    %v1410 = vunpack.c.l.s4 1983009808
    %v1411 = vunpack.c.0.s8 %v1410
    %v1412 = vlaneseq
    %v1413 = vshrl.u32 %v1412, 7
    %v1414 = vsub.s32 %v1411, %v1413
    %v1415 = vrot.slane %v1401, %v1414
    %v1416 = vcombine.low %v637, %v639
    %v1417 = vcombine.high %v637, %v639
    %v1419 = vunpack.c.l.s4 1983009808
    %v1420 = vunpack.c.0.s8 %v1419
    %v1421 = vlaneseq
    %v1422 = vshrl.u32 %v1421, 7
    %v1423 = vsub.s32 %v1420, %v1422
    %v1424 = vrot.slane %v1416, %v1423
    %v1426 = vunpack.c.l.s4 1983009808
    %v1427 = vunpack.c.0.s8 %v1426
    %v1428 = vlaneseq
    %v1429 = vshrl.u32 %v1428, 7
    %v1430 = vsub.s32 %v1427, %v1429
    %v1431 = vrot.slane %v1417, %v1430
    %v1432 = vcombine.low %v1376, %v1392
    %v1433 = vcombine.high %v1376, %v1392
    %v1435 = vunpack.c.l.s4 1934713408
    %v1436 = vunpack.c.0.s8 %v1435
    %v1437 = vlaneseq
    %v1438 = vshrl.u32 %v1437, 7
    %v1439 = vsub.s32 %v1436, %v1438
    %v1440 = vrot.slane %v1432, %v1439
    %v1442 = vunpack.c.l.s4 1934713408
    %v1443 = vunpack.c.0.s8 %v1442
    %v1444 = vlaneseq
    %v1445 = vshrl.u32 %v1444, 7
    %v1446 = vsub.s32 %v1443, %v1445
    %v1447 = vrot.slane %v1433, %v1446
    %v1448 = vcombine.low %v1383, %v1399
    %v1449 = vcombine.high %v1383, %v1399
    %v1451 = vunpack.c.l.s4 1934713408
    %v1452 = vunpack.c.0.s8 %v1451
    %v1453 = vlaneseq
    %v1454 = vshrl.u32 %v1453, 7
    %v1455 = vsub.s32 %v1452, %v1454
    %v1456 = vrot.slane %v1448, %v1455
    %v1458 = vunpack.c.l.s4 1934713408
    %v1459 = vunpack.c.0.s8 %v1458
    %v1460 = vlaneseq
    %v1461 = vshrl.u32 %v1460, 7
    %v1462 = vsub.s32 %v1459, %v1461
    %v1463 = vrot.slane %v1449, %v1462
    %v1464 = vcombine.low %v1408, %v1424
    %v1465 = vcombine.high %v1408, %v1424
    %v1467 = vunpack.c.l.s4 1934713408
    %v1468 = vunpack.c.0.s8 %v1467
    %v1469 = vlaneseq
    %v1470 = vshrl.u32 %v1469, 7
    %v1471 = vsub.s32 %v1468, %v1470
    %v1472 = vrot.slane %v1464, %v1471
    %v1474 = vunpack.c.l.s4 1934713408
    %v1475 = vunpack.c.0.s8 %v1474
    %v1476 = vlaneseq
    %v1477 = vshrl.u32 %v1476, 7
    %v1478 = vsub.s32 %v1475, %v1477
    %v1479 = vrot.slane %v1465, %v1478
    %v1480 = vcombine.low %v1415, %v1431
    %v1481 = vcombine.high %v1415, %v1431
    %v1483 = vunpack.c.l.s4 1934713408
    %v1484 = vunpack.c.0.s8 %v1483
    %v1485 = vlaneseq
    %v1486 = vshrl.u32 %v1485, 7
    %v1487 = vsub.s32 %v1484, %v1486
    %v1488 = vrot.slane %v1480, %v1487
    %v1490 = vunpack.c.l.s4 1934713408
    %v1491 = vunpack.c.0.s8 %v1490
    %v1492 = vlaneseq
    %v1493 = vshrl.u32 %v1492, 7
    %v1494 = vsub.s32 %v1491, %v1493
    %v1495 = vrot.slane %v1481, %v1494
    %v1496 = vcombine.low %v1440, %v1472
    %v1497 = vcombine.high %v1440, %v1472
    %v1498 = vcombine.low %v1447, %v1479
    %v1499 = vcombine.high %v1447, %v1479
    %v1500 = vcombine.low %v1456, %v1488
    %v1501 = vcombine.high %v1456, %v1488
    %v1502 = vcombine.low %v1463, %v1495
    %v1503 = vcombine.high %v1463, %v1495
    %v1504 = vcombine.low %v768, %v770
    %v1505 = vcombine.high %v768, %v770
    %v1507 = vunpack.c.l.s4 1983009808
    %v1508 = vunpack.c.0.s8 %v1507
    %v1509 = vlaneseq
    %v1510 = vshrl.u32 %v1509, 7
    %v1511 = vsub.s32 %v1508, %v1510
    %v1512 = vrot.slane %v1504, %v1511
    %v1514 = vunpack.c.l.s4 1983009808
    %v1515 = vunpack.c.0.s8 %v1514
    %v1516 = vlaneseq
    %v1517 = vshrl.u32 %v1516, 7
    %v1518 = vsub.s32 %v1515, %v1517
    %v1519 = vrot.slane %v1505, %v1518
    %v1520 = vcombine.low %v769, %v771
    %v1521 = vcombine.high %v769, %v771
    %v1523 = vunpack.c.l.s4 1983009808
    %v1524 = vunpack.c.0.s8 %v1523
    %v1525 = vlaneseq
    %v1526 = vshrl.u32 %v1525, 7
    %v1527 = vsub.s32 %v1524, %v1526
    %v1528 = vrot.slane %v1520, %v1527
    %v1530 = vunpack.c.l.s4 1983009808
    %v1531 = vunpack.c.0.s8 %v1530
    %v1532 = vlaneseq
    %v1533 = vshrl.u32 %v1532, 7
    %v1534 = vsub.s32 %v1531, %v1533
    %v1535 = vrot.slane %v1521, %v1534
    %v1536 = vcombine.low %v772, %v774
    %v1537 = vcombine.high %v772, %v774
    %v1539 = vunpack.c.l.s4 1983009808
    %v1540 = vunpack.c.0.s8 %v1539
    %v1541 = vlaneseq
    %v1542 = vshrl.u32 %v1541, 7
    %v1543 = vsub.s32 %v1540, %v1542
    %v1544 = vrot.slane %v1536, %v1543
    %v1546 = vunpack.c.l.s4 1983009808
    %v1547 = vunpack.c.0.s8 %v1546
    %v1548 = vlaneseq
    %v1549 = vshrl.u32 %v1548, 7
    %v1550 = vsub.s32 %v1547, %v1549
    %v1551 = vrot.slane %v1537, %v1550
    %v1552 = vcombine.low %v773, %v775
    %v1553 = vcombine.high %v773, %v775
    %v1555 = vunpack.c.l.s4 1983009808
    %v1556 = vunpack.c.0.s8 %v1555
    %v1557 = vlaneseq
    %v1558 = vshrl.u32 %v1557, 7
    %v1559 = vsub.s32 %v1556, %v1558
    %v1560 = vrot.slane %v1552, %v1559
    %v1562 = vunpack.c.l.s4 1983009808
    %v1563 = vunpack.c.0.s8 %v1562
    %v1564 = vlaneseq
    %v1565 = vshrl.u32 %v1564, 7
    %v1566 = vsub.s32 %v1563, %v1565
    %v1567 = vrot.slane %v1553, %v1566
    %v1568 = vcombine.low %v1512, %v1528
    %v1569 = vcombine.high %v1512, %v1528
    %v1571 = vunpack.c.l.s4 1934713408
    %v1572 = vunpack.c.0.s8 %v1571
    %v1573 = vlaneseq
    %v1574 = vshrl.u32 %v1573, 7
    %v1575 = vsub.s32 %v1572, %v1574
    %v1576 = vrot.slane %v1568, %v1575
    %v1578 = vunpack.c.l.s4 1934713408
    %v1579 = vunpack.c.0.s8 %v1578
    %v1580 = vlaneseq
    %v1581 = vshrl.u32 %v1580, 7
    %v1582 = vsub.s32 %v1579, %v1581
    %v1583 = vrot.slane %v1569, %v1582
    %v1584 = vcombine.low %v1519, %v1535
    %v1585 = vcombine.high %v1519, %v1535
    %v1587 = vunpack.c.l.s4 1934713408
    %v1588 = vunpack.c.0.s8 %v1587
    %v1589 = vlaneseq
    %v1590 = vshrl.u32 %v1589, 7
    %v1591 = vsub.s32 %v1588, %v1590
    %v1592 = vrot.slane %v1584, %v1591
    %v1594 = vunpack.c.l.s4 1934713408
    %v1595 = vunpack.c.0.s8 %v1594
    %v1596 = vlaneseq
    %v1597 = vshrl.u32 %v1596, 7
    %v1598 = vsub.s32 %v1595, %v1597
    %v1599 = vrot.slane %v1585, %v1598
    %v1600 = vcombine.low %v1544, %v1560
    %v1601 = vcombine.high %v1544, %v1560
    %v1603 = vunpack.c.l.s4 1934713408
    %v1604 = vunpack.c.0.s8 %v1603
    %v1605 = vlaneseq
    %v1606 = vshrl.u32 %v1605, 7
    %v1607 = vsub.s32 %v1604, %v1606
    %v1608 = vrot.slane %v1600, %v1607
    %v1610 = vunpack.c.l.s4 1934713408
    %v1611 = vunpack.c.0.s8 %v1610
    %v1612 = vlaneseq
    %v1613 = vshrl.u32 %v1612, 7
    %v1614 = vsub.s32 %v1611, %v1613
    %v1615 = vrot.slane %v1601, %v1614
    %v1616 = vcombine.low %v1551, %v1567
    %v1617 = vcombine.high %v1551, %v1567
    %v1619 = vunpack.c.l.s4 1934713408
    %v1620 = vunpack.c.0.s8 %v1619
    %v1621 = vlaneseq
    %v1622 = vshrl.u32 %v1621, 7
    %v1623 = vsub.s32 %v1620, %v1622
    %v1624 = vrot.slane %v1616, %v1623
    %v1626 = vunpack.c.l.s4 1934713408
    %v1627 = vunpack.c.0.s8 %v1626
    %v1628 = vlaneseq
    %v1629 = vshrl.u32 %v1628, 7
    %v1630 = vsub.s32 %v1627, %v1629
    %v1631 = vrot.slane %v1617, %v1630
    %v1632 = vcombine.low %v1576, %v1608
    %v1633 = vcombine.high %v1576, %v1608
    %v1634 = vcombine.low %v1583, %v1615
    %v1635 = vcombine.high %v1583, %v1615
    %v1636 = vcombine.low %v1592, %v1624
    %v1637 = vcombine.high %v1592, %v1624
    %v1638 = vcombine.low %v1599, %v1631
    %v1639 = vcombine.high %v1599, %v1631
    %v1640 = vcombine.low %v952, %v954
    %v1641 = vcombine.high %v952, %v954
    %v1643 = vunpack.c.l.s4 1983009808
    %v1644 = vunpack.c.0.s8 %v1643
    %v1645 = vlaneseq
    %v1646 = vshrl.u32 %v1645, 7
    %v1647 = vsub.s32 %v1644, %v1646
    %v1648 = vrot.slane %v1640, %v1647
    %v1650 = vunpack.c.l.s4 1983009808
    %v1651 = vunpack.c.0.s8 %v1650
    %v1652 = vlaneseq
    %v1653 = vshrl.u32 %v1652, 7
    %v1654 = vsub.s32 %v1651, %v1653
    %v1655 = vrot.slane %v1641, %v1654
    %v1656 = vcombine.low %v953, %v955
    %v1657 = vcombine.high %v953, %v955
    %v1659 = vunpack.c.l.s4 1983009808
    %v1660 = vunpack.c.0.s8 %v1659
    %v1661 = vlaneseq
    %v1662 = vshrl.u32 %v1661, 7
    %v1663 = vsub.s32 %v1660, %v1662
    %v1664 = vrot.slane %v1656, %v1663
    %v1666 = vunpack.c.l.s4 1983009808
    %v1667 = vunpack.c.0.s8 %v1666
    %v1668 = vlaneseq
    %v1669 = vshrl.u32 %v1668, 7
    %v1670 = vsub.s32 %v1667, %v1669
    %v1671 = vrot.slane %v1657, %v1670
    %v1672 = vcombine.low %v956, %v958
    %v1673 = vcombine.high %v956, %v958
    %v1675 = vunpack.c.l.s4 1983009808
    %v1676 = vunpack.c.0.s8 %v1675
    %v1677 = vlaneseq
    %v1678 = vshrl.u32 %v1677, 7
    %v1679 = vsub.s32 %v1676, %v1678
    %v1680 = vrot.slane %v1672, %v1679
    %v1682 = vunpack.c.l.s4 1983009808
    %v1683 = vunpack.c.0.s8 %v1682
    %v1684 = vlaneseq
    %v1685 = vshrl.u32 %v1684, 7
    %v1686 = vsub.s32 %v1683, %v1685
    %v1687 = vrot.slane %v1673, %v1686
    %v1688 = vcombine.low %v957, %v959
    %v1689 = vcombine.high %v957, %v959
    %v1691 = vunpack.c.l.s4 1983009808
    %v1692 = vunpack.c.0.s8 %v1691
    %v1693 = vlaneseq
    %v1694 = vshrl.u32 %v1693, 7
    %v1695 = vsub.s32 %v1692, %v1694
    %v1696 = vrot.slane %v1688, %v1695
    %v1698 = vunpack.c.l.s4 1983009808
    %v1699 = vunpack.c.0.s8 %v1698
    %v1700 = vlaneseq
    %v1701 = vshrl.u32 %v1700, 7
    %v1702 = vsub.s32 %v1699, %v1701
    %v1703 = vrot.slane %v1689, %v1702
    %v1704 = vcombine.low %v1648, %v1664
    %v1705 = vcombine.high %v1648, %v1664
    %v1707 = vunpack.c.l.s4 1934713408
    %v1708 = vunpack.c.0.s8 %v1707
    %v1709 = vlaneseq
    %v1710 = vshrl.u32 %v1709, 7
    %v1711 = vsub.s32 %v1708, %v1710
    %v1712 = vrot.slane %v1704, %v1711
    %v1714 = vunpack.c.l.s4 1934713408
    %v1715 = vunpack.c.0.s8 %v1714
    %v1716 = vlaneseq
    %v1717 = vshrl.u32 %v1716, 7
    %v1718 = vsub.s32 %v1715, %v1717
    %v1719 = vrot.slane %v1705, %v1718
    %v1720 = vcombine.low %v1655, %v1671
    %v1721 = vcombine.high %v1655, %v1671
    %v1723 = vunpack.c.l.s4 1934713408
    %v1724 = vunpack.c.0.s8 %v1723
    %v1725 = vlaneseq
    %v1726 = vshrl.u32 %v1725, 7
    %v1727 = vsub.s32 %v1724, %v1726
    %v1728 = vrot.slane %v1720, %v1727
    %v1730 = vunpack.c.l.s4 1934713408
    %v1731 = vunpack.c.0.s8 %v1730
    %v1732 = vlaneseq
    %v1733 = vshrl.u32 %v1732, 7
    %v1734 = vsub.s32 %v1731, %v1733
    %v1735 = vrot.slane %v1721, %v1734
    %v1736 = vcombine.low %v1680, %v1696
    %v1737 = vcombine.high %v1680, %v1696
    %v1739 = vunpack.c.l.s4 1934713408
    %v1740 = vunpack.c.0.s8 %v1739
    %v1741 = vlaneseq
    %v1742 = vshrl.u32 %v1741, 7
    %v1743 = vsub.s32 %v1740, %v1742
    %v1744 = vrot.slane %v1736, %v1743
    %v1746 = vunpack.c.l.s4 1934713408
    %v1747 = vunpack.c.0.s8 %v1746
    %v1748 = vlaneseq
    %v1749 = vshrl.u32 %v1748, 7
    %v1750 = vsub.s32 %v1747, %v1749
    %v1751 = vrot.slane %v1737, %v1750
    %v1752 = vcombine.low %v1687, %v1703
    %v1753 = vcombine.high %v1687, %v1703
    %v1755 = vunpack.c.l.s4 1934713408
    %v1756 = vunpack.c.0.s8 %v1755
    %v1757 = vlaneseq
    %v1758 = vshrl.u32 %v1757, 7
    %v1759 = vsub.s32 %v1756, %v1758
    %v1760 = vrot.slane %v1752, %v1759
    %v1762 = vunpack.c.l.s4 1934713408
    %v1763 = vunpack.c.0.s8 %v1762
    %v1764 = vlaneseq
    %v1765 = vshrl.u32 %v1764, 7
    %v1766 = vsub.s32 %v1763, %v1765
    %v1767 = vrot.slane %v1753, %v1766
    %v1768 = vcombine.low %v1712, %v1744
    %v1769 = vcombine.high %v1712, %v1744
    %v1770 = vcombine.low %v1719, %v1751
    %v1771 = vcombine.high %v1719, %v1751
    %v1772 = vcombine.low %v1728, %v1760
    %v1773 = vcombine.high %v1728, %v1760
    %v1774 = vcombine.low %v1735, %v1767
    %v1775 = vcombine.high %v1735, %v1767
    %v1776 = vcombine.low %v1088, %v1090
    %v1777 = vcombine.high %v1088, %v1090
    %v1779 = vunpack.c.l.s4 1983009808
    %v1780 = vunpack.c.0.s8 %v1779
    %v1781 = vlaneseq
    %v1782 = vshrl.u32 %v1781, 7
    %v1783 = vsub.s32 %v1780, %v1782
    %v1784 = vrot.slane %v1776, %v1783
    %v1786 = vunpack.c.l.s4 1983009808
    %v1787 = vunpack.c.0.s8 %v1786
    %v1788 = vlaneseq
    %v1789 = vshrl.u32 %v1788, 7
    %v1790 = vsub.s32 %v1787, %v1789
    %v1791 = vrot.slane %v1777, %v1790
    %v1792 = vcombine.low %v1089, %v1091
    %v1793 = vcombine.high %v1089, %v1091
    %v1795 = vunpack.c.l.s4 1983009808
    %v1796 = vunpack.c.0.s8 %v1795
    %v1797 = vlaneseq
    %v1798 = vshrl.u32 %v1797, 7
    %v1799 = vsub.s32 %v1796, %v1798
    %v1800 = vrot.slane %v1792, %v1799
    %v1802 = vunpack.c.l.s4 1983009808
    %v1803 = vunpack.c.0.s8 %v1802
    %v1804 = vlaneseq
    %v1805 = vshrl.u32 %v1804, 7
    %v1806 = vsub.s32 %v1803, %v1805
    %v1807 = vrot.slane %v1793, %v1806
    %v1808 = vcombine.low %v1092, %v1094
    %v1809 = vcombine.high %v1092, %v1094
    %v1811 = vunpack.c.l.s4 1983009808
    %v1812 = vunpack.c.0.s8 %v1811
    %v1813 = vlaneseq
    %v1814 = vshrl.u32 %v1813, 7
    %v1815 = vsub.s32 %v1812, %v1814
    %v1816 = vrot.slane %v1808, %v1815
    %v1818 = vunpack.c.l.s4 1983009808
    %v1819 = vunpack.c.0.s8 %v1818
    %v1820 = vlaneseq
    %v1821 = vshrl.u32 %v1820, 7
    %v1822 = vsub.s32 %v1819, %v1821
    %v1823 = vrot.slane %v1809, %v1822
    %v1824 = vcombine.low %v1093, %v1095
    %v1825 = vcombine.high %v1093, %v1095
    %v1827 = vunpack.c.l.s4 1983009808
    %v1828 = vunpack.c.0.s8 %v1827
    %v1829 = vlaneseq
    %v1830 = vshrl.u32 %v1829, 7
    %v1831 = vsub.s32 %v1828, %v1830
    %v1832 = vrot.slane %v1824, %v1831
    %v1834 = vunpack.c.l.s4 1983009808
    %v1835 = vunpack.c.0.s8 %v1834
    %v1836 = vlaneseq
    %v1837 = vshrl.u32 %v1836, 7
    %v1838 = vsub.s32 %v1835, %v1837
    %v1839 = vrot.slane %v1825, %v1838
    %v1840 = vcombine.low %v1784, %v1800
    %v1841 = vcombine.high %v1784, %v1800
    %v1843 = vunpack.c.l.s4 1934713408
    %v1844 = vunpack.c.0.s8 %v1843
    %v1845 = vlaneseq
    %v1846 = vshrl.u32 %v1845, 7
    %v1847 = vsub.s32 %v1844, %v1846
    %v1848 = vrot.slane %v1840, %v1847
    %v1850 = vunpack.c.l.s4 1934713408
    %v1851 = vunpack.c.0.s8 %v1850
    %v1852 = vlaneseq
    %v1853 = vshrl.u32 %v1852, 7
    %v1854 = vsub.s32 %v1851, %v1853
    %v1855 = vrot.slane %v1841, %v1854
    %v1856 = vcombine.low %v1791, %v1807
    %v1857 = vcombine.high %v1791, %v1807
    %v1859 = vunpack.c.l.s4 1934713408
    %v1860 = vunpack.c.0.s8 %v1859
    %v1861 = vlaneseq
    %v1862 = vshrl.u32 %v1861, 7
    %v1863 = vsub.s32 %v1860, %v1862
    %v1864 = vrot.slane %v1856, %v1863
    %v1866 = vunpack.c.l.s4 1934713408
    %v1867 = vunpack.c.0.s8 %v1866
    %v1868 = vlaneseq
    %v1869 = vshrl.u32 %v1868, 7
    %v1870 = vsub.s32 %v1867, %v1869
    %v1871 = vrot.slane %v1857, %v1870
    %v1872 = vcombine.low %v1816, %v1832
    %v1873 = vcombine.high %v1816, %v1832
    %v1875 = vunpack.c.l.s4 1934713408
    %v1876 = vunpack.c.0.s8 %v1875
    %v1877 = vlaneseq
    %v1878 = vshrl.u32 %v1877, 7
    %v1879 = vsub.s32 %v1876, %v1878
    %v1880 = vrot.slane %v1872, %v1879
    %v1882 = vunpack.c.l.s4 1934713408
    %v1883 = vunpack.c.0.s8 %v1882
    %v1884 = vlaneseq
    %v1885 = vshrl.u32 %v1884, 7
    %v1886 = vsub.s32 %v1883, %v1885
    %v1887 = vrot.slane %v1873, %v1886
    %v1888 = vcombine.low %v1823, %v1839
    %v1889 = vcombine.high %v1823, %v1839
    %v1891 = vunpack.c.l.s4 1934713408
    %v1892 = vunpack.c.0.s8 %v1891
    %v1893 = vlaneseq
    %v1894 = vshrl.u32 %v1893, 7
    %v1895 = vsub.s32 %v1892, %v1894
    %v1896 = vrot.slane %v1888, %v1895
    %v1898 = vunpack.c.l.s4 1934713408
    %v1899 = vunpack.c.0.s8 %v1898
    %v1900 = vlaneseq
    %v1901 = vshrl.u32 %v1900, 7
    %v1902 = vsub.s32 %v1899, %v1901
    %v1903 = vrot.slane %v1889, %v1902
    %v1904 = vcombine.low %v1848, %v1880
    %v1905 = vcombine.high %v1848, %v1880
    %v1906 = vcombine.low %v1855, %v1887
    %v1907 = vcombine.high %v1855, %v1887
    %v1908 = vcombine.low %v1864, %v1896
    %v1909 = vcombine.high %v1864, %v1896
    %v1910 = vcombine.low %v1871, %v1903
    %v1911 = vcombine.high %v1871, %v1903
    %vm1912 = vcmask 31744
    %v1914 = vsel %vm1912, %v1224, 0
    %v1917 = vsel %vm1912, %v1496, 0
    %1919 = vmatprep.subr.mxu0 0.0
    %1920 = vmatpush1.xpose.msra.mxu0 %v1917
    %1921 = vmatprep.subr.mxu0 0.0
    %1922 = vmatpush1.xpose.msra.mxu0 0.0
    %1923 = vmatprep.subr.mxu0 0.0
    %1924 = vmatpush1.xpose.msra.mxu0 0.0
    %1925 = vmatprep.subr.mxu0 0.0
    %1926 = vmatpush1.xpose.msra.mxu0 0.0
    %1927 = vmatprep.subr.mxu0 0.0
    %1928 = vmatpush1.xpose.msra.mxu0 0.0
    %1929 = vmatprep.subr.mxu0 0.0
    %1930 = vmatpush1.xpose.msra.mxu0 0.0
    %1931 = vmatprep.subr.mxu0 0.0
    %1932 = vmatpush1.xpose.msra.mxu0 0.0
    %1933 = vmatprep.subr.mxu0 0.0
    %1934 = vmatpush1.xpose.msra.mxu0 0.0
    %1935 = vmatprep.subr.mxu0 0.0
    %1936 = vmatpush1.xpose.msra.mxu0 0.0
    %1937 = vmatprep.subr.mxu0 0.0
    %1938 = vmatpush1.xpose.msra.mxu0 0.0
    %1939 = vmatprep.subr.mxu0 0.0
    %1940 = vmatpush1.xpose.msra.mxu0 0.0
    %1941 = vmatprep.subr.mxu0 0.0
    %1942 = vmatpush1.xpose.msra.mxu0 0.0
    %1943 = vmatprep.subr.mxu0 0.0
    %1944 = vmatpush1.xpose.msra.mxu0 0.0
    %1945 = vmatprep.subr.mxu0 0.0
    %1946 = vmatpush1.xpose.msra.mxu0 0.0
    %1947 = vmatprep.subr.mxu0 0.0
    %1948 = vmatpush1.xpose.msra.mxu0 0.0
    %1949 = vmatprep.subr.mxu0 0.0
    %1950 = vmatpush1.xpose.msra.mxu0 0.0
    %1951 = vmatprep.subr.mxu0 0.0
    %1952 = vmatpush1.xpose.msra.mxu0 0.0
    %1953 = vmatprep.subr.mxu0 0.0
    %1954 = vmatpush1.xpose.msra.mxu0 0.0
    %1955 = vmatprep.subr.mxu0 0.0
    %1956 = vmatpush1.xpose.msra.mxu0 0.0
    %1957 = vmatprep.subr.mxu0 0.0
    %1958 = vmatpush1.xpose.msra.mxu0 0.0
    %1959 = vmatprep.subr.mxu0 0.0
    %1960 = vmatpush1.xpose.msra.mxu0 0.0
    %1961 = vmatprep.subr.mxu0 0.0
    %1962 = vmatpush1.xpose.msra.mxu0 0.0
    %1963 = vmatprep.subr.mxu0 0.0
    %1964 = vmatpush1.xpose.msra.mxu0 0.0
    %1965 = vmatprep.subr.mxu0 0.0
    %1966 = vmatpush1.xpose.msra.mxu0 0.0
    %1967 = vmatprep.subr.mxu0 0.0
    %1968 = vmatpush1.xpose.msra.mxu0 0.0
    %1969 = vmatprep.subr.mxu0 0.0
    %1970 = vmatpush1.xpose.msra.mxu0 0.0
    %1971 = vmatprep.subr.mxu0 0.0
    %1972 = vmatpush1.xpose.msra.mxu0 0.0
    %1973 = vmatprep.subr.mxu0 0.0
    %1974 = vmatpush1.xpose.msra.mxu0 0.0
    %1975 = vmatprep.subr.mxu0 0.0
    %1976 = vmatpush1.xpose.msra.mxu0 0.0
    %1977 = vmatprep.subr.mxu0 0.0
    %1978 = vmatpush1.xpose.msra.mxu0 0.0
    %1979 = vmatprep.subr.mxu0 0.0
    %1980 = vmatpush1.xpose.msra.mxu0 0.0
    %1981 = vmatprep.subr.mxu0 0.0
    %1982 = vmatpush1.xpose.msra.mxu0 0.0
    %1983 = vmatprep.mubr.f32.mxu0 0.0
    %1984 = vmatmul.mubr.f32.gmra.mrb[0].mxu0 %v1914
    %v1985 = vpop.f32.mrb[0].mxu0
    %v1986 = vadd.f32 0.0, %v1985
    %v1987 = vpop.f32.mrb[0].mxu0
    %1988 = vdwg.mxu0
    %v1990 = vsel %vm1912, %v1225, 0
    %v1993 = vsel %vm1912, %v1497, 0
    %1995 = vmatprep.subr.mxu0 0.0
    %1996 = vmatpush1.xpose.msra.mxu0 %v1993
    %1997 = vmatprep.subr.mxu0 0.0
    %1998 = vmatpush1.xpose.msra.mxu0 0.0
    %1999 = vmatprep.subr.mxu0 0.0
    %2000 = vmatpush1.xpose.msra.mxu0 0.0
    %2001 = vmatprep.subr.mxu0 0.0
    %2002 = vmatpush1.xpose.msra.mxu0 0.0
    %2003 = vmatprep.subr.mxu0 0.0
    %2004 = vmatpush1.xpose.msra.mxu0 0.0
    %2005 = vmatprep.subr.mxu0 0.0
    %2006 = vmatpush1.xpose.msra.mxu0 0.0
    %2007 = vmatprep.subr.mxu0 0.0
    %2008 = vmatpush1.xpose.msra.mxu0 0.0
    %2009 = vmatprep.subr.mxu0 0.0
    %2010 = vmatpush1.xpose.msra.mxu0 0.0
    %2011 = vmatprep.subr.mxu0 0.0
    %2012 = vmatpush1.xpose.msra.mxu0 0.0
    %2013 = vmatprep.subr.mxu0 0.0
    %2014 = vmatpush1.xpose.msra.mxu0 0.0
    %2015 = vmatprep.subr.mxu0 0.0
    %2016 = vmatpush1.xpose.msra.mxu0 0.0
    %2017 = vmatprep.subr.mxu0 0.0
    %2018 = vmatpush1.xpose.msra.mxu0 0.0
    %2019 = vmatprep.subr.mxu0 0.0
    %2020 = vmatpush1.xpose.msra.mxu0 0.0
    %2021 = vmatprep.subr.mxu0 0.0
    %2022 = vmatpush1.xpose.msra.mxu0 0.0
    %2023 = vmatprep.subr.mxu0 0.0
    %2024 = vmatpush1.xpose.msra.mxu0 0.0
    %2025 = vmatprep.subr.mxu0 0.0
    %2026 = vmatpush1.xpose.msra.mxu0 0.0
    %2027 = vmatprep.subr.mxu0 0.0
    %2028 = vmatpush1.xpose.msra.mxu0 0.0
    %2029 = vmatprep.subr.mxu0 0.0
    %2030 = vmatpush1.xpose.msra.mxu0 0.0
    %2031 = vmatprep.subr.mxu0 0.0
    %2032 = vmatpush1.xpose.msra.mxu0 0.0
    %2033 = vmatprep.subr.mxu0 0.0
    %2034 = vmatpush1.xpose.msra.mxu0 0.0
    %2035 = vmatprep.subr.mxu0 0.0
    %2036 = vmatpush1.xpose.msra.mxu0 0.0
    %2037 = vmatprep.subr.mxu0 0.0
    %2038 = vmatpush1.xpose.msra.mxu0 0.0
    %2039 = vmatprep.subr.mxu0 0.0
    %2040 = vmatpush1.xpose.msra.mxu0 0.0
    %2041 = vmatprep.subr.mxu0 0.0
    %2042 = vmatpush1.xpose.msra.mxu0 0.0
    %2043 = vmatprep.subr.mxu0 0.0
    %2044 = vmatpush1.xpose.msra.mxu0 0.0
    %2045 = vmatprep.subr.mxu0 0.0
    %2046 = vmatpush1.xpose.msra.mxu0 0.0
    %2047 = vmatprep.subr.mxu0 0.0
    %2048 = vmatpush1.xpose.msra.mxu0 0.0
    %2049 = vmatprep.subr.mxu0 0.0
    %2050 = vmatpush1.xpose.msra.mxu0 0.0
    %2051 = vmatprep.subr.mxu0 0.0
    %2052 = vmatpush1.xpose.msra.mxu0 0.0
    %2053 = vmatprep.subr.mxu0 0.0
    %2054 = vmatpush1.xpose.msra.mxu0 0.0
    %2055 = vmatprep.subr.mxu0 0.0
    %2056 = vmatpush1.xpose.msra.mxu0 0.0
    %2057 = vmatprep.subr.mxu0 0.0
    %2058 = vmatpush1.xpose.msra.mxu0 0.0
    %2059 = vmatprep.mubr.f32.mxu0 0.0
    %2060 = vmatmul.mubr.f32.gmra.mrb[0].mxu0 %v1990
    %v2061 = vpop.f32.mrb[0].mxu0
    %v2062 = vadd.f32 0.0, %v2061
    %v2063 = vpop.f32.mrb[0].mxu0
    %2064 = vdwg.mxu0
    %v2066 = vsel %vm1912, %v1226, 0
    %v2069 = vsel %vm1912, %v1498, 0
    %2071 = vmatprep.subr.mxu0 0.0
    %2072 = vmatpush1.xpose.msra.mxu0 %v2069
    %2073 = vmatprep.subr.mxu0 0.0
    %2074 = vmatpush1.xpose.msra.mxu0 0.0
    %2075 = vmatprep.subr.mxu0 0.0
    %2076 = vmatpush1.xpose.msra.mxu0 0.0
    %2077 = vmatprep.subr.mxu0 0.0
    %2078 = vmatpush1.xpose.msra.mxu0 0.0
    %2079 = vmatprep.subr.mxu0 0.0
    %2080 = vmatpush1.xpose.msra.mxu0 0.0
    %2081 = vmatprep.subr.mxu0 0.0
    %2082 = vmatpush1.xpose.msra.mxu0 0.0
    %2083 = vmatprep.subr.mxu0 0.0
    %2084 = vmatpush1.xpose.msra.mxu0 0.0
    %2085 = vmatprep.subr.mxu0 0.0
    %2086 = vmatpush1.xpose.msra.mxu0 0.0
    %2087 = vmatprep.subr.mxu0 0.0
    %2088 = vmatpush1.xpose.msra.mxu0 0.0
    %2089 = vmatprep.subr.mxu0 0.0
    %2090 = vmatpush1.xpose.msra.mxu0 0.0
    %2091 = vmatprep.subr.mxu0 0.0
    %2092 = vmatpush1.xpose.msra.mxu0 0.0
    %2093 = vmatprep.subr.mxu0 0.0
    %2094 = vmatpush1.xpose.msra.mxu0 0.0
    %2095 = vmatprep.subr.mxu0 0.0
    %2096 = vmatpush1.xpose.msra.mxu0 0.0
    %2097 = vmatprep.subr.mxu0 0.0
    %2098 = vmatpush1.xpose.msra.mxu0 0.0
    %2099 = vmatprep.subr.mxu0 0.0
    %2100 = vmatpush1.xpose.msra.mxu0 0.0
    %2101 = vmatprep.subr.mxu0 0.0
    %2102 = vmatpush1.xpose.msra.mxu0 0.0
    %2103 = vmatprep.subr.mxu0 0.0
    %2104 = vmatpush1.xpose.msra.mxu0 0.0
    %2105 = vmatprep.subr.mxu0 0.0
    %2106 = vmatpush1.xpose.msra.mxu0 0.0
    %2107 = vmatprep.subr.mxu0 0.0
    %2108 = vmatpush1.xpose.msra.mxu0 0.0
    %2109 = vmatprep.subr.mxu0 0.0
    %2110 = vmatpush1.xpose.msra.mxu0 0.0
    %2111 = vmatprep.subr.mxu0 0.0
    %2112 = vmatpush1.xpose.msra.mxu0 0.0
    %2113 = vmatprep.subr.mxu0 0.0
    %2114 = vmatpush1.xpose.msra.mxu0 0.0
    %2115 = vmatprep.subr.mxu0 0.0
    %2116 = vmatpush1.xpose.msra.mxu0 0.0
    %2117 = vmatprep.subr.mxu0 0.0
    %2118 = vmatpush1.xpose.msra.mxu0 0.0
    %2119 = vmatprep.subr.mxu0 0.0
    %2120 = vmatpush1.xpose.msra.mxu0 0.0
    %2121 = vmatprep.subr.mxu0 0.0
    %2122 = vmatpush1.xpose.msra.mxu0 0.0
    %2123 = vmatprep.subr.mxu0 0.0
    %2124 = vmatpush1.xpose.msra.mxu0 0.0
    %2125 = vmatprep.subr.mxu0 0.0
    %2126 = vmatpush1.xpose.msra.mxu0 0.0
    %2127 = vmatprep.subr.mxu0 0.0
    %2128 = vmatpush1.xpose.msra.mxu0 0.0
    %2129 = vmatprep.subr.mxu0 0.0
    %2130 = vmatpush1.xpose.msra.mxu0 0.0
    %2131 = vmatprep.subr.mxu0 0.0
    %2132 = vmatpush1.xpose.msra.mxu0 0.0
    %2133 = vmatprep.subr.mxu0 0.0
    %2134 = vmatpush1.xpose.msra.mxu0 0.0
    %2135 = vmatprep.mubr.f32.mxu0 0.0
    %2136 = vmatmul.mubr.f32.gmra.mrb[0].mxu0 %v2066
    %v2137 = vpop.f32.mrb[0].mxu0
    %v2138 = vadd.f32 0.0, %v2137
    %v2139 = vpop.f32.mrb[0].mxu0
    %2140 = vdwg.mxu0
    %v2142 = vsel %vm1912, %v1227, 0
    %v2145 = vsel %vm1912, %v1499, 0
    %2147 = vmatprep.subr.mxu0 0.0
    %2148 = vmatpush1.xpose.msra.mxu0 %v2145
    %2149 = vmatprep.subr.mxu0 0.0
    %2150 = vmatpush1.xpose.msra.mxu0 0.0
    %2151 = vmatprep.subr.mxu0 0.0
    %2152 = vmatpush1.xpose.msra.mxu0 0.0
    %2153 = vmatprep.subr.mxu0 0.0
    %2154 = vmatpush1.xpose.msra.mxu0 0.0
    %2155 = vmatprep.subr.mxu0 0.0
    %2156 = vmatpush1.xpose.msra.mxu0 0.0
    %2157 = vmatprep.subr.mxu0 0.0
    %2158 = vmatpush1.xpose.msra.mxu0 0.0
    %2159 = vmatprep.subr.mxu0 0.0
    %2160 = vmatpush1.xpose.msra.mxu0 0.0
    %2161 = vmatprep.subr.mxu0 0.0
    %2162 = vmatpush1.xpose.msra.mxu0 0.0
    %2163 = vmatprep.subr.mxu0 0.0
    %2164 = vmatpush1.xpose.msra.mxu0 0.0
    %2165 = vmatprep.subr.mxu0 0.0
    %2166 = vmatpush1.xpose.msra.mxu0 0.0
    %2167 = vmatprep.subr.mxu0 0.0
    %2168 = vmatpush1.xpose.msra.mxu0 0.0
    %2169 = vmatprep.subr.mxu0 0.0
    %2170 = vmatpush1.xpose.msra.mxu0 0.0
    %2171 = vmatprep.subr.mxu0 0.0
    %2172 = vmatpush1.xpose.msra.mxu0 0.0
    %2173 = vmatprep.subr.mxu0 0.0
    %2174 = vmatpush1.xpose.msra.mxu0 0.0
    %2175 = vmatprep.subr.mxu0 0.0
    %2176 = vmatpush1.xpose.msra.mxu0 0.0
    %2177 = vmatprep.subr.mxu0 0.0
    %2178 = vmatpush1.xpose.msra.mxu0 0.0
    %2179 = vmatprep.subr.mxu0 0.0
    %2180 = vmatpush1.xpose.msra.mxu0 0.0
    %2181 = vmatprep.subr.mxu0 0.0
    %2182 = vmatpush1.xpose.msra.mxu0 0.0
    %2183 = vmatprep.subr.mxu0 0.0
    %2184 = vmatpush1.xpose.msra.mxu0 0.0
    %2185 = vmatprep.subr.mxu0 0.0
    %2186 = vmatpush1.xpose.msra.mxu0 0.0
    %2187 = vmatprep.subr.mxu0 0.0
    %2188 = vmatpush1.xpose.msra.mxu0 0.0
    %2189 = vmatprep.subr.mxu0 0.0
    %2190 = vmatpush1.xpose.msra.mxu0 0.0
    %2191 = vmatprep.subr.mxu0 0.0
    %2192 = vmatpush1.xpose.msra.mxu0 0.0
    %2193 = vmatprep.subr.mxu0 0.0
    %2194 = vmatpush1.xpose.msra.mxu0 0.0
    %2195 = vmatprep.subr.mxu0 0.0
    %2196 = vmatpush1.xpose.msra.mxu0 0.0
    %2197 = vmatprep.subr.mxu0 0.0
    %2198 = vmatpush1.xpose.msra.mxu0 0.0
    %2199 = vmatprep.subr.mxu0 0.0
    %2200 = vmatpush1.xpose.msra.mxu0 0.0
    %2201 = vmatprep.subr.mxu0 0.0
    %2202 = vmatpush1.xpose.msra.mxu0 0.0
    %2203 = vmatprep.subr.mxu0 0.0
    %2204 = vmatpush1.xpose.msra.mxu0 0.0
    %2205 = vmatprep.subr.mxu0 0.0
    %2206 = vmatpush1.xpose.msra.mxu0 0.0
    %2207 = vmatprep.subr.mxu0 0.0
    %2208 = vmatpush1.xpose.msra.mxu0 0.0
    %2209 = vmatprep.subr.mxu0 0.0
    %2210 = vmatpush1.xpose.msra.mxu0 0.0
    %2211 = vmatprep.mubr.f32.mxu0 0.0
    %2212 = vmatmul.mubr.f32.gmra.mrb[0].mxu0 %v2142
    %v2213 = vpop.f32.mrb[0].mxu0
    %v2214 = vadd.f32 0.0, %v2213
    %v2215 = vpop.f32.mrb[0].mxu0
    %2216 = vdwg.mxu0
    %v2218 = vsel %vm1912, %v1228, 0
    %v2221 = vsel %vm1912, %v1500, 0
    %2223 = vmatprep.subr.mxu0 0.0
    %2224 = vmatpush1.xpose.msra.mxu0 %v2221
    %2225 = vmatprep.subr.mxu0 0.0
    %2226 = vmatpush1.xpose.msra.mxu0 0.0
    %2227 = vmatprep.subr.mxu0 0.0
    %2228 = vmatpush1.xpose.msra.mxu0 0.0
    %2229 = vmatprep.subr.mxu0 0.0
    %2230 = vmatpush1.xpose.msra.mxu0 0.0
    %2231 = vmatprep.subr.mxu0 0.0
    %2232 = vmatpush1.xpose.msra.mxu0 0.0
    %2233 = vmatprep.subr.mxu0 0.0
    %2234 = vmatpush1.xpose.msra.mxu0 0.0
    %2235 = vmatprep.subr.mxu0 0.0
    %2236 = vmatpush1.xpose.msra.mxu0 0.0
    %2237 = vmatprep.subr.mxu0 0.0
    %2238 = vmatpush1.xpose.msra.mxu0 0.0
    %2239 = vmatprep.subr.mxu0 0.0
    %2240 = vmatpush1.xpose.msra.mxu0 0.0
    %2241 = vmatprep.subr.mxu0 0.0
    %2242 = vmatpush1.xpose.msra.mxu0 0.0
    %2243 = vmatprep.subr.mxu0 0.0
    %2244 = vmatpush1.xpose.msra.mxu0 0.0
    %2245 = vmatprep.subr.mxu0 0.0
    %2246 = vmatpush1.xpose.msra.mxu0 0.0
    %2247 = vmatprep.subr.mxu0 0.0
    %2248 = vmatpush1.xpose.msra.mxu0 0.0
    %2249 = vmatprep.subr.mxu0 0.0
    %2250 = vmatpush1.xpose.msra.mxu0 0.0
    %2251 = vmatprep.subr.mxu0 0.0
    %2252 = vmatpush1.xpose.msra.mxu0 0.0
    %2253 = vmatprep.subr.mxu0 0.0
    %2254 = vmatpush1.xpose.msra.mxu0 0.0
    %2255 = vmatprep.subr.mxu0 0.0
    %2256 = vmatpush1.xpose.msra.mxu0 0.0
    %2257 = vmatprep.subr.mxu0 0.0
    %2258 = vmatpush1.xpose.msra.mxu0 0.0
    %2259 = vmatprep.subr.mxu0 0.0
    %2260 = vmatpush1.xpose.msra.mxu0 0.0
    %2261 = vmatprep.subr.mxu0 0.0
    %2262 = vmatpush1.xpose.msra.mxu0 0.0
    %2263 = vmatprep.subr.mxu0 0.0
    %2264 = vmatpush1.xpose.msra.mxu0 0.0
    %2265 = vmatprep.subr.mxu0 0.0
    %2266 = vmatpush1.xpose.msra.mxu0 0.0
    %2267 = vmatprep.subr.mxu0 0.0
    %2268 = vmatpush1.xpose.msra.mxu0 0.0
    %2269 = vmatprep.subr.mxu0 0.0
    %2270 = vmatpush1.xpose.msra.mxu0 0.0
    %2271 = vmatprep.subr.mxu0 0.0
    %2272 = vmatpush1.xpose.msra.mxu0 0.0
    %2273 = vmatprep.subr.mxu0 0.0
    %2274 = vmatpush1.xpose.msra.mxu0 0.0
    %2275 = vmatprep.subr.mxu0 0.0
    %2276 = vmatpush1.xpose.msra.mxu0 0.0
    %2277 = vmatprep.subr.mxu0 0.0
    %2278 = vmatpush1.xpose.msra.mxu0 0.0
    %2279 = vmatprep.subr.mxu0 0.0
    %2280 = vmatpush1.xpose.msra.mxu0 0.0
    %2281 = vmatprep.subr.mxu0 0.0
    %2282 = vmatpush1.xpose.msra.mxu0 0.0
    %2283 = vmatprep.subr.mxu0 0.0
    %2284 = vmatpush1.xpose.msra.mxu0 0.0
    %2285 = vmatprep.subr.mxu0 0.0
    %2286 = vmatpush1.xpose.msra.mxu0 0.0
    %2287 = vmatprep.mubr.f32.mxu0 0.0
    %2288 = vmatmul.mubr.f32.gmra.mrb[0].mxu0 %v2218
    %v2289 = vpop.f32.mrb[0].mxu0
    %v2290 = vadd.f32 0.0, %v2289
    %v2291 = vpop.f32.mrb[0].mxu0
    %2292 = vdwg.mxu0
    %v2294 = vsel %vm1912, %v1229, 0
    %v2297 = vsel %vm1912, %v1501, 0
    %2299 = vmatprep.subr.mxu0 0.0
    %2300 = vmatpush1.xpose.msra.mxu0 %v2297
    %2301 = vmatprep.subr.mxu0 0.0
    %2302 = vmatpush1.xpose.msra.mxu0 0.0
    %2303 = vmatprep.subr.mxu0 0.0
    %2304 = vmatpush1.xpose.msra.mxu0 0.0
    %2305 = vmatprep.subr.mxu0 0.0
    %2306 = vmatpush1.xpose.msra.mxu0 0.0
    %2307 = vmatprep.subr.mxu0 0.0
    %2308 = vmatpush1.xpose.msra.mxu0 0.0
    %2309 = vmatprep.subr.mxu0 0.0
    %2310 = vmatpush1.xpose.msra.mxu0 0.0
    %2311 = vmatprep.subr.mxu0 0.0
    %2312 = vmatpush1.xpose.msra.mxu0 0.0
    %2313 = vmatprep.subr.mxu0 0.0
    %2314 = vmatpush1.xpose.msra.mxu0 0.0
    %2315 = vmatprep.subr.mxu0 0.0
    %2316 = vmatpush1.xpose.msra.mxu0 0.0
    %2317 = vmatprep.subr.mxu0 0.0
    %2318 = vmatpush1.xpose.msra.mxu0 0.0
    %2319 = vmatprep.subr.mxu0 0.0
    %2320 = vmatpush1.xpose.msra.mxu0 0.0
    %2321 = vmatprep.subr.mxu0 0.0
    %2322 = vmatpush1.xpose.msra.mxu0 0.0
    %2323 = vmatprep.subr.mxu0 0.0
    %2324 = vmatpush1.xpose.msra.mxu0 0.0
    %2325 = vmatprep.subr.mxu0 0.0
    %2326 = vmatpush1.xpose.msra.mxu0 0.0
    %2327 = vmatprep.subr.mxu0 0.0
    %2328 = vmatpush1.xpose.msra.mxu0 0.0
    %2329 = vmatprep.subr.mxu0 0.0
    %2330 = vmatpush1.xpose.msra.mxu0 0.0
    %2331 = vmatprep.subr.mxu0 0.0
    %2332 = vmatpush1.xpose.msra.mxu0 0.0
    %2333 = vmatprep.subr.mxu0 0.0
    %2334 = vmatpush1.xpose.msra.mxu0 0.0
    %2335 = vmatprep.subr.mxu0 0.0
    %2336 = vmatpush1.xpose.msra.mxu0 0.0
    %2337 = vmatprep.subr.mxu0 0.0
    %2338 = vmatpush1.xpose.msra.mxu0 0.0
    %2339 = vmatprep.subr.mxu0 0.0
    %2340 = vmatpush1.xpose.msra.mxu0 0.0
    %2341 = vmatprep.subr.mxu0 0.0
    %2342 = vmatpush1.xpose.msra.mxu0 0.0
    %2343 = vmatprep.subr.mxu0 0.0
    %2344 = vmatpush1.xpose.msra.mxu0 0.0
    %2345 = vmatprep.subr.mxu0 0.0
    %2346 = vmatpush1.xpose.msra.mxu0 0.0
    %2347 = vmatprep.subr.mxu0 0.0
    %2348 = vmatpush1.xpose.msra.mxu0 0.0
    %2349 = vmatprep.subr.mxu0 0.0
    %2350 = vmatpush1.xpose.msra.mxu0 0.0
    %2351 = vmatprep.subr.mxu0 0.0
    %2352 = vmatpush1.xpose.msra.mxu0 0.0
    %2353 = vmatprep.subr.mxu0 0.0
    %2354 = vmatpush1.xpose.msra.mxu0 0.0
    %2355 = vmatprep.subr.mxu0 0.0
    %2356 = vmatpush1.xpose.msra.mxu0 0.0
    %2357 = vmatprep.subr.mxu0 0.0
    %2358 = vmatpush1.xpose.msra.mxu0 0.0
    %2359 = vmatprep.subr.mxu0 0.0
    %2360 = vmatpush1.xpose.msra.mxu0 0.0
    %2361 = vmatprep.subr.mxu0 0.0
    %2362 = vmatpush1.xpose.msra.mxu0 0.0
    %2363 = vmatprep.mubr.f32.mxu0 0.0
    %2364 = vmatmul.mubr.f32.gmra.mrb[0].mxu0 %v2294
    %v2365 = vpop.f32.mrb[0].mxu0
    %v2366 = vadd.f32 0.0, %v2365
    %v2367 = vpop.f32.mrb[0].mxu0
    %2368 = vdwg.mxu0
    %v2370 = vsel %vm1912, %v1230, 0
    %v2373 = vsel %vm1912, %v1502, 0
    %2375 = vmatprep.subr.mxu0 0.0
    %2376 = vmatpush1.xpose.msra.mxu0 %v2373
    %2377 = vmatprep.subr.mxu0 0.0
    %2378 = vmatpush1.xpose.msra.mxu0 0.0
    %2379 = vmatprep.subr.mxu0 0.0
    %2380 = vmatpush1.xpose.msra.mxu0 0.0
    %2381 = vmatprep.subr.mxu0 0.0
    %2382 = vmatpush1.xpose.msra.mxu0 0.0
    %2383 = vmatprep.subr.mxu0 0.0
    %2384 = vmatpush1.xpose.msra.mxu0 0.0
    %2385 = vmatprep.subr.mxu0 0.0
    %2386 = vmatpush1.xpose.msra.mxu0 0.0
    %2387 = vmatprep.subr.mxu0 0.0
    %2388 = vmatpush1.xpose.msra.mxu0 0.0
    %2389 = vmatprep.subr.mxu0 0.0
    %2390 = vmatpush1.xpose.msra.mxu0 0.0
    %2391 = vmatprep.subr.mxu0 0.0
    %2392 = vmatpush1.xpose.msra.mxu0 0.0
    %2393 = vmatprep.subr.mxu0 0.0
    %2394 = vmatpush1.xpose.msra.mxu0 0.0
    %2395 = vmatprep.subr.mxu0 0.0
    %2396 = vmatpush1.xpose.msra.mxu0 0.0
    %2397 = vmatprep.subr.mxu0 0.0
    %2398 = vmatpush1.xpose.msra.mxu0 0.0
    %2399 = vmatprep.subr.mxu0 0.0
    %2400 = vmatpush1.xpose.msra.mxu0 0.0
    %2401 = vmatprep.subr.mxu0 0.0
    %2402 = vmatpush1.xpose.msra.mxu0 0.0
    %2403 = vmatprep.subr.mxu0 0.0
    %2404 = vmatpush1.xpose.msra.mxu0 0.0
    %2405 = vmatprep.subr.mxu0 0.0
    %2406 = vmatpush1.xpose.msra.mxu0 0.0
    %2407 = vmatprep.subr.mxu0 0.0
    %2408 = vmatpush1.xpose.msra.mxu0 0.0
    %2409 = vmatprep.subr.mxu0 0.0
    %2410 = vmatpush1.xpose.msra.mxu0 0.0
    %2411 = vmatprep.subr.mxu0 0.0
    %2412 = vmatpush1.xpose.msra.mxu0 0.0
    %2413 = vmatprep.subr.mxu0 0.0
    %2414 = vmatpush1.xpose.msra.mxu0 0.0
    %2415 = vmatprep.subr.mxu0 0.0
    %2416 = vmatpush1.xpose.msra.mxu0 0.0
    %2417 = vmatprep.subr.mxu0 0.0
    %2418 = vmatpush1.xpose.msra.mxu0 0.0
    %2419 = vmatprep.subr.mxu0 0.0
    %2420 = vmatpush1.xpose.msra.mxu0 0.0
    %2421 = vmatprep.subr.mxu0 0.0
    %2422 = vmatpush1.xpose.msra.mxu0 0.0
    %2423 = vmatprep.subr.mxu0 0.0
    %2424 = vmatpush1.xpose.msra.mxu0 0.0
    %2425 = vmatprep.subr.mxu0 0.0
    %2426 = vmatpush1.xpose.msra.mxu0 0.0
    %2427 = vmatprep.subr.mxu0 0.0
    %2428 = vmatpush1.xpose.msra.mxu0 0.0
    %2429 = vmatprep.subr.mxu0 0.0
    %2430 = vmatpush1.xpose.msra.mxu0 0.0
    %2431 = vmatprep.subr.mxu0 0.0
    %2432 = vmatpush1.xpose.msra.mxu0 0.0
    %2433 = vmatprep.subr.mxu0 0.0
    %2434 = vmatpush1.xpose.msra.mxu0 0.0
    %2435 = vmatprep.subr.mxu0 0.0
    %2436 = vmatpush1.xpose.msra.mxu0 0.0
    %2437 = vmatprep.subr.mxu0 0.0
    %2438 = vmatpush1.xpose.msra.mxu0 0.0
    %2439 = vmatprep.mubr.f32.mxu0 0.0
    %2440 = vmatmul.mubr.f32.gmra.mrb[0].mxu0 %v2370
    %v2441 = vpop.f32.mrb[0].mxu0
    %v2442 = vadd.f32 0.0, %v2441
    %v2443 = vpop.f32.mrb[0].mxu0
    %2444 = vdwg.mxu0
    %v2446 = vsel %vm1912, %v1231, 0
    %v2449 = vsel %vm1912, %v1503, 0
    %2451 = vmatprep.subr.mxu0 0.0
    %2452 = vmatpush1.xpose.msra.mxu0 %v2449
    %2453 = vmatprep.subr.mxu0 0.0
    %2454 = vmatpush1.xpose.msra.mxu0 0.0
    %2455 = vmatprep.subr.mxu0 0.0
    %2456 = vmatpush1.xpose.msra.mxu0 0.0
    %2457 = vmatprep.subr.mxu0 0.0
    %2458 = vmatpush1.xpose.msra.mxu0 0.0
    %2459 = vmatprep.subr.mxu0 0.0
    %2460 = vmatpush1.xpose.msra.mxu0 0.0
    %2461 = vmatprep.subr.mxu0 0.0
    %2462 = vmatpush1.xpose.msra.mxu0 0.0
    %2463 = vmatprep.subr.mxu0 0.0
    %2464 = vmatpush1.xpose.msra.mxu0 0.0
    %2465 = vmatprep.subr.mxu0 0.0
    %2466 = vmatpush1.xpose.msra.mxu0 0.0
    %2467 = vmatprep.subr.mxu0 0.0
    %2468 = vmatpush1.xpose.msra.mxu0 0.0
    %2469 = vmatprep.subr.mxu0 0.0
    %2470 = vmatpush1.xpose.msra.mxu0 0.0
    %2471 = vmatprep.subr.mxu0 0.0
    %2472 = vmatpush1.xpose.msra.mxu0 0.0
    %2473 = vmatprep.subr.mxu0 0.0
    %2474 = vmatpush1.xpose.msra.mxu0 0.0
    %2475 = vmatprep.subr.mxu0 0.0
    %2476 = vmatpush1.xpose.msra.mxu0 0.0
    %2477 = vmatprep.subr.mxu0 0.0
    %2478 = vmatpush1.xpose.msra.mxu0 0.0
    %2479 = vmatprep.subr.mxu0 0.0
    %2480 = vmatpush1.xpose.msra.mxu0 0.0
    %2481 = vmatprep.subr.mxu0 0.0
    %2482 = vmatpush1.xpose.msra.mxu0 0.0
    %2483 = vmatprep.subr.mxu0 0.0
    %2484 = vmatpush1.xpose.msra.mxu0 0.0
    %2485 = vmatprep.subr.mxu0 0.0
    %2486 = vmatpush1.xpose.msra.mxu0 0.0
    %2487 = vmatprep.subr.mxu0 0.0
    %2488 = vmatpush1.xpose.msra.mxu0 0.0
    %2489 = vmatprep.subr.mxu0 0.0
    %2490 = vmatpush1.xpose.msra.mxu0 0.0
    %2491 = vmatprep.subr.mxu0 0.0
    %2492 = vmatpush1.xpose.msra.mxu0 0.0
    %2493 = vmatprep.subr.mxu0 0.0
    %2494 = vmatpush1.xpose.msra.mxu0 0.0
    %2495 = vmatprep.subr.mxu0 0.0
    %2496 = vmatpush1.xpose.msra.mxu0 0.0
    %2497 = vmatprep.subr.mxu0 0.0
    %2498 = vmatpush1.xpose.msra.mxu0 0.0
    %2499 = vmatprep.subr.mxu0 0.0
    %2500 = vmatpush1.xpose.msra.mxu0 0.0
    %2501 = vmatprep.subr.mxu0 0.0
    %2502 = vmatpush1.xpose.msra.mxu0 0.0
    %2503 = vmatprep.subr.mxu0 0.0
    %2504 = vmatpush1.xpose.msra.mxu0 0.0
    %2505 = vmatprep.subr.mxu0 0.0
    %2506 = vmatpush1.xpose.msra.mxu0 0.0
    %2507 = vmatprep.subr.mxu0 0.0
    %2508 = vmatpush1.xpose.msra.mxu0 0.0
    %2509 = vmatprep.subr.mxu0 0.0
    %2510 = vmatpush1.xpose.msra.mxu0 0.0
    %2511 = vmatprep.subr.mxu0 0.0
    %2512 = vmatpush1.xpose.msra.mxu0 0.0
    %2513 = vmatprep.subr.mxu0 0.0
    %2514 = vmatpush1.xpose.msra.mxu0 0.0
    %2515 = vmatprep.mubr.f32.mxu0 0.0
    %2516 = vmatmul.mubr.f32.gmra.mrb[0].mxu0 %v2446
    %v2517 = vpop.f32.mrb[0].mxu0
    %v2518 = vadd.f32 0.0, %v2517
    %v2519 = vpop.f32.mrb[0].mxu0
    %2520 = vdwg.mxu0
    %v2522 = vsel %vm1912, %v1360, 0
    %v2525 = vsel %vm1912, %v1632, 0
    %2527 = vmatprep.subr.mxu0 0.0
    %2528 = vmatpush1.xpose.msra.mxu0 %v2525
    %2529 = vmatprep.subr.mxu0 0.0
    %2530 = vmatpush1.xpose.msra.mxu0 0.0
    %2531 = vmatprep.subr.mxu0 0.0
    %2532 = vmatpush1.xpose.msra.mxu0 0.0
    %2533 = vmatprep.subr.mxu0 0.0
    %2534 = vmatpush1.xpose.msra.mxu0 0.0
    %2535 = vmatprep.subr.mxu0 0.0
    %2536 = vmatpush1.xpose.msra.mxu0 0.0
    %2537 = vmatprep.subr.mxu0 0.0
    %2538 = vmatpush1.xpose.msra.mxu0 0.0
    %2539 = vmatprep.subr.mxu0 0.0
    %2540 = vmatpush1.xpose.msra.mxu0 0.0
    %2541 = vmatprep.subr.mxu0 0.0
    %2542 = vmatpush1.xpose.msra.mxu0 0.0
    %2543 = vmatprep.subr.mxu0 0.0
    %2544 = vmatpush1.xpose.msra.mxu0 0.0
    %2545 = vmatprep.subr.mxu0 0.0
    %2546 = vmatpush1.xpose.msra.mxu0 0.0
    %2547 = vmatprep.subr.mxu0 0.0
    %2548 = vmatpush1.xpose.msra.mxu0 0.0
    %2549 = vmatprep.subr.mxu0 0.0
    %2550 = vmatpush1.xpose.msra.mxu0 0.0
    %2551 = vmatprep.subr.mxu0 0.0
    %2552 = vmatpush1.xpose.msra.mxu0 0.0
    %2553 = vmatprep.subr.mxu0 0.0
    %2554 = vmatpush1.xpose.msra.mxu0 0.0
    %2555 = vmatprep.subr.mxu0 0.0
    %2556 = vmatpush1.xpose.msra.mxu0 0.0
    %2557 = vmatprep.subr.mxu0 0.0
    %2558 = vmatpush1.xpose.msra.mxu0 0.0
    %2559 = vmatprep.subr.mxu0 0.0
    %2560 = vmatpush1.xpose.msra.mxu0 0.0
    %2561 = vmatprep.subr.mxu0 0.0
    %2562 = vmatpush1.xpose.msra.mxu0 0.0
    %2563 = vmatprep.subr.mxu0 0.0
    %2564 = vmatpush1.xpose.msra.mxu0 0.0
    %2565 = vmatprep.subr.mxu0 0.0
    %2566 = vmatpush1.xpose.msra.mxu0 0.0
    %2567 = vmatprep.subr.mxu0 0.0
    %2568 = vmatpush1.xpose.msra.mxu0 0.0
    %2569 = vmatprep.subr.mxu0 0.0
    %2570 = vmatpush1.xpose.msra.mxu0 0.0
    %2571 = vmatprep.subr.mxu0 0.0
    %2572 = vmatpush1.xpose.msra.mxu0 0.0
    %2573 = vmatprep.subr.mxu0 0.0
    %2574 = vmatpush1.xpose.msra.mxu0 0.0
    %2575 = vmatprep.subr.mxu0 0.0
    %2576 = vmatpush1.xpose.msra.mxu0 0.0
    %2577 = vmatprep.subr.mxu0 0.0
    %2578 = vmatpush1.xpose.msra.mxu0 0.0
    %2579 = vmatprep.subr.mxu0 0.0
    %2580 = vmatpush1.xpose.msra.mxu0 0.0
    %2581 = vmatprep.subr.mxu0 0.0
    %2582 = vmatpush1.xpose.msra.mxu0 0.0
    %2583 = vmatprep.subr.mxu0 0.0
    %2584 = vmatpush1.xpose.msra.mxu0 0.0
    %2585 = vmatprep.subr.mxu0 0.0
    %2586 = vmatpush1.xpose.msra.mxu0 0.0
    %2587 = vmatprep.subr.mxu0 0.0
    %2588 = vmatpush1.xpose.msra.mxu0 0.0
    %2589 = vmatprep.subr.mxu0 0.0
    %2590 = vmatpush1.xpose.msra.mxu0 0.0
    %2591 = vmatprep.mubr.f32.mxu0 0.0
    %2592 = vmatmul.mubr.f32.gmra.mrb[0].mxu0 %v2522
    %v2593 = vpop.f32.mrb[0].mxu0
    %v2594 = vadd.f32 0.0, %v2593
    %v2595 = vpop.f32.mrb[0].mxu0
    %2596 = vdwg.mxu0
    %v2598 = vsel %vm1912, %v1361, 0
    %v2601 = vsel %vm1912, %v1633, 0
    %2603 = vmatprep.subr.mxu0 0.0
    %2604 = vmatpush1.xpose.msra.mxu0 %v2601
    %2605 = vmatprep.subr.mxu0 0.0
    %2606 = vmatpush1.xpose.msra.mxu0 0.0
    %2607 = vmatprep.subr.mxu0 0.0
    %2608 = vmatpush1.xpose.msra.mxu0 0.0
    %2609 = vmatprep.subr.mxu0 0.0
    %2610 = vmatpush1.xpose.msra.mxu0 0.0
    %2611 = vmatprep.subr.mxu0 0.0
    %2612 = vmatpush1.xpose.msra.mxu0 0.0
    %2613 = vmatprep.subr.mxu0 0.0
    %2614 = vmatpush1.xpose.msra.mxu0 0.0
    %2615 = vmatprep.subr.mxu0 0.0
    %2616 = vmatpush1.xpose.msra.mxu0 0.0
    %2617 = vmatprep.subr.mxu0 0.0
    %2618 = vmatpush1.xpose.msra.mxu0 0.0
    %2619 = vmatprep.subr.mxu0 0.0
    %2620 = vmatpush1.xpose.msra.mxu0 0.0
    %2621 = vmatprep.subr.mxu0 0.0
    %2622 = vmatpush1.xpose.msra.mxu0 0.0
    %2623 = vmatprep.subr.mxu0 0.0
    %2624 = vmatpush1.xpose.msra.mxu0 0.0
    %2625 = vmatprep.subr.mxu0 0.0
    %2626 = vmatpush1.xpose.msra.mxu0 0.0
    %2627 = vmatprep.subr.mxu0 0.0
    %2628 = vmatpush1.xpose.msra.mxu0 0.0
    %2629 = vmatprep.subr.mxu0 0.0
    %2630 = vmatpush1.xpose.msra.mxu0 0.0
    %2631 = vmatprep.subr.mxu0 0.0
    %2632 = vmatpush1.xpose.msra.mxu0 0.0
    %2633 = vmatprep.subr.mxu0 0.0
    %2634 = vmatpush1.xpose.msra.mxu0 0.0
    %2635 = vmatprep.subr.mxu0 0.0
    %2636 = vmatpush1.xpose.msra.mxu0 0.0
    %2637 = vmatprep.subr.mxu0 0.0
    %2638 = vmatpush1.xpose.msra.mxu0 0.0
    %2639 = vmatprep.subr.mxu0 0.0
    %2640 = vmatpush1.xpose.msra.mxu0 0.0
    %2641 = vmatprep.subr.mxu0 0.0
    %2642 = vmatpush1.xpose.msra.mxu0 0.0
    %2643 = vmatprep.subr.mxu0 0.0
    %2644 = vmatpush1.xpose.msra.mxu0 0.0
    %2645 = vmatprep.subr.mxu0 0.0
    %2646 = vmatpush1.xpose.msra.mxu0 0.0
    %2647 = vmatprep.subr.mxu0 0.0
    %2648 = vmatpush1.xpose.msra.mxu0 0.0
    %2649 = vmatprep.subr.mxu0 0.0
    %2650 = vmatpush1.xpose.msra.mxu0 0.0
    %2651 = vmatprep.subr.mxu0 0.0
    %2652 = vmatpush1.xpose.msra.mxu0 0.0
    %2653 = vmatprep.subr.mxu0 0.0
    %2654 = vmatpush1.xpose.msra.mxu0 0.0
    %2655 = vmatprep.subr.mxu0 0.0
    %2656 = vmatpush1.xpose.msra.mxu0 0.0
    %2657 = vmatprep.subr.mxu0 0.0
    %2658 = vmatpush1.xpose.msra.mxu0 0.0
    %2659 = vmatprep.subr.mxu0 0.0
    %2660 = vmatpush1.xpose.msra.mxu0 0.0
    %2661 = vmatprep.subr.mxu0 0.0
    %2662 = vmatpush1.xpose.msra.mxu0 0.0
    %2663 = vmatprep.subr.mxu0 0.0
    %2664 = vmatpush1.xpose.msra.mxu0 0.0
    %2665 = vmatprep.subr.mxu0 0.0
    %2666 = vmatpush1.xpose.msra.mxu0 0.0
    %2667 = vmatprep.mubr.f32.mxu0 0.0
    %2668 = vmatmul.mubr.f32.gmra.mrb[0].mxu0 %v2598
    %v2669 = vpop.f32.mrb[0].mxu0
    %v2670 = vadd.f32 0.0, %v2669
    %v2671 = vpop.f32.mrb[0].mxu0
    %2672 = vdwg.mxu0
    %v2674 = vsel %vm1912, %v1362, 0
    %v2677 = vsel %vm1912, %v1634, 0
    %2679 = vmatprep.subr.mxu0 0.0
    %2680 = vmatpush1.xpose.msra.mxu0 %v2677
    %2681 = vmatprep.subr.mxu0 0.0
    %2682 = vmatpush1.xpose.msra.mxu0 0.0
    %2683 = vmatprep.subr.mxu0 0.0
    %2684 = vmatpush1.xpose.msra.mxu0 0.0
    %2685 = vmatprep.subr.mxu0 0.0
    %2686 = vmatpush1.xpose.msra.mxu0 0.0
    %2687 = vmatprep.subr.mxu0 0.0
    %2688 = vmatpush1.xpose.msra.mxu0 0.0
    %2689 = vmatprep.subr.mxu0 0.0
    %2690 = vmatpush1.xpose.msra.mxu0 0.0
    %2691 = vmatprep.subr.mxu0 0.0
    %2692 = vmatpush1.xpose.msra.mxu0 0.0
    %2693 = vmatprep.subr.mxu0 0.0
    %2694 = vmatpush1.xpose.msra.mxu0 0.0
    %2695 = vmatprep.subr.mxu0 0.0
    %2696 = vmatpush1.xpose.msra.mxu0 0.0
    %2697 = vmatprep.subr.mxu0 0.0
    %2698 = vmatpush1.xpose.msra.mxu0 0.0
    %2699 = vmatprep.subr.mxu0 0.0
    %2700 = vmatpush1.xpose.msra.mxu0 0.0
    %2701 = vmatprep.subr.mxu0 0.0
    %2702 = vmatpush1.xpose.msra.mxu0 0.0
    %2703 = vmatprep.subr.mxu0 0.0
    %2704 = vmatpush1.xpose.msra.mxu0 0.0
    %2705 = vmatprep.subr.mxu0 0.0
    %2706 = vmatpush1.xpose.msra.mxu0 0.0
    %2707 = vmatprep.subr.mxu0 0.0
    %2708 = vmatpush1.xpose.msra.mxu0 0.0
    %2709 = vmatprep.subr.mxu0 0.0
    %2710 = vmatpush1.xpose.msra.mxu0 0.0
    %2711 = vmatprep.subr.mxu0 0.0
    %2712 = vmatpush1.xpose.msra.mxu0 0.0
    %2713 = vmatprep.subr.mxu0 0.0
    %2714 = vmatpush1.xpose.msra.mxu0 0.0
    %2715 = vmatprep.subr.mxu0 0.0
    %2716 = vmatpush1.xpose.msra.mxu0 0.0
    %2717 = vmatprep.subr.mxu0 0.0
    %2718 = vmatpush1.xpose.msra.mxu0 0.0
    %2719 = vmatprep.subr.mxu0 0.0
    %2720 = vmatpush1.xpose.msra.mxu0 0.0
    %2721 = vmatprep.subr.mxu0 0.0
    %2722 = vmatpush1.xpose.msra.mxu0 0.0
    %2723 = vmatprep.subr.mxu0 0.0
    %2724 = vmatpush1.xpose.msra.mxu0 0.0
    %2725 = vmatprep.subr.mxu0 0.0
    %2726 = vmatpush1.xpose.msra.mxu0 0.0
    %2727 = vmatprep.subr.mxu0 0.0
    %2728 = vmatpush1.xpose.msra.mxu0 0.0
    %2729 = vmatprep.subr.mxu0 0.0
    %2730 = vmatpush1.xpose.msra.mxu0 0.0
    %2731 = vmatprep.subr.mxu0 0.0
    %2732 = vmatpush1.xpose.msra.mxu0 0.0
    %2733 = vmatprep.subr.mxu0 0.0
    %2734 = vmatpush1.xpose.msra.mxu0 0.0
    %2735 = vmatprep.subr.mxu0 0.0
    %2736 = vmatpush1.xpose.msra.mxu0 0.0
    %2737 = vmatprep.subr.mxu0 0.0
    %2738 = vmatpush1.xpose.msra.mxu0 0.0
    %2739 = vmatprep.subr.mxu0 0.0
    %2740 = vmatpush1.xpose.msra.mxu0 0.0
    %2741 = vmatprep.subr.mxu0 0.0
    %2742 = vmatpush1.xpose.msra.mxu0 0.0
    %2743 = vmatprep.mubr.f32.mxu0 0.0
    %2744 = vmatmul.mubr.f32.gmra.mrb[0].mxu0 %v2674
    %v2745 = vpop.f32.mrb[0].mxu0
    %v2746 = vadd.f32 0.0, %v2745
    %v2747 = vpop.f32.mrb[0].mxu0
    %2748 = vdwg.mxu0
    %v2750 = vsel %vm1912, %v1363, 0
    %v2753 = vsel %vm1912, %v1635, 0
    %2755 = vmatprep.subr.mxu0 0.0
    %2756 = vmatpush1.xpose.msra.mxu0 %v2753
    %2757 = vmatprep.subr.mxu0 0.0
    %2758 = vmatpush1.xpose.msra.mxu0 0.0
    %2759 = vmatprep.subr.mxu0 0.0
    %2760 = vmatpush1.xpose.msra.mxu0 0.0
    %2761 = vmatprep.subr.mxu0 0.0
    %2762 = vmatpush1.xpose.msra.mxu0 0.0
    %2763 = vmatprep.subr.mxu0 0.0
    %2764 = vmatpush1.xpose.msra.mxu0 0.0
    %2765 = vmatprep.subr.mxu0 0.0
    %2766 = vmatpush1.xpose.msra.mxu0 0.0
    %2767 = vmatprep.subr.mxu0 0.0
    %2768 = vmatpush1.xpose.msra.mxu0 0.0
    %2769 = vmatprep.subr.mxu0 0.0
    %2770 = vmatpush1.xpose.msra.mxu0 0.0
    %2771 = vmatprep.subr.mxu0 0.0
    %2772 = vmatpush1.xpose.msra.mxu0 0.0
    %2773 = vmatprep.subr.mxu0 0.0
    %2774 = vmatpush1.xpose.msra.mxu0 0.0
    %2775 = vmatprep.subr.mxu0 0.0
    %2776 = vmatpush1.xpose.msra.mxu0 0.0
    %2777 = vmatprep.subr.mxu0 0.0
    %2778 = vmatpush1.xpose.msra.mxu0 0.0
    %2779 = vmatprep.subr.mxu0 0.0
    %2780 = vmatpush1.xpose.msra.mxu0 0.0
    %2781 = vmatprep.subr.mxu0 0.0
    %2782 = vmatpush1.xpose.msra.mxu0 0.0
    %2783 = vmatprep.subr.mxu0 0.0
    %2784 = vmatpush1.xpose.msra.mxu0 0.0
    %2785 = vmatprep.subr.mxu0 0.0
    %2786 = vmatpush1.xpose.msra.mxu0 0.0
    %2787 = vmatprep.subr.mxu0 0.0
    %2788 = vmatpush1.xpose.msra.mxu0 0.0
    %2789 = vmatprep.subr.mxu0 0.0
    %2790 = vmatpush1.xpose.msra.mxu0 0.0
    %2791 = vmatprep.subr.mxu0 0.0
    %2792 = vmatpush1.xpose.msra.mxu0 0.0
    %2793 = vmatprep.subr.mxu0 0.0
    %2794 = vmatpush1.xpose.msra.mxu0 0.0
    %2795 = vmatprep.subr.mxu0 0.0
    %2796 = vmatpush1.xpose.msra.mxu0 0.0
    %2797 = vmatprep.subr.mxu0 0.0
    %2798 = vmatpush1.xpose.msra.mxu0 0.0
    %2799 = vmatprep.subr.mxu0 0.0
    %2800 = vmatpush1.xpose.msra.mxu0 0.0
    %2801 = vmatprep.subr.mxu0 0.0
    %2802 = vmatpush1.xpose.msra.mxu0 0.0
    %2803 = vmatprep.subr.mxu0 0.0
    %2804 = vmatpush1.xpose.msra.mxu0 0.0
    %2805 = vmatprep.subr.mxu0 0.0
    %2806 = vmatpush1.xpose.msra.mxu0 0.0
    %2807 = vmatprep.subr.mxu0 0.0
    %2808 = vmatpush1.xpose.msra.mxu0 0.0
    %2809 = vmatprep.subr.mxu0 0.0
    %2810 = vmatpush1.xpose.msra.mxu0 0.0
    %2811 = vmatprep.subr.mxu0 0.0
    %2812 = vmatpush1.xpose.msra.mxu0 0.0
    %2813 = vmatprep.subr.mxu0 0.0
    %2814 = vmatpush1.xpose.msra.mxu0 0.0
    %2815 = vmatprep.subr.mxu0 0.0
    %2816 = vmatpush1.xpose.msra.mxu0 0.0
    %2817 = vmatprep.subr.mxu0 0.0
    %2818 = vmatpush1.xpose.msra.mxu0 0.0
    %2819 = vmatprep.mubr.f32.mxu0 0.0
    %2820 = vmatmul.mubr.f32.gmra.mrb[0].mxu0 %v2750
    %v2821 = vpop.f32.mrb[0].mxu0
    %v2822 = vadd.f32 0.0, %v2821
    %v2823 = vpop.f32.mrb[0].mxu0
    %2824 = vdwg.mxu0
    %v2826 = vsel %vm1912, %v1364, 0
    %v2829 = vsel %vm1912, %v1636, 0
    %2831 = vmatprep.subr.mxu0 0.0
    %2832 = vmatpush1.xpose.msra.mxu0 %v2829
    %2833 = vmatprep.subr.mxu0 0.0
    %2834 = vmatpush1.xpose.msra.mxu0 0.0
    %2835 = vmatprep.subr.mxu0 0.0
    %2836 = vmatpush1.xpose.msra.mxu0 0.0
    %2837 = vmatprep.subr.mxu0 0.0
    %2838 = vmatpush1.xpose.msra.mxu0 0.0
    %2839 = vmatprep.subr.mxu0 0.0
    %2840 = vmatpush1.xpose.msra.mxu0 0.0
    %2841 = vmatprep.subr.mxu0 0.0
    %2842 = vmatpush1.xpose.msra.mxu0 0.0
    %2843 = vmatprep.subr.mxu0 0.0
    %2844 = vmatpush1.xpose.msra.mxu0 0.0
    %2845 = vmatprep.subr.mxu0 0.0
    %2846 = vmatpush1.xpose.msra.mxu0 0.0
    %2847 = vmatprep.subr.mxu0 0.0
    %2848 = vmatpush1.xpose.msra.mxu0 0.0
    %2849 = vmatprep.subr.mxu0 0.0
    %2850 = vmatpush1.xpose.msra.mxu0 0.0
    %2851 = vmatprep.subr.mxu0 0.0
    %2852 = vmatpush1.xpose.msra.mxu0 0.0
    %2853 = vmatprep.subr.mxu0 0.0
    %2854 = vmatpush1.xpose.msra.mxu0 0.0
    %2855 = vmatprep.subr.mxu0 0.0
    %2856 = vmatpush1.xpose.msra.mxu0 0.0
    %2857 = vmatprep.subr.mxu0 0.0
    %2858 = vmatpush1.xpose.msra.mxu0 0.0
    %2859 = vmatprep.subr.mxu0 0.0
    %2860 = vmatpush1.xpose.msra.mxu0 0.0
    %2861 = vmatprep.subr.mxu0 0.0
    %2862 = vmatpush1.xpose.msra.mxu0 0.0
    %2863 = vmatprep.subr.mxu0 0.0
    %2864 = vmatpush1.xpose.msra.mxu0 0.0
    %2865 = vmatprep.subr.mxu0 0.0
    %2866 = vmatpush1.xpose.msra.mxu0 0.0
    %2867 = vmatprep.subr.mxu0 0.0
    %2868 = vmatpush1.xpose.msra.mxu0 0.0
    %2869 = vmatprep.subr.mxu0 0.0
    %2870 = vmatpush1.xpose.msra.mxu0 0.0
    %2871 = vmatprep.subr.mxu0 0.0
    %2872 = vmatpush1.xpose.msra.mxu0 0.0
    %2873 = vmatprep.subr.mxu0 0.0
    %2874 = vmatpush1.xpose.msra.mxu0 0.0
    %2875 = vmatprep.subr.mxu0 0.0
    %2876 = vmatpush1.xpose.msra.mxu0 0.0
    %2877 = vmatprep.subr.mxu0 0.0
    %2878 = vmatpush1.xpose.msra.mxu0 0.0
    %2879 = vmatprep.subr.mxu0 0.0
    %2880 = vmatpush1.xpose.msra.mxu0 0.0
    %2881 = vmatprep.subr.mxu0 0.0
    %2882 = vmatpush1.xpose.msra.mxu0 0.0
    %2883 = vmatprep.subr.mxu0 0.0
    %2884 = vmatpush1.xpose.msra.mxu0 0.0
    %2885 = vmatprep.subr.mxu0 0.0
    %2886 = vmatpush1.xpose.msra.mxu0 0.0
    %2887 = vmatprep.subr.mxu0 0.0
    %2888 = vmatpush1.xpose.msra.mxu0 0.0
    %2889 = vmatprep.subr.mxu0 0.0
    %2890 = vmatpush1.xpose.msra.mxu0 0.0
    %2891 = vmatprep.subr.mxu0 0.0
    %2892 = vmatpush1.xpose.msra.mxu0 0.0
    %2893 = vmatprep.subr.mxu0 0.0
    %2894 = vmatpush1.xpose.msra.mxu0 0.0
    %2895 = vmatprep.mubr.f32.mxu0 0.0
    %2896 = vmatmul.mubr.f32.gmra.mrb[0].mxu0 %v2826
    %v2897 = vpop.f32.mrb[0].mxu0
    %v2898 = vadd.f32 0.0, %v2897
    %v2899 = vpop.f32.mrb[0].mxu0
    %2900 = vdwg.mxu0
    %v2902 = vsel %vm1912, %v1365, 0
    %v2905 = vsel %vm1912, %v1637, 0
    %2907 = vmatprep.subr.mxu0 0.0
    %2908 = vmatpush1.xpose.msra.mxu0 %v2905
    %2909 = vmatprep.subr.mxu0 0.0
    %2910 = vmatpush1.xpose.msra.mxu0 0.0
    %2911 = vmatprep.subr.mxu0 0.0
    %2912 = vmatpush1.xpose.msra.mxu0 0.0
    %2913 = vmatprep.subr.mxu0 0.0
    %2914 = vmatpush1.xpose.msra.mxu0 0.0
    %2915 = vmatprep.subr.mxu0 0.0
    %2916 = vmatpush1.xpose.msra.mxu0 0.0
    %2917 = vmatprep.subr.mxu0 0.0
    %2918 = vmatpush1.xpose.msra.mxu0 0.0
    %2919 = vmatprep.subr.mxu0 0.0
    %2920 = vmatpush1.xpose.msra.mxu0 0.0
    %2921 = vmatprep.subr.mxu0 0.0
    %2922 = vmatpush1.xpose.msra.mxu0 0.0
    %2923 = vmatprep.subr.mxu0 0.0
    %2924 = vmatpush1.xpose.msra.mxu0 0.0
    %2925 = vmatprep.subr.mxu0 0.0
    %2926 = vmatpush1.xpose.msra.mxu0 0.0
    %2927 = vmatprep.subr.mxu0 0.0
    %2928 = vmatpush1.xpose.msra.mxu0 0.0
    %2929 = vmatprep.subr.mxu0 0.0
    %2930 = vmatpush1.xpose.msra.mxu0 0.0
    %2931 = vmatprep.subr.mxu0 0.0
    %2932 = vmatpush1.xpose.msra.mxu0 0.0
    %2933 = vmatprep.subr.mxu0 0.0
    %2934 = vmatpush1.xpose.msra.mxu0 0.0
    %2935 = vmatprep.subr.mxu0 0.0
    %2936 = vmatpush1.xpose.msra.mxu0 0.0
    %2937 = vmatprep.subr.mxu0 0.0
    %2938 = vmatpush1.xpose.msra.mxu0 0.0
    %2939 = vmatprep.subr.mxu0 0.0
    %2940 = vmatpush1.xpose.msra.mxu0 0.0
    %2941 = vmatprep.subr.mxu0 0.0
    %2942 = vmatpush1.xpose.msra.mxu0 0.0
    %2943 = vmatprep.subr.mxu0 0.0
    %2944 = vmatpush1.xpose.msra.mxu0 0.0
    %2945 = vmatprep.subr.mxu0 0.0
    %2946 = vmatpush1.xpose.msra.mxu0 0.0
    %2947 = vmatprep.subr.mxu0 0.0
    %2948 = vmatpush1.xpose.msra.mxu0 0.0
    %2949 = vmatprep.subr.mxu0 0.0
    %2950 = vmatpush1.xpose.msra.mxu0 0.0
    %2951 = vmatprep.subr.mxu0 0.0
    %2952 = vmatpush1.xpose.msra.mxu0 0.0
    %2953 = vmatprep.subr.mxu0 0.0
    %2954 = vmatpush1.xpose.msra.mxu0 0.0
    %2955 = vmatprep.subr.mxu0 0.0
    %2956 = vmatpush1.xpose.msra.mxu0 0.0
    %2957 = vmatprep.subr.mxu0 0.0
    %2958 = vmatpush1.xpose.msra.mxu0 0.0
    %2959 = vmatprep.subr.mxu0 0.0
    %2960 = vmatpush1.xpose.msra.mxu0 0.0
    %2961 = vmatprep.subr.mxu0 0.0
    %2962 = vmatpush1.xpose.msra.mxu0 0.0
    %2963 = vmatprep.subr.mxu0 0.0
    %2964 = vmatpush1.xpose.msra.mxu0 0.0
    %2965 = vmatprep.subr.mxu0 0.0
    %2966 = vmatpush1.xpose.msra.mxu0 0.0
    %2967 = vmatprep.subr.mxu0 0.0
    %2968 = vmatpush1.xpose.msra.mxu0 0.0
    %2969 = vmatprep.subr.mxu0 0.0
    %2970 = vmatpush1.xpose.msra.mxu0 0.0
    %2971 = vmatprep.mubr.f32.mxu0 0.0
    %2972 = vmatmul.mubr.f32.gmra.mrb[0].mxu0 %v2902
    %v2973 = vpop.f32.mrb[0].mxu0
    %v2974 = vadd.f32 0.0, %v2973
    %v2975 = vpop.f32.mrb[0].mxu0
    %2976 = vdwg.mxu0
    %v2978 = vsel %vm1912, %v1366, 0
    %v2981 = vsel %vm1912, %v1638, 0
    %2983 = vmatprep.subr.mxu0 0.0
    %2984 = vmatpush1.xpose.msra.mxu0 %v2981
    %2985 = vmatprep.subr.mxu0 0.0
    %2986 = vmatpush1.xpose.msra.mxu0 0.0
    %2987 = vmatprep.subr.mxu0 0.0
    %2988 = vmatpush1.xpose.msra.mxu0 0.0
    %2989 = vmatprep.subr.mxu0 0.0
    %2990 = vmatpush1.xpose.msra.mxu0 0.0
    %2991 = vmatprep.subr.mxu0 0.0
    %2992 = vmatpush1.xpose.msra.mxu0 0.0
    %2993 = vmatprep.subr.mxu0 0.0
    %2994 = vmatpush1.xpose.msra.mxu0 0.0
    %2995 = vmatprep.subr.mxu0 0.0
    %2996 = vmatpush1.xpose.msra.mxu0 0.0
    %2997 = vmatprep.subr.mxu0 0.0
    %2998 = vmatpush1.xpose.msra.mxu0 0.0
    %2999 = vmatprep.subr.mxu0 0.0
    %3000 = vmatpush1.xpose.msra.mxu0 0.0
    %3001 = vmatprep.subr.mxu0 0.0
    %3002 = vmatpush1.xpose.msra.mxu0 0.0
    %3003 = vmatprep.subr.mxu0 0.0
    %3004 = vmatpush1.xpose.msra.mxu0 0.0
    %3005 = vmatprep.subr.mxu0 0.0
    %3006 = vmatpush1.xpose.msra.mxu0 0.0
    %3007 = vmatprep.subr.mxu0 0.0
    %3008 = vmatpush1.xpose.msra.mxu0 0.0
    %3009 = vmatprep.subr.mxu0 0.0
    %3010 = vmatpush1.xpose.msra.mxu0 0.0
    %3011 = vmatprep.subr.mxu0 0.0
    %3012 = vmatpush1.xpose.msra.mxu0 0.0
    %3013 = vmatprep.subr.mxu0 0.0
    %3014 = vmatpush1.xpose.msra.mxu0 0.0
    %3015 = vmatprep.subr.mxu0 0.0
    %3016 = vmatpush1.xpose.msra.mxu0 0.0
    %3017 = vmatprep.subr.mxu0 0.0
    %3018 = vmatpush1.xpose.msra.mxu0 0.0
    %3019 = vmatprep.subr.mxu0 0.0
    %3020 = vmatpush1.xpose.msra.mxu0 0.0
    %3021 = vmatprep.subr.mxu0 0.0
    %3022 = vmatpush1.xpose.msra.mxu0 0.0
    %3023 = vmatprep.subr.mxu0 0.0
    %3024 = vmatpush1.xpose.msra.mxu0 0.0
    %3025 = vmatprep.subr.mxu0 0.0
    %3026 = vmatpush1.xpose.msra.mxu0 0.0
    %3027 = vmatprep.subr.mxu0 0.0
    %3028 = vmatpush1.xpose.msra.mxu0 0.0
    %3029 = vmatprep.subr.mxu0 0.0
    %3030 = vmatpush1.xpose.msra.mxu0 0.0
    %3031 = vmatprep.subr.mxu0 0.0
    %3032 = vmatpush1.xpose.msra.mxu0 0.0
    %3033 = vmatprep.subr.mxu0 0.0
    %3034 = vmatpush1.xpose.msra.mxu0 0.0
    %3035 = vmatprep.subr.mxu0 0.0
    %3036 = vmatpush1.xpose.msra.mxu0 0.0
    %3037 = vmatprep.subr.mxu0 0.0
    %3038 = vmatpush1.xpose.msra.mxu0 0.0
    %3039 = vmatprep.subr.mxu0 0.0
    %3040 = vmatpush1.xpose.msra.mxu0 0.0
    %3041 = vmatprep.subr.mxu0 0.0
    %3042 = vmatpush1.xpose.msra.mxu0 0.0
    %3043 = vmatprep.subr.mxu0 0.0
    %3044 = vmatpush1.xpose.msra.mxu0 0.0
    %3045 = vmatprep.subr.mxu0 0.0
    %3046 = vmatpush1.xpose.msra.mxu0 0.0
    %3047 = vmatprep.mubr.f32.mxu0 0.0
    %3048 = vmatmul.mubr.f32.gmra.mrb[0].mxu0 %v2978
    %v3049 = vpop.f32.mrb[0].mxu0
    %v3050 = vadd.f32 0.0, %v3049
    %v3051 = vpop.f32.mrb[0].mxu0
    %3052 = vdwg.mxu0
    %v3054 = vsel %vm1912, %v1367, 0
    %v3057 = vsel %vm1912, %v1639, 0
    %3059 = vmatprep.subr.mxu0 0.0
    %3060 = vmatpush1.xpose.msra.mxu0 %v3057
    %3061 = vmatprep.subr.mxu0 0.0
    %3062 = vmatpush1.xpose.msra.mxu0 0.0
    %3063 = vmatprep.subr.mxu0 0.0
    %3064 = vmatpush1.xpose.msra.mxu0 0.0
    %3065 = vmatprep.subr.mxu0 0.0
    %3066 = vmatpush1.xpose.msra.mxu0 0.0
    %3067 = vmatprep.subr.mxu0 0.0
    %3068 = vmatpush1.xpose.msra.mxu0 0.0
    %3069 = vmatprep.subr.mxu0 0.0
    %3070 = vmatpush1.xpose.msra.mxu0 0.0
    %3071 = vmatprep.subr.mxu0 0.0
    %3072 = vmatpush1.xpose.msra.mxu0 0.0
    %3073 = vmatprep.subr.mxu0 0.0
    %3074 = vmatpush1.xpose.msra.mxu0 0.0
    %3075 = vmatprep.subr.mxu0 0.0
    %3076 = vmatpush1.xpose.msra.mxu0 0.0
    %3077 = vmatprep.subr.mxu0 0.0
    %3078 = vmatpush1.xpose.msra.mxu0 0.0
    %3079 = vmatprep.subr.mxu0 0.0
    %3080 = vmatpush1.xpose.msra.mxu0 0.0
    %3081 = vmatprep.subr.mxu0 0.0
    %3082 = vmatpush1.xpose.msra.mxu0 0.0
    %3083 = vmatprep.subr.mxu0 0.0
    %3084 = vmatpush1.xpose.msra.mxu0 0.0
    %3085 = vmatprep.subr.mxu0 0.0
    %3086 = vmatpush1.xpose.msra.mxu0 0.0
    %3087 = vmatprep.subr.mxu0 0.0
    %3088 = vmatpush1.xpose.msra.mxu0 0.0
    %3089 = vmatprep.subr.mxu0 0.0
    %3090 = vmatpush1.xpose.msra.mxu0 0.0
    %3091 = vmatprep.subr.mxu0 0.0
    %3092 = vmatpush1.xpose.msra.mxu0 0.0
    %3093 = vmatprep.subr.mxu0 0.0
    %3094 = vmatpush1.xpose.msra.mxu0 0.0
    %3095 = vmatprep.subr.mxu0 0.0
    %3096 = vmatpush1.xpose.msra.mxu0 0.0
    %3097 = vmatprep.subr.mxu0 0.0
    %3098 = vmatpush1.xpose.msra.mxu0 0.0
    %3099 = vmatprep.subr.mxu0 0.0
    %3100 = vmatpush1.xpose.msra.mxu0 0.0
    %3101 = vmatprep.subr.mxu0 0.0
    %3102 = vmatpush1.xpose.msra.mxu0 0.0
    %3103 = vmatprep.subr.mxu0 0.0
    %3104 = vmatpush1.xpose.msra.mxu0 0.0
    %3105 = vmatprep.subr.mxu0 0.0
    %3106 = vmatpush1.xpose.msra.mxu0 0.0
    %3107 = vmatprep.subr.mxu0 0.0
    %3108 = vmatpush1.xpose.msra.mxu0 0.0
    %3109 = vmatprep.subr.mxu0 0.0
    %3110 = vmatpush1.xpose.msra.mxu0 0.0
    %3111 = vmatprep.subr.mxu0 0.0
    %3112 = vmatpush1.xpose.msra.mxu0 0.0
    %3113 = vmatprep.subr.mxu0 0.0
    %3114 = vmatpush1.xpose.msra.mxu0 0.0
    %3115 = vmatprep.subr.mxu0 0.0
    %3116 = vmatpush1.xpose.msra.mxu0 0.0
    %3117 = vmatprep.subr.mxu0 0.0
    %3118 = vmatpush1.xpose.msra.mxu0 0.0
    %3119 = vmatprep.subr.mxu0 0.0
    %3120 = vmatpush1.xpose.msra.mxu0 0.0
    %3121 = vmatprep.subr.mxu0 0.0
    %3122 = vmatpush1.xpose.msra.mxu0 0.0
    %3123 = vmatprep.mubr.f32.mxu0 0.0
    %3124 = vmatmul.mubr.f32.gmra.mrb[0].mxu0 %v3054
    %v3125 = vpop.f32.mrb[0].mxu0
    %v3126 = vadd.f32 0.0, %v3125
    %v3127 = vpop.f32.mrb[0].mxu0
    %3128 = vdwg.mxu0
    %vm3129 = vcmask 64512
    %v3130 = vsel %vm3129, %v1986, -inf
    %3131 = vmax.xlane.f32.xlu0 %v3130
    %v3132 = vpop.xlane.xlu0 %3131
    %v3133 = vsel %vm3129, %v2062, -inf
    %3134 = vmax.xlane.f32.xlu0 %v3133
    %v3135 = vpop.xlane.xlu0 %3134
    %v3136 = vsel %vm3129, %v2138, -inf
    %3137 = vmax.xlane.f32.xlu0 %v3136
    %v3138 = vpop.xlane.xlu0 %3137
    %v3139 = vsel %vm3129, %v2214, -inf
    %3140 = vmax.xlane.f32.xlu0 %v3139
    %v3141 = vpop.xlane.xlu0 %3140
    %v3142 = vsel %vm3129, %v2290, -inf
    %3143 = vmax.xlane.f32.xlu0 %v3142
    %v3144 = vpop.xlane.xlu0 %3143
    %v3145 = vsel %vm3129, %v2366, -inf
    %3146 = vmax.xlane.f32.xlu0 %v3145
    %v3147 = vpop.xlane.xlu0 %3146
    %v3148 = vsel %vm3129, %v2442, -inf
    %3149 = vmax.xlane.f32.xlu0 %v3148
    %v3150 = vpop.xlane.xlu0 %3149
    %v3151 = vsel %vm3129, %v2518, -inf
    %3152 = vmax.xlane.f32.xlu0 %v3151
    %v3153 = vpop.xlane.xlu0 %3152
    %v3154 = vsel %vm3129, %v2594, -inf
    %3155 = vmax.xlane.f32.xlu0 %v3154
    %v3156 = vpop.xlane.xlu0 %3155
    %v3157 = vsel %vm3129, %v2670, -inf
    %3158 = vmax.xlane.f32.xlu0 %v3157
    %v3159 = vpop.xlane.xlu0 %3158
    %v3160 = vsel %vm3129, %v2746, -inf
    %3161 = vmax.xlane.f32.xlu0 %v3160
    %v3162 = vpop.xlane.xlu0 %3161
    %v3163 = vsel %vm3129, %v2822, -inf
    %3164 = vmax.xlane.f32.xlu0 %v3163
    %v3165 = vpop.xlane.xlu0 %3164
    %v3166 = vsel %vm3129, %v2898, -inf
    %3167 = vmax.xlane.f32.xlu0 %v3166
    %v3168 = vpop.xlane.xlu0 %3167
    %v3169 = vsel %vm3129, %v2974, -inf
    %3170 = vmax.xlane.f32.xlu0 %v3169
    %v3171 = vpop.xlane.xlu0 %3170
    %v3172 = vsel %vm3129, %v3050, -inf
    %3173 = vmax.xlane.f32.xlu0 %v3172
    %v3174 = vpop.xlane.xlu0 %3173
    %v3175 = vsel %vm3129, %v3126, -inf
    %3176 = vmax.xlane.f32.xlu0 %v3175
    %v3177 = vpop.xlane.xlu0 %3176
    %v3178 = vsub.f32 %v1986, %v3132
    %v3179 = vsub.f32 %v2062, %v3135
    %v3180 = vsub.f32 %v2138, %v3138
    %v3181 = vsub.f32 %v2214, %v3141
    %v3182 = vsub.f32 %v2290, %v3144
    %v3183 = vsub.f32 %v2366, %v3147
    %v3184 = vsub.f32 %v2442, %v3150
    %v3185 = vsub.f32 %v2518, %v3153
    %v3186 = vsub.f32 %v2594, %v3156
    %v3187 = vsub.f32 %v2670, %v3159
    %v3188 = vsub.f32 %v2746, %v3162
    %v3189 = vsub.f32 %v2822, %v3165
    %v3190 = vsub.f32 %v2898, %v3168
    %v3191 = vsub.f32 %v2974, %v3171
    %v3192 = vsub.f32 %v3050, %v3174
    %v3193 = vsub.f32 %v3126, %v3177
    %v3194 = vmul.f32 %v3178, 1.442695
    %v3195 = vpow.pop %v3194
    %v3196 = vmul.f32 %v3179, 1.442695
    %v3197 = vpow.pop %v3196
    %v3198 = vmul.f32 %v3180, 1.442695
    %v3199 = vpow.pop %v3198
    %v3200 = vmul.f32 %v3181, 1.442695
    %v3201 = vpow.pop %v3200
    %v3202 = vmul.f32 %v3182, 1.442695
    %v3203 = vpow.pop %v3202
    %v3204 = vmul.f32 %v3183, 1.442695
    %v3205 = vpow.pop %v3204
    %v3206 = vmul.f32 %v3184, 1.442695
    %v3207 = vpow.pop %v3206
    %v3208 = vmul.f32 %v3185, 1.442695
    %v3209 = vpow.pop %v3208
    %v3210 = vmul.f32 %v3186, 1.442695
    %v3211 = vpow.pop %v3210
    %v3212 = vmul.f32 %v3187, 1.442695
    %v3213 = vpow.pop %v3212
    %v3214 = vmul.f32 %v3188, 1.442695
    %v3215 = vpow.pop %v3214
    %v3216 = vmul.f32 %v3189, 1.442695
    %v3217 = vpow.pop %v3216
    %v3218 = vmul.f32 %v3190, 1.442695
    %v3219 = vpow.pop %v3218
    %v3220 = vmul.f32 %v3191, 1.442695
    %v3221 = vpow.pop %v3220
    %v3222 = vmul.f32 %v3192, 1.442695
    %v3223 = vpow.pop %v3222
    %v3224 = vmul.f32 %v3193, 1.442695
    %v3225 = vpow.pop %v3224
    %v3226 = vsel %vm3129, %v3195, 0.0
    %3227 = vadd.xlane.f32.xlu0 %v3226
    %v3228 = vpop.xlane.xlu0 %3227
    %v3229 = vsel %vm3129, %v3197, 0.0
    %3230 = vadd.xlane.f32.xlu0 %v3229
    %v3231 = vpop.xlane.xlu0 %3230
    %v3232 = vsel %vm3129, %v3199, 0.0
    %3233 = vadd.xlane.f32.xlu0 %v3232
    %v3234 = vpop.xlane.xlu0 %3233
    %v3235 = vsel %vm3129, %v3201, 0.0
    %3236 = vadd.xlane.f32.xlu0 %v3235
    %v3237 = vpop.xlane.xlu0 %3236
    %v3238 = vsel %vm3129, %v3203, 0.0
    %3239 = vadd.xlane.f32.xlu0 %v3238
    %v3240 = vpop.xlane.xlu0 %3239
    %v3241 = vsel %vm3129, %v3205, 0.0
    %3242 = vadd.xlane.f32.xlu0 %v3241
    %v3243 = vpop.xlane.xlu0 %3242
    %v3244 = vsel %vm3129, %v3207, 0.0
    %3245 = vadd.xlane.f32.xlu0 %v3244
    %v3246 = vpop.xlane.xlu0 %3245
    %v3247 = vsel %vm3129, %v3209, 0.0
    %3248 = vadd.xlane.f32.xlu0 %v3247
    %v3249 = vpop.xlane.xlu0 %3248
    %v3250 = vsel %vm3129, %v3211, 0.0
    %3251 = vadd.xlane.f32.xlu0 %v3250
    %v3252 = vpop.xlane.xlu0 %3251
    %v3253 = vsel %vm3129, %v3213, 0.0
    %3254 = vadd.xlane.f32.xlu0 %v3253
    %v3255 = vpop.xlane.xlu0 %3254
    %v3256 = vsel %vm3129, %v3215, 0.0
    %3257 = vadd.xlane.f32.xlu0 %v3256
    %v3258 = vpop.xlane.xlu0 %3257
    %v3259 = vsel %vm3129, %v3217, 0.0
    %3260 = vadd.xlane.f32.xlu0 %v3259
    %v3261 = vpop.xlane.xlu0 %3260
    %v3262 = vsel %vm3129, %v3219, 0.0
    %3263 = vadd.xlane.f32.xlu0 %v3262
    %v3264 = vpop.xlane.xlu0 %3263
    %v3265 = vsel %vm3129, %v3221, 0.0
    %3266 = vadd.xlane.f32.xlu0 %v3265
    %v3267 = vpop.xlane.xlu0 %3266
    %v3268 = vsel %vm3129, %v3223, 0.0
    %3269 = vadd.xlane.f32.xlu0 %v3268
    %v3270 = vpop.xlane.xlu0 %3269
    %v3271 = vsel %vm3129, %v3225, 0.0
    %3272 = vadd.xlane.f32.xlu0 %v3271
    %v3273 = vpop.xlane.xlu0 %3272
    %v3274 = vrcp.pop %v3228
    %v3275 = vmul.f32 1.0, %v3274
    %v3276 = vrcp.pop %v3231
    %v3277 = vmul.f32 1.0, %v3276
    %v3278 = vrcp.pop %v3234
    %v3279 = vmul.f32 1.0, %v3278
    %v3280 = vrcp.pop %v3237
    %v3281 = vmul.f32 1.0, %v3280
    %v3282 = vrcp.pop %v3240
    %v3283 = vmul.f32 1.0, %v3282
    %v3284 = vrcp.pop %v3243
    %v3285 = vmul.f32 1.0, %v3284
    %v3286 = vrcp.pop %v3246
    %v3287 = vmul.f32 1.0, %v3286
    %v3288 = vrcp.pop %v3249
    %v3289 = vmul.f32 1.0, %v3288
    %v3290 = vrcp.pop %v3252
    %v3291 = vmul.f32 1.0, %v3290
    %v3292 = vrcp.pop %v3255
    %v3293 = vmul.f32 1.0, %v3292
    %v3294 = vrcp.pop %v3258
    %v3295 = vmul.f32 1.0, %v3294
    %v3296 = vrcp.pop %v3261
    %v3297 = vmul.f32 1.0, %v3296
    %v3298 = vrcp.pop %v3264
    %v3299 = vmul.f32 1.0, %v3298
    %v3300 = vrcp.pop %v3267
    %v3301 = vmul.f32 1.0, %v3300
    %v3302 = vrcp.pop %v3270
    %v3303 = vmul.f32 1.0, %v3302
    %v3304 = vrcp.pop %v3273
    %v3305 = vmul.f32 1.0, %v3304
    %v3306 = vmul.f32 %v3195, %v3275
    %v3307 = vmul.f32 %v3197, %v3277
    %v3308 = vmul.f32 %v3199, %v3279
    %v3309 = vmul.f32 %v3201, %v3281
    %v3310 = vmul.f32 %v3203, %v3283
    %v3311 = vmul.f32 %v3205, %v3285
    %v3312 = vmul.f32 %v3207, %v3287
    %v3313 = vmul.f32 %v3209, %v3289
    %v3314 = vmul.f32 %v3211, %v3291
    %v3315 = vmul.f32 %v3213, %v3293
    %v3316 = vmul.f32 %v3215, %v3295
    %v3317 = vmul.f32 %v3217, %v3297
    %v3318 = vmul.f32 %v3219, %v3299
    %v3319 = vmul.f32 %v3221, %v3301
    %v3320 = vmul.f32 %v3223, %v3303
    %v3321 = vmul.f32 %v3225, %v3305
    %v3323 = vsel %vm3129, %v3306, 0
    %3325 = vmatprep.subr.mxu0 0.0
    %3326 = vmatpush1.msra.mxu0 %v1768
    %3327 = vmatprep.subr.mxu0 0.0
    %3328 = vmatpush1.msra.mxu0 0.0
    %3329 = vmatprep.subr.mxu0 0.0
    %3330 = vmatpush1.msra.mxu0 0.0
    %3331 = vmatprep.subr.mxu0 0.0
    %3332 = vmatpush1.msra.mxu0 0.0
    %3333 = vmatprep.subr.mxu0 0.0
    %3334 = vmatpush1.msra.mxu0 0.0
    %3335 = vmatprep.subr.mxu0 0.0
    %3336 = vmatpush1.msra.mxu0 0.0
    %3337 = vmatprep.subr.mxu0 0.0
    %3338 = vmatpush1.msra.mxu0 0.0
    %3339 = vmatprep.subr.mxu0 0.0
    %3340 = vmatpush1.msra.mxu0 0.0
    %3341 = vmatprep.subr.mxu0 0.0
    %3342 = vmatpush1.msra.mxu0 0.0
    %3343 = vmatprep.subr.mxu0 0.0
    %3344 = vmatpush1.msra.mxu0 0.0
    %3345 = vmatprep.subr.mxu0 0.0
    %3346 = vmatpush1.msra.mxu0 0.0
    %3347 = vmatprep.subr.mxu0 0.0
    %3348 = vmatpush1.msra.mxu0 0.0
    %3349 = vmatprep.subr.mxu0 0.0
    %3350 = vmatpush1.msra.mxu0 0.0
    %3351 = vmatprep.subr.mxu0 0.0
    %3352 = vmatpush1.msra.mxu0 0.0
    %3353 = vmatprep.subr.mxu0 0.0
    %3354 = vmatpush1.msra.mxu0 0.0
    %3355 = vmatprep.subr.mxu0 0.0
    %3356 = vmatpush1.msra.mxu0 0.0
    %3357 = vmatprep.subr.mxu0 0.0
    %3358 = vmatpush1.msra.mxu0 0.0
    %3359 = vmatprep.subr.mxu0 0.0
    %3360 = vmatpush1.msra.mxu0 0.0
    %3361 = vmatprep.subr.mxu0 0.0
    %3362 = vmatpush1.msra.mxu0 0.0
    %3363 = vmatprep.subr.mxu0 0.0
    %3364 = vmatpush1.msra.mxu0 0.0
    %3365 = vmatprep.subr.mxu0 0.0
    %3366 = vmatpush1.msra.mxu0 0.0
    %3367 = vmatprep.subr.mxu0 0.0
    %3368 = vmatpush1.msra.mxu0 0.0
    %3369 = vmatprep.subr.mxu0 0.0
    %3370 = vmatpush1.msra.mxu0 0.0
    %3371 = vmatprep.subr.mxu0 0.0
    %3372 = vmatpush1.msra.mxu0 0.0
    %3373 = vmatprep.subr.mxu0 0.0
    %3374 = vmatpush1.msra.mxu0 0.0
    %3375 = vmatprep.subr.mxu0 0.0
    %3376 = vmatpush1.msra.mxu0 0.0
    %3377 = vmatprep.subr.mxu0 0.0
    %3378 = vmatpush1.msra.mxu0 0.0
    %3379 = vmatprep.subr.mxu0 0.0
    %3380 = vmatpush1.msra.mxu0 0.0
    %3381 = vmatprep.subr.mxu0 0.0
    %3382 = vmatpush1.msra.mxu0 0.0
    %3383 = vmatprep.subr.mxu0 0.0
    %3384 = vmatpush1.msra.mxu0 0.0
    %3385 = vmatprep.subr.mxu0 0.0
    %3386 = vmatpush1.msra.mxu0 0.0
    %3387 = vmatprep.subr.mxu0 0.0
    %3388 = vmatpush1.msra.mxu0 0.0
    %3389 = vmatprep.mubr.f32.mxu0 0.0
    %3390 = vmatmul.mubr.f32.gmra.mrb[0].mxu0 %v3323
    %v3391 = vpop.f32.mrb[0].mxu0
    %v3392 = vadd.f32 0.0, %v3391
    %v3393 = vpop.f32.mrb[0].mxu0
    %3394 = vdwg.mxu0
    %v3396 = vsel %vm3129, %v3307, 0
    %3398 = vmatprep.subr.mxu0 0.0
    %3399 = vmatpush1.msra.mxu0 %v1769
    %3400 = vmatprep.subr.mxu0 0.0
    %3401 = vmatpush1.msra.mxu0 0.0
    %3402 = vmatprep.subr.mxu0 0.0
    %3403 = vmatpush1.msra.mxu0 0.0
    %3404 = vmatprep.subr.mxu0 0.0
    %3405 = vmatpush1.msra.mxu0 0.0
    %3406 = vmatprep.subr.mxu0 0.0
    %3407 = vmatpush1.msra.mxu0 0.0
    %3408 = vmatprep.subr.mxu0 0.0
    %3409 = vmatpush1.msra.mxu0 0.0
    %3410 = vmatprep.subr.mxu0 0.0
    %3411 = vmatpush1.msra.mxu0 0.0
    %3412 = vmatprep.subr.mxu0 0.0
    %3413 = vmatpush1.msra.mxu0 0.0
    %3414 = vmatprep.subr.mxu0 0.0
    %3415 = vmatpush1.msra.mxu0 0.0
    %3416 = vmatprep.subr.mxu0 0.0
    %3417 = vmatpush1.msra.mxu0 0.0
    %3418 = vmatprep.subr.mxu0 0.0
    %3419 = vmatpush1.msra.mxu0 0.0
    %3420 = vmatprep.subr.mxu0 0.0
    %3421 = vmatpush1.msra.mxu0 0.0
    %3422 = vmatprep.subr.mxu0 0.0
    %3423 = vmatpush1.msra.mxu0 0.0
    %3424 = vmatprep.subr.mxu0 0.0
    %3425 = vmatpush1.msra.mxu0 0.0
    %3426 = vmatprep.subr.mxu0 0.0
    %3427 = vmatpush1.msra.mxu0 0.0
    %3428 = vmatprep.subr.mxu0 0.0
    %3429 = vmatpush1.msra.mxu0 0.0
    %3430 = vmatprep.subr.mxu0 0.0
    %3431 = vmatpush1.msra.mxu0 0.0
    %3432 = vmatprep.subr.mxu0 0.0
    %3433 = vmatpush1.msra.mxu0 0.0
    %3434 = vmatprep.subr.mxu0 0.0
    %3435 = vmatpush1.msra.mxu0 0.0
    %3436 = vmatprep.subr.mxu0 0.0
    %3437 = vmatpush1.msra.mxu0 0.0
    %3438 = vmatprep.subr.mxu0 0.0
    %3439 = vmatpush1.msra.mxu0 0.0
    %3440 = vmatprep.subr.mxu0 0.0
    %3441 = vmatpush1.msra.mxu0 0.0
    %3442 = vmatprep.subr.mxu0 0.0
    %3443 = vmatpush1.msra.mxu0 0.0
    %3444 = vmatprep.subr.mxu0 0.0
    %3445 = vmatpush1.msra.mxu0 0.0
    %3446 = vmatprep.subr.mxu0 0.0
    %3447 = vmatpush1.msra.mxu0 0.0
    %3448 = vmatprep.subr.mxu0 0.0
    %3449 = vmatpush1.msra.mxu0 0.0
    %3450 = vmatprep.subr.mxu0 0.0
    %3451 = vmatpush1.msra.mxu0 0.0
    %3452 = vmatprep.subr.mxu0 0.0
    %3453 = vmatpush1.msra.mxu0 0.0
    %3454 = vmatprep.subr.mxu0 0.0
    %3455 = vmatpush1.msra.mxu0 0.0
    %3456 = vmatprep.subr.mxu0 0.0
    %3457 = vmatpush1.msra.mxu0 0.0
    %3458 = vmatprep.subr.mxu0 0.0
    %3459 = vmatpush1.msra.mxu0 0.0
    %3460 = vmatprep.subr.mxu0 0.0
    %3461 = vmatpush1.msra.mxu0 0.0
    %3462 = vmatprep.mubr.f32.mxu0 0.0
    %3463 = vmatmul.mubr.f32.gmra.mrb[0].mxu0 %v3396
    %v3464 = vpop.f32.mrb[0].mxu0
    %v3465 = vadd.f32 0.0, %v3464
    %v3466 = vpop.f32.mrb[0].mxu0
    %3467 = vdwg.mxu0
    %v3469 = vsel %vm3129, %v3308, 0
    %3471 = vmatprep.subr.mxu0 0.0
    %3472 = vmatpush1.msra.mxu0 %v1770
    %3473 = vmatprep.subr.mxu0 0.0
    %3474 = vmatpush1.msra.mxu0 0.0
    %3475 = vmatprep.subr.mxu0 0.0
    %3476 = vmatpush1.msra.mxu0 0.0
    %3477 = vmatprep.subr.mxu0 0.0
    %3478 = vmatpush1.msra.mxu0 0.0
    %3479 = vmatprep.subr.mxu0 0.0
    %3480 = vmatpush1.msra.mxu0 0.0
    %3481 = vmatprep.subr.mxu0 0.0
    %3482 = vmatpush1.msra.mxu0 0.0
    %3483 = vmatprep.subr.mxu0 0.0
    %3484 = vmatpush1.msra.mxu0 0.0
    %3485 = vmatprep.subr.mxu0 0.0
    %3486 = vmatpush1.msra.mxu0 0.0
    %3487 = vmatprep.subr.mxu0 0.0
    %3488 = vmatpush1.msra.mxu0 0.0
    %3489 = vmatprep.subr.mxu0 0.0
    %3490 = vmatpush1.msra.mxu0 0.0
    %3491 = vmatprep.subr.mxu0 0.0
    %3492 = vmatpush1.msra.mxu0 0.0
    %3493 = vmatprep.subr.mxu0 0.0
    %3494 = vmatpush1.msra.mxu0 0.0
    %3495 = vmatprep.subr.mxu0 0.0
    %3496 = vmatpush1.msra.mxu0 0.0
    %3497 = vmatprep.subr.mxu0 0.0
    %3498 = vmatpush1.msra.mxu0 0.0
    %3499 = vmatprep.subr.mxu0 0.0
    %3500 = vmatpush1.msra.mxu0 0.0
    %3501 = vmatprep.subr.mxu0 0.0
    %3502 = vmatpush1.msra.mxu0 0.0
    %3503 = vmatprep.subr.mxu0 0.0
    %3504 = vmatpush1.msra.mxu0 0.0
    %3505 = vmatprep.subr.mxu0 0.0
    %3506 = vmatpush1.msra.mxu0 0.0
    %3507 = vmatprep.subr.mxu0 0.0
    %3508 = vmatpush1.msra.mxu0 0.0
    %3509 = vmatprep.subr.mxu0 0.0
    %3510 = vmatpush1.msra.mxu0 0.0
    %3511 = vmatprep.subr.mxu0 0.0
    %3512 = vmatpush1.msra.mxu0 0.0
    %3513 = vmatprep.subr.mxu0 0.0
    %3514 = vmatpush1.msra.mxu0 0.0
    %3515 = vmatprep.subr.mxu0 0.0
    %3516 = vmatpush1.msra.mxu0 0.0
    %3517 = vmatprep.subr.mxu0 0.0
    %3518 = vmatpush1.msra.mxu0 0.0
    %3519 = vmatprep.subr.mxu0 0.0
    %3520 = vmatpush1.msra.mxu0 0.0
    %3521 = vmatprep.subr.mxu0 0.0
    %3522 = vmatpush1.msra.mxu0 0.0
    %3523 = vmatprep.subr.mxu0 0.0
    %3524 = vmatpush1.msra.mxu0 0.0
    %3525 = vmatprep.subr.mxu0 0.0
    %3526 = vmatpush1.msra.mxu0 0.0
    %3527 = vmatprep.subr.mxu0 0.0
    %3528 = vmatpush1.msra.mxu0 0.0
    %3529 = vmatprep.subr.mxu0 0.0
    %3530 = vmatpush1.msra.mxu0 0.0
    %3531 = vmatprep.subr.mxu0 0.0
    %3532 = vmatpush1.msra.mxu0 0.0
    %3533 = vmatprep.subr.mxu0 0.0
    %3534 = vmatpush1.msra.mxu0 0.0
    %3535 = vmatprep.mubr.f32.mxu0 0.0
    %3536 = vmatmul.mubr.f32.gmra.mrb[0].mxu0 %v3469
    %v3537 = vpop.f32.mrb[0].mxu0
    %v3538 = vadd.f32 0.0, %v3537
    %v3539 = vpop.f32.mrb[0].mxu0
    %3540 = vdwg.mxu0
    %v3542 = vsel %vm3129, %v3309, 0
    %3544 = vmatprep.subr.mxu0 0.0
    %3545 = vmatpush1.msra.mxu0 %v1771
    %3546 = vmatprep.subr.mxu0 0.0
    %3547 = vmatpush1.msra.mxu0 0.0
    %3548 = vmatprep.subr.mxu0 0.0
    %3549 = vmatpush1.msra.mxu0 0.0
    %3550 = vmatprep.subr.mxu0 0.0
    %3551 = vmatpush1.msra.mxu0 0.0
    %3552 = vmatprep.subr.mxu0 0.0
    %3553 = vmatpush1.msra.mxu0 0.0
    %3554 = vmatprep.subr.mxu0 0.0
    %3555 = vmatpush1.msra.mxu0 0.0
    %3556 = vmatprep.subr.mxu0 0.0
    %3557 = vmatpush1.msra.mxu0 0.0
    %3558 = vmatprep.subr.mxu0 0.0
    %3559 = vmatpush1.msra.mxu0 0.0
    %3560 = vmatprep.subr.mxu0 0.0
    %3561 = vmatpush1.msra.mxu0 0.0
    %3562 = vmatprep.subr.mxu0 0.0
    %3563 = vmatpush1.msra.mxu0 0.0
    %3564 = vmatprep.subr.mxu0 0.0
    %3565 = vmatpush1.msra.mxu0 0.0
    %3566 = vmatprep.subr.mxu0 0.0
    %3567 = vmatpush1.msra.mxu0 0.0
    %3568 = vmatprep.subr.mxu0 0.0
    %3569 = vmatpush1.msra.mxu0 0.0
    %3570 = vmatprep.subr.mxu0 0.0
    %3571 = vmatpush1.msra.mxu0 0.0
    %3572 = vmatprep.subr.mxu0 0.0
    %3573 = vmatpush1.msra.mxu0 0.0
    %3574 = vmatprep.subr.mxu0 0.0
    %3575 = vmatpush1.msra.mxu0 0.0
    %3576 = vmatprep.subr.mxu0 0.0
    %3577 = vmatpush1.msra.mxu0 0.0
    %3578 = vmatprep.subr.mxu0 0.0
    %3579 = vmatpush1.msra.mxu0 0.0
    %3580 = vmatprep.subr.mxu0 0.0
    %3581 = vmatpush1.msra.mxu0 0.0
    %3582 = vmatprep.subr.mxu0 0.0
    %3583 = vmatpush1.msra.mxu0 0.0
    %3584 = vmatprep.subr.mxu0 0.0
    %3585 = vmatpush1.msra.mxu0 0.0
    %3586 = vmatprep.subr.mxu0 0.0
    %3587 = vmatpush1.msra.mxu0 0.0
    %3588 = vmatprep.subr.mxu0 0.0
    %3589 = vmatpush1.msra.mxu0 0.0
    %3590 = vmatprep.subr.mxu0 0.0
    %3591 = vmatpush1.msra.mxu0 0.0
    %3592 = vmatprep.subr.mxu0 0.0
    %3593 = vmatpush1.msra.mxu0 0.0
    %3594 = vmatprep.subr.mxu0 0.0
    %3595 = vmatpush1.msra.mxu0 0.0
    %3596 = vmatprep.subr.mxu0 0.0
    %3597 = vmatpush1.msra.mxu0 0.0
    %3598 = vmatprep.subr.mxu0 0.0
    %3599 = vmatpush1.msra.mxu0 0.0
    %3600 = vmatprep.subr.mxu0 0.0
    %3601 = vmatpush1.msra.mxu0 0.0
    %3602 = vmatprep.subr.mxu0 0.0
    %3603 = vmatpush1.msra.mxu0 0.0
    %3604 = vmatprep.subr.mxu0 0.0
    %3605 = vmatpush1.msra.mxu0 0.0
    %3606 = vmatprep.subr.mxu0 0.0
    %3607 = vmatpush1.msra.mxu0 0.0
    %3608 = vmatprep.mubr.f32.mxu0 0.0
    %3609 = vmatmul.mubr.f32.gmra.mrb[0].mxu0 %v3542
    %v3610 = vpop.f32.mrb[0].mxu0
    %v3611 = vadd.f32 0.0, %v3610
    %v3612 = vpop.f32.mrb[0].mxu0
    %3613 = vdwg.mxu0
    %v3615 = vsel %vm3129, %v3310, 0
    %3617 = vmatprep.subr.mxu0 0.0
    %3618 = vmatpush1.msra.mxu0 %v1772
    %3619 = vmatprep.subr.mxu0 0.0
    %3620 = vmatpush1.msra.mxu0 0.0
    %3621 = vmatprep.subr.mxu0 0.0
    %3622 = vmatpush1.msra.mxu0 0.0
    %3623 = vmatprep.subr.mxu0 0.0
    %3624 = vmatpush1.msra.mxu0 0.0
    %3625 = vmatprep.subr.mxu0 0.0
    %3626 = vmatpush1.msra.mxu0 0.0
    %3627 = vmatprep.subr.mxu0 0.0
    %3628 = vmatpush1.msra.mxu0 0.0
    %3629 = vmatprep.subr.mxu0 0.0
    %3630 = vmatpush1.msra.mxu0 0.0
    %3631 = vmatprep.subr.mxu0 0.0
    %3632 = vmatpush1.msra.mxu0 0.0
    %3633 = vmatprep.subr.mxu0 0.0
    %3634 = vmatpush1.msra.mxu0 0.0
    %3635 = vmatprep.subr.mxu0 0.0
    %3636 = vmatpush1.msra.mxu0 0.0
    %3637 = vmatprep.subr.mxu0 0.0
    %3638 = vmatpush1.msra.mxu0 0.0
    %3639 = vmatprep.subr.mxu0 0.0
    %3640 = vmatpush1.msra.mxu0 0.0
    %3641 = vmatprep.subr.mxu0 0.0
    %3642 = vmatpush1.msra.mxu0 0.0
    %3643 = vmatprep.subr.mxu0 0.0
    %3644 = vmatpush1.msra.mxu0 0.0
    %3645 = vmatprep.subr.mxu0 0.0
    %3646 = vmatpush1.msra.mxu0 0.0
    %3647 = vmatprep.subr.mxu0 0.0
    %3648 = vmatpush1.msra.mxu0 0.0
    %3649 = vmatprep.subr.mxu0 0.0
    %3650 = vmatpush1.msra.mxu0 0.0
    %3651 = vmatprep.subr.mxu0 0.0
    %3652 = vmatpush1.msra.mxu0 0.0
    %3653 = vmatprep.subr.mxu0 0.0
    %3654 = vmatpush1.msra.mxu0 0.0
    %3655 = vmatprep.subr.mxu0 0.0
    %3656 = vmatpush1.msra.mxu0 0.0
    %3657 = vmatprep.subr.mxu0 0.0
    %3658 = vmatpush1.msra.mxu0 0.0
    %3659 = vmatprep.subr.mxu0 0.0
    %3660 = vmatpush1.msra.mxu0 0.0
    %3661 = vmatprep.subr.mxu0 0.0
    %3662 = vmatpush1.msra.mxu0 0.0
    %3663 = vmatprep.subr.mxu0 0.0
    %3664 = vmatpush1.msra.mxu0 0.0
    %3665 = vmatprep.subr.mxu0 0.0
    %3666 = vmatpush1.msra.mxu0 0.0
    %3667 = vmatprep.subr.mxu0 0.0
    %3668 = vmatpush1.msra.mxu0 0.0
    %3669 = vmatprep.subr.mxu0 0.0
    %3670 = vmatpush1.msra.mxu0 0.0
    %3671 = vmatprep.subr.mxu0 0.0
    %3672 = vmatpush1.msra.mxu0 0.0
    %3673 = vmatprep.subr.mxu0 0.0
    %3674 = vmatpush1.msra.mxu0 0.0
    %3675 = vmatprep.subr.mxu0 0.0
    %3676 = vmatpush1.msra.mxu0 0.0
    %3677 = vmatprep.subr.mxu0 0.0
    %3678 = vmatpush1.msra.mxu0 0.0
    %3679 = vmatprep.subr.mxu0 0.0
    %3680 = vmatpush1.msra.mxu0 0.0
    %3681 = vmatprep.mubr.f32.mxu0 0.0
    %3682 = vmatmul.mubr.f32.gmra.mrb[0].mxu0 %v3615
    %v3683 = vpop.f32.mrb[0].mxu0
    %v3684 = vadd.f32 0.0, %v3683
    %v3685 = vpop.f32.mrb[0].mxu0
    %3686 = vdwg.mxu0
    %v3688 = vsel %vm3129, %v3311, 0
    %3690 = vmatprep.subr.mxu0 0.0
    %3691 = vmatpush1.msra.mxu0 %v1773
    %3692 = vmatprep.subr.mxu0 0.0
    %3693 = vmatpush1.msra.mxu0 0.0
    %3694 = vmatprep.subr.mxu0 0.0
    %3695 = vmatpush1.msra.mxu0 0.0
    %3696 = vmatprep.subr.mxu0 0.0
    %3697 = vmatpush1.msra.mxu0 0.0
    %3698 = vmatprep.subr.mxu0 0.0
    %3699 = vmatpush1.msra.mxu0 0.0
    %3700 = vmatprep.subr.mxu0 0.0
    %3701 = vmatpush1.msra.mxu0 0.0
    %3702 = vmatprep.subr.mxu0 0.0
    %3703 = vmatpush1.msra.mxu0 0.0
    %3704 = vmatprep.subr.mxu0 0.0
    %3705 = vmatpush1.msra.mxu0 0.0
    %3706 = vmatprep.subr.mxu0 0.0
    %3707 = vmatpush1.msra.mxu0 0.0
    %3708 = vmatprep.subr.mxu0 0.0
    %3709 = vmatpush1.msra.mxu0 0.0
    %3710 = vmatprep.subr.mxu0 0.0
    %3711 = vmatpush1.msra.mxu0 0.0
    %3712 = vmatprep.subr.mxu0 0.0
    %3713 = vmatpush1.msra.mxu0 0.0
    %3714 = vmatprep.subr.mxu0 0.0
    %3715 = vmatpush1.msra.mxu0 0.0
    %3716 = vmatprep.subr.mxu0 0.0
    %3717 = vmatpush1.msra.mxu0 0.0
    %3718 = vmatprep.subr.mxu0 0.0
    %3719 = vmatpush1.msra.mxu0 0.0
    %3720 = vmatprep.subr.mxu0 0.0
    %3721 = vmatpush1.msra.mxu0 0.0
    %3722 = vmatprep.subr.mxu0 0.0
    %3723 = vmatpush1.msra.mxu0 0.0
    %3724 = vmatprep.subr.mxu0 0.0
    %3725 = vmatpush1.msra.mxu0 0.0
    %3726 = vmatprep.subr.mxu0 0.0
    %3727 = vmatpush1.msra.mxu0 0.0
    %3728 = vmatprep.subr.mxu0 0.0
    %3729 = vmatpush1.msra.mxu0 0.0
    %3730 = vmatprep.subr.mxu0 0.0
    %3731 = vmatpush1.msra.mxu0 0.0
    %3732 = vmatprep.subr.mxu0 0.0
    %3733 = vmatpush1.msra.mxu0 0.0
    %3734 = vmatprep.subr.mxu0 0.0
    %3735 = vmatpush1.msra.mxu0 0.0
    %3736 = vmatprep.subr.mxu0 0.0
    %3737 = vmatpush1.msra.mxu0 0.0
    %3738 = vmatprep.subr.mxu0 0.0
    %3739 = vmatpush1.msra.mxu0 0.0
    %3740 = vmatprep.subr.mxu0 0.0
    %3741 = vmatpush1.msra.mxu0 0.0
    %3742 = vmatprep.subr.mxu0 0.0
    %3743 = vmatpush1.msra.mxu0 0.0
    %3744 = vmatprep.subr.mxu0 0.0
    %3745 = vmatpush1.msra.mxu0 0.0
    %3746 = vmatprep.subr.mxu0 0.0
    %3747 = vmatpush1.msra.mxu0 0.0
    %3748 = vmatprep.subr.mxu0 0.0
    %3749 = vmatpush1.msra.mxu0 0.0
    %3750 = vmatprep.subr.mxu0 0.0
    %3751 = vmatpush1.msra.mxu0 0.0
    %3752 = vmatprep.subr.mxu0 0.0
    %3753 = vmatpush1.msra.mxu0 0.0
    %3754 = vmatprep.mubr.f32.mxu0 0.0
    %3755 = vmatmul.mubr.f32.gmra.mrb[0].mxu0 %v3688
    %v3756 = vpop.f32.mrb[0].mxu0
    %v3757 = vadd.f32 0.0, %v3756
    %v3758 = vpop.f32.mrb[0].mxu0
    %3759 = vdwg.mxu0
    %v3761 = vsel %vm3129, %v3312, 0
    %3763 = vmatprep.subr.mxu0 0.0
    %3764 = vmatpush1.msra.mxu0 %v1774
    %3765 = vmatprep.subr.mxu0 0.0
    %3766 = vmatpush1.msra.mxu0 0.0
    %3767 = vmatprep.subr.mxu0 0.0
    %3768 = vmatpush1.msra.mxu0 0.0
    %3769 = vmatprep.subr.mxu0 0.0
    %3770 = vmatpush1.msra.mxu0 0.0
    %3771 = vmatprep.subr.mxu0 0.0
    %3772 = vmatpush1.msra.mxu0 0.0
    %3773 = vmatprep.subr.mxu0 0.0
    %3774 = vmatpush1.msra.mxu0 0.0
    %3775 = vmatprep.subr.mxu0 0.0
    %3776 = vmatpush1.msra.mxu0 0.0
    %3777 = vmatprep.subr.mxu0 0.0
    %3778 = vmatpush1.msra.mxu0 0.0
    %3779 = vmatprep.subr.mxu0 0.0
    %3780 = vmatpush1.msra.mxu0 0.0
    %3781 = vmatprep.subr.mxu0 0.0
    %3782 = vmatpush1.msra.mxu0 0.0
    %3783 = vmatprep.subr.mxu0 0.0
    %3784 = vmatpush1.msra.mxu0 0.0
    %3785 = vmatprep.subr.mxu0 0.0
    %3786 = vmatpush1.msra.mxu0 0.0
    %3787 = vmatprep.subr.mxu0 0.0
    %3788 = vmatpush1.msra.mxu0 0.0
    %3789 = vmatprep.subr.mxu0 0.0
    %3790 = vmatpush1.msra.mxu0 0.0
    %3791 = vmatprep.subr.mxu0 0.0
    %3792 = vmatpush1.msra.mxu0 0.0
    %3793 = vmatprep.subr.mxu0 0.0
    %3794 = vmatpush1.msra.mxu0 0.0
    %3795 = vmatprep.subr.mxu0 0.0
    %3796 = vmatpush1.msra.mxu0 0.0
    %3797 = vmatprep.subr.mxu0 0.0
    %3798 = vmatpush1.msra.mxu0 0.0
    %3799 = vmatprep.subr.mxu0 0.0
    %3800 = vmatpush1.msra.mxu0 0.0
    %3801 = vmatprep.subr.mxu0 0.0
    %3802 = vmatpush1.msra.mxu0 0.0
    %3803 = vmatprep.subr.mxu0 0.0
    %3804 = vmatpush1.msra.mxu0 0.0
    %3805 = vmatprep.subr.mxu0 0.0
    %3806 = vmatpush1.msra.mxu0 0.0
    %3807 = vmatprep.subr.mxu0 0.0
    %3808 = vmatpush1.msra.mxu0 0.0
    %3809 = vmatprep.subr.mxu0 0.0
    %3810 = vmatpush1.msra.mxu0 0.0
    %3811 = vmatprep.subr.mxu0 0.0
    %3812 = vmatpush1.msra.mxu0 0.0
    %3813 = vmatprep.subr.mxu0 0.0
    %3814 = vmatpush1.msra.mxu0 0.0
    %3815 = vmatprep.subr.mxu0 0.0
    %3816 = vmatpush1.msra.mxu0 0.0
    %3817 = vmatprep.subr.mxu0 0.0
    %3818 = vmatpush1.msra.mxu0 0.0
    %3819 = vmatprep.subr.mxu0 0.0
    %3820 = vmatpush1.msra.mxu0 0.0
    %3821 = vmatprep.subr.mxu0 0.0
    %3822 = vmatpush1.msra.mxu0 0.0
    %3823 = vmatprep.subr.mxu0 0.0
    %3824 = vmatpush1.msra.mxu0 0.0
    %3825 = vmatprep.subr.mxu0 0.0
    %3826 = vmatpush1.msra.mxu0 0.0
    %3827 = vmatprep.mubr.f32.mxu0 0.0
    %3828 = vmatmul.mubr.f32.gmra.mrb[0].mxu0 %v3761
    %v3829 = vpop.f32.mrb[0].mxu0
    %v3830 = vadd.f32 0.0, %v3829
    %v3831 = vpop.f32.mrb[0].mxu0
    %3832 = vdwg.mxu0
    %v3834 = vsel %vm3129, %v3313, 0
    %3836 = vmatprep.subr.mxu0 0.0
    %3837 = vmatpush1.msra.mxu0 %v1775
    %3838 = vmatprep.subr.mxu0 0.0
    %3839 = vmatpush1.msra.mxu0 0.0
    %3840 = vmatprep.subr.mxu0 0.0
    %3841 = vmatpush1.msra.mxu0 0.0
    %3842 = vmatprep.subr.mxu0 0.0
    %3843 = vmatpush1.msra.mxu0 0.0
    %3844 = vmatprep.subr.mxu0 0.0
    %3845 = vmatpush1.msra.mxu0 0.0
    %3846 = vmatprep.subr.mxu0 0.0
    %3847 = vmatpush1.msra.mxu0 0.0
    %3848 = vmatprep.subr.mxu0 0.0
    %3849 = vmatpush1.msra.mxu0 0.0
    %3850 = vmatprep.subr.mxu0 0.0
    %3851 = vmatpush1.msra.mxu0 0.0
    %3852 = vmatprep.subr.mxu0 0.0
    %3853 = vmatpush1.msra.mxu0 0.0
    %3854 = vmatprep.subr.mxu0 0.0
    %3855 = vmatpush1.msra.mxu0 0.0
    %3856 = vmatprep.subr.mxu0 0.0
    %3857 = vmatpush1.msra.mxu0 0.0
    %3858 = vmatprep.subr.mxu0 0.0
    %3859 = vmatpush1.msra.mxu0 0.0
    %3860 = vmatprep.subr.mxu0 0.0
    %3861 = vmatpush1.msra.mxu0 0.0
    %3862 = vmatprep.subr.mxu0 0.0
    %3863 = vmatpush1.msra.mxu0 0.0
    %3864 = vmatprep.subr.mxu0 0.0
    %3865 = vmatpush1.msra.mxu0 0.0
    %3866 = vmatprep.subr.mxu0 0.0
    %3867 = vmatpush1.msra.mxu0 0.0
    %3868 = vmatprep.subr.mxu0 0.0
    %3869 = vmatpush1.msra.mxu0 0.0
    %3870 = vmatprep.subr.mxu0 0.0
    %3871 = vmatpush1.msra.mxu0 0.0
    %3872 = vmatprep.subr.mxu0 0.0
    %3873 = vmatpush1.msra.mxu0 0.0
    %3874 = vmatprep.subr.mxu0 0.0
    %3875 = vmatpush1.msra.mxu0 0.0
    %3876 = vmatprep.subr.mxu0 0.0
    %3877 = vmatpush1.msra.mxu0 0.0
    %3878 = vmatprep.subr.mxu0 0.0
    %3879 = vmatpush1.msra.mxu0 0.0
    %3880 = vmatprep.subr.mxu0 0.0
    %3881 = vmatpush1.msra.mxu0 0.0
    %3882 = vmatprep.subr.mxu0 0.0
    %3883 = vmatpush1.msra.mxu0 0.0
    %3884 = vmatprep.subr.mxu0 0.0
    %3885 = vmatpush1.msra.mxu0 0.0
    %3886 = vmatprep.subr.mxu0 0.0
    %3887 = vmatpush1.msra.mxu0 0.0
    %3888 = vmatprep.subr.mxu0 0.0
    %3889 = vmatpush1.msra.mxu0 0.0
    %3890 = vmatprep.subr.mxu0 0.0
    %3891 = vmatpush1.msra.mxu0 0.0
    %3892 = vmatprep.subr.mxu0 0.0
    %3893 = vmatpush1.msra.mxu0 0.0
    %3894 = vmatprep.subr.mxu0 0.0
    %3895 = vmatpush1.msra.mxu0 0.0
    %3896 = vmatprep.subr.mxu0 0.0
    %3897 = vmatpush1.msra.mxu0 0.0
    %3898 = vmatprep.subr.mxu0 0.0
    %3899 = vmatpush1.msra.mxu0 0.0
    %3900 = vmatprep.mubr.f32.mxu0 0.0
    %3901 = vmatmul.mubr.f32.gmra.mrb[0].mxu0 %v3834
    %v3902 = vpop.f32.mrb[0].mxu0
    %v3903 = vadd.f32 0.0, %v3902
    %v3904 = vpop.f32.mrb[0].mxu0
    %3905 = vdwg.mxu0
    %v3907 = vsel %vm3129, %v3314, 0
    %3909 = vmatprep.subr.mxu0 0.0
    %3910 = vmatpush1.msra.mxu0 %v1904
    %3911 = vmatprep.subr.mxu0 0.0
    %3912 = vmatpush1.msra.mxu0 0.0
    %3913 = vmatprep.subr.mxu0 0.0
    %3914 = vmatpush1.msra.mxu0 0.0
    %3915 = vmatprep.subr.mxu0 0.0
    %3916 = vmatpush1.msra.mxu0 0.0
    %3917 = vmatprep.subr.mxu0 0.0
    %3918 = vmatpush1.msra.mxu0 0.0
    %3919 = vmatprep.subr.mxu0 0.0
    %3920 = vmatpush1.msra.mxu0 0.0
    %3921 = vmatprep.subr.mxu0 0.0
    %3922 = vmatpush1.msra.mxu0 0.0
    %3923 = vmatprep.subr.mxu0 0.0
    %3924 = vmatpush1.msra.mxu0 0.0
    %3925 = vmatprep.subr.mxu0 0.0
    %3926 = vmatpush1.msra.mxu0 0.0
    %3927 = vmatprep.subr.mxu0 0.0
    %3928 = vmatpush1.msra.mxu0 0.0
    %3929 = vmatprep.subr.mxu0 0.0
    %3930 = vmatpush1.msra.mxu0 0.0
    %3931 = vmatprep.subr.mxu0 0.0
    %3932 = vmatpush1.msra.mxu0 0.0
    %3933 = vmatprep.subr.mxu0 0.0
    %3934 = vmatpush1.msra.mxu0 0.0
    %3935 = vmatprep.subr.mxu0 0.0
    %3936 = vmatpush1.msra.mxu0 0.0
    %3937 = vmatprep.subr.mxu0 0.0
    %3938 = vmatpush1.msra.mxu0 0.0
    %3939 = vmatprep.subr.mxu0 0.0
    %3940 = vmatpush1.msra.mxu0 0.0
    %3941 = vmatprep.subr.mxu0 0.0
    %3942 = vmatpush1.msra.mxu0 0.0
    %3943 = vmatprep.subr.mxu0 0.0
    %3944 = vmatpush1.msra.mxu0 0.0
    %3945 = vmatprep.subr.mxu0 0.0
    %3946 = vmatpush1.msra.mxu0 0.0
    %3947 = vmatprep.subr.mxu0 0.0
    %3948 = vmatpush1.msra.mxu0 0.0
    %3949 = vmatprep.subr.mxu0 0.0
    %3950 = vmatpush1.msra.mxu0 0.0
    %3951 = vmatprep.subr.mxu0 0.0
    %3952 = vmatpush1.msra.mxu0 0.0
    %3953 = vmatprep.subr.mxu0 0.0
    %3954 = vmatpush1.msra.mxu0 0.0
    %3955 = vmatprep.subr.mxu0 0.0
    %3956 = vmatpush1.msra.mxu0 0.0
    %3957 = vmatprep.subr.mxu0 0.0
    %3958 = vmatpush1.msra.mxu0 0.0
    %3959 = vmatprep.subr.mxu0 0.0
    %3960 = vmatpush1.msra.mxu0 0.0
    %3961 = vmatprep.subr.mxu0 0.0
    %3962 = vmatpush1.msra.mxu0 0.0
    %3963 = vmatprep.subr.mxu0 0.0
    %3964 = vmatpush1.msra.mxu0 0.0
    %3965 = vmatprep.subr.mxu0 0.0
    %3966 = vmatpush1.msra.mxu0 0.0
    %3967 = vmatprep.subr.mxu0 0.0
    %3968 = vmatpush1.msra.mxu0 0.0
    %3969 = vmatprep.subr.mxu0 0.0
    %3970 = vmatpush1.msra.mxu0 0.0
    %3971 = vmatprep.subr.mxu0 0.0
    %3972 = vmatpush1.msra.mxu0 0.0
    %3973 = vmatprep.mubr.f32.mxu0 0.0
    %3974 = vmatmul.mubr.f32.gmra.mrb[0].mxu0 %v3907
    %v3975 = vpop.f32.mrb[0].mxu0
    %v3976 = vadd.f32 0.0, %v3975
    %v3977 = vpop.f32.mrb[0].mxu0
    %3978 = vdwg.mxu0
    %v3980 = vsel %vm3129, %v3315, 0
    %3982 = vmatprep.subr.mxu0 0.0
    %3983 = vmatpush1.msra.mxu0 %v1905
    %3984 = vmatprep.subr.mxu0 0.0
    %3985 = vmatpush1.msra.mxu0 0.0
    %3986 = vmatprep.subr.mxu0 0.0
    %3987 = vmatpush1.msra.mxu0 0.0
    %3988 = vmatprep.subr.mxu0 0.0
    %3989 = vmatpush1.msra.mxu0 0.0
    %3990 = vmatprep.subr.mxu0 0.0
    %3991 = vmatpush1.msra.mxu0 0.0
    %3992 = vmatprep.subr.mxu0 0.0
    %3993 = vmatpush1.msra.mxu0 0.0
    %3994 = vmatprep.subr.mxu0 0.0
    %3995 = vmatpush1.msra.mxu0 0.0
    %3996 = vmatprep.subr.mxu0 0.0
    %3997 = vmatpush1.msra.mxu0 0.0
    %3998 = vmatprep.subr.mxu0 0.0
    %3999 = vmatpush1.msra.mxu0 0.0
    %4000 = vmatprep.subr.mxu0 0.0
    %4001 = vmatpush1.msra.mxu0 0.0
    %4002 = vmatprep.subr.mxu0 0.0
    %4003 = vmatpush1.msra.mxu0 0.0
    %4004 = vmatprep.subr.mxu0 0.0
    %4005 = vmatpush1.msra.mxu0 0.0
    %4006 = vmatprep.subr.mxu0 0.0
    %4007 = vmatpush1.msra.mxu0 0.0
    %4008 = vmatprep.subr.mxu0 0.0
    %4009 = vmatpush1.msra.mxu0 0.0
    %4010 = vmatprep.subr.mxu0 0.0
    %4011 = vmatpush1.msra.mxu0 0.0
    %4012 = vmatprep.subr.mxu0 0.0
    %4013 = vmatpush1.msra.mxu0 0.0
    %4014 = vmatprep.subr.mxu0 0.0
    %4015 = vmatpush1.msra.mxu0 0.0
    %4016 = vmatprep.subr.mxu0 0.0
    %4017 = vmatpush1.msra.mxu0 0.0
    %4018 = vmatprep.subr.mxu0 0.0
    %4019 = vmatpush1.msra.mxu0 0.0
    %4020 = vmatprep.subr.mxu0 0.0
    %4021 = vmatpush1.msra.mxu0 0.0
    %4022 = vmatprep.subr.mxu0 0.0
    %4023 = vmatpush1.msra.mxu0 0.0
    %4024 = vmatprep.subr.mxu0 0.0
    %4025 = vmatpush1.msra.mxu0 0.0
    %4026 = vmatprep.subr.mxu0 0.0
    %4027 = vmatpush1.msra.mxu0 0.0
    %4028 = vmatprep.subr.mxu0 0.0
    %4029 = vmatpush1.msra.mxu0 0.0
    %4030 = vmatprep.subr.mxu0 0.0
    %4031 = vmatpush1.msra.mxu0 0.0
    %4032 = vmatprep.subr.mxu0 0.0
    %4033 = vmatpush1.msra.mxu0 0.0
    %4034 = vmatprep.subr.mxu0 0.0
    %4035 = vmatpush1.msra.mxu0 0.0
    %4036 = vmatprep.subr.mxu0 0.0
    %4037 = vmatpush1.msra.mxu0 0.0
    %4038 = vmatprep.subr.mxu0 0.0
    %4039 = vmatpush1.msra.mxu0 0.0
    %4040 = vmatprep.subr.mxu0 0.0
    %4041 = vmatpush1.msra.mxu0 0.0
    %4042 = vmatprep.subr.mxu0 0.0
    %4043 = vmatpush1.msra.mxu0 0.0
    %4044 = vmatprep.subr.mxu0 0.0
    %4045 = vmatpush1.msra.mxu0 0.0
    %4046 = vmatprep.mubr.f32.mxu0 0.0
    %4047 = vmatmul.mubr.f32.gmra.mrb[0].mxu0 %v3980
    %v4048 = vpop.f32.mrb[0].mxu0
    %v4049 = vadd.f32 0.0, %v4048
    %v4050 = vpop.f32.mrb[0].mxu0
    %4051 = vdwg.mxu0
    %v4053 = vsel %vm3129, %v3316, 0
    %4055 = vmatprep.subr.mxu0 0.0
    %4056 = vmatpush1.msra.mxu0 %v1906
    %4057 = vmatprep.subr.mxu0 0.0
    %4058 = vmatpush1.msra.mxu0 0.0
    %4059 = vmatprep.subr.mxu0 0.0
    %4060 = vmatpush1.msra.mxu0 0.0
    %4061 = vmatprep.subr.mxu0 0.0
    %4062 = vmatpush1.msra.mxu0 0.0
    %4063 = vmatprep.subr.mxu0 0.0
    %4064 = vmatpush1.msra.mxu0 0.0
    %4065 = vmatprep.subr.mxu0 0.0
    %4066 = vmatpush1.msra.mxu0 0.0
    %4067 = vmatprep.subr.mxu0 0.0
    %4068 = vmatpush1.msra.mxu0 0.0
    %4069 = vmatprep.subr.mxu0 0.0
    %4070 = vmatpush1.msra.mxu0 0.0
    %4071 = vmatprep.subr.mxu0 0.0
    %4072 = vmatpush1.msra.mxu0 0.0
    %4073 = vmatprep.subr.mxu0 0.0
    %4074 = vmatpush1.msra.mxu0 0.0
    %4075 = vmatprep.subr.mxu0 0.0
    %4076 = vmatpush1.msra.mxu0 0.0
    %4077 = vmatprep.subr.mxu0 0.0
    %4078 = vmatpush1.msra.mxu0 0.0
    %4079 = vmatprep.subr.mxu0 0.0
    %4080 = vmatpush1.msra.mxu0 0.0
    %4081 = vmatprep.subr.mxu0 0.0
    %4082 = vmatpush1.msra.mxu0 0.0
    %4083 = vmatprep.subr.mxu0 0.0
    %4084 = vmatpush1.msra.mxu0 0.0
    %4085 = vmatprep.subr.mxu0 0.0
    %4086 = vmatpush1.msra.mxu0 0.0
    %4087 = vmatprep.subr.mxu0 0.0
    %4088 = vmatpush1.msra.mxu0 0.0
    %4089 = vmatprep.subr.mxu0 0.0
    %4090 = vmatpush1.msra.mxu0 0.0
    %4091 = vmatprep.subr.mxu0 0.0
    %4092 = vmatpush1.msra.mxu0 0.0
    %4093 = vmatprep.subr.mxu0 0.0
    %4094 = vmatpush1.msra.mxu0 0.0
    %4095 = vmatprep.subr.mxu0 0.0
    %4096 = vmatpush1.msra.mxu0 0.0
    %4097 = vmatprep.subr.mxu0 0.0
    %4098 = vmatpush1.msra.mxu0 0.0
    %4099 = vmatprep.subr.mxu0 0.0
    %4100 = vmatpush1.msra.mxu0 0.0
    %4101 = vmatprep.subr.mxu0 0.0
    %4102 = vmatpush1.msra.mxu0 0.0
    %4103 = vmatprep.subr.mxu0 0.0
    %4104 = vmatpush1.msra.mxu0 0.0
    %4105 = vmatprep.subr.mxu0 0.0
    %4106 = vmatpush1.msra.mxu0 0.0
    %4107 = vmatprep.subr.mxu0 0.0
    %4108 = vmatpush1.msra.mxu0 0.0
    %4109 = vmatprep.subr.mxu0 0.0
    %4110 = vmatpush1.msra.mxu0 0.0
    %4111 = vmatprep.subr.mxu0 0.0
    %4112 = vmatpush1.msra.mxu0 0.0
    %4113 = vmatprep.subr.mxu0 0.0
    %4114 = vmatpush1.msra.mxu0 0.0
    %4115 = vmatprep.subr.mxu0 0.0
    %4116 = vmatpush1.msra.mxu0 0.0
    %4117 = vmatprep.subr.mxu0 0.0
    %4118 = vmatpush1.msra.mxu0 0.0
    %4119 = vmatprep.mubr.f32.mxu0 0.0
    %4120 = vmatmul.mubr.f32.gmra.mrb[0].mxu0 %v4053
    %v4121 = vpop.f32.mrb[0].mxu0
    %v4122 = vadd.f32 0.0, %v4121
    %v4123 = vpop.f32.mrb[0].mxu0
    %4124 = vdwg.mxu0
    %v4126 = vsel %vm3129, %v3317, 0
    %4128 = vmatprep.subr.mxu0 0.0
    %4129 = vmatpush1.msra.mxu0 %v1907
    %4130 = vmatprep.subr.mxu0 0.0
    %4131 = vmatpush1.msra.mxu0 0.0
    %4132 = vmatprep.subr.mxu0 0.0
    %4133 = vmatpush1.msra.mxu0 0.0
    %4134 = vmatprep.subr.mxu0 0.0
    %4135 = vmatpush1.msra.mxu0 0.0
    %4136 = vmatprep.subr.mxu0 0.0
    %4137 = vmatpush1.msra.mxu0 0.0
    %4138 = vmatprep.subr.mxu0 0.0
    %4139 = vmatpush1.msra.mxu0 0.0
    %4140 = vmatprep.subr.mxu0 0.0
    %4141 = vmatpush1.msra.mxu0 0.0
    %4142 = vmatprep.subr.mxu0 0.0
    %4143 = vmatpush1.msra.mxu0 0.0
    %4144 = vmatprep.subr.mxu0 0.0
    %4145 = vmatpush1.msra.mxu0 0.0
    %4146 = vmatprep.subr.mxu0 0.0
    %4147 = vmatpush1.msra.mxu0 0.0
    %4148 = vmatprep.subr.mxu0 0.0
    %4149 = vmatpush1.msra.mxu0 0.0
    %4150 = vmatprep.subr.mxu0 0.0
    %4151 = vmatpush1.msra.mxu0 0.0
    %4152 = vmatprep.subr.mxu0 0.0
    %4153 = vmatpush1.msra.mxu0 0.0
    %4154 = vmatprep.subr.mxu0 0.0
    %4155 = vmatpush1.msra.mxu0 0.0
    %4156 = vmatprep.subr.mxu0 0.0
    %4157 = vmatpush1.msra.mxu0 0.0
    %4158 = vmatprep.subr.mxu0 0.0
    %4159 = vmatpush1.msra.mxu0 0.0
    %4160 = vmatprep.subr.mxu0 0.0
    %4161 = vmatpush1.msra.mxu0 0.0
    %4162 = vmatprep.subr.mxu0 0.0
    %4163 = vmatpush1.msra.mxu0 0.0
    %4164 = vmatprep.subr.mxu0 0.0
    %4165 = vmatpush1.msra.mxu0 0.0
    %4166 = vmatprep.subr.mxu0 0.0
    %4167 = vmatpush1.msra.mxu0 0.0
    %4168 = vmatprep.subr.mxu0 0.0
    %4169 = vmatpush1.msra.mxu0 0.0
    %4170 = vmatprep.subr.mxu0 0.0
    %4171 = vmatpush1.msra.mxu0 0.0
    %4172 = vmatprep.subr.mxu0 0.0
    %4173 = vmatpush1.msra.mxu0 0.0
    %4174 = vmatprep.subr.mxu0 0.0
    %4175 = vmatpush1.msra.mxu0 0.0
    %4176 = vmatprep.subr.mxu0 0.0
    %4177 = vmatpush1.msra.mxu0 0.0
    %4178 = vmatprep.subr.mxu0 0.0
    %4179 = vmatpush1.msra.mxu0 0.0
    %4180 = vmatprep.subr.mxu0 0.0
    %4181 = vmatpush1.msra.mxu0 0.0
    %4182 = vmatprep.subr.mxu0 0.0
    %4183 = vmatpush1.msra.mxu0 0.0
    %4184 = vmatprep.subr.mxu0 0.0
    %4185 = vmatpush1.msra.mxu0 0.0
    %4186 = vmatprep.subr.mxu0 0.0
    %4187 = vmatpush1.msra.mxu0 0.0
    %4188 = vmatprep.subr.mxu0 0.0
    %4189 = vmatpush1.msra.mxu0 0.0
    %4190 = vmatprep.subr.mxu0 0.0
    %4191 = vmatpush1.msra.mxu0 0.0
    %4192 = vmatprep.mubr.f32.mxu0 0.0
    %4193 = vmatmul.mubr.f32.gmra.mrb[0].mxu0 %v4126
    %v4194 = vpop.f32.mrb[0].mxu0
    %v4195 = vadd.f32 0.0, %v4194
    %v4196 = vpop.f32.mrb[0].mxu0
    %4197 = vdwg.mxu0
    %v4199 = vsel %vm3129, %v3318, 0
    %4201 = vmatprep.subr.mxu0 0.0
    %4202 = vmatpush1.msra.mxu0 %v1908
    %4203 = vmatprep.subr.mxu0 0.0
    %4204 = vmatpush1.msra.mxu0 0.0
    %4205 = vmatprep.subr.mxu0 0.0
    %4206 = vmatpush1.msra.mxu0 0.0
    %4207 = vmatprep.subr.mxu0 0.0
    %4208 = vmatpush1.msra.mxu0 0.0
    %4209 = vmatprep.subr.mxu0 0.0
    %4210 = vmatpush1.msra.mxu0 0.0
    %4211 = vmatprep.subr.mxu0 0.0
    %4212 = vmatpush1.msra.mxu0 0.0
    %4213 = vmatprep.subr.mxu0 0.0
    %4214 = vmatpush1.msra.mxu0 0.0
    %4215 = vmatprep.subr.mxu0 0.0
    %4216 = vmatpush1.msra.mxu0 0.0
    %4217 = vmatprep.subr.mxu0 0.0
    %4218 = vmatpush1.msra.mxu0 0.0
    %4219 = vmatprep.subr.mxu0 0.0
    %4220 = vmatpush1.msra.mxu0 0.0
    %4221 = vmatprep.subr.mxu0 0.0
    %4222 = vmatpush1.msra.mxu0 0.0
    %4223 = vmatprep.subr.mxu0 0.0
    %4224 = vmatpush1.msra.mxu0 0.0
    %4225 = vmatprep.subr.mxu0 0.0
    %4226 = vmatpush1.msra.mxu0 0.0
    %4227 = vmatprep.subr.mxu0 0.0
    %4228 = vmatpush1.msra.mxu0 0.0
    %4229 = vmatprep.subr.mxu0 0.0
    %4230 = vmatpush1.msra.mxu0 0.0
    %4231 = vmatprep.subr.mxu0 0.0
    %4232 = vmatpush1.msra.mxu0 0.0
    %4233 = vmatprep.subr.mxu0 0.0
    %4234 = vmatpush1.msra.mxu0 0.0
    %4235 = vmatprep.subr.mxu0 0.0
    %4236 = vmatpush1.msra.mxu0 0.0
    %4237 = vmatprep.subr.mxu0 0.0
    %4238 = vmatpush1.msra.mxu0 0.0
    %4239 = vmatprep.subr.mxu0 0.0
    %4240 = vmatpush1.msra.mxu0 0.0
    %4241 = vmatprep.subr.mxu0 0.0
    %4242 = vmatpush1.msra.mxu0 0.0
    %4243 = vmatprep.subr.mxu0 0.0
    %4244 = vmatpush1.msra.mxu0 0.0
    %4245 = vmatprep.subr.mxu0 0.0
    %4246 = vmatpush1.msra.mxu0 0.0
    %4247 = vmatprep.subr.mxu0 0.0
    %4248 = vmatpush1.msra.mxu0 0.0
    %4249 = vmatprep.subr.mxu0 0.0
    %4250 = vmatpush1.msra.mxu0 0.0
    %4251 = vmatprep.subr.mxu0 0.0
    %4252 = vmatpush1.msra.mxu0 0.0
    %4253 = vmatprep.subr.mxu0 0.0
    %4254 = vmatpush1.msra.mxu0 0.0
    %4255 = vmatprep.subr.mxu0 0.0
    %4256 = vmatpush1.msra.mxu0 0.0
    %4257 = vmatprep.subr.mxu0 0.0
    %4258 = vmatpush1.msra.mxu0 0.0
    %4259 = vmatprep.subr.mxu0 0.0
    %4260 = vmatpush1.msra.mxu0 0.0
    %4261 = vmatprep.subr.mxu0 0.0
    %4262 = vmatpush1.msra.mxu0 0.0
    %4263 = vmatprep.subr.mxu0 0.0
    %4264 = vmatpush1.msra.mxu0 0.0
    %4265 = vmatprep.mubr.f32.mxu0 0.0
    %4266 = vmatmul.mubr.f32.gmra.mrb[0].mxu0 %v4199
    %v4267 = vpop.f32.mrb[0].mxu0
    %v4268 = vadd.f32 0.0, %v4267
    %v4269 = vpop.f32.mrb[0].mxu0
    %4270 = vdwg.mxu0
    %v4272 = vsel %vm3129, %v3319, 0
    %4274 = vmatprep.subr.mxu0 0.0
    %4275 = vmatpush1.msra.mxu0 %v1909
    %4276 = vmatprep.subr.mxu0 0.0
    %4277 = vmatpush1.msra.mxu0 0.0
    %4278 = vmatprep.subr.mxu0 0.0
    %4279 = vmatpush1.msra.mxu0 0.0
    %4280 = vmatprep.subr.mxu0 0.0
    %4281 = vmatpush1.msra.mxu0 0.0
    %4282 = vmatprep.subr.mxu0 0.0
    %4283 = vmatpush1.msra.mxu0 0.0
    %4284 = vmatprep.subr.mxu0 0.0
    %4285 = vmatpush1.msra.mxu0 0.0
    %4286 = vmatprep.subr.mxu0 0.0
    %4287 = vmatpush1.msra.mxu0 0.0
    %4288 = vmatprep.subr.mxu0 0.0
    %4289 = vmatpush1.msra.mxu0 0.0
    %4290 = vmatprep.subr.mxu0 0.0
    %4291 = vmatpush1.msra.mxu0 0.0
    %4292 = vmatprep.subr.mxu0 0.0
    %4293 = vmatpush1.msra.mxu0 0.0
    %4294 = vmatprep.subr.mxu0 0.0
    %4295 = vmatpush1.msra.mxu0 0.0
    %4296 = vmatprep.subr.mxu0 0.0
    %4297 = vmatpush1.msra.mxu0 0.0
    %4298 = vmatprep.subr.mxu0 0.0
    %4299 = vmatpush1.msra.mxu0 0.0
    %4300 = vmatprep.subr.mxu0 0.0
    %4301 = vmatpush1.msra.mxu0 0.0
    %4302 = vmatprep.subr.mxu0 0.0
    %4303 = vmatpush1.msra.mxu0 0.0
    %4304 = vmatprep.subr.mxu0 0.0
    %4305 = vmatpush1.msra.mxu0 0.0
    %4306 = vmatprep.subr.mxu0 0.0
    %4307 = vmatpush1.msra.mxu0 0.0
    %4308 = vmatprep.subr.mxu0 0.0
    %4309 = vmatpush1.msra.mxu0 0.0
    %4310 = vmatprep.subr.mxu0 0.0
    %4311 = vmatpush1.msra.mxu0 0.0
    %4312 = vmatprep.subr.mxu0 0.0
    %4313 = vmatpush1.msra.mxu0 0.0
    %4314 = vmatprep.subr.mxu0 0.0
    %4315 = vmatpush1.msra.mxu0 0.0
    %4316 = vmatprep.subr.mxu0 0.0
    %4317 = vmatpush1.msra.mxu0 0.0
    %4318 = vmatprep.subr.mxu0 0.0
    %4319 = vmatpush1.msra.mxu0 0.0
    %4320 = vmatprep.subr.mxu0 0.0
    %4321 = vmatpush1.msra.mxu0 0.0
    %4322 = vmatprep.subr.mxu0 0.0
    %4323 = vmatpush1.msra.mxu0 0.0
    %4324 = vmatprep.subr.mxu0 0.0
    %4325 = vmatpush1.msra.mxu0 0.0
    %4326 = vmatprep.subr.mxu0 0.0
    %4327 = vmatpush1.msra.mxu0 0.0
    %4328 = vmatprep.subr.mxu0 0.0
    %4329 = vmatpush1.msra.mxu0 0.0
    %4330 = vmatprep.subr.mxu0 0.0
    %4331 = vmatpush1.msra.mxu0 0.0
    %4332 = vmatprep.subr.mxu0 0.0
    %4333 = vmatpush1.msra.mxu0 0.0
    %4334 = vmatprep.subr.mxu0 0.0
    %4335 = vmatpush1.msra.mxu0 0.0
    %4336 = vmatprep.subr.mxu0 0.0
    %4337 = vmatpush1.msra.mxu0 0.0
    %4338 = vmatprep.mubr.f32.mxu0 0.0
    %4339 = vmatmul.mubr.f32.gmra.mrb[0].mxu0 %v4272
    %v4340 = vpop.f32.mrb[0].mxu0
    %v4341 = vadd.f32 0.0, %v4340
    %v4342 = vpop.f32.mrb[0].mxu0
    %4343 = vdwg.mxu0
    %v4345 = vsel %vm3129, %v3320, 0
    %4347 = vmatprep.subr.mxu0 0.0
    %4348 = vmatpush1.msra.mxu0 %v1910
    %4349 = vmatprep.subr.mxu0 0.0
    %4350 = vmatpush1.msra.mxu0 0.0
    %4351 = vmatprep.subr.mxu0 0.0
    %4352 = vmatpush1.msra.mxu0 0.0
    %4353 = vmatprep.subr.mxu0 0.0
    %4354 = vmatpush1.msra.mxu0 0.0
    %4355 = vmatprep.subr.mxu0 0.0
    %4356 = vmatpush1.msra.mxu0 0.0
    %4357 = vmatprep.subr.mxu0 0.0
    %4358 = vmatpush1.msra.mxu0 0.0
    %4359 = vmatprep.subr.mxu0 0.0
    %4360 = vmatpush1.msra.mxu0 0.0
    %4361 = vmatprep.subr.mxu0 0.0
    %4362 = vmatpush1.msra.mxu0 0.0
    %4363 = vmatprep.subr.mxu0 0.0
    %4364 = vmatpush1.msra.mxu0 0.0
    %4365 = vmatprep.subr.mxu0 0.0
    %4366 = vmatpush1.msra.mxu0 0.0
    %4367 = vmatprep.subr.mxu0 0.0
    %4368 = vmatpush1.msra.mxu0 0.0
    %4369 = vmatprep.subr.mxu0 0.0
    %4370 = vmatpush1.msra.mxu0 0.0
    %4371 = vmatprep.subr.mxu0 0.0
    %4372 = vmatpush1.msra.mxu0 0.0
    %4373 = vmatprep.subr.mxu0 0.0
    %4374 = vmatpush1.msra.mxu0 0.0
    %4375 = vmatprep.subr.mxu0 0.0
    %4376 = vmatpush1.msra.mxu0 0.0
    %4377 = vmatprep.subr.mxu0 0.0
    %4378 = vmatpush1.msra.mxu0 0.0
    %4379 = vmatprep.subr.mxu0 0.0
    %4380 = vmatpush1.msra.mxu0 0.0
    %4381 = vmatprep.subr.mxu0 0.0
    %4382 = vmatpush1.msra.mxu0 0.0
    %4383 = vmatprep.subr.mxu0 0.0
    %4384 = vmatpush1.msra.mxu0 0.0
    %4385 = vmatprep.subr.mxu0 0.0
    %4386 = vmatpush1.msra.mxu0 0.0
    %4387 = vmatprep.subr.mxu0 0.0
    %4388 = vmatpush1.msra.mxu0 0.0
    %4389 = vmatprep.subr.mxu0 0.0
    %4390 = vmatpush1.msra.mxu0 0.0
    %4391 = vmatprep.subr.mxu0 0.0
    %4392 = vmatpush1.msra.mxu0 0.0
    %4393 = vmatprep.subr.mxu0 0.0
    %4394 = vmatpush1.msra.mxu0 0.0
    %4395 = vmatprep.subr.mxu0 0.0
    %4396 = vmatpush1.msra.mxu0 0.0
    %4397 = vmatprep.subr.mxu0 0.0
    %4398 = vmatpush1.msra.mxu0 0.0
    %4399 = vmatprep.subr.mxu0 0.0
    %4400 = vmatpush1.msra.mxu0 0.0
    %4401 = vmatprep.subr.mxu0 0.0
    %4402 = vmatpush1.msra.mxu0 0.0
    %4403 = vmatprep.subr.mxu0 0.0
    %4404 = vmatpush1.msra.mxu0 0.0
    %4405 = vmatprep.subr.mxu0 0.0
    %4406 = vmatpush1.msra.mxu0 0.0
    %4407 = vmatprep.subr.mxu0 0.0
    %4408 = vmatpush1.msra.mxu0 0.0
    %4409 = vmatprep.subr.mxu0 0.0
    %4410 = vmatpush1.msra.mxu0 0.0
    %4411 = vmatprep.mubr.f32.mxu0 0.0
    %4412 = vmatmul.mubr.f32.gmra.mrb[0].mxu0 %v4345
    %v4413 = vpop.f32.mrb[0].mxu0
    %v4414 = vadd.f32 0.0, %v4413
    %v4415 = vpop.f32.mrb[0].mxu0
    %4416 = vdwg.mxu0
    %v4418 = vsel %vm3129, %v3321, 0
    %4420 = vmatprep.subr.mxu0 0.0
    %4421 = vmatpush1.msra.mxu0 %v1911
    %4422 = vmatprep.subr.mxu0 0.0
    %4423 = vmatpush1.msra.mxu0 0.0
    %4424 = vmatprep.subr.mxu0 0.0
    %4425 = vmatpush1.msra.mxu0 0.0
    %4426 = vmatprep.subr.mxu0 0.0
    %4427 = vmatpush1.msra.mxu0 0.0
    %4428 = vmatprep.subr.mxu0 0.0
    %4429 = vmatpush1.msra.mxu0 0.0
    %4430 = vmatprep.subr.mxu0 0.0
    %4431 = vmatpush1.msra.mxu0 0.0
    %4432 = vmatprep.subr.mxu0 0.0
    %4433 = vmatpush1.msra.mxu0 0.0
    %4434 = vmatprep.subr.mxu0 0.0
    %4435 = vmatpush1.msra.mxu0 0.0
    %4436 = vmatprep.subr.mxu0 0.0
    %4437 = vmatpush1.msra.mxu0 0.0
    %4438 = vmatprep.subr.mxu0 0.0
    %4439 = vmatpush1.msra.mxu0 0.0
    %4440 = vmatprep.subr.mxu0 0.0
    %4441 = vmatpush1.msra.mxu0 0.0
    %4442 = vmatprep.subr.mxu0 0.0
    %4443 = vmatpush1.msra.mxu0 0.0
    %4444 = vmatprep.subr.mxu0 0.0
    %4445 = vmatpush1.msra.mxu0 0.0
    %4446 = vmatprep.subr.mxu0 0.0
    %4447 = vmatpush1.msra.mxu0 0.0
    %4448 = vmatprep.subr.mxu0 0.0
    %4449 = vmatpush1.msra.mxu0 0.0
    %4450 = vmatprep.subr.mxu0 0.0
    %4451 = vmatpush1.msra.mxu0 0.0
    %4452 = vmatprep.subr.mxu0 0.0
    %4453 = vmatpush1.msra.mxu0 0.0
    %4454 = vmatprep.subr.mxu0 0.0
    %4455 = vmatpush1.msra.mxu0 0.0
    %4456 = vmatprep.subr.mxu0 0.0
    %4457 = vmatpush1.msra.mxu0 0.0
    %4458 = vmatprep.subr.mxu0 0.0
    %4459 = vmatpush1.msra.mxu0 0.0
    %4460 = vmatprep.subr.mxu0 0.0
    %4461 = vmatpush1.msra.mxu0 0.0
    %4462 = vmatprep.subr.mxu0 0.0
    %4463 = vmatpush1.msra.mxu0 0.0
    %4464 = vmatprep.subr.mxu0 0.0
    %4465 = vmatpush1.msra.mxu0 0.0
    %4466 = vmatprep.subr.mxu0 0.0
    %4467 = vmatpush1.msra.mxu0 0.0
    %4468 = vmatprep.subr.mxu0 0.0
    %4469 = vmatpush1.msra.mxu0 0.0
    %4470 = vmatprep.subr.mxu0 0.0
    %4471 = vmatpush1.msra.mxu0 0.0
    %4472 = vmatprep.subr.mxu0 0.0
    %4473 = vmatpush1.msra.mxu0 0.0
    %4474 = vmatprep.subr.mxu0 0.0
    %4475 = vmatpush1.msra.mxu0 0.0
    %4476 = vmatprep.subr.mxu0 0.0
    %4477 = vmatpush1.msra.mxu0 0.0
    %4478 = vmatprep.subr.mxu0 0.0
    %4479 = vmatpush1.msra.mxu0 0.0
    %4480 = vmatprep.subr.mxu0 0.0
    %4481 = vmatpush1.msra.mxu0 0.0
    %4482 = vmatprep.subr.mxu0 0.0
    %4483 = vmatpush1.msra.mxu0 0.0
    %4484 = vmatprep.mubr.f32.mxu0 0.0
    %4485 = vmatmul.mubr.f32.gmra.mrb[0].mxu0 %v4418
    %v4486 = vpop.f32.mrb[0].mxu0
    %v4487 = vadd.f32 0.0, %v4486
    %v4488 = vpop.f32.mrb[0].mxu0
    %4489 = vdwg.mxu0
    %v4490 = vcombine.low %v3392, %v3538
    %v4491 = vcombine.high %v3392, %v3538
    %v4493 = vunpack.c.l.s4 1983009808
    %v4494 = vunpack.c.0.s8 %v4493
    %v4495 = vlaneseq
    %v4496 = vshrl.u32 %v4495, 7
    %v4497 = vsub.s32 %v4494, %v4496
    %v4498 = vrot.slane %v4490, %v4497
    %v4500 = vunpack.c.l.s4 1983009808
    %v4501 = vunpack.c.0.s8 %v4500
    %v4502 = vlaneseq
    %v4503 = vshrl.u32 %v4502, 7
    %v4504 = vsub.s32 %v4501, %v4503
    %v4505 = vrot.slane %v4491, %v4504
    %v4506 = vcombine.low %v3465, %v3611
    %v4507 = vcombine.high %v3465, %v3611
    %v4509 = vunpack.c.l.s4 1983009808
    %v4510 = vunpack.c.0.s8 %v4509
    %v4511 = vlaneseq
    %v4512 = vshrl.u32 %v4511, 7
    %v4513 = vsub.s32 %v4510, %v4512
    %v4514 = vrot.slane %v4506, %v4513
    %v4516 = vunpack.c.l.s4 1983009808
    %v4517 = vunpack.c.0.s8 %v4516
    %v4518 = vlaneseq
    %v4519 = vshrl.u32 %v4518, 7
    %v4520 = vsub.s32 %v4517, %v4519
    %v4521 = vrot.slane %v4507, %v4520
    %v4522 = vcombine.low %v3684, %v3830
    %v4523 = vcombine.high %v3684, %v3830
    %v4525 = vunpack.c.l.s4 1983009808
    %v4526 = vunpack.c.0.s8 %v4525
    %v4527 = vlaneseq
    %v4528 = vshrl.u32 %v4527, 7
    %v4529 = vsub.s32 %v4526, %v4528
    %v4530 = vrot.slane %v4522, %v4529
    %v4532 = vunpack.c.l.s4 1983009808
    %v4533 = vunpack.c.0.s8 %v4532
    %v4534 = vlaneseq
    %v4535 = vshrl.u32 %v4534, 7
    %v4536 = vsub.s32 %v4533, %v4535
    %v4537 = vrot.slane %v4523, %v4536
    %v4538 = vcombine.low %v3757, %v3903
    %v4539 = vcombine.high %v3757, %v3903
    %v4541 = vunpack.c.l.s4 1983009808
    %v4542 = vunpack.c.0.s8 %v4541
    %v4543 = vlaneseq
    %v4544 = vshrl.u32 %v4543, 7
    %v4545 = vsub.s32 %v4542, %v4544
    %v4546 = vrot.slane %v4538, %v4545
    %v4548 = vunpack.c.l.s4 1983009808
    %v4549 = vunpack.c.0.s8 %v4548
    %v4550 = vlaneseq
    %v4551 = vshrl.u32 %v4550, 7
    %v4552 = vsub.s32 %v4549, %v4551
    %v4553 = vrot.slane %v4539, %v4552
    %v4554 = vcombine.low %v4498, %v4514
    %v4555 = vcombine.high %v4498, %v4514
    %v4557 = vunpack.c.l.s4 1934713408
    %v4558 = vunpack.c.0.s8 %v4557
    %v4559 = vlaneseq
    %v4560 = vshrl.u32 %v4559, 7
    %v4561 = vsub.s32 %v4558, %v4560
    %v4562 = vrot.slane %v4554, %v4561
    %v4564 = vunpack.c.l.s4 1934713408
    %v4565 = vunpack.c.0.s8 %v4564
    %v4566 = vlaneseq
    %v4567 = vshrl.u32 %v4566, 7
    %v4568 = vsub.s32 %v4565, %v4567
    %v4569 = vrot.slane %v4555, %v4568
    %v4570 = vcombine.low %v4505, %v4521
    %v4571 = vcombine.high %v4505, %v4521
    %v4573 = vunpack.c.l.s4 1934713408
    %v4574 = vunpack.c.0.s8 %v4573
    %v4575 = vlaneseq
    %v4576 = vshrl.u32 %v4575, 7
    %v4577 = vsub.s32 %v4574, %v4576
    %v4578 = vrot.slane %v4570, %v4577
    %v4580 = vunpack.c.l.s4 1934713408
    %v4581 = vunpack.c.0.s8 %v4580
    %v4582 = vlaneseq
    %v4583 = vshrl.u32 %v4582, 7
    %v4584 = vsub.s32 %v4581, %v4583
    %v4585 = vrot.slane %v4571, %v4584
    %v4586 = vcombine.low %v4530, %v4546
    %v4587 = vcombine.high %v4530, %v4546
    %v4589 = vunpack.c.l.s4 1934713408
    %v4590 = vunpack.c.0.s8 %v4589
    %v4591 = vlaneseq
    %v4592 = vshrl.u32 %v4591, 7
    %v4593 = vsub.s32 %v4590, %v4592
    %v4594 = vrot.slane %v4586, %v4593
    %v4596 = vunpack.c.l.s4 1934713408
    %v4597 = vunpack.c.0.s8 %v4596
    %v4598 = vlaneseq
    %v4599 = vshrl.u32 %v4598, 7
    %v4600 = vsub.s32 %v4597, %v4599
    %v4601 = vrot.slane %v4587, %v4600
    %v4602 = vcombine.low %v4537, %v4553
    %v4603 = vcombine.high %v4537, %v4553
    %v4605 = vunpack.c.l.s4 1934713408
    %v4606 = vunpack.c.0.s8 %v4605
    %v4607 = vlaneseq
    %v4608 = vshrl.u32 %v4607, 7
    %v4609 = vsub.s32 %v4606, %v4608
    %v4610 = vrot.slane %v4602, %v4609
    %v4612 = vunpack.c.l.s4 1934713408
    %v4613 = vunpack.c.0.s8 %v4612
    %v4614 = vlaneseq
    %v4615 = vshrl.u32 %v4614, 7
    %v4616 = vsub.s32 %v4613, %v4615
    %v4617 = vrot.slane %v4603, %v4616
    %v4618 = vcombine.low %v4562, %v4594
    %v4619 = vcombine.high %v4562, %v4594
    %v4620 = vcombine.low %v4569, %v4601
    %v4621 = vcombine.high %v4569, %v4601
    %v4622 = vcombine.low %v4578, %v4610
    %v4623 = vcombine.high %v4578, %v4610
    %v4624 = vcombine.low %v4585, %v4617
    %v4625 = vcombine.high %v4585, %v4617
    %v4626 = vcombine.low %v3976, %v4122
    %v4627 = vcombine.high %v3976, %v4122
    %v4629 = vunpack.c.l.s4 1983009808
    %v4630 = vunpack.c.0.s8 %v4629
    %v4631 = vlaneseq
    %v4632 = vshrl.u32 %v4631, 7
    %v4633 = vsub.s32 %v4630, %v4632
    %v4634 = vrot.slane %v4626, %v4633
    %v4636 = vunpack.c.l.s4 1983009808
    %v4637 = vunpack.c.0.s8 %v4636
    %v4638 = vlaneseq
    %v4639 = vshrl.u32 %v4638, 7
    %v4640 = vsub.s32 %v4637, %v4639
    %v4641 = vrot.slane %v4627, %v4640
    %v4642 = vcombine.low %v4049, %v4195
    %v4643 = vcombine.high %v4049, %v4195
    %v4645 = vunpack.c.l.s4 1983009808
    %v4646 = vunpack.c.0.s8 %v4645
    %v4647 = vlaneseq
    %v4648 = vshrl.u32 %v4647, 7
    %v4649 = vsub.s32 %v4646, %v4648
    %v4650 = vrot.slane %v4642, %v4649
    %v4652 = vunpack.c.l.s4 1983009808
    %v4653 = vunpack.c.0.s8 %v4652
    %v4654 = vlaneseq
    %v4655 = vshrl.u32 %v4654, 7
    %v4656 = vsub.s32 %v4653, %v4655
    %v4657 = vrot.slane %v4643, %v4656
    %v4658 = vcombine.low %v4268, %v4414
    %v4659 = vcombine.high %v4268, %v4414
    %v4661 = vunpack.c.l.s4 1983009808
    %v4662 = vunpack.c.0.s8 %v4661
    %v4663 = vlaneseq
    %v4664 = vshrl.u32 %v4663, 7
    %v4665 = vsub.s32 %v4662, %v4664
    %v4666 = vrot.slane %v4658, %v4665
    %v4668 = vunpack.c.l.s4 1983009808
    %v4669 = vunpack.c.0.s8 %v4668
    %v4670 = vlaneseq
    %v4671 = vshrl.u32 %v4670, 7
    %v4672 = vsub.s32 %v4669, %v4671
    %v4673 = vrot.slane %v4659, %v4672
    %v4674 = vcombine.low %v4341, %v4487
    %v4675 = vcombine.high %v4341, %v4487
    %v4677 = vunpack.c.l.s4 1983009808
    %v4678 = vunpack.c.0.s8 %v4677
    %v4679 = vlaneseq
    %v4680 = vshrl.u32 %v4679, 7
    %v4681 = vsub.s32 %v4678, %v4680
    %v4682 = vrot.slane %v4674, %v4681
    %v4684 = vunpack.c.l.s4 1983009808
    %v4685 = vunpack.c.0.s8 %v4684
    %v4686 = vlaneseq
    %v4687 = vshrl.u32 %v4686, 7
    %v4688 = vsub.s32 %v4685, %v4687
    %v4689 = vrot.slane %v4675, %v4688
    %v4690 = vcombine.low %v4634, %v4650
    %v4691 = vcombine.high %v4634, %v4650
    %v4693 = vunpack.c.l.s4 1934713408
    %v4694 = vunpack.c.0.s8 %v4693
    %v4695 = vlaneseq
    %v4696 = vshrl.u32 %v4695, 7
    %v4697 = vsub.s32 %v4694, %v4696
    %v4698 = vrot.slane %v4690, %v4697
    %v4700 = vunpack.c.l.s4 1934713408
    %v4701 = vunpack.c.0.s8 %v4700
    %v4702 = vlaneseq
    %v4703 = vshrl.u32 %v4702, 7
    %v4704 = vsub.s32 %v4701, %v4703
    %v4705 = vrot.slane %v4691, %v4704
    %v4706 = vcombine.low %v4641, %v4657
    %v4707 = vcombine.high %v4641, %v4657
    %v4709 = vunpack.c.l.s4 1934713408
    %v4710 = vunpack.c.0.s8 %v4709
    %v4711 = vlaneseq
    %v4712 = vshrl.u32 %v4711, 7
    %v4713 = vsub.s32 %v4710, %v4712
    %v4714 = vrot.slane %v4706, %v4713
    %v4716 = vunpack.c.l.s4 1934713408
    %v4717 = vunpack.c.0.s8 %v4716
    %v4718 = vlaneseq
    %v4719 = vshrl.u32 %v4718, 7
    %v4720 = vsub.s32 %v4717, %v4719
    %v4721 = vrot.slane %v4707, %v4720
    %v4722 = vcombine.low %v4666, %v4682
    %v4723 = vcombine.high %v4666, %v4682
    %v4725 = vunpack.c.l.s4 1934713408
    %v4726 = vunpack.c.0.s8 %v4725
    %v4727 = vlaneseq
    %v4728 = vshrl.u32 %v4727, 7
    %v4729 = vsub.s32 %v4726, %v4728
    %v4730 = vrot.slane %v4722, %v4729
    %v4732 = vunpack.c.l.s4 1934713408
    %v4733 = vunpack.c.0.s8 %v4732
    %v4734 = vlaneseq
    %v4735 = vshrl.u32 %v4734, 7
    %v4736 = vsub.s32 %v4733, %v4735
    %v4737 = vrot.slane %v4723, %v4736
    %v4738 = vcombine.low %v4673, %v4689
    %v4739 = vcombine.high %v4673, %v4689
    %v4741 = vunpack.c.l.s4 1934713408
    %v4742 = vunpack.c.0.s8 %v4741
    %v4743 = vlaneseq
    %v4744 = vshrl.u32 %v4743, 7
    %v4745 = vsub.s32 %v4742, %v4744
    %v4746 = vrot.slane %v4738, %v4745
    %v4748 = vunpack.c.l.s4 1934713408
    %v4749 = vunpack.c.0.s8 %v4748
    %v4750 = vlaneseq
    %v4751 = vshrl.u32 %v4750, 7
    %v4752 = vsub.s32 %v4749, %v4751
    %v4753 = vrot.slane %v4739, %v4752
    %v4754 = vcombine.low %v4698, %v4730
    %v4755 = vcombine.high %v4698, %v4730
    %v4756 = vcombine.low %v4705, %v4737
    %v4757 = vcombine.high %v4705, %v4737
    %v4758 = vcombine.low %v4714, %v4746
    %v4759 = vcombine.high %v4714, %v4746
    %v4760 = vcombine.low %v4721, %v4753
    %v4761 = vcombine.high %v4721, %v4753
    %v4762 = vcombine.low %v4618, %v4620
    %v4763 = vcombine.high %v4618, %v4620
    %v4765 = vunpack.c.l.s4 1983009808
    %v4766 = vunpack.c.0.s8 %v4765
    %v4767 = vlaneseq
    %v4768 = vshrl.u32 %v4767, 7
    %v4769 = vsub.s32 %v4766, %v4768
    %v4770 = vrot.slane %v4762, %v4769
    %v4772 = vunpack.c.l.s4 1983009808
    %v4773 = vunpack.c.0.s8 %v4772
    %v4774 = vlaneseq
    %v4775 = vshrl.u32 %v4774, 7
    %v4776 = vsub.s32 %v4773, %v4775
    %v4777 = vrot.slane %v4763, %v4776
    %v4778 = vcombine.low %v4619, %v4621
    %v4779 = vcombine.high %v4619, %v4621
    %v4781 = vunpack.c.l.s4 1983009808
    %v4782 = vunpack.c.0.s8 %v4781
    %v4783 = vlaneseq
    %v4784 = vshrl.u32 %v4783, 7
    %v4785 = vsub.s32 %v4782, %v4784
    %v4786 = vrot.slane %v4778, %v4785
    %v4788 = vunpack.c.l.s4 1983009808
    %v4789 = vunpack.c.0.s8 %v4788
    %v4790 = vlaneseq
    %v4791 = vshrl.u32 %v4790, 7
    %v4792 = vsub.s32 %v4789, %v4791
    %v4793 = vrot.slane %v4779, %v4792
    %v4794 = vcombine.low %v4622, %v4624
    %v4795 = vcombine.high %v4622, %v4624
    %v4797 = vunpack.c.l.s4 1983009808
    %v4798 = vunpack.c.0.s8 %v4797
    %v4799 = vlaneseq
    %v4800 = vshrl.u32 %v4799, 7
    %v4801 = vsub.s32 %v4798, %v4800
    %v4802 = vrot.slane %v4794, %v4801
    %v4804 = vunpack.c.l.s4 1983009808
    %v4805 = vunpack.c.0.s8 %v4804
    %v4806 = vlaneseq
    %v4807 = vshrl.u32 %v4806, 7
    %v4808 = vsub.s32 %v4805, %v4807
    %v4809 = vrot.slane %v4795, %v4808
    %v4810 = vcombine.low %v4623, %v4625
    %v4811 = vcombine.high %v4623, %v4625
    %v4813 = vunpack.c.l.s4 1983009808
    %v4814 = vunpack.c.0.s8 %v4813
    %v4815 = vlaneseq
    %v4816 = vshrl.u32 %v4815, 7
    %v4817 = vsub.s32 %v4814, %v4816
    %v4818 = vrot.slane %v4810, %v4817
    %v4820 = vunpack.c.l.s4 1983009808
    %v4821 = vunpack.c.0.s8 %v4820
    %v4822 = vlaneseq
    %v4823 = vshrl.u32 %v4822, 7
    %v4824 = vsub.s32 %v4821, %v4823
    %v4825 = vrot.slane %v4811, %v4824
    %v4826 = vcombine.low %v4770, %v4786
    %v4827 = vcombine.high %v4770, %v4786
    %v4829 = vunpack.c.l.s4 1934713408
    %v4830 = vunpack.c.0.s8 %v4829
    %v4831 = vlaneseq
    %v4832 = vshrl.u32 %v4831, 7
    %v4833 = vsub.s32 %v4830, %v4832
    %v4834 = vrot.slane %v4826, %v4833
    %v4836 = vunpack.c.l.s4 1934713408
    %v4837 = vunpack.c.0.s8 %v4836
    %v4838 = vlaneseq
    %v4839 = vshrl.u32 %v4838, 7
    %v4840 = vsub.s32 %v4837, %v4839
    %v4841 = vrot.slane %v4827, %v4840
    %v4842 = vcombine.low %v4777, %v4793
    %v4843 = vcombine.high %v4777, %v4793
    %v4845 = vunpack.c.l.s4 1934713408
    %v4846 = vunpack.c.0.s8 %v4845
    %v4847 = vlaneseq
    %v4848 = vshrl.u32 %v4847, 7
    %v4849 = vsub.s32 %v4846, %v4848
    %v4850 = vrot.slane %v4842, %v4849
    %v4852 = vunpack.c.l.s4 1934713408
    %v4853 = vunpack.c.0.s8 %v4852
    %v4854 = vlaneseq
    %v4855 = vshrl.u32 %v4854, 7
    %v4856 = vsub.s32 %v4853, %v4855
    %v4857 = vrot.slane %v4843, %v4856
    %v4858 = vcombine.low %v4802, %v4818
    %v4859 = vcombine.high %v4802, %v4818
    %v4861 = vunpack.c.l.s4 1934713408
    %v4862 = vunpack.c.0.s8 %v4861
    %v4863 = vlaneseq
    %v4864 = vshrl.u32 %v4863, 7
    %v4865 = vsub.s32 %v4862, %v4864
    %v4866 = vrot.slane %v4858, %v4865
    %v4868 = vunpack.c.l.s4 1934713408
    %v4869 = vunpack.c.0.s8 %v4868
    %v4870 = vlaneseq
    %v4871 = vshrl.u32 %v4870, 7
    %v4872 = vsub.s32 %v4869, %v4871
    %v4873 = vrot.slane %v4859, %v4872
    %v4874 = vcombine.low %v4809, %v4825
    %v4875 = vcombine.high %v4809, %v4825
    %v4877 = vunpack.c.l.s4 1934713408
    %v4878 = vunpack.c.0.s8 %v4877
    %v4879 = vlaneseq
    %v4880 = vshrl.u32 %v4879, 7
    %v4881 = vsub.s32 %v4878, %v4880
    %v4882 = vrot.slane %v4874, %v4881
    %v4884 = vunpack.c.l.s4 1934713408
    %v4885 = vunpack.c.0.s8 %v4884
    %v4886 = vlaneseq
    %v4887 = vshrl.u32 %v4886, 7
    %v4888 = vsub.s32 %v4885, %v4887
    %v4889 = vrot.slane %v4875, %v4888
    %v4890 = vcombine.low %v4834, %v4866
    %v4891 = vcombine.high %v4834, %v4866
    %v4892 = vcombine.low %v4841, %v4873
    %v4893 = vcombine.high %v4841, %v4873
    %v4894 = vcombine.low %v4850, %v4882
    %v4895 = vcombine.high %v4850, %v4882
    %v4896 = vcombine.low %v4857, %v4889
    %v4897 = vcombine.high %v4857, %v4889
    %v4898 = vcombine.low %v4754, %v4756
    %v4899 = vcombine.high %v4754, %v4756
    %v4901 = vunpack.c.l.s4 1983009808
    %v4902 = vunpack.c.0.s8 %v4901
    %v4903 = vlaneseq
    %v4904 = vshrl.u32 %v4903, 7
    %v4905 = vsub.s32 %v4902, %v4904
    %v4906 = vrot.slane %v4898, %v4905
    %v4908 = vunpack.c.l.s4 1983009808
    %v4909 = vunpack.c.0.s8 %v4908
    %v4910 = vlaneseq
    %v4911 = vshrl.u32 %v4910, 7
    %v4912 = vsub.s32 %v4909, %v4911
    %v4913 = vrot.slane %v4899, %v4912
    %v4914 = vcombine.low %v4755, %v4757
    %v4915 = vcombine.high %v4755, %v4757
    %v4917 = vunpack.c.l.s4 1983009808
    %v4918 = vunpack.c.0.s8 %v4917
    %v4919 = vlaneseq
    %v4920 = vshrl.u32 %v4919, 7
    %v4921 = vsub.s32 %v4918, %v4920
    %v4922 = vrot.slane %v4914, %v4921
    %v4924 = vunpack.c.l.s4 1983009808
    %v4925 = vunpack.c.0.s8 %v4924
    %v4926 = vlaneseq
    %v4927 = vshrl.u32 %v4926, 7
    %v4928 = vsub.s32 %v4925, %v4927
    %v4929 = vrot.slane %v4915, %v4928
    %v4930 = vcombine.low %v4758, %v4760
    %v4931 = vcombine.high %v4758, %v4760
    %v4933 = vunpack.c.l.s4 1983009808
    %v4934 = vunpack.c.0.s8 %v4933
    %v4935 = vlaneseq
    %v4936 = vshrl.u32 %v4935, 7
    %v4937 = vsub.s32 %v4934, %v4936
    %v4938 = vrot.slane %v4930, %v4937
    %v4940 = vunpack.c.l.s4 1983009808
    %v4941 = vunpack.c.0.s8 %v4940
    %v4942 = vlaneseq
    %v4943 = vshrl.u32 %v4942, 7
    %v4944 = vsub.s32 %v4941, %v4943
    %v4945 = vrot.slane %v4931, %v4944
    %v4946 = vcombine.low %v4759, %v4761
    %v4947 = vcombine.high %v4759, %v4761
    %v4949 = vunpack.c.l.s4 1983009808
    %v4950 = vunpack.c.0.s8 %v4949
    %v4951 = vlaneseq
    %v4952 = vshrl.u32 %v4951, 7
    %v4953 = vsub.s32 %v4950, %v4952
    %v4954 = vrot.slane %v4946, %v4953
    %v4956 = vunpack.c.l.s4 1983009808
    %v4957 = vunpack.c.0.s8 %v4956
    %v4958 = vlaneseq
    %v4959 = vshrl.u32 %v4958, 7
    %v4960 = vsub.s32 %v4957, %v4959
    %v4961 = vrot.slane %v4947, %v4960
    %v4962 = vcombine.low %v4906, %v4922
    %v4963 = vcombine.high %v4906, %v4922
    %v4965 = vunpack.c.l.s4 1934713408
    %v4966 = vunpack.c.0.s8 %v4965
    %v4967 = vlaneseq
    %v4968 = vshrl.u32 %v4967, 7
    %v4969 = vsub.s32 %v4966, %v4968
    %v4970 = vrot.slane %v4962, %v4969
    %v4972 = vunpack.c.l.s4 1934713408
    %v4973 = vunpack.c.0.s8 %v4972
    %v4974 = vlaneseq
    %v4975 = vshrl.u32 %v4974, 7
    %v4976 = vsub.s32 %v4973, %v4975
    %v4977 = vrot.slane %v4963, %v4976
    %v4978 = vcombine.low %v4913, %v4929
    %v4979 = vcombine.high %v4913, %v4929
    %v4981 = vunpack.c.l.s4 1934713408
    %v4982 = vunpack.c.0.s8 %v4981
    %v4983 = vlaneseq
    %v4984 = vshrl.u32 %v4983, 7
    %v4985 = vsub.s32 %v4982, %v4984
    %v4986 = vrot.slane %v4978, %v4985
    %v4988 = vunpack.c.l.s4 1934713408
    %v4989 = vunpack.c.0.s8 %v4988
    %v4990 = vlaneseq
    %v4991 = vshrl.u32 %v4990, 7
    %v4992 = vsub.s32 %v4989, %v4991
    %v4993 = vrot.slane %v4979, %v4992
    %v4994 = vcombine.low %v4938, %v4954
    %v4995 = vcombine.high %v4938, %v4954
    %v4997 = vunpack.c.l.s4 1934713408
    %v4998 = vunpack.c.0.s8 %v4997
    %v4999 = vlaneseq
    %v5000 = vshrl.u32 %v4999, 7
    %v5001 = vsub.s32 %v4998, %v5000
    %v5002 = vrot.slane %v4994, %v5001
    %v5004 = vunpack.c.l.s4 1934713408
    %v5005 = vunpack.c.0.s8 %v5004
    %v5006 = vlaneseq
    %v5007 = vshrl.u32 %v5006, 7
    %v5008 = vsub.s32 %v5005, %v5007
    %v5009 = vrot.slane %v4995, %v5008
    %v5010 = vcombine.low %v4945, %v4961
    %v5011 = vcombine.high %v4945, %v4961
    %v5013 = vunpack.c.l.s4 1934713408
    %v5014 = vunpack.c.0.s8 %v5013
    %v5015 = vlaneseq
    %v5016 = vshrl.u32 %v5015, 7
    %v5017 = vsub.s32 %v5014, %v5016
    %v5018 = vrot.slane %v5010, %v5017
    %v5020 = vunpack.c.l.s4 1934713408
    %v5021 = vunpack.c.0.s8 %v5020
    %v5022 = vlaneseq
    %v5023 = vshrl.u32 %v5022, 7
    %v5024 = vsub.s32 %v5021, %v5023
    %v5025 = vrot.slane %v5011, %v5024
    %v5026 = vcombine.low %v4970, %v5002
    %v5027 = vcombine.high %v4970, %v5002
    %v5028 = vcombine.low %v4977, %v5009
    %v5029 = vcombine.high %v4977, %v5009
    %v5030 = vcombine.low %v4986, %v5018
    %v5031 = vcombine.high %v4986, %v5018
    %v5032 = vcombine.low %v4993, %v5025
    %v5033 = vcombine.high %v4993, %v5025
    %5036 = vrot.lane.b32.xlu0 %v4891, 4
    %v5037 = vpop.permute.xlu0 %5036
    %5038 = vrot.lane.b32.xlu0 %v5027, 4
    %v5039 = vpop.permute.xlu0 %5038
    %5044 = vrot.lane.b32.xlu0 %v4892, 8
    %v5045 = vpop.permute.xlu0 %5044
    %5046 = vrot.lane.b32.xlu0 %v5028, 8
    %v5047 = vpop.permute.xlu0 %5046
    %5052 = vrot.lane.b32.xlu0 %v4893, 12
    %v5053 = vpop.permute.xlu0 %5052
    %5054 = vrot.lane.b32.xlu0 %v5029, 12
    %v5055 = vpop.permute.xlu0 %5054
    %5060 = vrot.lane.b32.xlu0 %v4894, 16
    %v5061 = vpop.permute.xlu0 %5060
    %5062 = vrot.lane.b32.xlu0 %v5030, 16
    %v5063 = vpop.permute.xlu0 %5062
    %5068 = vrot.lane.b32.xlu0 %v4895, 20
    %v5069 = vpop.permute.xlu0 %5068
    %5070 = vrot.lane.b32.xlu0 %v5031, 20
    %v5071 = vpop.permute.xlu0 %5070
    %5076 = vrot.lane.b32.xlu0 %v4896, 24
    %v5077 = vpop.permute.xlu0 %5076
    %5078 = vrot.lane.b32.xlu0 %v5032, 24
    %v5079 = vpop.permute.xlu0 %5078
    %5084 = vrot.lane.b32.xlu0 %v4897, 28
    %v5085 = vpop.permute.xlu0 %5084
    %5086 = vrot.lane.b32.xlu0 %v5033, 28
    %v5087 = vpop.permute.xlu0 %5086
    %v5090 = vsel %vm1912, %v4890, %v5037
    %v5091 = vsel %vm1912, %v5026, %v5039
    %v5092 = vsel %vm3129, %v5090, %v5045
    %v5093 = vsel %vm3129, %v5091, %v5047
    %vm5094 = vcmask 97280
    %v5095 = vsel %vm5094, %v5092, %v5053
    %v5096 = vsel %vm5094, %v5093, %v5055
    %vm5097 = vcmask 130048
    %v5098 = vsel %vm5097, %v5095, %v5061
    %v5099 = vsel %vm5097, %v5096, %v5063
    %vm5100 = vcmask 162816
    %v5101 = vsel %vm5100, %v5098, %v5069
    %v5102 = vsel %vm5100, %v5099, %v5071
    %vm5103 = vcmask 195584
    %v5104 = vsel %vm5103, %v5101, %v5077
    %v5105 = vsel %vm5103, %v5102, %v5079
    %vm5106 = vcmask 228352
    %v5107 = vsel %vm5106, %v5104, %v5085
    %v5108 = vsel %vm5106, %v5105, %v5087
    %v5109 = vld [vmem:[%s3] sm:$0xff]
    %v5110 = vld [vmem:[%s3 + $0x8] sm:$0xff]
    %v5111 = vld [vmem:[%s3 + $0x10] sm:$0xff]
    %v5112 = vld [vmem:[%s3 + $0x18] sm:$0xff]
    %v5113 = vld [vmem:[%s4] sm:$0x1]
    %v5115 = vlaneseq
    %v5116 = vshrl.u32 %v5115, 7
    %v5117 = vsub.s32 0, %v5116
    %v5118 = vrot.slane %v5113, %v5117
    %v5121 = vsel %vm58, %v5107, 0
    %v5124 = vsel %vm58, %v5108, 0
    %5126 = vmatprep.subr.mxu0 0.0
    %5127 = vmatpush1.msra.mxu0 %v5109
    %5128 = vmatprep.subr.mxu0 0.0
    %5129 = vmatpush1.msra.mxu0 %v5110
    %5130 = vmatprep.subr.mxu0 0.0
    %5131 = vmatpush1.msra.mxu0 %v5111
    %5132 = vmatprep.subr.mxu0 0.0
    %5133 = vmatpush1.msra.mxu0 %v5112
    %5134 = vmatprep.subr.mxu0 0.0
    %5135 = vmatpush1.msra.mxu0 0.0
    %5136 = vmatprep.subr.mxu0 0.0
    %5137 = vmatpush1.msra.mxu0 0.0
    %5138 = vmatprep.subr.mxu0 0.0
    %5139 = vmatpush1.msra.mxu0 0.0
    %5140 = vmatprep.subr.mxu0 0.0
    %5141 = vmatpush1.msra.mxu0 0.0
    %5142 = vmatprep.subr.mxu0 0.0
    %5143 = vmatpush1.msra.mxu0 0.0
    %5144 = vmatprep.subr.mxu0 0.0
    %5145 = vmatpush1.msra.mxu0 0.0
    %5146 = vmatprep.subr.mxu0 0.0
    %5147 = vmatpush1.msra.mxu0 0.0
    %5148 = vmatprep.subr.mxu0 0.0
    %5149 = vmatpush1.msra.mxu0 0.0
    %5150 = vmatprep.subr.mxu0 0.0
    %5151 = vmatpush1.msra.mxu0 0.0
    %5152 = vmatprep.subr.mxu0 0.0
    %5153 = vmatpush1.msra.mxu0 0.0
    %5154 = vmatprep.subr.mxu0 0.0
    %5155 = vmatpush1.msra.mxu0 0.0
    %5156 = vmatprep.subr.mxu0 0.0
    %5157 = vmatpush1.msra.mxu0 0.0
    %5158 = vmatprep.subr.mxu0 0.0
    %5159 = vmatpush1.msra.mxu0 0.0
    %5160 = vmatprep.subr.mxu0 0.0
    %5161 = vmatpush1.msra.mxu0 0.0
    %5162 = vmatprep.subr.mxu0 0.0
    %5163 = vmatpush1.msra.mxu0 0.0
    %5164 = vmatprep.subr.mxu0 0.0
    %5165 = vmatpush1.msra.mxu0 0.0
    %5166 = vmatprep.subr.mxu0 0.0
    %5167 = vmatpush1.msra.mxu0 0.0
    %5168 = vmatprep.subr.mxu0 0.0
    %5169 = vmatpush1.msra.mxu0 0.0
    %5170 = vmatprep.subr.mxu0 0.0
    %5171 = vmatpush1.msra.mxu0 0.0
    %5172 = vmatprep.subr.mxu0 0.0
    %5173 = vmatpush1.msra.mxu0 0.0
    %5174 = vmatprep.subr.mxu0 0.0
    %5175 = vmatpush1.msra.mxu0 0.0
    %5176 = vmatprep.subr.mxu0 0.0
    %5177 = vmatpush1.msra.mxu0 0.0
    %5178 = vmatprep.subr.mxu0 0.0
    %5179 = vmatpush1.msra.mxu0 0.0
    %5180 = vmatprep.subr.mxu0 0.0
    %5181 = vmatpush1.msra.mxu0 0.0
    %5182 = vmatprep.subr.mxu0 0.0
    %5183 = vmatpush1.msra.mxu0 0.0
    %5184 = vmatprep.subr.mxu0 0.0
    %5185 = vmatpush1.msra.mxu0 0.0
    %5186 = vmatprep.subr.mxu0 0.0
    %5187 = vmatpush1.msra.mxu0 0.0
    %5188 = vmatprep.subr.mxu0 0.0
    %5189 = vmatpush1.msra.mxu0 0.0
    %5190 = vmatprep.mubr.f32.mxu0 0.0
    %5191 = vmatmul.mubr.f32.gmra.mrb[0].mxu0 %v5121
    %v5192 = vpop.f32.mrb[0].mxu0
    %v5193 = vadd.f32 %v5118, %v5192
    %v5194 = vpop.f32.mrb[0].mxu0
    %5195 = vmatprep.mubr.f32.mxu0 0.0
    %5196 = vmatmul.mubr.f32.gmra.mrb[0].mxu0 %v5124
    %v5197 = vpop.f32.mrb[0].mxu0
    %v5198 = vadd.f32 %v5118, %v5197
    %v5199 = vpop.f32.mrb[0].mxu0
    %5200 = vdwg.mxu0
    %v5201 = vadd.f32 %v45, %v5193
    %v5202 = vadd.f32 %v46, %v5198
    %v5203 = vld [vmem:[%s5] sm:$0x1]
    %v5204 = vld [vmem:[%s6] sm:$0x1]
    %v5205 = vsel %vm58, %v5201, 0.0
    %5206 = vadd.xlane.f32.xlu0 %v5205
    %v5207 = vpop.xlane.xlu0 %5206
    %v5208 = vsel %vm58, %v5202, 0.0
    %5209 = vadd.xlane.f32.xlu0 %v5208
    %v5210 = vpop.xlane.xlu0 %5209
    %v5211 = vrcp.pop 32.0
    %v5212 = vmul.f32 %v5207, %v5211
    %v5213 = vmul.f32 %v5210, %v5211
    %v5214 = vsub.f32 %v5201, %v5212
    %v5215 = vsub.f32 %v5202, %v5213
    %v5216 = vmul.f32 %v5214, %v5214
    %v5217 = vmul.f32 %v5215, %v5215
    %v5218 = vsel %vm58, %v5216, 0.0
    %5219 = vadd.xlane.f32.xlu0 %v5218
    %v5220 = vpop.xlane.xlu0 %5219
    %v5221 = vsel %vm58, %v5217, 0.0
    %5222 = vadd.xlane.f32.xlu0 %v5221
    %v5223 = vpop.xlane.xlu0 %5222
    %v5224 = vmul.f32 %v5220, %v5211
    %v5225 = vmul.f32 %v5223, %v5211
    %v5226 = vadd.f32 %v5224, 1e-05
    %v5227 = vadd.f32 %v5225, 1e-05
    %v5228 = vrsqrt.pop %v5226
    %v5229 = vrsqrt.pop %v5227
    %v5230 = vmul.f32 %v5214, %v5228
    %v5231 = vmul.f32 %v5215, %v5229
    %v5233 = vlaneseq
    %v5234 = vshrl.u32 %v5233, 7
    %v5235 = vsub.s32 0, %v5234
    %v5236 = vrot.slane %v5203, %v5235
    %v5238 = vmul.f32 %v5230, %v5236
    %v5239 = vmul.f32 %v5231, %v5236
    %v5241 = vlaneseq
    %v5242 = vshrl.u32 %v5241, 7
    %v5243 = vsub.s32 0, %v5242
    %v5244 = vrot.slane %v5204, %v5243
    %v5246 = vadd.f32 %v5238, %v5244
    %v5247 = vadd.f32 %v5239, %v5244
    %v5248 = vld [vmem:[%s7] sm:$0xff]
    %v5249 = vld [vmem:[%s7 + $0x8] sm:$0xff]
    %v5250 = vld [vmem:[%s7 + $0x10] sm:$0xff]
    %v5251 = vld [vmem:[%s7 + $0x18] sm:$0xff]
    %v5252 = vld [vmem:[%s7 + $0x20] sm:$0xff]
    %v5253 = vld [vmem:[%s7 + $0x28] sm:$0xff]
    %v5254 = vld [vmem:[%s7 + $0x30] sm:$0xff]
    %v5255 = vld [vmem:[%s7 + $0x38] sm:$0xff]
    %v5256 = vld [vmem:[%s7 + $0x40] sm:$0xff]
    %v5257 = vld [vmem:[%s7 + $0x48] sm:$0xff]
    %v5258 = vld [vmem:[%s7 + $0x50] sm:$0xff]
    %v5259 = vld [vmem:[%s7 + $0x58] sm:$0xff]
    %v5260 = vld [vmem:[%s7 + $0x60] sm:$0xff]
    %v5261 = vld [vmem:[%s7 + $0x68] sm:$0xff]
    %v5262 = vld [vmem:[%s7 + $0x70] sm:$0xff]
    %v5263 = vld [vmem:[%s7 + $0x78] sm:$0xff]
    %v5264 = vld [vmem:[%s7 + $0x80] sm:$0xff]
    %v5265 = vld [vmem:[%s7 + $0x88] sm:$0xff]
    %v5266 = vld [vmem:[%s7 + $0x90] sm:$0xff]
    %v5267 = vld [vmem:[%s7 + $0x98] sm:$0xff]
    %v5268 = vld [vmem:[%s7 + $0xa0] sm:$0xff]
    %v5269 = vld [vmem:[%s7 + $0xa8] sm:$0xff]
    %v5270 = vld [vmem:[%s7 + $0xb0] sm:$0xff]
    %v5271 = vld [vmem:[%s7 + $0xb8] sm:$0xff]
    %v5272 = vld [vmem:[%s7 + $0xc0] sm:$0xff]
    %v5273 = vld [vmem:[%s7 + $0xc8] sm:$0xff]
    %v5274 = vld [vmem:[%s7 + $0xd0] sm:$0xff]
    %v5275 = vld [vmem:[%s7 + $0xd8] sm:$0xff]
    %v5276 = vld [vmem:[%s7 + $0xe0] sm:$0xff]
    %v5277 = vld [vmem:[%s7 + $0xe8] sm:$0xff]
    %v5278 = vld [vmem:[%s7 + $0xf0] sm:$0xff]
    %v5279 = vld [vmem:[%s7 + $0xf8] sm:$0xff]
    %v5280 = vld [vmem:[%s7 + $0x100] sm:$0xff]
    %v5281 = vld [vmem:[%s7 + $0x108] sm:$0xff]
    %v5282 = vld [vmem:[%s7 + $0x110] sm:$0xff]
    %v5283 = vld [vmem:[%s7 + $0x118] sm:$0xff]
    %v5284 = vld [vmem:[%s7 + $0x120] sm:$0xff]
    %v5285 = vld [vmem:[%s7 + $0x128] sm:$0xff]
    %v5286 = vld [vmem:[%s7 + $0x130] sm:$0xff]
    %v5287 = vld [vmem:[%s7 + $0x138] sm:$0xff]
    %v5288 = vld [vmem:[%s7 + $0x140] sm:$0xff]
    %v5289 = vld [vmem:[%s7 + $0x148] sm:$0xff]
    %v5290 = vld [vmem:[%s7 + $0x150] sm:$0xff]
    %v5291 = vld [vmem:[%s7 + $0x158] sm:$0xff]
    %v5292 = vld [vmem:[%s7 + $0x160] sm:$0xff]
    %v5293 = vld [vmem:[%s7 + $0x168] sm:$0xff]
    %v5294 = vld [vmem:[%s7 + $0x170] sm:$0xff]
    %v5295 = vld [vmem:[%s7 + $0x178] sm:$0xff]
    %v5296 = vld [vmem:[%s7 + $0x180] sm:$0xff]
    %v5297 = vld [vmem:[%s7 + $0x188] sm:$0xff]
    %v5298 = vld [vmem:[%s7 + $0x190] sm:$0xff]
    %v5299 = vld [vmem:[%s7 + $0x198] sm:$0xff]
    %v5300 = vld [vmem:[%s7 + $0x1a0] sm:$0xff]
    %v5301 = vld [vmem:[%s7 + $0x1a8] sm:$0xff]
    %v5302 = vld [vmem:[%s7 + $0x1b0] sm:$0xff]
    %v5303 = vld [vmem:[%s7 + $0x1b8] sm:$0xff]
    %v5304 = vld [vmem:[%s7 + $0x1c0] sm:$0xff]
    %v5305 = vld [vmem:[%s7 + $0x1c8] sm:$0xff]
    %v5306 = vld [vmem:[%s7 + $0x1d0] sm:$0xff]
    %v5307 = vld [vmem:[%s7 + $0x1d8] sm:$0xff]
    %v5308 = vld [vmem:[%s7 + $0x1e0] sm:$0xff]
    %v5309 = vld [vmem:[%s7 + $0x1e8] sm:$0xff]
    %v5310 = vld [vmem:[%s7 + $0x1f0] sm:$0xff]
    %v5311 = vld [vmem:[%s7 + $0x1f8] sm:$0xff]
    %v5312 = vld [vmem:[%s8] sm:$0xff]
    %v5313 = vld [vmem:[%s8 + $0x8] sm:$0xff]
    %v5316 = vlaneseq
    %v5317 = vshrl.u32 %v5316, 7
    %v5318 = vsub.s32 0, %v5317
    %v5319 = vrot.slane %v5312, %v5318
    %v5320 = vlaneseq
    %v5321 = vshrl.u32 %v5320, 7
    %v5322 = vsub.s32 1, %v5321
    %v5323 = vrot.slane %v5312, %v5322
    %v5324 = vlaneseq
    %v5325 = vshrl.u32 %v5324, 7
    %v5326 = vsub.s32 2, %v5325
    %v5327 = vrot.slane %v5312, %v5326
    %v5328 = vlaneseq
    %v5329 = vshrl.u32 %v5328, 7
    %v5330 = vsub.s32 3, %v5329
    %v5331 = vrot.slane %v5312, %v5330
    %v5332 = vlaneseq
    %v5333 = vshrl.u32 %v5332, 7
    %v5334 = vsub.s32 4, %v5333
    %v5335 = vrot.slane %v5312, %v5334
    %v5336 = vlaneseq
    %v5337 = vshrl.u32 %v5336, 7
    %v5338 = vsub.s32 5, %v5337
    %v5339 = vrot.slane %v5312, %v5338
    %v5340 = vlaneseq
    %v5341 = vshrl.u32 %v5340, 7
    %v5342 = vsub.s32 6, %v5341
    %v5343 = vrot.slane %v5312, %v5342
    %v5344 = vlaneseq
    %v5345 = vshrl.u32 %v5344, 7
    %v5346 = vsub.s32 7, %v5345
    %v5347 = vrot.slane %v5312, %v5346
    %v5348 = vlaneseq
    %v5349 = vshrl.u32 %v5348, 7
    %v5350 = vsub.s32 0, %v5349
    %v5351 = vrot.slane %v5313, %v5350
    %v5352 = vlaneseq
    %v5353 = vshrl.u32 %v5352, 7
    %v5354 = vsub.s32 1, %v5353
    %v5355 = vrot.slane %v5313, %v5354
    %v5356 = vlaneseq
    %v5357 = vshrl.u32 %v5356, 7
    %v5358 = vsub.s32 2, %v5357
    %v5359 = vrot.slane %v5313, %v5358
    %v5360 = vlaneseq
    %v5361 = vshrl.u32 %v5360, 7
    %v5362 = vsub.s32 3, %v5361
    %v5363 = vrot.slane %v5313, %v5362
    %v5364 = vlaneseq
    %v5365 = vshrl.u32 %v5364, 7
    %v5366 = vsub.s32 4, %v5365
    %v5367 = vrot.slane %v5313, %v5366
    %v5368 = vlaneseq
    %v5369 = vshrl.u32 %v5368, 7
    %v5370 = vsub.s32 5, %v5369
    %v5371 = vrot.slane %v5313, %v5370
    %v5372 = vlaneseq
    %v5373 = vshrl.u32 %v5372, 7
    %v5374 = vsub.s32 6, %v5373
    %v5375 = vrot.slane %v5313, %v5374
    %v5376 = vlaneseq
    %v5377 = vshrl.u32 %v5376, 7
    %v5378 = vsub.s32 7, %v5377
    %v5379 = vrot.slane %v5313, %v5378
    %v5397 = vsel %vm58, %v5246, 0
    %v5400 = vsel %vm58, %v5247, 0
    %5402 = vmatprep.subr.mxu0 %v5249
    %5403 = vmatpush1.msra.mxu0 %v5248
    %5404 = vmatprep.subr.mxu0 %v5265
    %5405 = vmatpush1.msra.mxu0 %v5264
    %5406 = vmatprep.subr.mxu0 %v5281
    %5407 = vmatpush1.msra.mxu0 %v5280
    %5408 = vmatprep.subr.mxu0 %v5297
    %5409 = vmatpush1.msra.mxu0 %v5296
    %5410 = vmatprep.subr.mxu0 0.0
    %5411 = vmatpush1.msra.mxu0 0.0
    %5412 = vmatprep.subr.mxu0 0.0
    %5413 = vmatpush1.msra.mxu0 0.0
    %5414 = vmatprep.subr.mxu0 0.0
    %5415 = vmatpush1.msra.mxu0 0.0
    %5416 = vmatprep.subr.mxu0 0.0
    %5417 = vmatpush1.msra.mxu0 0.0
    %5418 = vmatprep.subr.mxu0 0.0
    %5419 = vmatpush1.msra.mxu0 0.0
    %5420 = vmatprep.subr.mxu0 0.0
    %5421 = vmatpush1.msra.mxu0 0.0
    %5422 = vmatprep.subr.mxu0 0.0
    %5423 = vmatpush1.msra.mxu0 0.0
    %5424 = vmatprep.subr.mxu0 0.0
    %5425 = vmatpush1.msra.mxu0 0.0
    %5426 = vmatprep.subr.mxu0 0.0
    %5427 = vmatpush1.msra.mxu0 0.0
    %5428 = vmatprep.subr.mxu0 0.0
    %5429 = vmatpush1.msra.mxu0 0.0
    %5430 = vmatprep.subr.mxu0 0.0
    %5431 = vmatpush1.msra.mxu0 0.0
    %5432 = vmatprep.subr.mxu0 0.0
    %5433 = vmatpush1.msra.mxu0 0.0
    %5434 = vmatprep.subr.mxu0 0.0
    %5435 = vmatpush1.msra.mxu0 0.0
    %5436 = vmatprep.subr.mxu0 0.0
    %5437 = vmatpush1.msra.mxu0 0.0
    %5438 = vmatprep.subr.mxu0 0.0
    %5439 = vmatpush1.msra.mxu0 0.0
    %5440 = vmatprep.subr.mxu0 0.0
    %5441 = vmatpush1.msra.mxu0 0.0
    %5442 = vmatprep.subr.mxu0 0.0
    %5443 = vmatpush1.msra.mxu0 0.0
    %5444 = vmatprep.subr.mxu0 0.0
    %5445 = vmatpush1.msra.mxu0 0.0
    %5446 = vmatprep.subr.mxu0 0.0
    %5447 = vmatpush1.msra.mxu0 0.0
    %5448 = vmatprep.subr.mxu0 0.0
    %5449 = vmatpush1.msra.mxu0 0.0
    %5450 = vmatprep.subr.mxu0 0.0
    %5451 = vmatpush1.msra.mxu0 0.0
    %5452 = vmatprep.subr.mxu0 0.0
    %5453 = vmatpush1.msra.mxu0 0.0
    %5454 = vmatprep.subr.mxu0 0.0
    %5455 = vmatpush1.msra.mxu0 0.0
    %5456 = vmatprep.subr.mxu0 0.0
    %5457 = vmatpush1.msra.mxu0 0.0
    %5458 = vmatprep.subr.mxu0 0.0
    %5459 = vmatpush1.msra.mxu0 0.0
    %5460 = vmatprep.subr.mxu0 0.0
    %5461 = vmatpush1.msra.mxu0 0.0
    %5462 = vmatprep.subr.mxu0 0.0
    %5463 = vmatpush1.msra.mxu0 0.0
    %5464 = vmatprep.subr.mxu0 0.0
    %5465 = vmatpush1.msra.mxu0 0.0
    %5466 = vmatprep.mubr.f32.mxu0 0.0
    %5467 = vmatmul.mubr.f32.gmra.mrb[0].mxu0 %v5397
    %v5468 = vpop.f32.mrb[0].mxu0
    %v5469 = vadd.f32 %v5319, %v5468
    %v5470 = vpop.f32.mrb[0].mxu0
    %v5471 = vadd.f32 %v5323, %v5470
    %5472 = vmatprep.mubr.f32.mxu0 0.0
    %5473 = vmatmul.mubr.f32.gmra.mrb[0].mxu0 %v5400
    %v5474 = vpop.f32.mrb[0].mxu0
    %v5475 = vadd.f32 %v5319, %v5474
    %v5476 = vpop.f32.mrb[0].mxu0
    %v5477 = vadd.f32 %v5323, %v5476
    %5478 = vdwg.mxu0
    %5479 = vmatprep.subr.mxu0 %v5251
    %5480 = vmatpush1.msra.mxu0 %v5250
    %5481 = vmatprep.subr.mxu0 %v5267
    %5482 = vmatpush1.msra.mxu0 %v5266
    %5483 = vmatprep.subr.mxu0 %v5283
    %5484 = vmatpush1.msra.mxu0 %v5282
    %5485 = vmatprep.subr.mxu0 %v5299
    %5486 = vmatpush1.msra.mxu0 %v5298
    %5487 = vmatprep.subr.mxu0 0.0
    %5488 = vmatpush1.msra.mxu0 0.0
    %5489 = vmatprep.subr.mxu0 0.0
    %5490 = vmatpush1.msra.mxu0 0.0
    %5491 = vmatprep.subr.mxu0 0.0
    %5492 = vmatpush1.msra.mxu0 0.0
    %5493 = vmatprep.subr.mxu0 0.0
    %5494 = vmatpush1.msra.mxu0 0.0
    %5495 = vmatprep.subr.mxu0 0.0
    %5496 = vmatpush1.msra.mxu0 0.0
    %5497 = vmatprep.subr.mxu0 0.0
    %5498 = vmatpush1.msra.mxu0 0.0
    %5499 = vmatprep.subr.mxu0 0.0
    %5500 = vmatpush1.msra.mxu0 0.0
    %5501 = vmatprep.subr.mxu0 0.0
    %5502 = vmatpush1.msra.mxu0 0.0
    %5503 = vmatprep.subr.mxu0 0.0
    %5504 = vmatpush1.msra.mxu0 0.0
    %5505 = vmatprep.subr.mxu0 0.0
    %5506 = vmatpush1.msra.mxu0 0.0
    %5507 = vmatprep.subr.mxu0 0.0
    %5508 = vmatpush1.msra.mxu0 0.0
    %5509 = vmatprep.subr.mxu0 0.0
    %5510 = vmatpush1.msra.mxu0 0.0
    %5511 = vmatprep.subr.mxu0 0.0
    %5512 = vmatpush1.msra.mxu0 0.0
    %5513 = vmatprep.subr.mxu0 0.0
    %5514 = vmatpush1.msra.mxu0 0.0
    %5515 = vmatprep.subr.mxu0 0.0
    %5516 = vmatpush1.msra.mxu0 0.0
    %5517 = vmatprep.subr.mxu0 0.0
    %5518 = vmatpush1.msra.mxu0 0.0
    %5519 = vmatprep.subr.mxu0 0.0
    %5520 = vmatpush1.msra.mxu0 0.0
    %5521 = vmatprep.subr.mxu0 0.0
    %5522 = vmatpush1.msra.mxu0 0.0
    %5523 = vmatprep.subr.mxu0 0.0
    %5524 = vmatpush1.msra.mxu0 0.0
    %5525 = vmatprep.subr.mxu0 0.0
    %5526 = vmatpush1.msra.mxu0 0.0
    %5527 = vmatprep.subr.mxu0 0.0
    %5528 = vmatpush1.msra.mxu0 0.0
    %5529 = vmatprep.subr.mxu0 0.0
    %5530 = vmatpush1.msra.mxu0 0.0
    %5531 = vmatprep.subr.mxu0 0.0
    %5532 = vmatpush1.msra.mxu0 0.0
    %5533 = vmatprep.subr.mxu0 0.0
    %5534 = vmatpush1.msra.mxu0 0.0
    %5535 = vmatprep.subr.mxu0 0.0
    %5536 = vmatpush1.msra.mxu0 0.0
    %5537 = vmatprep.subr.mxu0 0.0
    %5538 = vmatpush1.msra.mxu0 0.0
    %5539 = vmatprep.subr.mxu0 0.0
    %5540 = vmatpush1.msra.mxu0 0.0
    %5541 = vmatprep.subr.mxu0 0.0
    %5542 = vmatpush1.msra.mxu0 0.0
    %5543 = vmatprep.mubr.f32.mxu0 0.0
    %5544 = vmatmul.mubr.f32.gmra.mrb[0].mxu0 %v5397
    %v5545 = vpop.f32.mrb[0].mxu0
    %v5546 = vadd.f32 %v5327, %v5545
    %v5547 = vpop.f32.mrb[0].mxu0
    %v5548 = vadd.f32 %v5331, %v5547
    %5549 = vmatprep.mubr.f32.mxu0 0.0
    %5550 = vmatmul.mubr.f32.gmra.mrb[0].mxu0 %v5400
    %v5551 = vpop.f32.mrb[0].mxu0
    %v5552 = vadd.f32 %v5327, %v5551
    %v5553 = vpop.f32.mrb[0].mxu0
    %v5554 = vadd.f32 %v5331, %v5553
    %5555 = vdwg.mxu0
    %5556 = vmatprep.subr.mxu0 %v5253
    %5557 = vmatpush1.msra.mxu0 %v5252
    %5558 = vmatprep.subr.mxu0 %v5269
    %5559 = vmatpush1.msra.mxu0 %v5268
    %5560 = vmatprep.subr.mxu0 %v5285
    %5561 = vmatpush1.msra.mxu0 %v5284
    %5562 = vmatprep.subr.mxu0 %v5301
    %5563 = vmatpush1.msra.mxu0 %v5300
    %5564 = vmatprep.subr.mxu0 0.0
    %5565 = vmatpush1.msra.mxu0 0.0
    %5566 = vmatprep.subr.mxu0 0.0
    %5567 = vmatpush1.msra.mxu0 0.0
    %5568 = vmatprep.subr.mxu0 0.0
    %5569 = vmatpush1.msra.mxu0 0.0
    %5570 = vmatprep.subr.mxu0 0.0
    %5571 = vmatpush1.msra.mxu0 0.0
    %5572 = vmatprep.subr.mxu0 0.0
    %5573 = vmatpush1.msra.mxu0 0.0
    %5574 = vmatprep.subr.mxu0 0.0
    %5575 = vmatpush1.msra.mxu0 0.0
    %5576 = vmatprep.subr.mxu0 0.0
    %5577 = vmatpush1.msra.mxu0 0.0
    %5578 = vmatprep.subr.mxu0 0.0
    %5579 = vmatpush1.msra.mxu0 0.0
    %5580 = vmatprep.subr.mxu0 0.0
    %5581 = vmatpush1.msra.mxu0 0.0
    %5582 = vmatprep.subr.mxu0 0.0
    %5583 = vmatpush1.msra.mxu0 0.0
    %5584 = vmatprep.subr.mxu0 0.0
    %5585 = vmatpush1.msra.mxu0 0.0
    %5586 = vmatprep.subr.mxu0 0.0
    %5587 = vmatpush1.msra.mxu0 0.0
    %5588 = vmatprep.subr.mxu0 0.0
    %5589 = vmatpush1.msra.mxu0 0.0
    %5590 = vmatprep.subr.mxu0 0.0
    %5591 = vmatpush1.msra.mxu0 0.0
    %5592 = vmatprep.subr.mxu0 0.0
    %5593 = vmatpush1.msra.mxu0 0.0
    %5594 = vmatprep.subr.mxu0 0.0
    %5595 = vmatpush1.msra.mxu0 0.0
    %5596 = vmatprep.subr.mxu0 0.0
    %5597 = vmatpush1.msra.mxu0 0.0
    %5598 = vmatprep.subr.mxu0 0.0
    %5599 = vmatpush1.msra.mxu0 0.0
    %5600 = vmatprep.subr.mxu0 0.0
    %5601 = vmatpush1.msra.mxu0 0.0
    %5602 = vmatprep.subr.mxu0 0.0
    %5603 = vmatpush1.msra.mxu0 0.0
    %5604 = vmatprep.subr.mxu0 0.0
    %5605 = vmatpush1.msra.mxu0 0.0
    %5606 = vmatprep.subr.mxu0 0.0
    %5607 = vmatpush1.msra.mxu0 0.0
    %5608 = vmatprep.subr.mxu0 0.0
    %5609 = vmatpush1.msra.mxu0 0.0
    %5610 = vmatprep.subr.mxu0 0.0
    %5611 = vmatpush1.msra.mxu0 0.0
    %5612 = vmatprep.subr.mxu0 0.0
    %5613 = vmatpush1.msra.mxu0 0.0
    %5614 = vmatprep.subr.mxu0 0.0
    %5615 = vmatpush1.msra.mxu0 0.0
    %5616 = vmatprep.subr.mxu0 0.0
    %5617 = vmatpush1.msra.mxu0 0.0
    %5618 = vmatprep.subr.mxu0 0.0
    %5619 = vmatpush1.msra.mxu0 0.0
    %5620 = vmatprep.mubr.f32.mxu0 0.0
    %5621 = vmatmul.mubr.f32.gmra.mrb[0].mxu0 %v5397
    %v5622 = vpop.f32.mrb[0].mxu0
    %v5623 = vadd.f32 %v5335, %v5622
    %v5624 = vpop.f32.mrb[0].mxu0
    %v5625 = vadd.f32 %v5339, %v5624
    %5626 = vmatprep.mubr.f32.mxu0 0.0
    %5627 = vmatmul.mubr.f32.gmra.mrb[0].mxu0 %v5400
    %v5628 = vpop.f32.mrb[0].mxu0
    %v5629 = vadd.f32 %v5335, %v5628
    %v5630 = vpop.f32.mrb[0].mxu0
    %v5631 = vadd.f32 %v5339, %v5630
    %5632 = vdwg.mxu0
    %5633 = vmatprep.subr.mxu0 %v5255
    %5634 = vmatpush1.msra.mxu0 %v5254
    %5635 = vmatprep.subr.mxu0 %v5271
    %5636 = vmatpush1.msra.mxu0 %v5270
    %5637 = vmatprep.subr.mxu0 %v5287
    %5638 = vmatpush1.msra.mxu0 %v5286
    %5639 = vmatprep.subr.mxu0 %v5303
    %5640 = vmatpush1.msra.mxu0 %v5302
    %5641 = vmatprep.subr.mxu0 0.0
    %5642 = vmatpush1.msra.mxu0 0.0
    %5643 = vmatprep.subr.mxu0 0.0
    %5644 = vmatpush1.msra.mxu0 0.0
    %5645 = vmatprep.subr.mxu0 0.0
    %5646 = vmatpush1.msra.mxu0 0.0
    %5647 = vmatprep.subr.mxu0 0.0
    %5648 = vmatpush1.msra.mxu0 0.0
    %5649 = vmatprep.subr.mxu0 0.0
    %5650 = vmatpush1.msra.mxu0 0.0
    %5651 = vmatprep.subr.mxu0 0.0
    %5652 = vmatpush1.msra.mxu0 0.0
    %5653 = vmatprep.subr.mxu0 0.0
    %5654 = vmatpush1.msra.mxu0 0.0
    %5655 = vmatprep.subr.mxu0 0.0
    %5656 = vmatpush1.msra.mxu0 0.0
    %5657 = vmatprep.subr.mxu0 0.0
    %5658 = vmatpush1.msra.mxu0 0.0
    %5659 = vmatprep.subr.mxu0 0.0
    %5660 = vmatpush1.msra.mxu0 0.0
    %5661 = vmatprep.subr.mxu0 0.0
    %5662 = vmatpush1.msra.mxu0 0.0
    %5663 = vmatprep.subr.mxu0 0.0
    %5664 = vmatpush1.msra.mxu0 0.0
    %5665 = vmatprep.subr.mxu0 0.0
    %5666 = vmatpush1.msra.mxu0 0.0
    %5667 = vmatprep.subr.mxu0 0.0
    %5668 = vmatpush1.msra.mxu0 0.0
    %5669 = vmatprep.subr.mxu0 0.0
    %5670 = vmatpush1.msra.mxu0 0.0
    %5671 = vmatprep.subr.mxu0 0.0
    %5672 = vmatpush1.msra.mxu0 0.0
    %5673 = vmatprep.subr.mxu0 0.0
    %5674 = vmatpush1.msra.mxu0 0.0
    %5675 = vmatprep.subr.mxu0 0.0
    %5676 = vmatpush1.msra.mxu0 0.0
    %5677 = vmatprep.subr.mxu0 0.0
    %5678 = vmatpush1.msra.mxu0 0.0
    %5679 = vmatprep.subr.mxu0 0.0
    %5680 = vmatpush1.msra.mxu0 0.0
    %5681 = vmatprep.subr.mxu0 0.0
    %5682 = vmatpush1.msra.mxu0 0.0
    %5683 = vmatprep.subr.mxu0 0.0
    %5684 = vmatpush1.msra.mxu0 0.0
    %5685 = vmatprep.subr.mxu0 0.0
    %5686 = vmatpush1.msra.mxu0 0.0
    %5687 = vmatprep.subr.mxu0 0.0
    %5688 = vmatpush1.msra.mxu0 0.0
    %5689 = vmatprep.subr.mxu0 0.0
    %5690 = vmatpush1.msra.mxu0 0.0
    %5691 = vmatprep.subr.mxu0 0.0
    %5692 = vmatpush1.msra.mxu0 0.0
    %5693 = vmatprep.subr.mxu0 0.0
    %5694 = vmatpush1.msra.mxu0 0.0
    %5695 = vmatprep.subr.mxu0 0.0
    %5696 = vmatpush1.msra.mxu0 0.0
    %5697 = vmatprep.mubr.f32.mxu0 0.0
    %5698 = vmatmul.mubr.f32.gmra.mrb[0].mxu0 %v5397
    %v5699 = vpop.f32.mrb[0].mxu0
    %v5700 = vadd.f32 %v5343, %v5699
    %v5701 = vpop.f32.mrb[0].mxu0
    %v5702 = vadd.f32 %v5347, %v5701
    %5703 = vmatprep.mubr.f32.mxu0 0.0
    %5704 = vmatmul.mubr.f32.gmra.mrb[0].mxu0 %v5400
    %v5705 = vpop.f32.mrb[0].mxu0
    %v5706 = vadd.f32 %v5343, %v5705
    %v5707 = vpop.f32.mrb[0].mxu0
    %v5708 = vadd.f32 %v5347, %v5707
    %5709 = vdwg.mxu0
    %5710 = vmatprep.subr.mxu0 %v5257
    %5711 = vmatpush1.msra.mxu0 %v5256
    %5712 = vmatprep.subr.mxu0 %v5273
    %5713 = vmatpush1.msra.mxu0 %v5272
    %5714 = vmatprep.subr.mxu0 %v5289
    %5715 = vmatpush1.msra.mxu0 %v5288
    %5716 = vmatprep.subr.mxu0 %v5305
    %5717 = vmatpush1.msra.mxu0 %v5304
    %5718 = vmatprep.subr.mxu0 0.0
    %5719 = vmatpush1.msra.mxu0 0.0
    %5720 = vmatprep.subr.mxu0 0.0
    %5721 = vmatpush1.msra.mxu0 0.0
    %5722 = vmatprep.subr.mxu0 0.0
    %5723 = vmatpush1.msra.mxu0 0.0
    %5724 = vmatprep.subr.mxu0 0.0
    %5725 = vmatpush1.msra.mxu0 0.0
    %5726 = vmatprep.subr.mxu0 0.0
    %5727 = vmatpush1.msra.mxu0 0.0
    %5728 = vmatprep.subr.mxu0 0.0
    %5729 = vmatpush1.msra.mxu0 0.0
    %5730 = vmatprep.subr.mxu0 0.0
    %5731 = vmatpush1.msra.mxu0 0.0
    %5732 = vmatprep.subr.mxu0 0.0
    %5733 = vmatpush1.msra.mxu0 0.0
    %5734 = vmatprep.subr.mxu0 0.0
    %5735 = vmatpush1.msra.mxu0 0.0
    %5736 = vmatprep.subr.mxu0 0.0
    %5737 = vmatpush1.msra.mxu0 0.0
    %5738 = vmatprep.subr.mxu0 0.0
    %5739 = vmatpush1.msra.mxu0 0.0
    %5740 = vmatprep.subr.mxu0 0.0
    %5741 = vmatpush1.msra.mxu0 0.0
    %5742 = vmatprep.subr.mxu0 0.0
    %5743 = vmatpush1.msra.mxu0 0.0
    %5744 = vmatprep.subr.mxu0 0.0
    %5745 = vmatpush1.msra.mxu0 0.0
    %5746 = vmatprep.subr.mxu0 0.0
    %5747 = vmatpush1.msra.mxu0 0.0
    %5748 = vmatprep.subr.mxu0 0.0
    %5749 = vmatpush1.msra.mxu0 0.0
    %5750 = vmatprep.subr.mxu0 0.0
    %5751 = vmatpush1.msra.mxu0 0.0
    %5752 = vmatprep.subr.mxu0 0.0
    %5753 = vmatpush1.msra.mxu0 0.0
    %5754 = vmatprep.subr.mxu0 0.0
    %5755 = vmatpush1.msra.mxu0 0.0
    %5756 = vmatprep.subr.mxu0 0.0
    %5757 = vmatpush1.msra.mxu0 0.0
    %5758 = vmatprep.subr.mxu0 0.0
    %5759 = vmatpush1.msra.mxu0 0.0
    %5760 = vmatprep.subr.mxu0 0.0
    %5761 = vmatpush1.msra.mxu0 0.0
    %5762 = vmatprep.subr.mxu0 0.0
    %5763 = vmatpush1.msra.mxu0 0.0
    %5764 = vmatprep.subr.mxu0 0.0
    %5765 = vmatpush1.msra.mxu0 0.0
    %5766 = vmatprep.subr.mxu0 0.0
    %5767 = vmatpush1.msra.mxu0 0.0
    %5768 = vmatprep.subr.mxu0 0.0
    %5769 = vmatpush1.msra.mxu0 0.0
    %5770 = vmatprep.subr.mxu0 0.0
    %5771 = vmatpush1.msra.mxu0 0.0
    %5772 = vmatprep.subr.mxu0 0.0
    %5773 = vmatpush1.msra.mxu0 0.0
    %5774 = vmatprep.mubr.f32.mxu0 0.0
    %5775 = vmatmul.mubr.f32.gmra.mrb[0].mxu0 %v5397
    %v5776 = vpop.f32.mrb[0].mxu0
    %v5777 = vadd.f32 %v5351, %v5776
    %v5778 = vpop.f32.mrb[0].mxu0
    %v5779 = vadd.f32 %v5355, %v5778
    %5780 = vmatprep.mubr.f32.mxu0 0.0
    %5781 = vmatmul.mubr.f32.gmra.mrb[0].mxu0 %v5400
    %v5782 = vpop.f32.mrb[0].mxu0
    %v5783 = vadd.f32 %v5351, %v5782
    %v5784 = vpop.f32.mrb[0].mxu0
    %v5785 = vadd.f32 %v5355, %v5784
    %5786 = vdwg.mxu0
    %5787 = vmatprep.subr.mxu0 %v5259
    %5788 = vmatpush1.msra.mxu0 %v5258
    %5789 = vmatprep.subr.mxu0 %v5275
    %5790 = vmatpush1.msra.mxu0 %v5274
    %5791 = vmatprep.subr.mxu0 %v5291
    %5792 = vmatpush1.msra.mxu0 %v5290
    %5793 = vmatprep.subr.mxu0 %v5307
    %5794 = vmatpush1.msra.mxu0 %v5306
    %5795 = vmatprep.subr.mxu0 0.0
    %5796 = vmatpush1.msra.mxu0 0.0
    %5797 = vmatprep.subr.mxu0 0.0
    %5798 = vmatpush1.msra.mxu0 0.0
    %5799 = vmatprep.subr.mxu0 0.0
    %5800 = vmatpush1.msra.mxu0 0.0
    %5801 = vmatprep.subr.mxu0 0.0
    %5802 = vmatpush1.msra.mxu0 0.0
    %5803 = vmatprep.subr.mxu0 0.0
    %5804 = vmatpush1.msra.mxu0 0.0
    %5805 = vmatprep.subr.mxu0 0.0
    %5806 = vmatpush1.msra.mxu0 0.0
    %5807 = vmatprep.subr.mxu0 0.0
    %5808 = vmatpush1.msra.mxu0 0.0
    %5809 = vmatprep.subr.mxu0 0.0
    %5810 = vmatpush1.msra.mxu0 0.0
    %5811 = vmatprep.subr.mxu0 0.0
    %5812 = vmatpush1.msra.mxu0 0.0
    %5813 = vmatprep.subr.mxu0 0.0
    %5814 = vmatpush1.msra.mxu0 0.0
    %5815 = vmatprep.subr.mxu0 0.0
    %5816 = vmatpush1.msra.mxu0 0.0
    %5817 = vmatprep.subr.mxu0 0.0
    %5818 = vmatpush1.msra.mxu0 0.0
    %5819 = vmatprep.subr.mxu0 0.0
    %5820 = vmatpush1.msra.mxu0 0.0
    %5821 = vmatprep.subr.mxu0 0.0
    %5822 = vmatpush1.msra.mxu0 0.0
    %5823 = vmatprep.subr.mxu0 0.0
    %5824 = vmatpush1.msra.mxu0 0.0
    %5825 = vmatprep.subr.mxu0 0.0
    %5826 = vmatpush1.msra.mxu0 0.0
    %5827 = vmatprep.subr.mxu0 0.0
    %5828 = vmatpush1.msra.mxu0 0.0
    %5829 = vmatprep.subr.mxu0 0.0
    %5830 = vmatpush1.msra.mxu0 0.0
    %5831 = vmatprep.subr.mxu0 0.0
    %5832 = vmatpush1.msra.mxu0 0.0
    %5833 = vmatprep.subr.mxu0 0.0
    %5834 = vmatpush1.msra.mxu0 0.0
    %5835 = vmatprep.subr.mxu0 0.0
    %5836 = vmatpush1.msra.mxu0 0.0
    %5837 = vmatprep.subr.mxu0 0.0
    %5838 = vmatpush1.msra.mxu0 0.0
    %5839 = vmatprep.subr.mxu0 0.0
    %5840 = vmatpush1.msra.mxu0 0.0
    %5841 = vmatprep.subr.mxu0 0.0
    %5842 = vmatpush1.msra.mxu0 0.0
    %5843 = vmatprep.subr.mxu0 0.0
    %5844 = vmatpush1.msra.mxu0 0.0
    %5845 = vmatprep.subr.mxu0 0.0
    %5846 = vmatpush1.msra.mxu0 0.0
    %5847 = vmatprep.subr.mxu0 0.0
    %5848 = vmatpush1.msra.mxu0 0.0
    %5849 = vmatprep.subr.mxu0 0.0
    %5850 = vmatpush1.msra.mxu0 0.0
    %5851 = vmatprep.mubr.f32.mxu0 0.0
    %5852 = vmatmul.mubr.f32.gmra.mrb[0].mxu0 %v5397
    %v5853 = vpop.f32.mrb[0].mxu0
    %v5854 = vadd.f32 %v5359, %v5853
    %v5855 = vpop.f32.mrb[0].mxu0
    %v5856 = vadd.f32 %v5363, %v5855
    %5857 = vmatprep.mubr.f32.mxu0 0.0
    %5858 = vmatmul.mubr.f32.gmra.mrb[0].mxu0 %v5400
    %v5859 = vpop.f32.mrb[0].mxu0
    %v5860 = vadd.f32 %v5359, %v5859
    %v5861 = vpop.f32.mrb[0].mxu0
    %v5862 = vadd.f32 %v5363, %v5861
    %5863 = vdwg.mxu0
    %5864 = vmatprep.subr.mxu0 %v5261
    %5865 = vmatpush1.msra.mxu0 %v5260
    %5866 = vmatprep.subr.mxu0 %v5277
    %5867 = vmatpush1.msra.mxu0 %v5276
    %5868 = vmatprep.subr.mxu0 %v5293
    %5869 = vmatpush1.msra.mxu0 %v5292
    %5870 = vmatprep.subr.mxu0 %v5309
    %5871 = vmatpush1.msra.mxu0 %v5308
    %5872 = vmatprep.subr.mxu0 0.0
    %5873 = vmatpush1.msra.mxu0 0.0
    %5874 = vmatprep.subr.mxu0 0.0
    %5875 = vmatpush1.msra.mxu0 0.0
    %5876 = vmatprep.subr.mxu0 0.0
    %5877 = vmatpush1.msra.mxu0 0.0
    %5878 = vmatprep.subr.mxu0 0.0
    %5879 = vmatpush1.msra.mxu0 0.0
    %5880 = vmatprep.subr.mxu0 0.0
    %5881 = vmatpush1.msra.mxu0 0.0
    %5882 = vmatprep.subr.mxu0 0.0
    %5883 = vmatpush1.msra.mxu0 0.0
    %5884 = vmatprep.subr.mxu0 0.0
    %5885 = vmatpush1.msra.mxu0 0.0
    %5886 = vmatprep.subr.mxu0 0.0
    %5887 = vmatpush1.msra.mxu0 0.0
    %5888 = vmatprep.subr.mxu0 0.0
    %5889 = vmatpush1.msra.mxu0 0.0
    %5890 = vmatprep.subr.mxu0 0.0
    %5891 = vmatpush1.msra.mxu0 0.0
    %5892 = vmatprep.subr.mxu0 0.0
    %5893 = vmatpush1.msra.mxu0 0.0
    %5894 = vmatprep.subr.mxu0 0.0
    %5895 = vmatpush1.msra.mxu0 0.0
    %5896 = vmatprep.subr.mxu0 0.0
    %5897 = vmatpush1.msra.mxu0 0.0
    %5898 = vmatprep.subr.mxu0 0.0
    %5899 = vmatpush1.msra.mxu0 0.0
    %5900 = vmatprep.subr.mxu0 0.0
    %5901 = vmatpush1.msra.mxu0 0.0
    %5902 = vmatprep.subr.mxu0 0.0
    %5903 = vmatpush1.msra.mxu0 0.0
    %5904 = vmatprep.subr.mxu0 0.0
    %5905 = vmatpush1.msra.mxu0 0.0
    %5906 = vmatprep.subr.mxu0 0.0
    %5907 = vmatpush1.msra.mxu0 0.0
    %5908 = vmatprep.subr.mxu0 0.0
    %5909 = vmatpush1.msra.mxu0 0.0
    %5910 = vmatprep.subr.mxu0 0.0
    %5911 = vmatpush1.msra.mxu0 0.0
    %5912 = vmatprep.subr.mxu0 0.0
    %5913 = vmatpush1.msra.mxu0 0.0
    %5914 = vmatprep.subr.mxu0 0.0
    %5915 = vmatpush1.msra.mxu0 0.0
    %5916 = vmatprep.subr.mxu0 0.0
    %5917 = vmatpush1.msra.mxu0 0.0
    %5918 = vmatprep.subr.mxu0 0.0
    %5919 = vmatpush1.msra.mxu0 0.0
    %5920 = vmatprep.subr.mxu0 0.0
    %5921 = vmatpush1.msra.mxu0 0.0
    %5922 = vmatprep.subr.mxu0 0.0
    %5923 = vmatpush1.msra.mxu0 0.0
    %5924 = vmatprep.subr.mxu0 0.0
    %5925 = vmatpush1.msra.mxu0 0.0
    %5926 = vmatprep.subr.mxu0 0.0
    %5927 = vmatpush1.msra.mxu0 0.0
    %5928 = vmatprep.mubr.f32.mxu0 0.0
    %5929 = vmatmul.mubr.f32.gmra.mrb[0].mxu0 %v5397
    %v5930 = vpop.f32.mrb[0].mxu0
    %v5931 = vadd.f32 %v5367, %v5930
    %v5932 = vpop.f32.mrb[0].mxu0
    %v5933 = vadd.f32 %v5371, %v5932
    %5934 = vmatprep.mubr.f32.mxu0 0.0
    %5935 = vmatmul.mubr.f32.gmra.mrb[0].mxu0 %v5400
    %v5936 = vpop.f32.mrb[0].mxu0
    %v5937 = vadd.f32 %v5367, %v5936
    %v5938 = vpop.f32.mrb[0].mxu0
    %v5939 = vadd.f32 %v5371, %v5938
    %5940 = vdwg.mxu0
    %5941 = vmatprep.subr.mxu0 %v5263
    %5942 = vmatpush1.msra.mxu0 %v5262
    %5943 = vmatprep.subr.mxu0 %v5279
    %5944 = vmatpush1.msra.mxu0 %v5278
    %5945 = vmatprep.subr.mxu0 %v5295
    %5946 = vmatpush1.msra.mxu0 %v5294
    %5947 = vmatprep.subr.mxu0 %v5311
    %5948 = vmatpush1.msra.mxu0 %v5310
    %5949 = vmatprep.subr.mxu0 0.0
    %5950 = vmatpush1.msra.mxu0 0.0
    %5951 = vmatprep.subr.mxu0 0.0
    %5952 = vmatpush1.msra.mxu0 0.0
    %5953 = vmatprep.subr.mxu0 0.0
    %5954 = vmatpush1.msra.mxu0 0.0
    %5955 = vmatprep.subr.mxu0 0.0
    %5956 = vmatpush1.msra.mxu0 0.0
    %5957 = vmatprep.subr.mxu0 0.0
    %5958 = vmatpush1.msra.mxu0 0.0
    %5959 = vmatprep.subr.mxu0 0.0
    %5960 = vmatpush1.msra.mxu0 0.0
    %5961 = vmatprep.subr.mxu0 0.0
    %5962 = vmatpush1.msra.mxu0 0.0
    %5963 = vmatprep.subr.mxu0 0.0
    %5964 = vmatpush1.msra.mxu0 0.0
    %5965 = vmatprep.subr.mxu0 0.0
    %5966 = vmatpush1.msra.mxu0 0.0
    %5967 = vmatprep.subr.mxu0 0.0
    %5968 = vmatpush1.msra.mxu0 0.0
    %5969 = vmatprep.subr.mxu0 0.0
    %5970 = vmatpush1.msra.mxu0 0.0
    %5971 = vmatprep.subr.mxu0 0.0
    %5972 = vmatpush1.msra.mxu0 0.0
    %5973 = vmatprep.subr.mxu0 0.0
    %5974 = vmatpush1.msra.mxu0 0.0
    %5975 = vmatprep.subr.mxu0 0.0
    %5976 = vmatpush1.msra.mxu0 0.0
    %5977 = vmatprep.subr.mxu0 0.0
    %5978 = vmatpush1.msra.mxu0 0.0
    %5979 = vmatprep.subr.mxu0 0.0
    %5980 = vmatpush1.msra.mxu0 0.0
    %5981 = vmatprep.subr.mxu0 0.0
    %5982 = vmatpush1.msra.mxu0 0.0
    %5983 = vmatprep.subr.mxu0 0.0
    %5984 = vmatpush1.msra.mxu0 0.0
    %5985 = vmatprep.subr.mxu0 0.0
    %5986 = vmatpush1.msra.mxu0 0.0
    %5987 = vmatprep.subr.mxu0 0.0
    %5988 = vmatpush1.msra.mxu0 0.0
    %5989 = vmatprep.subr.mxu0 0.0
    %5990 = vmatpush1.msra.mxu0 0.0
    %5991 = vmatprep.subr.mxu0 0.0
    %5992 = vmatpush1.msra.mxu0 0.0
    %5993 = vmatprep.subr.mxu0 0.0
    %5994 = vmatpush1.msra.mxu0 0.0
    %5995 = vmatprep.subr.mxu0 0.0
    %5996 = vmatpush1.msra.mxu0 0.0
    %5997 = vmatprep.subr.mxu0 0.0
    %5998 = vmatpush1.msra.mxu0 0.0
    %5999 = vmatprep.subr.mxu0 0.0
    %6000 = vmatpush1.msra.mxu0 0.0
    %6001 = vmatprep.subr.mxu0 0.0
    %6002 = vmatpush1.msra.mxu0 0.0
    %6003 = vmatprep.subr.mxu0 0.0
    %6004 = vmatpush1.msra.mxu0 0.0
    %6005 = vmatprep.mubr.f32.mxu0 0.0
    %6006 = vmatmul.mubr.f32.gmra.mrb[0].mxu0 %v5397
    %v6007 = vpop.f32.mrb[0].mxu0
    %v6008 = vadd.f32 %v5375, %v6007
    %v6009 = vpop.f32.mrb[0].mxu0
    %v6010 = vadd.f32 %v5379, %v6009
    %6011 = vmatprep.mubr.f32.mxu0 0.0
    %6012 = vmatmul.mubr.f32.gmra.mrb[0].mxu0 %v5400
    %v6013 = vpop.f32.mrb[0].mxu0
    %v6014 = vadd.f32 %v5375, %v6013
    %v6015 = vpop.f32.mrb[0].mxu0
    %v6016 = vadd.f32 %v5379, %v6015
    %6017 = vdwg.mxu0
    %v6018 = vmax.f32 %v5469, 0.0
    %v6019 = vmax.f32 %v5471, 0.0
    %v6020 = vmax.f32 %v5546, 0.0
    %v6021 = vmax.f32 %v5548, 0.0
    %v6022 = vmax.f32 %v5623, 0.0
    %v6023 = vmax.f32 %v5625, 0.0
    %v6024 = vmax.f32 %v5700, 0.0
    %v6025 = vmax.f32 %v5702, 0.0
    %v6026 = vmax.f32 %v5777, 0.0
    %v6027 = vmax.f32 %v5779, 0.0
    %v6028 = vmax.f32 %v5854, 0.0
    %v6029 = vmax.f32 %v5856, 0.0
    %v6030 = vmax.f32 %v5931, 0.0
    %v6031 = vmax.f32 %v5933, 0.0
    %v6032 = vmax.f32 %v6008, 0.0
    %v6033 = vmax.f32 %v6010, 0.0
    %v6034 = vmax.f32 %v5475, 0.0
    %v6035 = vmax.f32 %v5477, 0.0
    %v6036 = vmax.f32 %v5552, 0.0
    %v6037 = vmax.f32 %v5554, 0.0
    %v6038 = vmax.f32 %v5629, 0.0
    %v6039 = vmax.f32 %v5631, 0.0
    %v6040 = vmax.f32 %v5706, 0.0
    %v6041 = vmax.f32 %v5708, 0.0
    %v6042 = vmax.f32 %v5783, 0.0
    %v6043 = vmax.f32 %v5785, 0.0
    %v6044 = vmax.f32 %v5860, 0.0
    %v6045 = vmax.f32 %v5862, 0.0
    %v6046 = vmax.f32 %v5937, 0.0
    %v6047 = vmax.f32 %v5939, 0.0
    %v6048 = vmax.f32 %v6014, 0.0
    %v6049 = vmax.f32 %v6016, 0.0
    %v6050 = vld [vmem:[%s9] sm:$0xff]
    %v6051 = vld [vmem:[%s9 + $0x8] sm:$0xff]
    %v6052 = vld [vmem:[%s9 + $0x10] sm:$0xff]
    %v6053 = vld [vmem:[%s9 + $0x18] sm:$0xff]
    %v6054 = vld [vmem:[%s9 + $0x20] sm:$0xff]
    %v6055 = vld [vmem:[%s9 + $0x28] sm:$0xff]
    %v6056 = vld [vmem:[%s9 + $0x30] sm:$0xff]
    %v6057 = vld [vmem:[%s9 + $0x38] sm:$0xff]
    %v6058 = vld [vmem:[%s9 + $0x40] sm:$0xff]
    %v6059 = vld [vmem:[%s9 + $0x48] sm:$0xff]
    %v6060 = vld [vmem:[%s9 + $0x50] sm:$0xff]
    %v6061 = vld [vmem:[%s9 + $0x58] sm:$0xff]
    %v6062 = vld [vmem:[%s9 + $0x60] sm:$0xff]
    %v6063 = vld [vmem:[%s9 + $0x68] sm:$0xff]
    %v6064 = vld [vmem:[%s9 + $0x70] sm:$0xff]
    %v6065 = vld [vmem:[%s9 + $0x78] sm:$0xff]
    %v6066 = vld [vmem:[%s9 + $0x80] sm:$0xff]
    %v6067 = vld [vmem:[%s9 + $0x88] sm:$0xff]
    %v6068 = vld [vmem:[%s9 + $0x90] sm:$0xff]
    %v6069 = vld [vmem:[%s9 + $0x98] sm:$0xff]
    %v6070 = vld [vmem:[%s9 + $0xa0] sm:$0xff]
    %v6071 = vld [vmem:[%s9 + $0xa8] sm:$0xff]
    %v6072 = vld [vmem:[%s9 + $0xb0] sm:$0xff]
    %v6073 = vld [vmem:[%s9 + $0xb8] sm:$0xff]
    %v6074 = vld [vmem:[%s9 + $0xc0] sm:$0xff]
    %v6075 = vld [vmem:[%s9 + $0xc8] sm:$0xff]
    %v6076 = vld [vmem:[%s9 + $0xd0] sm:$0xff]
    %v6077 = vld [vmem:[%s9 + $0xd8] sm:$0xff]
    %v6078 = vld [vmem:[%s9 + $0xe0] sm:$0xff]
    %v6079 = vld [vmem:[%s9 + $0xe8] sm:$0xff]
    %v6080 = vld [vmem:[%s9 + $0xf0] sm:$0xff]
    %v6081 = vld [vmem:[%s9 + $0xf8] sm:$0xff]
    %v6082 = vld [vmem:[%s9 + $0x100] sm:$0xff]
    %v6083 = vld [vmem:[%s9 + $0x108] sm:$0xff]
    %v6084 = vld [vmem:[%s9 + $0x110] sm:$0xff]
    %v6085 = vld [vmem:[%s9 + $0x118] sm:$0xff]
    %v6086 = vld [vmem:[%s9 + $0x120] sm:$0xff]
    %v6087 = vld [vmem:[%s9 + $0x128] sm:$0xff]
    %v6088 = vld [vmem:[%s9 + $0x130] sm:$0xff]
    %v6089 = vld [vmem:[%s9 + $0x138] sm:$0xff]
    %v6090 = vld [vmem:[%s9 + $0x140] sm:$0xff]
    %v6091 = vld [vmem:[%s9 + $0x148] sm:$0xff]
    %v6092 = vld [vmem:[%s9 + $0x150] sm:$0xff]
    %v6093 = vld [vmem:[%s9 + $0x158] sm:$0xff]
    %v6094 = vld [vmem:[%s9 + $0x160] sm:$0xff]
    %v6095 = vld [vmem:[%s9 + $0x168] sm:$0xff]
    %v6096 = vld [vmem:[%s9 + $0x170] sm:$0xff]
    %v6097 = vld [vmem:[%s9 + $0x178] sm:$0xff]
    %v6098 = vld [vmem:[%s9 + $0x180] sm:$0xff]
    %v6099 = vld [vmem:[%s9 + $0x188] sm:$0xff]
    %v6100 = vld [vmem:[%s9 + $0x190] sm:$0xff]
    %v6101 = vld [vmem:[%s9 + $0x198] sm:$0xff]
    %v6102 = vld [vmem:[%s9 + $0x1a0] sm:$0xff]
    %v6103 = vld [vmem:[%s9 + $0x1a8] sm:$0xff]
    %v6104 = vld [vmem:[%s9 + $0x1b0] sm:$0xff]
    %v6105 = vld [vmem:[%s9 + $0x1b8] sm:$0xff]
    %v6106 = vld [vmem:[%s9 + $0x1c0] sm:$0xff]
    %v6107 = vld [vmem:[%s9 + $0x1c8] sm:$0xff]
    %v6108 = vld [vmem:[%s9 + $0x1d0] sm:$0xff]
    %v6109 = vld [vmem:[%s9 + $0x1d8] sm:$0xff]
    %v6110 = vld [vmem:[%s9 + $0x1e0] sm:$0xff]
    %v6111 = vld [vmem:[%s9 + $0x1e8] sm:$0xff]
    %v6112 = vld [vmem:[%s9 + $0x1f0] sm:$0xff]
    %v6113 = vld [vmem:[%s9 + $0x1f8] sm:$0xff]
    %v6114 = vld [vmem:[%s9 + $0x200] sm:$0xff]
    %v6115 = vld [vmem:[%s9 + $0x208] sm:$0xff]
    %v6116 = vld [vmem:[%s9 + $0x210] sm:$0xff]
    %v6117 = vld [vmem:[%s9 + $0x218] sm:$0xff]
    %v6118 = vld [vmem:[%s9 + $0x220] sm:$0xff]
    %v6119 = vld [vmem:[%s9 + $0x228] sm:$0xff]
    %v6120 = vld [vmem:[%s9 + $0x230] sm:$0xff]
    %v6121 = vld [vmem:[%s9 + $0x238] sm:$0xff]
    %v6122 = vld [vmem:[%s9 + $0x240] sm:$0xff]
    %v6123 = vld [vmem:[%s9 + $0x248] sm:$0xff]
    %v6124 = vld [vmem:[%s9 + $0x250] sm:$0xff]
    %v6125 = vld [vmem:[%s9 + $0x258] sm:$0xff]
    %v6126 = vld [vmem:[%s9 + $0x260] sm:$0xff]
    %v6127 = vld [vmem:[%s9 + $0x268] sm:$0xff]
    %v6128 = vld [vmem:[%s9 + $0x270] sm:$0xff]
    %v6129 = vld [vmem:[%s9 + $0x278] sm:$0xff]
    %v6130 = vld [vmem:[%s9 + $0x280] sm:$0xff]
    %v6131 = vld [vmem:[%s9 + $0x288] sm:$0xff]
    %v6132 = vld [vmem:[%s9 + $0x290] sm:$0xff]
    %v6133 = vld [vmem:[%s9 + $0x298] sm:$0xff]
    %v6134 = vld [vmem:[%s9 + $0x2a0] sm:$0xff]
    %v6135 = vld [vmem:[%s9 + $0x2a8] sm:$0xff]
    %v6136 = vld [vmem:[%s9 + $0x2b0] sm:$0xff]
    %v6137 = vld [vmem:[%s9 + $0x2b8] sm:$0xff]
    %v6138 = vld [vmem:[%s9 + $0x2c0] sm:$0xff]
    %v6139 = vld [vmem:[%s9 + $0x2c8] sm:$0xff]
    %v6140 = vld [vmem:[%s9 + $0x2d0] sm:$0xff]
    %v6141 = vld [vmem:[%s9 + $0x2d8] sm:$0xff]
    %v6142 = vld [vmem:[%s9 + $0x2e0] sm:$0xff]
    %v6143 = vld [vmem:[%s9 + $0x2e8] sm:$0xff]
    %v6144 = vld [vmem:[%s9 + $0x2f0] sm:$0xff]
    %v6145 = vld [vmem:[%s9 + $0x2f8] sm:$0xff]
    %v6146 = vld [vmem:[%s9 + $0x300] sm:$0xff]
    %v6147 = vld [vmem:[%s9 + $0x308] sm:$0xff]
    %v6148 = vld [vmem:[%s9 + $0x310] sm:$0xff]
    %v6149 = vld [vmem:[%s9 + $0x318] sm:$0xff]
    %v6150 = vld [vmem:[%s9 + $0x320] sm:$0xff]
    %v6151 = vld [vmem:[%s9 + $0x328] sm:$0xff]
    %v6152 = vld [vmem:[%s9 + $0x330] sm:$0xff]
    %v6153 = vld [vmem:[%s9 + $0x338] sm:$0xff]
    %v6154 = vld [vmem:[%s9 + $0x340] sm:$0xff]
    %v6155 = vld [vmem:[%s9 + $0x348] sm:$0xff]
    %v6156 = vld [vmem:[%s9 + $0x350] sm:$0xff]
    %v6157 = vld [vmem:[%s9 + $0x358] sm:$0xff]
    %v6158 = vld [vmem:[%s9 + $0x360] sm:$0xff]
    %v6159 = vld [vmem:[%s9 + $0x368] sm:$0xff]
    %v6160 = vld [vmem:[%s9 + $0x370] sm:$0xff]
    %v6161 = vld [vmem:[%s9 + $0x378] sm:$0xff]
    %v6162 = vld [vmem:[%s9 + $0x380] sm:$0xff]
    %v6163 = vld [vmem:[%s9 + $0x388] sm:$0xff]
    %v6164 = vld [vmem:[%s9 + $0x390] sm:$0xff]
    %v6165 = vld [vmem:[%s9 + $0x398] sm:$0xff]
    %v6166 = vld [vmem:[%s9 + $0x3a0] sm:$0xff]
    %v6167 = vld [vmem:[%s9 + $0x3a8] sm:$0xff]
    %v6168 = vld [vmem:[%s9 + $0x3b0] sm:$0xff]
    %v6169 = vld [vmem:[%s9 + $0x3b8] sm:$0xff]
    %v6170 = vld [vmem:[%s9 + $0x3c0] sm:$0xff]
    %v6171 = vld [vmem:[%s9 + $0x3c8] sm:$0xff]
    %v6172 = vld [vmem:[%s9 + $0x3d0] sm:$0xff]
    %v6173 = vld [vmem:[%s9 + $0x3d8] sm:$0xff]
    %v6174 = vld [vmem:[%s9 + $0x3e0] sm:$0xff]
    %v6175 = vld [vmem:[%s9 + $0x3e8] sm:$0xff]
    %v6176 = vld [vmem:[%s9 + $0x3f0] sm:$0xff]
    %v6177 = vld [vmem:[%s9 + $0x3f8] sm:$0xff]
    %v6178 = vld [vmem:[%s9 + $0x400] sm:$0xff]
    %v6179 = vld [vmem:[%s9 + $0x408] sm:$0xff]
    %v6180 = vld [vmem:[%s9 + $0x410] sm:$0xff]
    %v6181 = vld [vmem:[%s9 + $0x418] sm:$0xff]
    %v6182 = vld [vmem:[%s9 + $0x420] sm:$0xff]
    %v6183 = vld [vmem:[%s9 + $0x428] sm:$0xff]
    %v6184 = vld [vmem:[%s9 + $0x430] sm:$0xff]
    %v6185 = vld [vmem:[%s9 + $0x438] sm:$0xff]
    %v6186 = vld [vmem:[%s9 + $0x440] sm:$0xff]
    %v6187 = vld [vmem:[%s9 + $0x448] sm:$0xff]
    %v6188 = vld [vmem:[%s9 + $0x450] sm:$0xff]
    %v6189 = vld [vmem:[%s9 + $0x458] sm:$0xff]
    %v6190 = vld [vmem:[%s9 + $0x460] sm:$0xff]
    %v6191 = vld [vmem:[%s9 + $0x468] sm:$0xff]
    %v6192 = vld [vmem:[%s9 + $0x470] sm:$0xff]
    %v6193 = vld [vmem:[%s9 + $0x478] sm:$0xff]
    %v6194 = vld [vmem:[%s9 + $0x480] sm:$0xff]
    %v6195 = vld [vmem:[%s9 + $0x488] sm:$0xff]
    %v6196 = vld [vmem:[%s9 + $0x490] sm:$0xff]
    %v6197 = vld [vmem:[%s9 + $0x498] sm:$0xff]
    %v6198 = vld [vmem:[%s9 + $0x4a0] sm:$0xff]
    %v6199 = vld [vmem:[%s9 + $0x4a8] sm:$0xff]
    %v6200 = vld [vmem:[%s9 + $0x4b0] sm:$0xff]
    %v6201 = vld [vmem:[%s9 + $0x4b8] sm:$0xff]
    %v6202 = vld [vmem:[%s9 + $0x4c0] sm:$0xff]
    %v6203 = vld [vmem:[%s9 + $0x4c8] sm:$0xff]
    %v6204 = vld [vmem:[%s9 + $0x4d0] sm:$0xff]
    %v6205 = vld [vmem:[%s9 + $0x4d8] sm:$0xff]
    %v6206 = vld [vmem:[%s9 + $0x4e0] sm:$0xff]
    %v6207 = vld [vmem:[%s9 + $0x4e8] sm:$0xff]
    %v6208 = vld [vmem:[%s9 + $0x4f0] sm:$0xff]
    %v6209 = vld [vmem:[%s9 + $0x4f8] sm:$0xff]
    %v6210 = vld [vmem:[%s9 + $0x500] sm:$0xff]
    %v6211 = vld [vmem:[%s9 + $0x508] sm:$0xff]
    %v6212 = vld [vmem:[%s9 + $0x510] sm:$0xff]
    %v6213 = vld [vmem:[%s9 + $0x518] sm:$0xff]
    %v6214 = vld [vmem:[%s9 + $0x520] sm:$0xff]
    %v6215 = vld [vmem:[%s9 + $0x528] sm:$0xff]
    %v6216 = vld [vmem:[%s9 + $0x530] sm:$0xff]
    %v6217 = vld [vmem:[%s9 + $0x538] sm:$0xff]
    %v6218 = vld [vmem:[%s9 + $0x540] sm:$0xff]
    %v6219 = vld [vmem:[%s9 + $0x548] sm:$0xff]
    %v6220 = vld [vmem:[%s9 + $0x550] sm:$0xff]
    %v6221 = vld [vmem:[%s9 + $0x558] sm:$0xff]
    %v6222 = vld [vmem:[%s9 + $0x560] sm:$0xff]
    %v6223 = vld [vmem:[%s9 + $0x568] sm:$0xff]
    %v6224 = vld [vmem:[%s9 + $0x570] sm:$0xff]
    %v6225 = vld [vmem:[%s9 + $0x578] sm:$0xff]
    %v6226 = vld [vmem:[%s9 + $0x580] sm:$0xff]
    %v6227 = vld [vmem:[%s9 + $0x588] sm:$0xff]
    %v6228 = vld [vmem:[%s9 + $0x590] sm:$0xff]
    %v6229 = vld [vmem:[%s9 + $0x598] sm:$0xff]
    %v6230 = vld [vmem:[%s9 + $0x5a0] sm:$0xff]
    %v6231 = vld [vmem:[%s9 + $0x5a8] sm:$0xff]
    %v6232 = vld [vmem:[%s9 + $0x5b0] sm:$0xff]
    %v6233 = vld [vmem:[%s9 + $0x5b8] sm:$0xff]
    %v6234 = vld [vmem:[%s9 + $0x5c0] sm:$0xff]
    %v6235 = vld [vmem:[%s9 + $0x5c8] sm:$0xff]
    %v6236 = vld [vmem:[%s9 + $0x5d0] sm:$0xff]
    %v6237 = vld [vmem:[%s9 + $0x5d8] sm:$0xff]
    %v6238 = vld [vmem:[%s9 + $0x5e0] sm:$0xff]
    %v6239 = vld [vmem:[%s9 + $0x5e8] sm:$0xff]
    %v6240 = vld [vmem:[%s9 + $0x5f0] sm:$0xff]
    %v6241 = vld [vmem:[%s9 + $0x5f8] sm:$0xff]
    %v6242 = vld [vmem:[%s9 + $0x600] sm:$0xff]
    %v6243 = vld [vmem:[%s9 + $0x608] sm:$0xff]
    %v6244 = vld [vmem:[%s9 + $0x610] sm:$0xff]
    %v6245 = vld [vmem:[%s9 + $0x618] sm:$0xff]
    %v6246 = vld [vmem:[%s9 + $0x620] sm:$0xff]
    %v6247 = vld [vmem:[%s9 + $0x628] sm:$0xff]
    %v6248 = vld [vmem:[%s9 + $0x630] sm:$0xff]
    %v6249 = vld [vmem:[%s9 + $0x638] sm:$0xff]
    %v6250 = vld [vmem:[%s9 + $0x640] sm:$0xff]
    %v6251 = vld [vmem:[%s9 + $0x648] sm:$0xff]
    %v6252 = vld [vmem:[%s9 + $0x650] sm:$0xff]
    %v6253 = vld [vmem:[%s9 + $0x658] sm:$0xff]
    %v6254 = vld [vmem:[%s9 + $0x660] sm:$0xff]
    %v6255 = vld [vmem:[%s9 + $0x668] sm:$0xff]
    %v6256 = vld [vmem:[%s9 + $0x670] sm:$0xff]
    %v6257 = vld [vmem:[%s9 + $0x678] sm:$0xff]
    %v6258 = vld [vmem:[%s9 + $0x680] sm:$0xff]
    %v6259 = vld [vmem:[%s9 + $0x688] sm:$0xff]
    %v6260 = vld [vmem:[%s9 + $0x690] sm:$0xff]
    %v6261 = vld [vmem:[%s9 + $0x698] sm:$0xff]
    %v6262 = vld [vmem:[%s9 + $0x6a0] sm:$0xff]
    %v6263 = vld [vmem:[%s9 + $0x6a8] sm:$0xff]
    %v6264 = vld [vmem:[%s9 + $0x6b0] sm:$0xff]
    %v6265 = vld [vmem:[%s9 + $0x6b8] sm:$0xff]
    %v6266 = vld [vmem:[%s9 + $0x6c0] sm:$0xff]
    %v6267 = vld [vmem:[%s9 + $0x6c8] sm:$0xff]
    %v6268 = vld [vmem:[%s9 + $0x6d0] sm:$0xff]
    %v6269 = vld [vmem:[%s9 + $0x6d8] sm:$0xff]
    %v6270 = vld [vmem:[%s9 + $0x6e0] sm:$0xff]
    %v6271 = vld [vmem:[%s9 + $0x6e8] sm:$0xff]
    %v6272 = vld [vmem:[%s9 + $0x6f0] sm:$0xff]
    %v6273 = vld [vmem:[%s9 + $0x6f8] sm:$0xff]
    %v6274 = vld [vmem:[%s9 + $0x700] sm:$0xff]
    %v6275 = vld [vmem:[%s9 + $0x708] sm:$0xff]
    %v6276 = vld [vmem:[%s9 + $0x710] sm:$0xff]
    %v6277 = vld [vmem:[%s9 + $0x718] sm:$0xff]
    %v6278 = vld [vmem:[%s9 + $0x720] sm:$0xff]
    %v6279 = vld [vmem:[%s9 + $0x728] sm:$0xff]
    %v6280 = vld [vmem:[%s9 + $0x730] sm:$0xff]
    %v6281 = vld [vmem:[%s9 + $0x738] sm:$0xff]
    %v6282 = vld [vmem:[%s9 + $0x740] sm:$0xff]
    %v6283 = vld [vmem:[%s9 + $0x748] sm:$0xff]
    %v6284 = vld [vmem:[%s9 + $0x750] sm:$0xff]
    %v6285 = vld [vmem:[%s9 + $0x758] sm:$0xff]
    %v6286 = vld [vmem:[%s9 + $0x760] sm:$0xff]
    %v6287 = vld [vmem:[%s9 + $0x768] sm:$0xff]
    %v6288 = vld [vmem:[%s9 + $0x770] sm:$0xff]
    %v6289 = vld [vmem:[%s9 + $0x778] sm:$0xff]
    %v6290 = vld [vmem:[%s9 + $0x780] sm:$0xff]
    %v6291 = vld [vmem:[%s9 + $0x788] sm:$0xff]
    %v6292 = vld [vmem:[%s9 + $0x790] sm:$0xff]
    %v6293 = vld [vmem:[%s9 + $0x798] sm:$0xff]
    %v6294 = vld [vmem:[%s9 + $0x7a0] sm:$0xff]
    %v6295 = vld [vmem:[%s9 + $0x7a8] sm:$0xff]
    %v6296 = vld [vmem:[%s9 + $0x7b0] sm:$0xff]
    %v6297 = vld [vmem:[%s9 + $0x7b8] sm:$0xff]
    %v6298 = vld [vmem:[%s9 + $0x7c0] sm:$0xff]
    %v6299 = vld [vmem:[%s9 + $0x7c8] sm:$0xff]
    %v6300 = vld [vmem:[%s9 + $0x7d0] sm:$0xff]
    %v6301 = vld [vmem:[%s9 + $0x7d8] sm:$0xff]
    %v6302 = vld [vmem:[%s9 + $0x7e0] sm:$0xff]
    %v6303 = vld [vmem:[%s9 + $0x7e8] sm:$0xff]
    %v6304 = vld [vmem:[%s9 + $0x7f0] sm:$0xff]
    %v6305 = vld [vmem:[%s9 + $0x7f8] sm:$0xff]
    %v6306 = vld [vmem:[%s10] sm:$0x1]
    %v6308 = vlaneseq
    %v6309 = vshrl.u32 %v6308, 7
    %v6310 = vsub.s32 0, %v6309
    %v6311 = vrot.slane %v6306, %v6310
    %6313 = vmatprep.subr.mxu0 0.0
    %6314 = vmatpush1.msra.mxu0 %v6050
    %6315 = vmatprep.subr.mxu0 0.0
    %6316 = vmatpush1.msra.mxu0 %v6051
    %6317 = vmatprep.subr.mxu0 0.0
    %6318 = vmatpush1.msra.mxu0 %v6052
    %6319 = vmatprep.subr.mxu0 0.0
    %6320 = vmatpush1.msra.mxu0 %v6053
    %6321 = vmatprep.subr.mxu0 0.0
    %6322 = vmatpush1.msra.mxu0 %v6054
    %6323 = vmatprep.subr.mxu0 0.0
    %6324 = vmatpush1.msra.mxu0 %v6055
    %6325 = vmatprep.subr.mxu0 0.0
    %6326 = vmatpush1.msra.mxu0 %v6056
    %6327 = vmatprep.subr.mxu0 0.0
    %6328 = vmatpush1.msra.mxu0 %v6057
    %6329 = vmatprep.subr.mxu0 0.0
    %6330 = vmatpush1.msra.mxu0 %v6058
    %6331 = vmatprep.subr.mxu0 0.0
    %6332 = vmatpush1.msra.mxu0 %v6059
    %6333 = vmatprep.subr.mxu0 0.0
    %6334 = vmatpush1.msra.mxu0 %v6060
    %6335 = vmatprep.subr.mxu0 0.0
    %6336 = vmatpush1.msra.mxu0 %v6061
    %6337 = vmatprep.subr.mxu0 0.0
    %6338 = vmatpush1.msra.mxu0 %v6062
    %6339 = vmatprep.subr.mxu0 0.0
    %6340 = vmatpush1.msra.mxu0 %v6063
    %6341 = vmatprep.subr.mxu0 0.0
    %6342 = vmatpush1.msra.mxu0 %v6064
    %6343 = vmatprep.subr.mxu0 0.0
    %6344 = vmatpush1.msra.mxu0 %v6065
    %6345 = vmatprep.subr.mxu0 0.0
    %6346 = vmatpush1.msra.mxu0 %v6066
    %6347 = vmatprep.subr.mxu0 0.0
    %6348 = vmatpush1.msra.mxu0 %v6067
    %6349 = vmatprep.subr.mxu0 0.0
    %6350 = vmatpush1.msra.mxu0 %v6068
    %6351 = vmatprep.subr.mxu0 0.0
    %6352 = vmatpush1.msra.mxu0 %v6069
    %6353 = vmatprep.subr.mxu0 0.0
    %6354 = vmatpush1.msra.mxu0 %v6070
    %6355 = vmatprep.subr.mxu0 0.0
    %6356 = vmatpush1.msra.mxu0 %v6071
    %6357 = vmatprep.subr.mxu0 0.0
    %6358 = vmatpush1.msra.mxu0 %v6072
    %6359 = vmatprep.subr.mxu0 0.0
    %6360 = vmatpush1.msra.mxu0 %v6073
    %6361 = vmatprep.subr.mxu0 0.0
    %6362 = vmatpush1.msra.mxu0 %v6074
    %6363 = vmatprep.subr.mxu0 0.0
    %6364 = vmatpush1.msra.mxu0 %v6075
    %6365 = vmatprep.subr.mxu0 0.0
    %6366 = vmatpush1.msra.mxu0 %v6076
    %6367 = vmatprep.subr.mxu0 0.0
    %6368 = vmatpush1.msra.mxu0 %v6077
    %6369 = vmatprep.subr.mxu0 0.0
    %6370 = vmatpush1.msra.mxu0 %v6078
    %6371 = vmatprep.subr.mxu0 0.0
    %6372 = vmatpush1.msra.mxu0 %v6079
    %6373 = vmatprep.subr.mxu0 0.0
    %6374 = vmatpush1.msra.mxu0 %v6080
    %6375 = vmatprep.subr.mxu0 0.0
    %6376 = vmatpush1.msra.mxu0 %v6081
    %6377 = vmatprep.mubr.f32.mxu0 %v6019
    %6378 = vmatmul.mubr.f32.gmra.mrb[0].mxu0 %v6018
    %v6379 = vpop.f32.mrb[0].mxu0
    %v6380 = vadd.f32 %v6311, %v6379
    %v6381 = vpop.f32.mrb[0].mxu0
    %6382 = vmatprep.mubr.f32.mxu0 %v6035
    %6383 = vmatmul.mubr.f32.gmra.mrb[0].mxu0 %v6034
    %v6384 = vpop.f32.mrb[0].mxu0
    %v6385 = vadd.f32 %v6311, %v6384
    %v6386 = vpop.f32.mrb[0].mxu0
    %6387 = vdwg.mxu0
    %6388 = vmatprep.subr.mxu0 0.0
    %6389 = vmatpush1.msra.mxu0 %v6082
    %6390 = vmatprep.subr.mxu0 0.0
    %6391 = vmatpush1.msra.mxu0 %v6083
    %6392 = vmatprep.subr.mxu0 0.0
    %6393 = vmatpush1.msra.mxu0 %v6084
    %6394 = vmatprep.subr.mxu0 0.0
    %6395 = vmatpush1.msra.mxu0 %v6085
    %6396 = vmatprep.subr.mxu0 0.0
    %6397 = vmatpush1.msra.mxu0 %v6086
    %6398 = vmatprep.subr.mxu0 0.0
    %6399 = vmatpush1.msra.mxu0 %v6087
    %6400 = vmatprep.subr.mxu0 0.0
    %6401 = vmatpush1.msra.mxu0 %v6088
    %6402 = vmatprep.subr.mxu0 0.0
    %6403 = vmatpush1.msra.mxu0 %v6089
    %6404 = vmatprep.subr.mxu0 0.0
    %6405 = vmatpush1.msra.mxu0 %v6090
    %6406 = vmatprep.subr.mxu0 0.0
    %6407 = vmatpush1.msra.mxu0 %v6091
    %6408 = vmatprep.subr.mxu0 0.0
    %6409 = vmatpush1.msra.mxu0 %v6092
    %6410 = vmatprep.subr.mxu0 0.0
    %6411 = vmatpush1.msra.mxu0 %v6093
    %6412 = vmatprep.subr.mxu0 0.0
    %6413 = vmatpush1.msra.mxu0 %v6094
    %6414 = vmatprep.subr.mxu0 0.0
    %6415 = vmatpush1.msra.mxu0 %v6095
    %6416 = vmatprep.subr.mxu0 0.0
    %6417 = vmatpush1.msra.mxu0 %v6096
    %6418 = vmatprep.subr.mxu0 0.0
    %6419 = vmatpush1.msra.mxu0 %v6097
    %6420 = vmatprep.subr.mxu0 0.0
    %6421 = vmatpush1.msra.mxu0 %v6098
    %6422 = vmatprep.subr.mxu0 0.0
    %6423 = vmatpush1.msra.mxu0 %v6099
    %6424 = vmatprep.subr.mxu0 0.0
    %6425 = vmatpush1.msra.mxu0 %v6100
    %6426 = vmatprep.subr.mxu0 0.0
    %6427 = vmatpush1.msra.mxu0 %v6101
    %6428 = vmatprep.subr.mxu0 0.0
    %6429 = vmatpush1.msra.mxu0 %v6102
    %6430 = vmatprep.subr.mxu0 0.0
    %6431 = vmatpush1.msra.mxu0 %v6103
    %6432 = vmatprep.subr.mxu0 0.0
    %6433 = vmatpush1.msra.mxu0 %v6104
    %6434 = vmatprep.subr.mxu0 0.0
    %6435 = vmatpush1.msra.mxu0 %v6105
    %6436 = vmatprep.subr.mxu0 0.0
    %6437 = vmatpush1.msra.mxu0 %v6106
    %6438 = vmatprep.subr.mxu0 0.0
    %6439 = vmatpush1.msra.mxu0 %v6107
    %6440 = vmatprep.subr.mxu0 0.0
    %6441 = vmatpush1.msra.mxu0 %v6108
    %6442 = vmatprep.subr.mxu0 0.0
    %6443 = vmatpush1.msra.mxu0 %v6109
    %6444 = vmatprep.subr.mxu0 0.0
    %6445 = vmatpush1.msra.mxu0 %v6110
    %6446 = vmatprep.subr.mxu0 0.0
    %6447 = vmatpush1.msra.mxu0 %v6111
    %6448 = vmatprep.subr.mxu0 0.0
    %6449 = vmatpush1.msra.mxu0 %v6112
    %6450 = vmatprep.subr.mxu0 0.0
    %6451 = vmatpush1.msra.mxu0 %v6113
    %6452 = vmatprep.mubr.f32.mxu0 %v6021
    %6453 = vmatmul.mubr.f32.gmra.mrb[0].mxu0 %v6020
    %v6454 = vpop.f32.mrb[0].mxu0
    %v6455 = vadd.f32 %v6380, %v6454
    %v6456 = vpop.f32.mrb[0].mxu0
    %6457 = vmatprep.mubr.f32.mxu0 %v6037
    %6458 = vmatmul.mubr.f32.gmra.mrb[0].mxu0 %v6036
    %v6459 = vpop.f32.mrb[0].mxu0
    %v6460 = vadd.f32 %v6385, %v6459
    %v6461 = vpop.f32.mrb[0].mxu0
    %6462 = vdwg.mxu0
    %6463 = vmatprep.subr.mxu0 0.0
    %6464 = vmatpush1.msra.mxu0 %v6114
    %6465 = vmatprep.subr.mxu0 0.0
    %6466 = vmatpush1.msra.mxu0 %v6115
    %6467 = vmatprep.subr.mxu0 0.0
    %6468 = vmatpush1.msra.mxu0 %v6116
    %6469 = vmatprep.subr.mxu0 0.0
    %6470 = vmatpush1.msra.mxu0 %v6117
    %6471 = vmatprep.subr.mxu0 0.0
    %6472 = vmatpush1.msra.mxu0 %v6118
    %6473 = vmatprep.subr.mxu0 0.0
    %6474 = vmatpush1.msra.mxu0 %v6119
    %6475 = vmatprep.subr.mxu0 0.0
    %6476 = vmatpush1.msra.mxu0 %v6120
    %6477 = vmatprep.subr.mxu0 0.0
    %6478 = vmatpush1.msra.mxu0 %v6121
    %6479 = vmatprep.subr.mxu0 0.0
    %6480 = vmatpush1.msra.mxu0 %v6122
    %6481 = vmatprep.subr.mxu0 0.0
    %6482 = vmatpush1.msra.mxu0 %v6123
    %6483 = vmatprep.subr.mxu0 0.0
    %6484 = vmatpush1.msra.mxu0 %v6124
    %6485 = vmatprep.subr.mxu0 0.0
    %6486 = vmatpush1.msra.mxu0 %v6125
    %6487 = vmatprep.subr.mxu0 0.0
    %6488 = vmatpush1.msra.mxu0 %v6126
    %6489 = vmatprep.subr.mxu0 0.0
    %6490 = vmatpush1.msra.mxu0 %v6127
    %6491 = vmatprep.subr.mxu0 0.0
    %6492 = vmatpush1.msra.mxu0 %v6128
    %6493 = vmatprep.subr.mxu0 0.0
    %6494 = vmatpush1.msra.mxu0 %v6129
    %6495 = vmatprep.subr.mxu0 0.0
    %6496 = vmatpush1.msra.mxu0 %v6130
    %6497 = vmatprep.subr.mxu0 0.0
    %6498 = vmatpush1.msra.mxu0 %v6131
    %6499 = vmatprep.subr.mxu0 0.0
    %6500 = vmatpush1.msra.mxu0 %v6132
    %6501 = vmatprep.subr.mxu0 0.0
    %6502 = vmatpush1.msra.mxu0 %v6133
    %6503 = vmatprep.subr.mxu0 0.0
    %6504 = vmatpush1.msra.mxu0 %v6134
    %6505 = vmatprep.subr.mxu0 0.0
    %6506 = vmatpush1.msra.mxu0 %v6135
    %6507 = vmatprep.subr.mxu0 0.0
    %6508 = vmatpush1.msra.mxu0 %v6136
    %6509 = vmatprep.subr.mxu0 0.0
    %6510 = vmatpush1.msra.mxu0 %v6137
    %6511 = vmatprep.subr.mxu0 0.0
    %6512 = vmatpush1.msra.mxu0 %v6138
    %6513 = vmatprep.subr.mxu0 0.0
    %6514 = vmatpush1.msra.mxu0 %v6139
    %6515 = vmatprep.subr.mxu0 0.0
    %6516 = vmatpush1.msra.mxu0 %v6140
    %6517 = vmatprep.subr.mxu0 0.0
    %6518 = vmatpush1.msra.mxu0 %v6141
    %6519 = vmatprep.subr.mxu0 0.0
    %6520 = vmatpush1.msra.mxu0 %v6142
    %6521 = vmatprep.subr.mxu0 0.0
    %6522 = vmatpush1.msra.mxu0 %v6143
    %6523 = vmatprep.subr.mxu0 0.0
    %6524 = vmatpush1.msra.mxu0 %v6144
    %6525 = vmatprep.subr.mxu0 0.0
    %6526 = vmatpush1.msra.mxu0 %v6145
    %6527 = vmatprep.mubr.f32.mxu0 %v6023
    %6528 = vmatmul.mubr.f32.gmra.mrb[0].mxu0 %v6022
    %v6529 = vpop.f32.mrb[0].mxu0
    %v6530 = vadd.f32 %v6455, %v6529
    %v6531 = vpop.f32.mrb[0].mxu0
    %6532 = vmatprep.mubr.f32.mxu0 %v6039
    %6533 = vmatmul.mubr.f32.gmra.mrb[0].mxu0 %v6038
    %v6534 = vpop.f32.mrb[0].mxu0
    %v6535 = vadd.f32 %v6460, %v6534
    %v6536 = vpop.f32.mrb[0].mxu0
    %6537 = vdwg.mxu0
    %6538 = vmatprep.subr.mxu0 0.0
    %6539 = vmatpush1.msra.mxu0 %v6146
    %6540 = vmatprep.subr.mxu0 0.0
    %6541 = vmatpush1.msra.mxu0 %v6147
    %6542 = vmatprep.subr.mxu0 0.0
    %6543 = vmatpush1.msra.mxu0 %v6148
    %6544 = vmatprep.subr.mxu0 0.0
    %6545 = vmatpush1.msra.mxu0 %v6149
    %6546 = vmatprep.subr.mxu0 0.0
    %6547 = vmatpush1.msra.mxu0 %v6150
    %6548 = vmatprep.subr.mxu0 0.0
    %6549 = vmatpush1.msra.mxu0 %v6151
    %6550 = vmatprep.subr.mxu0 0.0
    %6551 = vmatpush1.msra.mxu0 %v6152
    %6552 = vmatprep.subr.mxu0 0.0
    %6553 = vmatpush1.msra.mxu0 %v6153
    %6554 = vmatprep.subr.mxu0 0.0
    %6555 = vmatpush1.msra.mxu0 %v6154
    %6556 = vmatprep.subr.mxu0 0.0
    %6557 = vmatpush1.msra.mxu0 %v6155
    %6558 = vmatprep.subr.mxu0 0.0
    %6559 = vmatpush1.msra.mxu0 %v6156
    %6560 = vmatprep.subr.mxu0 0.0
    %6561 = vmatpush1.msra.mxu0 %v6157
    %6562 = vmatprep.subr.mxu0 0.0
    %6563 = vmatpush1.msra.mxu0 %v6158
    %6564 = vmatprep.subr.mxu0 0.0
    %6565 = vmatpush1.msra.mxu0 %v6159
    %6566 = vmatprep.subr.mxu0 0.0
    %6567 = vmatpush1.msra.mxu0 %v6160
    %6568 = vmatprep.subr.mxu0 0.0
    %6569 = vmatpush1.msra.mxu0 %v6161
    %6570 = vmatprep.subr.mxu0 0.0
    %6571 = vmatpush1.msra.mxu0 %v6162
    %6572 = vmatprep.subr.mxu0 0.0
    %6573 = vmatpush1.msra.mxu0 %v6163
    %6574 = vmatprep.subr.mxu0 0.0
    %6575 = vmatpush1.msra.mxu0 %v6164
    %6576 = vmatprep.subr.mxu0 0.0
    %6577 = vmatpush1.msra.mxu0 %v6165
    %6578 = vmatprep.subr.mxu0 0.0
    %6579 = vmatpush1.msra.mxu0 %v6166
    %6580 = vmatprep.subr.mxu0 0.0
    %6581 = vmatpush1.msra.mxu0 %v6167
    %6582 = vmatprep.subr.mxu0 0.0
    %6583 = vmatpush1.msra.mxu0 %v6168
    %6584 = vmatprep.subr.mxu0 0.0
    %6585 = vmatpush1.msra.mxu0 %v6169
    %6586 = vmatprep.subr.mxu0 0.0
    %6587 = vmatpush1.msra.mxu0 %v6170
    %6588 = vmatprep.subr.mxu0 0.0
    %6589 = vmatpush1.msra.mxu0 %v6171
    %6590 = vmatprep.subr.mxu0 0.0
    %6591 = vmatpush1.msra.mxu0 %v6172
    %6592 = vmatprep.subr.mxu0 0.0
    %6593 = vmatpush1.msra.mxu0 %v6173
    %6594 = vmatprep.subr.mxu0 0.0
    %6595 = vmatpush1.msra.mxu0 %v6174
    %6596 = vmatprep.subr.mxu0 0.0
    %6597 = vmatpush1.msra.mxu0 %v6175
    %6598 = vmatprep.subr.mxu0 0.0
    %6599 = vmatpush1.msra.mxu0 %v6176
    %6600 = vmatprep.subr.mxu0 0.0
    %6601 = vmatpush1.msra.mxu0 %v6177
    %6602 = vmatprep.mubr.f32.mxu0 %v6025
    %6603 = vmatmul.mubr.f32.gmra.mrb[0].mxu0 %v6024
    %v6604 = vpop.f32.mrb[0].mxu0
    %v6605 = vadd.f32 %v6530, %v6604
    %v6606 = vpop.f32.mrb[0].mxu0
    %6607 = vmatprep.mubr.f32.mxu0 %v6041
    %6608 = vmatmul.mubr.f32.gmra.mrb[0].mxu0 %v6040
    %v6609 = vpop.f32.mrb[0].mxu0
    %v6610 = vadd.f32 %v6535, %v6609
    %v6611 = vpop.f32.mrb[0].mxu0
    %6612 = vdwg.mxu0
    %6613 = vmatprep.subr.mxu0 0.0
    %6614 = vmatpush1.msra.mxu0 %v6178
    %6615 = vmatprep.subr.mxu0 0.0
    %6616 = vmatpush1.msra.mxu0 %v6179
    %6617 = vmatprep.subr.mxu0 0.0
    %6618 = vmatpush1.msra.mxu0 %v6180
    %6619 = vmatprep.subr.mxu0 0.0
    %6620 = vmatpush1.msra.mxu0 %v6181
    %6621 = vmatprep.subr.mxu0 0.0
    %6622 = vmatpush1.msra.mxu0 %v6182
    %6623 = vmatprep.subr.mxu0 0.0
    %6624 = vmatpush1.msra.mxu0 %v6183
    %6625 = vmatprep.subr.mxu0 0.0
    %6626 = vmatpush1.msra.mxu0 %v6184
    %6627 = vmatprep.subr.mxu0 0.0
    %6628 = vmatpush1.msra.mxu0 %v6185
    %6629 = vmatprep.subr.mxu0 0.0
    %6630 = vmatpush1.msra.mxu0 %v6186
    %6631 = vmatprep.subr.mxu0 0.0
    %6632 = vmatpush1.msra.mxu0 %v6187
    %6633 = vmatprep.subr.mxu0 0.0
    %6634 = vmatpush1.msra.mxu0 %v6188
    %6635 = vmatprep.subr.mxu0 0.0
    %6636 = vmatpush1.msra.mxu0 %v6189
    %6637 = vmatprep.subr.mxu0 0.0
    %6638 = vmatpush1.msra.mxu0 %v6190
    %6639 = vmatprep.subr.mxu0 0.0
    %6640 = vmatpush1.msra.mxu0 %v6191
    %6641 = vmatprep.subr.mxu0 0.0
    %6642 = vmatpush1.msra.mxu0 %v6192
    %6643 = vmatprep.subr.mxu0 0.0
    %6644 = vmatpush1.msra.mxu0 %v6193
    %6645 = vmatprep.subr.mxu0 0.0
    %6646 = vmatpush1.msra.mxu0 %v6194
    %6647 = vmatprep.subr.mxu0 0.0
    %6648 = vmatpush1.msra.mxu0 %v6195
    %6649 = vmatprep.subr.mxu0 0.0
    %6650 = vmatpush1.msra.mxu0 %v6196
    %6651 = vmatprep.subr.mxu0 0.0
    %6652 = vmatpush1.msra.mxu0 %v6197
    %6653 = vmatprep.subr.mxu0 0.0
    %6654 = vmatpush1.msra.mxu0 %v6198
    %6655 = vmatprep.subr.mxu0 0.0
    %6656 = vmatpush1.msra.mxu0 %v6199
    %6657 = vmatprep.subr.mxu0 0.0
    %6658 = vmatpush1.msra.mxu0 %v6200
    %6659 = vmatprep.subr.mxu0 0.0
    %6660 = vmatpush1.msra.mxu0 %v6201
    %6661 = vmatprep.subr.mxu0 0.0
    %6662 = vmatpush1.msra.mxu0 %v6202
    %6663 = vmatprep.subr.mxu0 0.0
    %6664 = vmatpush1.msra.mxu0 %v6203
    %6665 = vmatprep.subr.mxu0 0.0
    %6666 = vmatpush1.msra.mxu0 %v6204
    %6667 = vmatprep.subr.mxu0 0.0
    %6668 = vmatpush1.msra.mxu0 %v6205
    %6669 = vmatprep.subr.mxu0 0.0
    %6670 = vmatpush1.msra.mxu0 %v6206
    %6671 = vmatprep.subr.mxu0 0.0
    %6672 = vmatpush1.msra.mxu0 %v6207
    %6673 = vmatprep.subr.mxu0 0.0
    %6674 = vmatpush1.msra.mxu0 %v6208
    %6675 = vmatprep.subr.mxu0 0.0
    %6676 = vmatpush1.msra.mxu0 %v6209
    %6677 = vmatprep.mubr.f32.mxu0 %v6027
    %6678 = vmatmul.mubr.f32.gmra.mrb[0].mxu0 %v6026
    %v6679 = vpop.f32.mrb[0].mxu0
    %v6680 = vadd.f32 %v6605, %v6679
    %v6681 = vpop.f32.mrb[0].mxu0
    %6682 = vmatprep.mubr.f32.mxu0 %v6043
    %6683 = vmatmul.mubr.f32.gmra.mrb[0].mxu0 %v6042
    %v6684 = vpop.f32.mrb[0].mxu0
    %v6685 = vadd.f32 %v6610, %v6684
    %v6686 = vpop.f32.mrb[0].mxu0
    %6687 = vdwg.mxu0
    %6688 = vmatprep.subr.mxu0 0.0
    %6689 = vmatpush1.msra.mxu0 %v6210
    %6690 = vmatprep.subr.mxu0 0.0
    %6691 = vmatpush1.msra.mxu0 %v6211
    %6692 = vmatprep.subr.mxu0 0.0
    %6693 = vmatpush1.msra.mxu0 %v6212
    %6694 = vmatprep.subr.mxu0 0.0
    %6695 = vmatpush1.msra.mxu0 %v6213
    %6696 = vmatprep.subr.mxu0 0.0
    %6697 = vmatpush1.msra.mxu0 %v6214
    %6698 = vmatprep.subr.mxu0 0.0
    %6699 = vmatpush1.msra.mxu0 %v6215
    %6700 = vmatprep.subr.mxu0 0.0
    %6701 = vmatpush1.msra.mxu0 %v6216
    %6702 = vmatprep.subr.mxu0 0.0
    %6703 = vmatpush1.msra.mxu0 %v6217
    %6704 = vmatprep.subr.mxu0 0.0
    %6705 = vmatpush1.msra.mxu0 %v6218
    %6706 = vmatprep.subr.mxu0 0.0
    %6707 = vmatpush1.msra.mxu0 %v6219
    %6708 = vmatprep.subr.mxu0 0.0
    %6709 = vmatpush1.msra.mxu0 %v6220
    %6710 = vmatprep.subr.mxu0 0.0
    %6711 = vmatpush1.msra.mxu0 %v6221
    %6712 = vmatprep.subr.mxu0 0.0
    %6713 = vmatpush1.msra.mxu0 %v6222
    %6714 = vmatprep.subr.mxu0 0.0
    %6715 = vmatpush1.msra.mxu0 %v6223
    %6716 = vmatprep.subr.mxu0 0.0
    %6717 = vmatpush1.msra.mxu0 %v6224
    %6718 = vmatprep.subr.mxu0 0.0
    %6719 = vmatpush1.msra.mxu0 %v6225
    %6720 = vmatprep.subr.mxu0 0.0
    %6721 = vmatpush1.msra.mxu0 %v6226
    %6722 = vmatprep.subr.mxu0 0.0
    %6723 = vmatpush1.msra.mxu0 %v6227
    %6724 = vmatprep.subr.mxu0 0.0
    %6725 = vmatpush1.msra.mxu0 %v6228
    %6726 = vmatprep.subr.mxu0 0.0
    %6727 = vmatpush1.msra.mxu0 %v6229
    %6728 = vmatprep.subr.mxu0 0.0
    %6729 = vmatpush1.msra.mxu0 %v6230
    %6730 = vmatprep.subr.mxu0 0.0
    %6731 = vmatpush1.msra.mxu0 %v6231
    %6732 = vmatprep.subr.mxu0 0.0
    %6733 = vmatpush1.msra.mxu0 %v6232
    %6734 = vmatprep.subr.mxu0 0.0
    %6735 = vmatpush1.msra.mxu0 %v6233
    %6736 = vmatprep.subr.mxu0 0.0
    %6737 = vmatpush1.msra.mxu0 %v6234
    %6738 = vmatprep.subr.mxu0 0.0
    %6739 = vmatpush1.msra.mxu0 %v6235
    %6740 = vmatprep.subr.mxu0 0.0
    %6741 = vmatpush1.msra.mxu0 %v6236
    %6742 = vmatprep.subr.mxu0 0.0
    %6743 = vmatpush1.msra.mxu0 %v6237
    %6744 = vmatprep.subr.mxu0 0.0
    %6745 = vmatpush1.msra.mxu0 %v6238
    %6746 = vmatprep.subr.mxu0 0.0
    %6747 = vmatpush1.msra.mxu0 %v6239
    %6748 = vmatprep.subr.mxu0 0.0
    %6749 = vmatpush1.msra.mxu0 %v6240
    %6750 = vmatprep.subr.mxu0 0.0
    %6751 = vmatpush1.msra.mxu0 %v6241
    %6752 = vmatprep.mubr.f32.mxu0 %v6029
    %6753 = vmatmul.mubr.f32.gmra.mrb[0].mxu0 %v6028
    %v6754 = vpop.f32.mrb[0].mxu0
    %v6755 = vadd.f32 %v6680, %v6754
    %v6756 = vpop.f32.mrb[0].mxu0
    %6757 = vmatprep.mubr.f32.mxu0 %v6045
    %6758 = vmatmul.mubr.f32.gmra.mrb[0].mxu0 %v6044
    %v6759 = vpop.f32.mrb[0].mxu0
    %v6760 = vadd.f32 %v6685, %v6759
    %v6761 = vpop.f32.mrb[0].mxu0
    %6762 = vdwg.mxu0
    %6763 = vmatprep.subr.mxu0 0.0
    %6764 = vmatpush1.msra.mxu0 %v6242
    %6765 = vmatprep.subr.mxu0 0.0
    %6766 = vmatpush1.msra.mxu0 %v6243
    %6767 = vmatprep.subr.mxu0 0.0
    %6768 = vmatpush1.msra.mxu0 %v6244
    %6769 = vmatprep.subr.mxu0 0.0
    %6770 = vmatpush1.msra.mxu0 %v6245
    %6771 = vmatprep.subr.mxu0 0.0
    %6772 = vmatpush1.msra.mxu0 %v6246
    %6773 = vmatprep.subr.mxu0 0.0
    %6774 = vmatpush1.msra.mxu0 %v6247
    %6775 = vmatprep.subr.mxu0 0.0
    %6776 = vmatpush1.msra.mxu0 %v6248
    %6777 = vmatprep.subr.mxu0 0.0
    %6778 = vmatpush1.msra.mxu0 %v6249
    %6779 = vmatprep.subr.mxu0 0.0
    %6780 = vmatpush1.msra.mxu0 %v6250
    %6781 = vmatprep.subr.mxu0 0.0
    %6782 = vmatpush1.msra.mxu0 %v6251
    %6783 = vmatprep.subr.mxu0 0.0
    %6784 = vmatpush1.msra.mxu0 %v6252
    %6785 = vmatprep.subr.mxu0 0.0
    %6786 = vmatpush1.msra.mxu0 %v6253
    %6787 = vmatprep.subr.mxu0 0.0
    %6788 = vmatpush1.msra.mxu0 %v6254
    %6789 = vmatprep.subr.mxu0 0.0
    %6790 = vmatpush1.msra.mxu0 %v6255
    %6791 = vmatprep.subr.mxu0 0.0
    %6792 = vmatpush1.msra.mxu0 %v6256
    %6793 = vmatprep.subr.mxu0 0.0
    %6794 = vmatpush1.msra.mxu0 %v6257
    %6795 = vmatprep.subr.mxu0 0.0
    %6796 = vmatpush1.msra.mxu0 %v6258
    %6797 = vmatprep.subr.mxu0 0.0
    %6798 = vmatpush1.msra.mxu0 %v6259
    %6799 = vmatprep.subr.mxu0 0.0
    %6800 = vmatpush1.msra.mxu0 %v6260
    %6801 = vmatprep.subr.mxu0 0.0
    %6802 = vmatpush1.msra.mxu0 %v6261
    %6803 = vmatprep.subr.mxu0 0.0
    %6804 = vmatpush1.msra.mxu0 %v6262
    %6805 = vmatprep.subr.mxu0 0.0
    %6806 = vmatpush1.msra.mxu0 %v6263
    %6807 = vmatprep.subr.mxu0 0.0
    %6808 = vmatpush1.msra.mxu0 %v6264
    %6809 = vmatprep.subr.mxu0 0.0
    %6810 = vmatpush1.msra.mxu0 %v6265
    %6811 = vmatprep.subr.mxu0 0.0
    %6812 = vmatpush1.msra.mxu0 %v6266
    %6813 = vmatprep.subr.mxu0 0.0
    %6814 = vmatpush1.msra.mxu0 %v6267
    %6815 = vmatprep.subr.mxu0 0.0
    %6816 = vmatpush1.msra.mxu0 %v6268
    %6817 = vmatprep.subr.mxu0 0.0
    %6818 = vmatpush1.msra.mxu0 %v6269
    %6819 = vmatprep.subr.mxu0 0.0
    %6820 = vmatpush1.msra.mxu0 %v6270
    %6821 = vmatprep.subr.mxu0 0.0
    %6822 = vmatpush1.msra.mxu0 %v6271
    %6823 = vmatprep.subr.mxu0 0.0
    %6824 = vmatpush1.msra.mxu0 %v6272
    %6825 = vmatprep.subr.mxu0 0.0
    %6826 = vmatpush1.msra.mxu0 %v6273
    %6827 = vmatprep.mubr.f32.mxu0 %v6031
    %6828 = vmatmul.mubr.f32.gmra.mrb[0].mxu0 %v6030
    %v6829 = vpop.f32.mrb[0].mxu0
    %v6830 = vadd.f32 %v6755, %v6829
    %v6831 = vpop.f32.mrb[0].mxu0
    %6832 = vmatprep.mubr.f32.mxu0 %v6047
    %6833 = vmatmul.mubr.f32.gmra.mrb[0].mxu0 %v6046
    %v6834 = vpop.f32.mrb[0].mxu0
    %v6835 = vadd.f32 %v6760, %v6834
    %v6836 = vpop.f32.mrb[0].mxu0
    %6837 = vdwg.mxu0
    %6838 = vmatprep.subr.mxu0 0.0
    %6839 = vmatpush1.msra.mxu0 %v6274
    %6840 = vmatprep.subr.mxu0 0.0
    %6841 = vmatpush1.msra.mxu0 %v6275
    %6842 = vmatprep.subr.mxu0 0.0
    %6843 = vmatpush1.msra.mxu0 %v6276
    %6844 = vmatprep.subr.mxu0 0.0
    %6845 = vmatpush1.msra.mxu0 %v6277
    %6846 = vmatprep.subr.mxu0 0.0
    %6847 = vmatpush1.msra.mxu0 %v6278
    %6848 = vmatprep.subr.mxu0 0.0
    %6849 = vmatpush1.msra.mxu0 %v6279
    %6850 = vmatprep.subr.mxu0 0.0
    %6851 = vmatpush1.msra.mxu0 %v6280
    %6852 = vmatprep.subr.mxu0 0.0
    %6853 = vmatpush1.msra.mxu0 %v6281
    %6854 = vmatprep.subr.mxu0 0.0
    %6855 = vmatpush1.msra.mxu0 %v6282
    %6856 = vmatprep.subr.mxu0 0.0
    %6857 = vmatpush1.msra.mxu0 %v6283
    %6858 = vmatprep.subr.mxu0 0.0
    %6859 = vmatpush1.msra.mxu0 %v6284
    %6860 = vmatprep.subr.mxu0 0.0
    %6861 = vmatpush1.msra.mxu0 %v6285
    %6862 = vmatprep.subr.mxu0 0.0
    %6863 = vmatpush1.msra.mxu0 %v6286
    %6864 = vmatprep.subr.mxu0 0.0
    %6865 = vmatpush1.msra.mxu0 %v6287
    %6866 = vmatprep.subr.mxu0 0.0
    %6867 = vmatpush1.msra.mxu0 %v6288
    %6868 = vmatprep.subr.mxu0 0.0
    %6869 = vmatpush1.msra.mxu0 %v6289
    %6870 = vmatprep.subr.mxu0 0.0
    %6871 = vmatpush1.msra.mxu0 %v6290
    %6872 = vmatprep.subr.mxu0 0.0
    %6873 = vmatpush1.msra.mxu0 %v6291
    %6874 = vmatprep.subr.mxu0 0.0
    %6875 = vmatpush1.msra.mxu0 %v6292
    %6876 = vmatprep.subr.mxu0 0.0
    %6877 = vmatpush1.msra.mxu0 %v6293
    %6878 = vmatprep.subr.mxu0 0.0
    %6879 = vmatpush1.msra.mxu0 %v6294
    %6880 = vmatprep.subr.mxu0 0.0
    %6881 = vmatpush1.msra.mxu0 %v6295
    %6882 = vmatprep.subr.mxu0 0.0
    %6883 = vmatpush1.msra.mxu0 %v6296
    %6884 = vmatprep.subr.mxu0 0.0
    %6885 = vmatpush1.msra.mxu0 %v6297
    %6886 = vmatprep.subr.mxu0 0.0
    %6887 = vmatpush1.msra.mxu0 %v6298
    %6888 = vmatprep.subr.mxu0 0.0
    %6889 = vmatpush1.msra.mxu0 %v6299
    %6890 = vmatprep.subr.mxu0 0.0
    %6891 = vmatpush1.msra.mxu0 %v6300
    %6892 = vmatprep.subr.mxu0 0.0
    %6893 = vmatpush1.msra.mxu0 %v6301
    %6894 = vmatprep.subr.mxu0 0.0
    %6895 = vmatpush1.msra.mxu0 %v6302
    %6896 = vmatprep.subr.mxu0 0.0
    %6897 = vmatpush1.msra.mxu0 %v6303
    %6898 = vmatprep.subr.mxu0 0.0
    %6899 = vmatpush1.msra.mxu0 %v6304
    %6900 = vmatprep.subr.mxu0 0.0
    %6901 = vmatpush1.msra.mxu0 %v6305
    %6902 = vmatprep.mubr.f32.mxu0 %v6033
    %6903 = vmatmul.mubr.f32.gmra.mrb[0].mxu0 %v6032
    %v6904 = vpop.f32.mrb[0].mxu0
    %v6905 = vadd.f32 %v6830, %v6904
    %v6906 = vpop.f32.mrb[0].mxu0
    %6907 = vmatprep.mubr.f32.mxu0 %v6049
    %6908 = vmatmul.mubr.f32.gmra.mrb[0].mxu0 %v6048
    %v6909 = vpop.f32.mrb[0].mxu0
    %v6910 = vadd.f32 %v6835, %v6909
    %v6911 = vpop.f32.mrb[0].mxu0
    %6912 = vdwg.mxu0
    %v6913 = vadd.f32 %v5246, %v6905
    %v6914 = vadd.f32 %v5247, %v6910
    %v6915 = vld [vmem:[%s11] sm:$0x1]
    %v6916 = vld [vmem:[%s12] sm:$0x1]
    %v6917 = vsel %vm58, %v6913, 0.0
    %6918 = vadd.xlane.f32.xlu0 %v6917
    %v6919 = vpop.xlane.xlu0 %6918
    %v6920 = vsel %vm58, %v6914, 0.0
    %6921 = vadd.xlane.f32.xlu0 %v6920
    %v6922 = vpop.xlane.xlu0 %6921
    %v6923 = vmul.f32 %v6919, %v5211
    %v6924 = vmul.f32 %v6922, %v5211
    %v6925 = vsub.f32 %v6913, %v6923
    %v6926 = vsub.f32 %v6914, %v6924
    %v6927 = vmul.f32 %v6925, %v6925
    %v6928 = vmul.f32 %v6926, %v6926
    %v6929 = vsel %vm58, %v6927, 0.0
    %6930 = vadd.xlane.f32.xlu0 %v6929
    %v6931 = vpop.xlane.xlu0 %6930
    %v6932 = vsel %vm58, %v6928, 0.0
    %6933 = vadd.xlane.f32.xlu0 %v6932
    %v6934 = vpop.xlane.xlu0 %6933
    %v6935 = vmul.f32 %v6931, %v5211
    %v6936 = vmul.f32 %v6934, %v5211
    %v6937 = vadd.f32 %v6935, 1e-05
    %v6938 = vadd.f32 %v6936, 1e-05
    %v6939 = vrsqrt.pop %v6937
    %v6940 = vrsqrt.pop %v6938
    %v6941 = vmul.f32 %v6925, %v6939
    %v6942 = vmul.f32 %v6926, %v6940
    %v6944 = vlaneseq
    %v6945 = vshrl.u32 %v6944, 7
    %v6946 = vsub.s32 0, %v6945
    %v6947 = vrot.slane %v6915, %v6946
    %v6949 = vmul.f32 %v6941, %v6947
    %v6950 = vmul.f32 %v6942, %v6947
    %v6952 = vlaneseq
    %v6953 = vshrl.u32 %v6952, 7
    %v6954 = vsub.s32 0, %v6953
    %v6955 = vrot.slane %v6916, %v6954
    %v6957 = vadd.f32 %v6949, %v6955
    %v6958 = vadd.f32 %v6950, %v6955
    %6959 = vst.msk [vmem:[#allocation2] sm:$0xff] %vm58, %v6957
    %6960 = vst.msk [vmem:[#allocation2 + $0x8] sm:$0xff] %vm58, %v6958
    // Predicated region
    $region54: #{tpu_custom_call.1} parent=1 // pred_check
      _
    $region55: #{tpu_custom_call.1} parent=1 // pred_check_branch
      %6962 = sbr.rel (0) target = $region57
    $region56: #{tpu_custom_call.1} parent=1 // pred_region
      %s6964 = ssub.s32 256, 256
      %6965 = vsyncadd [#allocation3], %s6964
      %s6966 = sshll.u32 [#allocation2], 4
      %s6967 = int_to_ptr.vmem [resolvable:$true] %s6966
      %6972 = dma.vmem_to_hbm [thread:$0]  %s6967, 256, %s13, [#allocation3], 128, 128, 8
    $region57: #{tpu_custom_call.1} parent=1 // pred_fallthru
      _
    // Predicated region
    $region58: #{tpu_custom_call.1} parent=1 // pred_check
      _
    $region59: #{tpu_custom_call.1} parent=1 // pred_check_branch
      %6974 = sbr.rel (0) target = $region61
    $region60: #{tpu_custom_call.1} parent=1 // pred_region
      %6975 = dma.done [#allocation3], 256
    $region61: #{tpu_custom_call.1} parent=1 // pred_fallthru
      _
    %6976 = vsyncpa [#allocation3], 1

</llo_original>
